<compile_context>
chip_gen: v7x
topology: tpu7x:2x2x1
jax: 0.10.0
libtpu: 0.0.40
codegen_flags: <defaults>
</compile_context>

<pallas_src>
import jax
import jax.numpy as jnp
from jax.experimental import pallas as pl
from jax.experimental.pallas import tpu as pltpu


# ---------------------------------------------------------------------------
# Pallas kernel: (batch_tile) images per grid step, whole HxW plane in VMEM.
# ---------------------------------------------------------------------------
def _inception_kernel(x_ref, wa_ref, w2_ref, w34_ref, w4c_ref, b_ref, out_ref):
    B, H, W, C = x_ref.shape                       # C == 128
    M = B * H * W
    x = x_ref[...]                                 # (B, H, W, 128) f32
    bias = b_ref[...]                              # (2, 128) f32
    col = jax.lax.broadcasted_iota(jnp.int32, (1, 1, W, 1), 2)

    # ----- fused 1x1 convs for branches 1 / 3 / 4 (one Cout=128 bf16 matmul) -
    xb = x.reshape(M, C).astype(jnp.bfloat16)
    ya = jnp.dot(xb, wa_ref[...],
                 preferred_element_type=jnp.float32) + bias[0:1, :]
    x1 = ya[:, 0:32]                               # branch-1 output (32 ch)
    # 64 lane-contiguous channels: [t3(24) | 0(8) | t4(24) | 0(8)]
    t34 = ya[:, 32:96].reshape(B, H, W, 64)

    # ----- branch 2: 3x3 maxpool (s=1, p=1); W via roll+mask, H via -inf pad -
    neg = jnp.float32(-jnp.inf)
    left = jnp.where(col == 0, neg, pltpu.roll(x, 1, axis=2))        # in[x-1]
    right = jnp.where(col == W - 1, neg, pltpu.roll(x, W - 1, axis=2))  # in[x+1]
    cmax = jnp.maximum(jnp.maximum(left, x), right)                  # (B,H,W,C)
    nrow = jnp.full((B, 1, W, C), neg, jnp.float32)
    ch = jnp.concatenate([nrow, cmax, nrow], axis=1)                 # (B,H+2,W,C)
    pooled = jnp.maximum(jnp.maximum(ch[:, 0:H], ch[:, 1:H + 1]),
                         ch[:, 2:H + 2])                             # (B,H,W,C)
    x2 = jnp.dot(pooled.reshape(M, C).astype(jnp.bfloat16), w2_ref[...],
                 preferred_element_type=jnp.float32) + bias[1:2, 0:32]

    # ----- 3x3 conv (pad 1) as 9 accumulated tap matmuls (no im2col slab) ----
    def conv3x3(inp, w_taps_ref, brow):
        b_, h_, w_, cin = inp.shape
        m = b_ * h_ * w_
        # W-shifted variants (kx = 0, 1, 2): roll on the sublane axis + zero
        # border mask, then cast to bf16 for the MXU.
        xm = jnp.where(col == 0, 0.0, pltpu.roll(inp, 1, axis=2))          # in[x-1]
        xp = jnp.where(col == w_ - 1, 0.0, pltpu.roll(inp, w_ - 1, axis=2))  # in[x+1]
        zrow = jnp.zeros((b_, 1, w_, cin), jnp.bfloat16)
        padded = [jnp.concatenate([zrow, v.astype(jnp.bfloat16), zrow], axis=1)
                  for v in (xm, inp, xp)]          # H-padded once per variant
        acc = None
        for ky in range(3):
            for kx in range(3):
                tap = padded[kx][:, ky:ky + h_].reshape(m, cin)  # aligned slice
                d = jnp.dot(tap, w_taps_ref[ky * 3 + kx],
                            preferred_element_type=jnp.float32)
                acc = d if acc is None else acc + d
        return acc + brow

    # branch-3 conv2 and branch-4 conv2 fused: Cin=64, Cout=64 per tap.
    y34 = conv3x3(t34, w34_ref, bias[1:2, 32:96])                    # (M, 64)
    x3 = y34[:, 0:32]                              # branch-3 output
    t4b = y34[:, 32:64].reshape(B, H, W, 32)       # branch-4 intermediate
    # branch-4 conv3 (Cin=32, Cout=32 per tap).
    x4 = conv3x3(t4b, w4c_ref, bias[1:2, 96:128])                    # (M, 32)

    # ----- concat (matches torch.cat dim=1) + single lane-dense store --------
    out = jnp.concatenate([x1, x2, x3, x4], axis=-1)                 # (M, 128)
    out_ref[...] = out.reshape(B, H, W, 128)


# ---------------------------------------------------------------------------
# Parameter construction (deterministic) + BN folding (eval mode).
# ---------------------------------------------------------------------------
def _make_conv_bn(key, cin, cout, ksize):
    ks = jax.random.split(key, 6)
    shape = (cin, cout) if ksize == 1 else (ksize, ksize, cin, cout)
    w = 0.1 * jax.random.normal(ks[0], shape, jnp.float32)
    conv_b = 0.1 * jax.random.normal(ks[1], (cout,), jnp.float32)
    gamma = 1.0 + 0.1 * jax.random.normal(ks[2], (cout,), jnp.float32)
    beta = 0.1 * jax.random.normal(ks[3], (cout,), jnp.float32)
    mean = 0.1 * jax.random.normal(ks[4], (cout,), jnp.float32)
    var = 0.5 + jax.nn.softplus(jax.random.normal(ks[5], (cout,), jnp.float32))
    eps = 1e-5
    scale = gamma / jnp.sqrt(var + eps)            # fold BN (eval mode)
    bias = beta + scale * (conv_b - mean)
    return w, scale, bias


def init_params(key):
    keys = jax.random.split(key, 7)
    p = {}
    p['w1'], p['s1'], p['b1'] = _make_conv_bn(keys[0], 128, 32, 1)
    p['w2'], p['s2'], p['b2'] = _make_conv_bn(keys[1], 128, 32, 1)
    p['w3a'], p['s3a'], p['b3a'] = _make_conv_bn(keys[2], 128, 24, 1)
    p['w3b'], p['s3b'], p['b3b'] = _make_conv_bn(keys[3], 24, 32, 3)
    p['w4a'], p['s4a'], p['b4a'] = _make_conv_bn(keys[4], 128, 24, 1)
    p['w4b'], p['s4b'], p['b4b'] = _make_conv_bn(keys[5], 24, 32, 3)
    p['w4c'], p['s4c'], p['b4c'] = _make_conv_bn(keys[6], 32, 32, 3)
    return p


# ---------------------------------------------------------------------------
# Weight packing (bf16): fold BN scale into conv weights.
# Fused 1x1 weight column layout (Cout axis, 128 wide):
#   [ 0:32]=w1   [32:56]=w3a  [56:64]=0  [64:88]=w4a  [88:128]=0
# Fused 3x3 taps w34 (9, 64, 64): rows 0:24 = w3b -> cols 0:32 (branch-3 out),
#   rows 32:56 = w4b -> cols 32:64 (branch-4 intermediate), rest zero.
# Bias table (2,128) f32: row0 = fused-1x1 biases, row1 = [b2 | b3b | b4b | b4c].
# ---------------------------------------------------------------------------
def _pack_params(p):
    wa = jnp.zeros((128, 128), jnp.float32)
    wa = wa.at[:, 0:32].set(p['w1'] * p['s1'][None, :])
    wa = wa.at[:, 32:56].set(p['w3a'] * p['s3a'][None, :])
    wa = wa.at[:, 64:88].set(p['w4a'] * p['s4a'][None, :])

    w2 = p['w2'] * p['s2'][None, :]                               # (128, 32)

    w34 = jnp.zeros((3, 3, 64, 64), jnp.float32)
    w34 = w34.at[:, :, 0:24, 0:32].set(p['w3b'] * p['s3b'][None, None, None, :])
    w34 = w34.at[:, :, 32:56, 32:64].set(p['w4b'] * p['s4b'][None, None, None, :])
    w34 = w34.reshape(9, 64, 64)

    w4c = (p['w4c'] * p['s4c'][None, None, None, :]).reshape(9, 32, 32)

    bias = jnp.zeros((2, 128), jnp.float32)
    bias = bias.at[0, 0:32].set(p['b1'])
    bias = bias.at[0, 32:56].set(p['b3a'])
    bias = bias.at[0, 64:88].set(p['b4a'])
    bias = bias.at[1, 0:32].set(p['b2'])
    bias = bias.at[1, 32:64].set(p['b3b'])
    bias = bias.at[1, 64:96].set(p['b4b'])
    bias = bias.at[1, 96:128].set(p['b4c'])

    return (wa.astype(jnp.bfloat16), w2.astype(jnp.bfloat16),
            w34.astype(jnp.bfloat16), w4c.astype(jnp.bfloat16), bias)


# ---------------------------------------------------------------------------
# Tiling heuristics / VMEM budget.
# ---------------------------------------------------------------------------
_TARGET_INPUT_BLOCK_BYTES = 4 << 20     # aim for ~4 MiB of input per grid step
_WORKING_BYTES_PER_PIXEL = 6 * 1024     # rough per-pixel VMEM (temps + 2x I/O)


def _vmem_capacity_bytes():
    try:
        return int(pltpu.get_tpu_info().vmem_capacity_bytes)
    except Exception:                   # pragma: no cover - conservative default
        return 64 << 20                 # v7x per-core VMEM


def _pick_batch_tile(N, H, W, pixel_budget_bytes):
    px_budget = max(H * W, pixel_budget_bytes // _WORKING_BYTES_PER_PIXEL)
    px_target = min(px_budget, _TARGET_INPUT_BLOCK_BYTES // (128 * 4))
    bt = max(1, px_target // (H * W))
    if N >= 2:                          # keep >=2 grid steps (DMA overlap, megacore)
        bt = max(1, min(bt, N // 2))
    bt = min(bt, N)
    while N % bt:
        bt -= 1
    return bt


# ---------------------------------------------------------------------------
# Wrapper: NCHW in / NCHW out (PyTorch convention).
# ---------------------------------------------------------------------------
@jax.jit
def inception_forward(x_nchw, params):
    x = jnp.transpose(x_nchw, (0, 2, 3, 1)).astype(jnp.float32)   # NHWC
    N, H, W, C = x.shape
    assert C == 128

    weights = _pack_params(params)      # (wa, w2, w34, w4c, bias)

    vmem_cap = _vmem_capacity_bytes()
    vmem_limit = min(int(0.75 * vmem_cap), 112 << 20)
    bt = _pick_batch_tile(N, H, W, vmem_limit // 2)
    # TODO(synk): add an H-strip grid axis with a 1-row halo for large H*W
    # (v7x) so a single-image batch still yields >=2 parallel grid units.

    def _w_spec(a):
        return pl.BlockSpec(a.shape, lambda n, _nd=a.ndim: (0,) * _nd)

    in_specs = ([pl.BlockSpec((bt, H, W, C), lambda n: (n, 0, 0, 0))]
                + [_w_spec(a) for a in weights])

    out = pl.pallas_call(
        _inception_kernel,
        out_shape=jax.ShapeDtypeStruct((N, H, W, 128), jnp.float32),
        grid=(N // bt,),
        in_specs=in_specs,
        out_specs=pl.BlockSpec((bt, H, W, 128), lambda n: (n, 0, 0, 0)),
        compiler_params=pltpu.CompilerParams(
            dimension_semantics=("parallel",),
            vmem_limit_bytes=vmem_limit),
    )(x, *weights)

    return jnp.transpose(out, (0, 3, 1, 2))                      # back to NCHW


# ---------------------------------------------------------------------------
# Pure-JAX f32 reference (uses the original un-packed weights).
# ---------------------------------------------------------------------------
def reference_forward(x_nchw, p):
    x = jnp.transpose(x_nchw, (0, 2, 3, 1)).astype(jnp.float32)
    dn = ('NHWC', 'HWIO', 'NHWC')

    def c1(x, w, s, b):
        y = jax.lax.conv_general_dilated(x, w[None, None], (1, 1), 'VALID',
                                         dimension_numbers=dn)
        return y * s + b

    def c3(x, w, s, b):
        y = jax.lax.conv_general_dilated(x, w, (1, 1), ((1, 1), (1, 1)),
                                         dimension_numbers=dn)
        return y * s + b

    def pool(x):
        return jax.lax.reduce_window(x, -jnp.inf, jax.lax.max,
                                     (1, 3, 3, 1), (1, 1, 1, 1),
                                     ((0, 0), (1, 1), (1, 1), (0, 0)))

    x1 = c1(x, p['w1'], p['s1'], p['b1'])
    x2 = c1(pool(x), p['w2'], p['s2'], p['b2'])
    x3 = c3(c1(x, p['w3a'], p['s3a'], p['b3a']), p['w3b'], p['s3b'], p['b3b'])
    t = c1(x, p['w4a'], p['s4a'], p['b4a'])
    t = c3(t, p['w4b'], p['s4b'], p['b4b'])
    x4 = c3(t, p['w4c'], p['s4c'], p['b4c'])
    out = jnp.concatenate([x1, x2, x3, x4], axis=-1)
    return jnp.transpose(out, (0, 3, 1, 2))


if __name__ == "__main__":
    key = jax.random.PRNGKey(0)
    kx, kp = jax.random.split(key)
    # NCHW input matching the PyTorch module (128 in-channels required).
    x = jax.random.normal(kx, (2, 128, 16, 16), jnp.float32)
    params = init_params(kp)

    out = inception_forward(x, params)
    out = jax.block_until_ready(out)

    ref = reference_forward(x, params)
    assert out.shape == (2, 128, 16, 16), out.shape
    scale = float(jnp.max(jnp.abs(ref)))
    err = float(jnp.max(jnp.abs(out - ref)))
    # Matmul operands are bf16 (f32 accumulation): validate with a
    # scale-relative tolerance instead of the f32 1e-3 bound.
    assert err <= 0.05 * scale + 1e-2, f"max abs err {err} (ref scale {scale})"

    print("KERNEL_OK")
</pallas_src>

<mosaic_0001>
module attributes {stable_mosaic.version = 11 : i64} {
  func.func @_inception_kernel(%arg0: i32, %arg1: memref<1x16x16x128xf32, #tpu.memory_space<vmem>>, %arg2: memref<128x128xbf16, #tpu.memory_space<vmem>>, %arg3: memref<128x32xbf16, #tpu.memory_space<vmem>>, %arg4: memref<9x64x64xbf16, #tpu.memory_space<vmem>>, %arg5: memref<9x32x32xbf16, #tpu.memory_space<vmem>>, %arg6: memref<2x128xf32, #tpu.memory_space<vmem>>, %arg7: memref<1x16x16x128xf32, #tpu.memory_space<vmem>>) attributes {dimension_semantics = [#tpu.dimension_semantics<parallel>], iteration_bounds = array<i64: 2>, scalar_prefetch = 0 : i64, scratch_operands = 0 : i64, tpu.core_type = #tpu.core_type<tc>, window_params = [{transform_indices = @transform_0, window_bounds = array<i64: 1, 16, 16, 128>}, {pipeline_mode = #tpu.pipeline_mode<synchronous>, transform_indices = @transform_1, window_bounds = array<i64: 128, 128>}, {pipeline_mode = #tpu.pipeline_mode<synchronous>, transform_indices = @transform_2, window_bounds = array<i64: 128, 32>}, {pipeline_mode = #tpu.pipeline_mode<synchronous>, transform_indices = @transform_3, window_bounds = array<i64: 9, 64, 64>}, {pipeline_mode = #tpu.pipeline_mode<synchronous>, transform_indices = @transform_4, window_bounds = array<i64: 9, 32, 32>}, {pipeline_mode = #tpu.pipeline_mode<synchronous>, transform_indices = @transform_5, window_bounds = array<i64: 2, 128>}, {transform_indices = @transform_6, window_bounds = array<i64: 1, 16, 16, 128>}]} {
    %c0 = arith.constant 0 : index
    %c0_0 = arith.constant 0 : index
    %c0_1 = arith.constant 0 : index
    %c0_2 = arith.constant 0 : index
    %0 = vector.load %arg1[%c0, %c0_0, %c0_1, %c0_2] : memref<1x16x16x128xf32, #tpu.memory_space<vmem>>, vector<1x16x16x128xf32>
    %c0_3 = arith.constant 0 : index
    %c0_4 = arith.constant 0 : index
    %1 = vector.load %arg6[%c0_3, %c0_4] : memref<2x128xf32, #tpu.memory_space<vmem>>, vector<2x128xf32>
    %2 = tpu.iota {dimensions = array<i32: 2>} : vector<1x1x16x1xi32>
    %3 = vector.shape_cast %0 : vector<1x16x16x128xf32> to vector<256x128xf32>
    %4 = arith.truncf %3 : vector<256x128xf32> to vector<256x128xbf16>
    %c0_5 = arith.constant 0 : index
    %c0_6 = arith.constant 0 : index
    %5 = vector.load %arg2[%c0_5, %c0_6] : memref<128x128xbf16, #tpu.memory_space<vmem>>, vector<128x128xbf16>
    %cst = arith.constant dense<0.000000e+00> : vector<256x128xf32>
    %6 = tpu.matmul %4, %5, %cst {dimension_numbers = #tpu.dot_dimension_numbers<[1], [0], [0], [1], [0, 0, 1, 1], [], []>} : vector<256x128xbf16>, vector<128x128xbf16>, vector<256x128xf32> -> vector<256x128xf32>
    %7 = vector.extract_strided_slice %1 {offsets = [0, 0], sizes = [1, 128], strides = [1, 1]} : vector<2x128xf32> to vector<1x128xf32>
    %8 = vector.broadcast %7 : vector<1x128xf32> to vector<256x128xf32>
    %9 = arith.addf %6, %8 : vector<256x128xf32>
    %10 = vector.extract_strided_slice %9 {offsets = [0, 0], sizes = [256, 32], strides = [1, 1]} : vector<256x128xf32> to vector<256x32xf32>
    %11 = vector.extract_strided_slice %9 {offsets = [0, 32], sizes = [256, 64], strides = [1, 1]} : vector<256x128xf32> to vector<256x64xf32>
    %12 = vector.shape_cast %11 : vector<256x64xf32> to vector<1x16x16x64xf32>
    %c0_i32 = arith.constant 0 : i32
    %13 = vector.broadcast %c0_i32 : i32 to vector<1x1x16x1xi32>
    %14 = arith.cmpi eq, %2, %13 : vector<1x1x16x1xi32>
    %c1_i32 = arith.constant 1 : i32
    %15 = tpu.dynamic_rotate %0 by %c1_i32 dim 2 : vector<1x16x16x128xf32>, i32 -> vector<1x16x16x128xf32>
    %cst_7 = arith.constant 0xFF800000 : f32
    %16 = vector.shape_cast %14 : vector<1x1x16x1xi1> to vector<1x1x16x1xi1>
    %17 = vector.broadcast %16 : vector<1x1x16x1xi1> to vector<1x16x16x128xi1>
    %18 = vector.broadcast %cst_7 : f32 to vector<1x16x16x128xf32>
    %19 = arith.select %17, %18, %15 : vector<1x16x16x128xi1>, vector<1x16x16x128xf32>
    %c15_i32 = arith.constant 15 : i32
    %20 = vector.broadcast %c15_i32 : i32 to vector<1x1x16x1xi32>
    %21 = arith.cmpi eq, %2, %20 : vector<1x1x16x1xi32>
    %c15_i32_8 = arith.constant 15 : i32
    %22 = tpu.dynamic_rotate %0 by %c15_i32_8 dim 2 : vector<1x16x16x128xf32>, i32 -> vector<1x16x16x128xf32>
    %cst_9 = arith.constant 0xFF800000 : f32
    %23 = vector.shape_cast %21 : vector<1x1x16x1xi1> to vector<1x1x16x1xi1>
    %24 = vector.broadcast %23 : vector<1x1x16x1xi1> to vector<1x16x16x128xi1>
    %25 = vector.broadcast %cst_9 : f32 to vector<1x16x16x128xf32>
    %26 = arith.select %24, %25, %22 : vector<1x16x16x128xi1>, vector<1x16x16x128xf32>
    %27 = arith.maximumf %19, %0 : vector<1x16x16x128xf32>
    %28 = arith.maximumf %27, %26 : vector<1x16x16x128xf32>
    %cst_10 = arith.constant 0xFF800000 : f32
    %29 = vector.broadcast %cst_10 : f32 to vector<1x1x16x128xf32>
    %30 = tpu.concatenate %29, %28, %29 in 1 : vector<1x1x16x128xf32>, vector<1x16x16x128xf32>, vector<1x1x16x128xf32> -> vector<1x18x16x128xf32>
    %31 = vector.extract_strided_slice %30 {offsets = [0, 0, 0, 0], sizes = [1, 16, 16, 128], strides = [1, 1, 1, 1]} : vector<1x18x16x128xf32> to vector<1x16x16x128xf32>
    %32 = vector.extract_strided_slice %30 {offsets = [0, 1, 0, 0], sizes = [1, 16, 16, 128], strides = [1, 1, 1, 1]} : vector<1x18x16x128xf32> to vector<1x16x16x128xf32>
    %33 = arith.maximumf %31, %32 : vector<1x16x16x128xf32>
    %34 = vector.extract_strided_slice %30 {offsets = [0, 2, 0, 0], sizes = [1, 16, 16, 128], strides = [1, 1, 1, 1]} : vector<1x18x16x128xf32> to vector<1x16x16x128xf32>
    %35 = arith.maximumf %33, %34 : vector<1x16x16x128xf32>
    %36 = vector.shape_cast %35 : vector<1x16x16x128xf32> to vector<256x128xf32>
    %37 = arith.truncf %36 : vector<256x128xf32> to vector<256x128xbf16>
    %c0_11 = arith.constant 0 : index
    %c0_12 = arith.constant 0 : index
    %38 = vector.load %arg3[%c0_11, %c0_12] : memref<128x32xbf16, #tpu.memory_space<vmem>>, vector<128x32xbf16>
    %cst_13 = arith.constant dense<0.000000e+00> : vector<256x32xf32>
    %39 = tpu.matmul %37, %38, %cst_13 {dimension_numbers = #tpu.dot_dimension_numbers<[1], [0], [0], [1], [0, 0, 1, 1], [], []>} : vector<256x128xbf16>, vector<128x32xbf16>, vector<256x32xf32> -> vector<256x32xf32>
    %40 = vector.extract_strided_slice %1 {offsets = [1, 0], sizes = [1, 32], strides = [1, 1]} : vector<2x128xf32> to vector<1x32xf32>
    %41 = vector.broadcast %40 : vector<1x32xf32> to vector<256x32xf32>
    %42 = arith.addf %39, %41 : vector<256x32xf32>
    %43 = vector.extract_strided_slice %1 {offsets = [1, 32], sizes = [1, 64], strides = [1, 1]} : vector<2x128xf32> to vector<1x64xf32>
    %c0_i32_14 = arith.constant 0 : i32
    %44 = vector.broadcast %c0_i32_14 : i32 to vector<1x1x16x1xi32>
    %45 = arith.cmpi eq, %2, %44 : vector<1x1x16x1xi32>
    %c1_i32_15 = arith.constant 1 : i32
    %46 = tpu.dynamic_rotate %12 by %c1_i32_15 dim 2 : vector<1x16x16x64xf32>, i32 -> vector<1x16x16x64xf32>
    %cst_16 = arith.constant 0.000000e+00 : f32
    %47 = vector.shape_cast %45 : vector<1x1x16x1xi1> to vector<1x1x16x1xi1>
    %48 = vector.broadcast %47 : vector<1x1x16x1xi1> to vector<1x16x16x64xi1>
    %49 = vector.broadcast %cst_16 : f32 to vector<1x16x16x64xf32>
    %50 = arith.select %48, %49, %46 : vector<1x16x16x64xi1>, vector<1x16x16x64xf32>
    %c15_i32_17 = arith.constant 15 : i32
    %51 = vector.broadcast %c15_i32_17 : i32 to vector<1x1x16x1xi32>
    %52 = arith.cmpi eq, %2, %51 : vector<1x1x16x1xi32>
    %c15_i32_18 = arith.constant 15 : i32
    %53 = tpu.dynamic_rotate %12 by %c15_i32_18 dim 2 : vector<1x16x16x64xf32>, i32 -> vector<1x16x16x64xf32>
    %cst_19 = arith.constant 0.000000e+00 : f32
    %54 = vector.shape_cast %52 : vector<1x1x16x1xi1> to vector<1x1x16x1xi1>
    %55 = vector.broadcast %54 : vector<1x1x16x1xi1> to vector<1x16x16x64xi1>
    %56 = vector.broadcast %cst_19 : f32 to vector<1x16x16x64xf32>
    %57 = arith.select %55, %56, %53 : vector<1x16x16x64xi1>, vector<1x16x16x64xf32>
    %cst_20 = arith.constant 0.000000e+00 : bf16
    %58 = vector.broadcast %cst_20 : bf16 to vector<1x1x16x64xbf16>
    %59 = arith.truncf %50 : vector<1x16x16x64xf32> to vector<1x16x16x64xbf16>
    %60 = tpu.concatenate %58, %59, %58 in 1 : vector<1x1x16x64xbf16>, vector<1x16x16x64xbf16>, vector<1x1x16x64xbf16> -> vector<1x18x16x64xbf16>
    %61 = arith.truncf %12 : vector<1x16x16x64xf32> to vector<1x16x16x64xbf16>
    %62 = tpu.concatenate %58, %61, %58 in 1 : vector<1x1x16x64xbf16>, vector<1x16x16x64xbf16>, vector<1x1x16x64xbf16> -> vector<1x18x16x64xbf16>
    %63 = arith.truncf %57 : vector<1x16x16x64xf32> to vector<1x16x16x64xbf16>
    %64 = tpu.concatenate %58, %63, %58 in 1 : vector<1x1x16x64xbf16>, vector<1x16x16x64xbf16>, vector<1x1x16x64xbf16> -> vector<1x18x16x64xbf16>
    %65 = vector.extract_strided_slice %60 {offsets = [0, 0, 0, 0], sizes = [1, 16, 16, 64], strides = [1, 1, 1, 1]} : vector<1x18x16x64xbf16> to vector<1x16x16x64xbf16>
    %66 = vector.shape_cast %65 : vector<1x16x16x64xbf16> to vector<256x64xbf16>
    %c0_21 = arith.constant 0 : index
    %c0_22 = arith.constant 0 : index
    %c0_23 = arith.constant 0 : index
    %67 = vector.load %arg4[%c0_21, %c0_22, %c0_23] : memref<9x64x64xbf16, #tpu.memory_space<vmem>>, vector<1x64x64xbf16>
    %68 = vector.shape_cast %67 : vector<1x64x64xbf16> to vector<64x64xbf16>
    %cst_24 = arith.constant dense<0.000000e+00> : vector<256x64xf32>
    %69 = tpu.matmul %66, %68, %cst_24 {dimension_numbers = #tpu.dot_dimension_numbers<[1], [0], [0], [1], [0, 0, 1, 1], [], []>} : vector<256x64xbf16>, vector<64x64xbf16>, vector<256x64xf32> -> vector<256x64xf32>
    %70 = vector.extract_strided_slice %62 {offsets = [0, 0, 0, 0], sizes = [1, 16, 16, 64], strides = [1, 1, 1, 1]} : vector<1x18x16x64xbf16> to vector<1x16x16x64xbf16>
    %71 = vector.shape_cast %70 : vector<1x16x16x64xbf16> to vector<256x64xbf16>
    %c1 = arith.constant 1 : index
    %c0_25 = arith.constant 0 : index
    %c0_26 = arith.constant 0 : index
    %72 = vector.load %arg4[%c1, %c0_25, %c0_26] : memref<9x64x64xbf16, #tpu.memory_space<vmem>>, vector<1x64x64xbf16>
    %73 = vector.shape_cast %72 : vector<1x64x64xbf16> to vector<64x64xbf16>
    %cst_27 = arith.constant dense<0.000000e+00> : vector<256x64xf32>
    %74 = tpu.matmul %71, %73, %cst_27 {dimension_numbers = #tpu.dot_dimension_numbers<[1], [0], [0], [1], [0, 0, 1, 1], [], []>} : vector<256x64xbf16>, vector<64x64xbf16>, vector<256x64xf32> -> vector<256x64xf32>
    %75 = arith.addf %69, %74 : vector<256x64xf32>
    %76 = vector.extract_strided_slice %64 {offsets = [0, 0, 0, 0], sizes = [1, 16, 16, 64], strides = [1, 1, 1, 1]} : vector<1x18x16x64xbf16> to vector<1x16x16x64xbf16>
    %77 = vector.shape_cast %76 : vector<1x16x16x64xbf16> to vector<256x64xbf16>
    %c2 = arith.constant 2 : index
    %c0_28 = arith.constant 0 : index
    %c0_29 = arith.constant 0 : index
    %78 = vector.load %arg4[%c2, %c0_28, %c0_29] : memref<9x64x64xbf16, #tpu.memory_space<vmem>>, vector<1x64x64xbf16>
    %79 = vector.shape_cast %78 : vector<1x64x64xbf16> to vector<64x64xbf16>
    %cst_30 = arith.constant dense<0.000000e+00> : vector<256x64xf32>
    %80 = tpu.matmul %77, %79, %cst_30 {dimension_numbers = #tpu.dot_dimension_numbers<[1], [0], [0], [1], [0, 0, 1, 1], [], []>} : vector<256x64xbf16>, vector<64x64xbf16>, vector<256x64xf32> -> vector<256x64xf32>
    %81 = arith.addf %75, %80 : vector<256x64xf32>
    %82 = vector.extract_strided_slice %60 {offsets = [0, 1, 0, 0], sizes = [1, 16, 16, 64], strides = [1, 1, 1, 1]} : vector<1x18x16x64xbf16> to vector<1x16x16x64xbf16>
    %83 = vector.shape_cast %82 : vector<1x16x16x64xbf16> to vector<256x64xbf16>
    %c3 = arith.constant 3 : index
    %c0_31 = arith.constant 0 : index
    %c0_32 = arith.constant 0 : index
    %84 = vector.load %arg4[%c3, %c0_31, %c0_32] : memref<9x64x64xbf16, #tpu.memory_space<vmem>>, vector<1x64x64xbf16>
    %85 = vector.shape_cast %84 : vector<1x64x64xbf16> to vector<64x64xbf16>
    %cst_33 = arith.constant dense<0.000000e+00> : vector<256x64xf32>
    %86 = tpu.matmul %83, %85, %cst_33 {dimension_numbers = #tpu.dot_dimension_numbers<[1], [0], [0], [1], [0, 0, 1, 1], [], []>} : vector<256x64xbf16>, vector<64x64xbf16>, vector<256x64xf32> -> vector<256x64xf32>
    %87 = arith.addf %81, %86 : vector<256x64xf32>
    %88 = vector.extract_strided_slice %62 {offsets = [0, 1, 0, 0], sizes = [1, 16, 16, 64], strides = [1, 1, 1, 1]} : vector<1x18x16x64xbf16> to vector<1x16x16x64xbf16>
    %89 = vector.shape_cast %88 : vector<1x16x16x64xbf16> to vector<256x64xbf16>
    %c4 = arith.constant 4 : index
    %c0_34 = arith.constant 0 : index
    %c0_35 = arith.constant 0 : index
    %90 = vector.load %arg4[%c4, %c0_34, %c0_35] : memref<9x64x64xbf16, #tpu.memory_space<vmem>>, vector<1x64x64xbf16>
    %91 = vector.shape_cast %90 : vector<1x64x64xbf16> to vector<64x64xbf16>
    %cst_36 = arith.constant dense<0.000000e+00> : vector<256x64xf32>
    %92 = tpu.matmul %89, %91, %cst_36 {dimension_numbers = #tpu.dot_dimension_numbers<[1], [0], [0], [1], [0, 0, 1, 1], [], []>} : vector<256x64xbf16>, vector<64x64xbf16>, vector<256x64xf32> -> vector<256x64xf32>
    %93 = arith.addf %87, %92 : vector<256x64xf32>
    %94 = vector.extract_strided_slice %64 {offsets = [0, 1, 0, 0], sizes = [1, 16, 16, 64], strides = [1, 1, 1, 1]} : vector<1x18x16x64xbf16> to vector<1x16x16x64xbf16>
    %95 = vector.shape_cast %94 : vector<1x16x16x64xbf16> to vector<256x64xbf16>
    %c5 = arith.constant 5 : index
    %c0_37 = arith.constant 0 : index
    %c0_38 = arith.constant 0 : index
    %96 = vector.load %arg4[%c5, %c0_37, %c0_38] : memref<9x64x64xbf16, #tpu.memory_space<vmem>>, vector<1x64x64xbf16>
    %97 = vector.shape_cast %96 : vector<1x64x64xbf16> to vector<64x64xbf16>
    %cst_39 = arith.constant dense<0.000000e+00> : vector<256x64xf32>
    %98 = tpu.matmul %95, %97, %cst_39 {dimension_numbers = #tpu.dot_dimension_numbers<[1], [0], [0], [1], [0, 0, 1, 1], [], []>} : vector<256x64xbf16>, vector<64x64xbf16>, vector<256x64xf32> -> vector<256x64xf32>
    %99 = arith.addf %93, %98 : vector<256x64xf32>
    %100 = vector.extract_strided_slice %60 {offsets = [0, 2, 0, 0], sizes = [1, 16, 16, 64], strides = [1, 1, 1, 1]} : vector<1x18x16x64xbf16> to vector<1x16x16x64xbf16>
    %101 = vector.shape_cast %100 : vector<1x16x16x64xbf16> to vector<256x64xbf16>
    %c6 = arith.constant 6 : index
    %c0_40 = arith.constant 0 : index
    %c0_41 = arith.constant 0 : index
    %102 = vector.load %arg4[%c6, %c0_40, %c0_41] : memref<9x64x64xbf16, #tpu.memory_space<vmem>>, vector<1x64x64xbf16>
    %103 = vector.shape_cast %102 : vector<1x64x64xbf16> to vector<64x64xbf16>
    %cst_42 = arith.constant dense<0.000000e+00> : vector<256x64xf32>
    %104 = tpu.matmul %101, %103, %cst_42 {dimension_numbers = #tpu.dot_dimension_numbers<[1], [0], [0], [1], [0, 0, 1, 1], [], []>} : vector<256x64xbf16>, vector<64x64xbf16>, vector<256x64xf32> -> vector<256x64xf32>
    %105 = arith.addf %99, %104 : vector<256x64xf32>
    %106 = vector.extract_strided_slice %62 {offsets = [0, 2, 0, 0], sizes = [1, 16, 16, 64], strides = [1, 1, 1, 1]} : vector<1x18x16x64xbf16> to vector<1x16x16x64xbf16>
    %107 = vector.shape_cast %106 : vector<1x16x16x64xbf16> to vector<256x64xbf16>
    %c7 = arith.constant 7 : index
    %c0_43 = arith.constant 0 : index
    %c0_44 = arith.constant 0 : index
    %108 = vector.load %arg4[%c7, %c0_43, %c0_44] : memref<9x64x64xbf16, #tpu.memory_space<vmem>>, vector<1x64x64xbf16>
    %109 = vector.shape_cast %108 : vector<1x64x64xbf16> to vector<64x64xbf16>
    %cst_45 = arith.constant dense<0.000000e+00> : vector<256x64xf32>
    %110 = tpu.matmul %107, %109, %cst_45 {dimension_numbers = #tpu.dot_dimension_numbers<[1], [0], [0], [1], [0, 0, 1, 1], [], []>} : vector<256x64xbf16>, vector<64x64xbf16>, vector<256x64xf32> -> vector<256x64xf32>
    %111 = arith.addf %105, %110 : vector<256x64xf32>
    %112 = vector.extract_strided_slice %64 {offsets = [0, 2, 0, 0], sizes = [1, 16, 16, 64], strides = [1, 1, 1, 1]} : vector<1x18x16x64xbf16> to vector<1x16x16x64xbf16>
    %113 = vector.shape_cast %112 : vector<1x16x16x64xbf16> to vector<256x64xbf16>
    %c8 = arith.constant 8 : index
    %c0_46 = arith.constant 0 : index
    %c0_47 = arith.constant 0 : index
    %114 = vector.load %arg4[%c8, %c0_46, %c0_47] : memref<9x64x64xbf16, #tpu.memory_space<vmem>>, vector<1x64x64xbf16>
    %115 = vector.shape_cast %114 : vector<1x64x64xbf16> to vector<64x64xbf16>
    %cst_48 = arith.constant dense<0.000000e+00> : vector<256x64xf32>
    %116 = tpu.matmul %113, %115, %cst_48 {dimension_numbers = #tpu.dot_dimension_numbers<[1], [0], [0], [1], [0, 0, 1, 1], [], []>} : vector<256x64xbf16>, vector<64x64xbf16>, vector<256x64xf32> -> vector<256x64xf32>
    %117 = arith.addf %111, %116 : vector<256x64xf32>
    %118 = vector.broadcast %43 : vector<1x64xf32> to vector<256x64xf32>
    %119 = arith.addf %117, %118 : vector<256x64xf32>
    %120 = vector.extract_strided_slice %119 {offsets = [0, 0], sizes = [256, 32], strides = [1, 1]} : vector<256x64xf32> to vector<256x32xf32>
    %121 = vector.extract_strided_slice %119 {offsets = [0, 32], sizes = [256, 32], strides = [1, 1]} : vector<256x64xf32> to vector<256x32xf32>
    %122 = vector.shape_cast %121 : vector<256x32xf32> to vector<1x16x16x32xf32>
    %123 = vector.extract_strided_slice %1 {offsets = [1, 96], sizes = [1, 32], strides = [1, 1]} : vector<2x128xf32> to vector<1x32xf32>
    %c0_i32_49 = arith.constant 0 : i32
    %124 = vector.broadcast %c0_i32_49 : i32 to vector<1x1x16x1xi32>
    %125 = arith.cmpi eq, %2, %124 : vector<1x1x16x1xi32>
    %c1_i32_50 = arith.constant 1 : i32
    %126 = tpu.dynamic_rotate %122 by %c1_i32_50 dim 2 : vector<1x16x16x32xf32>, i32 -> vector<1x16x16x32xf32>
    %cst_51 = arith.constant 0.000000e+00 : f32
    %127 = vector.shape_cast %125 : vector<1x1x16x1xi1> to vector<1x1x16x1xi1>
    %128 = vector.broadcast %127 : vector<1x1x16x1xi1> to vector<1x16x16x32xi1>
    %129 = vector.broadcast %cst_51 : f32 to vector<1x16x16x32xf32>
    %130 = arith.select %128, %129, %126 : vector<1x16x16x32xi1>, vector<1x16x16x32xf32>
    %c15_i32_52 = arith.constant 15 : i32
    %131 = vector.broadcast %c15_i32_52 : i32 to vector<1x1x16x1xi32>
    %132 = arith.cmpi eq, %2, %131 : vector<1x1x16x1xi32>
    %c15_i32_53 = arith.constant 15 : i32
    %133 = tpu.dynamic_rotate %122 by %c15_i32_53 dim 2 : vector<1x16x16x32xf32>, i32 -> vector<1x16x16x32xf32>
    %cst_54 = arith.constant 0.000000e+00 : f32
    %134 = vector.shape_cast %132 : vector<1x1x16x1xi1> to vector<1x1x16x1xi1>
    %135 = vector.broadcast %134 : vector<1x1x16x1xi1> to vector<1x16x16x32xi1>
    %136 = vector.broadcast %cst_54 : f32 to vector<1x16x16x32xf32>
    %137 = arith.select %135, %136, %133 : vector<1x16x16x32xi1>, vector<1x16x16x32xf32>
    %cst_55 = arith.constant 0.000000e+00 : bf16
    %138 = vector.broadcast %cst_55 : bf16 to vector<1x1x16x32xbf16>
    %139 = arith.truncf %130 : vector<1x16x16x32xf32> to vector<1x16x16x32xbf16>
    %140 = tpu.concatenate %138, %139, %138 in 1 : vector<1x1x16x32xbf16>, vector<1x16x16x32xbf16>, vector<1x1x16x32xbf16> -> vector<1x18x16x32xbf16>
    %141 = arith.truncf %122 : vector<1x16x16x32xf32> to vector<1x16x16x32xbf16>
    %142 = tpu.concatenate %138, %141, %138 in 1 : vector<1x1x16x32xbf16>, vector<1x16x16x32xbf16>, vector<1x1x16x32xbf16> -> vector<1x18x16x32xbf16>
    %143 = arith.truncf %137 : vector<1x16x16x32xf32> to vector<1x16x16x32xbf16>
    %144 = tpu.concatenate %138, %143, %138 in 1 : vector<1x1x16x32xbf16>, vector<1x16x16x32xbf16>, vector<1x1x16x32xbf16> -> vector<1x18x16x32xbf16>
    %145 = vector.extract_strided_slice %140 {offsets = [0, 0, 0, 0], sizes = [1, 16, 16, 32], strides = [1, 1, 1, 1]} : vector<1x18x16x32xbf16> to vector<1x16x16x32xbf16>
    %146 = vector.shape_cast %145 : vector<1x16x16x32xbf16> to vector<256x32xbf16>
    %c0_56 = arith.constant 0 : index
    %c0_57 = arith.constant 0 : index
    %c0_58 = arith.constant 0 : index
    %147 = vector.load %arg5[%c0_56, %c0_57, %c0_58] : memref<9x32x32xbf16, #tpu.memory_space<vmem>>, vector<1x32x32xbf16>
    %148 = vector.shape_cast %147 : vector<1x32x32xbf16> to vector<32x32xbf16>
    %cst_59 = arith.constant dense<0.000000e+00> : vector<256x32xf32>
    %149 = tpu.matmul %146, %148, %cst_59 {dimension_numbers = #tpu.dot_dimension_numbers<[1], [0], [0], [1], [0, 0, 1, 1], [], []>} : vector<256x32xbf16>, vector<32x32xbf16>, vector<256x32xf32> -> vector<256x32xf32>
    %150 = vector.extract_strided_slice %142 {offsets = [0, 0, 0, 0], sizes = [1, 16, 16, 32], strides = [1, 1, 1, 1]} : vector<1x18x16x32xbf16> to vector<1x16x16x32xbf16>
    %151 = vector.shape_cast %150 : vector<1x16x16x32xbf16> to vector<256x32xbf16>
    %c1_60 = arith.constant 1 : index
    %c0_61 = arith.constant 0 : index
    %c0_62 = arith.constant 0 : index
    %152 = vector.load %arg5[%c1_60, %c0_61, %c0_62] : memref<9x32x32xbf16, #tpu.memory_space<vmem>>, vector<1x32x32xbf16>
    %153 = vector.shape_cast %152 : vector<1x32x32xbf16> to vector<32x32xbf16>
    %cst_63 = arith.constant dense<0.000000e+00> : vector<256x32xf32>
    %154 = tpu.matmul %151, %153, %cst_63 {dimension_numbers = #tpu.dot_dimension_numbers<[1], [0], [0], [1], [0, 0, 1, 1], [], []>} : vector<256x32xbf16>, vector<32x32xbf16>, vector<256x32xf32> -> vector<256x32xf32>
    %155 = arith.addf %149, %154 : vector<256x32xf32>
    %156 = vector.extract_strided_slice %144 {offsets = [0, 0, 0, 0], sizes = [1, 16, 16, 32], strides = [1, 1, 1, 1]} : vector<1x18x16x32xbf16> to vector<1x16x16x32xbf16>
    %157 = vector.shape_cast %156 : vector<1x16x16x32xbf16> to vector<256x32xbf16>
    %c2_64 = arith.constant 2 : index
    %c0_65 = arith.constant 0 : index
    %c0_66 = arith.constant 0 : index
    %158 = vector.load %arg5[%c2_64, %c0_65, %c0_66] : memref<9x32x32xbf16, #tpu.memory_space<vmem>>, vector<1x32x32xbf16>
    %159 = vector.shape_cast %158 : vector<1x32x32xbf16> to vector<32x32xbf16>
    %cst_67 = arith.constant dense<0.000000e+00> : vector<256x32xf32>
    %160 = tpu.matmul %157, %159, %cst_67 {dimension_numbers = #tpu.dot_dimension_numbers<[1], [0], [0], [1], [0, 0, 1, 1], [], []>} : vector<256x32xbf16>, vector<32x32xbf16>, vector<256x32xf32> -> vector<256x32xf32>
    %161 = arith.addf %155, %160 : vector<256x32xf32>
    %162 = vector.extract_strided_slice %140 {offsets = [0, 1, 0, 0], sizes = [1, 16, 16, 32], strides = [1, 1, 1, 1]} : vector<1x18x16x32xbf16> to vector<1x16x16x32xbf16>
    %163 = vector.shape_cast %162 : vector<1x16x16x32xbf16> to vector<256x32xbf16>
    %c3_68 = arith.constant 3 : index
    %c0_69 = arith.constant 0 : index
    %c0_70 = arith.constant 0 : index
    %164 = vector.load %arg5[%c3_68, %c0_69, %c0_70] : memref<9x32x32xbf16, #tpu.memory_space<vmem>>, vector<1x32x32xbf16>
    %165 = vector.shape_cast %164 : vector<1x32x32xbf16> to vector<32x32xbf16>
    %cst_71 = arith.constant dense<0.000000e+00> : vector<256x32xf32>
    %166 = tpu.matmul %163, %165, %cst_71 {dimension_numbers = #tpu.dot_dimension_numbers<[1], [0], [0], [1], [0, 0, 1, 1], [], []>} : vector<256x32xbf16>, vector<32x32xbf16>, vector<256x32xf32> -> vector<256x32xf32>
    %167 = arith.addf %161, %166 : vector<256x32xf32>
    %168 = vector.extract_strided_slice %142 {offsets = [0, 1, 0, 0], sizes = [1, 16, 16, 32], strides = [1, 1, 1, 1]} : vector<1x18x16x32xbf16> to vector<1x16x16x32xbf16>
    %169 = vector.shape_cast %168 : vector<1x16x16x32xbf16> to vector<256x32xbf16>
    %c4_72 = arith.constant 4 : index
    %c0_73 = arith.constant 0 : index
    %c0_74 = arith.constant 0 : index
    %170 = vector.load %arg5[%c4_72, %c0_73, %c0_74] : memref<9x32x32xbf16, #tpu.memory_space<vmem>>, vector<1x32x32xbf16>
    %171 = vector.shape_cast %170 : vector<1x32x32xbf16> to vector<32x32xbf16>
    %cst_75 = arith.constant dense<0.000000e+00> : vector<256x32xf32>
    %172 = tpu.matmul %169, %171, %cst_75 {dimension_numbers = #tpu.dot_dimension_numbers<[1], [0], [0], [1], [0, 0, 1, 1], [], []>} : vector<256x32xbf16>, vector<32x32xbf16>, vector<256x32xf32> -> vector<256x32xf32>
    %173 = arith.addf %167, %172 : vector<256x32xf32>
    %174 = vector.extract_strided_slice %144 {offsets = [0, 1, 0, 0], sizes = [1, 16, 16, 32], strides = [1, 1, 1, 1]} : vector<1x18x16x32xbf16> to vector<1x16x16x32xbf16>
    %175 = vector.shape_cast %174 : vector<1x16x16x32xbf16> to vector<256x32xbf16>
    %c5_76 = arith.constant 5 : index
    %c0_77 = arith.constant 0 : index
    %c0_78 = arith.constant 0 : index
    %176 = vector.load %arg5[%c5_76, %c0_77, %c0_78] : memref<9x32x32xbf16, #tpu.memory_space<vmem>>, vector<1x32x32xbf16>
    %177 = vector.shape_cast %176 : vector<1x32x32xbf16> to vector<32x32xbf16>
    %cst_79 = arith.constant dense<0.000000e+00> : vector<256x32xf32>
    %178 = tpu.matmul %175, %177, %cst_79 {dimension_numbers = #tpu.dot_dimension_numbers<[1], [0], [0], [1], [0, 0, 1, 1], [], []>} : vector<256x32xbf16>, vector<32x32xbf16>, vector<256x32xf32> -> vector<256x32xf32>
    %179 = arith.addf %173, %178 : vector<256x32xf32>
    %180 = vector.extract_strided_slice %140 {offsets = [0, 2, 0, 0], sizes = [1, 16, 16, 32], strides = [1, 1, 1, 1]} : vector<1x18x16x32xbf16> to vector<1x16x16x32xbf16>
    %181 = vector.shape_cast %180 : vector<1x16x16x32xbf16> to vector<256x32xbf16>
    %c6_80 = arith.constant 6 : index
    %c0_81 = arith.constant 0 : index
    %c0_82 = arith.constant 0 : index
    %182 = vector.load %arg5[%c6_80, %c0_81, %c0_82] : memref<9x32x32xbf16, #tpu.memory_space<vmem>>, vector<1x32x32xbf16>
    %183 = vector.shape_cast %182 : vector<1x32x32xbf16> to vector<32x32xbf16>
    %cst_83 = arith.constant dense<0.000000e+00> : vector<256x32xf32>
    %184 = tpu.matmul %181, %183, %cst_83 {dimension_numbers = #tpu.dot_dimension_numbers<[1], [0], [0], [1], [0, 0, 1, 1], [], []>} : vector<256x32xbf16>, vector<32x32xbf16>, vector<256x32xf32> -> vector<256x32xf32>
    %185 = arith.addf %179, %184 : vector<256x32xf32>
    %186 = vector.extract_strided_slice %142 {offsets = [0, 2, 0, 0], sizes = [1, 16, 16, 32], strides = [1, 1, 1, 1]} : vector<1x18x16x32xbf16> to vector<1x16x16x32xbf16>
    %187 = vector.shape_cast %186 : vector<1x16x16x32xbf16> to vector<256x32xbf16>
    %c7_84 = arith.constant 7 : index
    %c0_85 = arith.constant 0 : index
    %c0_86 = arith.constant 0 : index
    %188 = vector.load %arg5[%c7_84, %c0_85, %c0_86] : memref<9x32x32xbf16, #tpu.memory_space<vmem>>, vector<1x32x32xbf16>
    %189 = vector.shape_cast %188 : vector<1x32x32xbf16> to vector<32x32xbf16>
    %cst_87 = arith.constant dense<0.000000e+00> : vector<256x32xf32>
    %190 = tpu.matmul %187, %189, %cst_87 {dimension_numbers = #tpu.dot_dimension_numbers<[1], [0], [0], [1], [0, 0, 1, 1], [], []>} : vector<256x32xbf16>, vector<32x32xbf16>, vector<256x32xf32> -> vector<256x32xf32>
    %191 = arith.addf %185, %190 : vector<256x32xf32>
    %192 = vector.extract_strided_slice %144 {offsets = [0, 2, 0, 0], sizes = [1, 16, 16, 32], strides = [1, 1, 1, 1]} : vector<1x18x16x32xbf16> to vector<1x16x16x32xbf16>
    %193 = vector.shape_cast %192 : vector<1x16x16x32xbf16> to vector<256x32xbf16>
    %c8_88 = arith.constant 8 : index
    %c0_89 = arith.constant 0 : index
    %c0_90 = arith.constant 0 : index
    %194 = vector.load %arg5[%c8_88, %c0_89, %c0_90] : memref<9x32x32xbf16, #tpu.memory_space<vmem>>, vector<1x32x32xbf16>
    %195 = vector.shape_cast %194 : vector<1x32x32xbf16> to vector<32x32xbf16>
    %cst_91 = arith.constant dense<0.000000e+00> : vector<256x32xf32>
    %196 = tpu.matmul %193, %195, %cst_91 {dimension_numbers = #tpu.dot_dimension_numbers<[1], [0], [0], [1], [0, 0, 1, 1], [], []>} : vector<256x32xbf16>, vector<32x32xbf16>, vector<256x32xf32> -> vector<256x32xf32>
    %197 = arith.addf %191, %196 : vector<256x32xf32>
    %198 = vector.broadcast %123 : vector<1x32xf32> to vector<256x32xf32>
    %199 = arith.addf %197, %198 : vector<256x32xf32>
    %200 = tpu.concatenate %10, %42, %120, %199 in 1 : vector<256x32xf32>, vector<256x32xf32>, vector<256x32xf32>, vector<256x32xf32> -> vector<256x128xf32>
    %201 = vector.shape_cast %200 : vector<256x128xf32> to vector<1x16x16x128xf32>
    %c0_92 = arith.constant 0 : index
    %c0_93 = arith.constant 0 : index
    %c0_94 = arith.constant 0 : index
    %c0_95 = arith.constant 0 : index
    %202 = vector.load %arg7[%c0_92, %c0_93, %c0_94, %c0_95] : memref<1x16x16x128xf32, #tpu.memory_space<vmem>>, vector<1x16x16x128xf32>
    tpu.vector_store %arg7[%c0_92, %c0_93, %c0_94, %c0_95], %201 {strides = array<i32>} : memref<1x16x16x128xf32, #tpu.memory_space<vmem>>, vector<1x16x16x128xf32>,
    return
  }
  func.func @transform_0(%arg0: i32) -> (i32, i32, i32, i32) {
    %c0_i32 = arith.constant 0 : i32
    %c0_i32_0 = arith.constant 0 : i32
    %c0_i32_1 = arith.constant 0 : i32
    %c0_i32_2 = arith.constant 0 : i32
    return %arg0, %c0_i32, %c0_i32_0, %c0_i32_1 : i32, i32, i32, i32
  }
  func.func @transform_1(%arg0: i32) -> (i32, i32) {
    %c0_i32 = arith.constant 0 : i32
    %c0_i32_0 = arith.constant 0 : i32
    %c0_i32_1 = arith.constant 0 : i32
    return %c0_i32, %c0_i32_0 : i32, i32
  }
  func.func @transform_2(%arg0: i32) -> (i32, i32) {
    %c0_i32 = arith.constant 0 : i32
    %c0_i32_0 = arith.constant 0 : i32
    %c0_i32_1 = arith.constant 0 : i32
    return %c0_i32, %c0_i32_0 : i32, i32
  }
  func.func @transform_3(%arg0: i32) -> (i32, i32, i32) {
    %c0_i32 = arith.constant 0 : i32
    %c0_i32_0 = arith.constant 0 : i32
    %c0_i32_1 = arith.constant 0 : i32
    %c0_i32_2 = arith.constant 0 : i32
    return %c0_i32, %c0_i32_0, %c0_i32_1 : i32, i32, i32
  }
  func.func @transform_4(%arg0: i32) -> (i32, i32, i32) {
    %c0_i32 = arith.constant 0 : i32
    %c0_i32_0 = arith.constant 0 : i32
    %c0_i32_1 = arith.constant 0 : i32
    %c0_i32_2 = arith.constant 0 : i32
    return %c0_i32, %c0_i32_0, %c0_i32_1 : i32, i32, i32
  }
  func.func @transform_5(%arg0: i32) -> (i32, i32) {
    %c0_i32 = arith.constant 0 : i32
    %c0_i32_0 = arith.constant 0 : i32
    %c0_i32_1 = arith.constant 0 : i32
    return %c0_i32, %c0_i32_0 : i32, i32
  }
  func.func @transform_6(%arg0: i32) -> (i32, i32, i32, i32) {
    %c0_i32 = arith.constant 0 : i32
    %c0_i32_0 = arith.constant 0 : i32
    %c0_i32_1 = arith.constant 0 : i32
    %c0_i32_2 = arith.constant 0 : i32
    return %arg0, %c0_i32, %c0_i32_0, %c0_i32_1 : i32, i32, i32, i32
  }
}

</mosaic_0001>

<llo_original>
// kernel: inception_forward.1
$region0: #{inception_forward.1}
  #allocation0 [shape = 'u32[]', space=smem, size = 0x4, offset = 0x4, fixed_abs, tag = 'smem constant byte address 0x4 - core index']
  #allocation1 [shape = 'u32[144,128]{1,0:T(1,128)}', space=vmem, size = 0x12000, scoped, tag = 'internal scratch']
  %s0 = inlined_call_operand.vmem [shape: f32[2,16,16,128], index: 0, kind: input, shape index: {}]
  %s1 = inlined_call_operand.vmem [shape: bf16[128,128], index: 1, kind: input, shape index: {}]
  %s2 = inlined_call_operand.vmem [shape: bf16[128,32], index: 2, kind: input, shape index: {}]
  %s3 = inlined_call_operand.vmem [shape: bf16[9,64,64], index: 3, kind: input, shape index: {}]
  %s4 = inlined_call_operand.vmem [shape: bf16[9,32,32], index: 4, kind: input, shape index: {}]
  %s5 = inlined_call_operand.vmem [shape: f32[2,128], index: 5, kind: input, shape index: {}]
  %s6 = inlined_call_operand.hbm [shape: f32[2,16,16,128], index: 6, kind: output, shape index: {}]
  %s7 = sld [smem:[#allocation0]]
  $region57: #{inception_forward.1} parent=0
    _
  %s9 = ssub.s32 1, %s7
  %s10 = scalar_select 0, %s9, %s7
  $region1: #{inception_forward.1} parent=0
    #allocation2 [shape = 'u8[262144]{0}', space=vmem, size = 0x40000, scoped, tag = 'output window, operand 0']
    #allocation3 [shape = 's32[2]{0}', space=sflag, size = 0x8, scoped, tag = 'scoped memory for inception_forward.1']
    %11 = vsyncpa [#allocation3], 0
    %s12 = scalar_lea.sflag [#allocation3], 1
    %13 = vsyncpa %s12, 0
    loop: start=0, step=1, limit=4
    $region2: #{inception_forward.1} parent=1 // loop_pre_header
      _
    $region3: #{inception_forward.1} parent=1 // loop_header
      %s15 = sphi 0, %s19
      %p16 = scmp.ge.s32.totalorder %s15, 4
      %s25 = sphi 0, %s27
      %s28 = sphi 0, %s25
      %s29 = sphi 0, %s28
      %s45 = sphi 0, %s29
      %s49 = sphi 0, %s49
      %s51 = sphi 0, %s49
      %s52 = sphi 0, %s51
      %s66 = sphi 0, %s52
      %s70 = sphi 0, %s70
      %s72 = sphi 0, %s70
      %s73 = sphi 0, %s72
      %s87 = sphi 0, %s73
      %s91 = sphi 0, %s91
      %s93 = sphi 0, %s91
      %s94 = sphi 0, %s93
      %s108 = sphi 0, %s94
      %s112 = sphi 0, %s112
      %s114 = sphi 0, %s112
      %s115 = sphi 0, %s114
      %s129 = sphi 0, %s115
      %s133 = sphi 0, %s133
      %s135 = sphi 0, %s133
      %s136 = sphi 0, %s135
      %s150 = sphi 0, %s136
      %s156 = sphi 0, %s158
      %s159 = sphi 0, %s156
      %s160 = sphi 0, %s159
      %s176 = sphi 0, %s160
    $region4: #{inception_forward.1} parent=1 // loop_header_branch
      %18 = sbr.rel (%p16) target = $region8
    $region5: #{inception_forward.1} parent=1 // loop_body
      %s20 = ssub.s32 %s15, 1
      %s21 = ssub.s32 %s15, 2
      %s22 = sadd.s32 %s15, 1
      %s23 = ssub.s32 %s15, %s22
      %p24 = scmp.eq.s32.totalorder %s23, 0
      %s26 = sadd.s32 %s25, 1
      %s27 = scalar_select %p24, %s25, %s26
      %p30 = pneg %p24
      %p31 = scmp.eq.s32.totalorder %s15, 1
      %p32 = por %p30, %p31
      %p33 = scmp.ne.s32.totalorder %s25, %s28
      %p34 = scmp.eq.s32.totalorder %s15, 0
      %p35 = por %p33, %p34
      %p36 = scmp.ne.s32.totalorder %s25, %s28
      %p37 = scmp.eq.s32.totalorder %s20, 1
      %p38 = por %p36, %p37
      %p39 = scmp.ne.s32.totalorder %s28, %s29
      %p40 = scmp.eq.s32.totalorder %s20, 0
      %p41 = por %p39, %p40
      %p42 = scmp.ne.s32.totalorder %s28, %s29
      %p43 = scmp.eq.s32.totalorder %s21, 1
      %p44 = por %p42, %p43
      %p46 = scmp.ne.s32.totalorder %s29, %s45
      %p47 = scmp.eq.s32.totalorder %s21, 0
      %p48 = por %p46, %p47
      %s50 = sadd.s32 %s49, 1
      %p53 = scmp.eq.s32.totalorder %s15, 1
      %p54 = scmp.ne.s32.totalorder %s49, %s51
      %p55 = scmp.eq.s32.totalorder %s15, 0
      %p56 = por %p54, %p55
      %p57 = scmp.ne.s32.totalorder %s49, %s51
      %p58 = scmp.eq.s32.totalorder %s20, 1
      %p59 = por %p57, %p58
      %p60 = scmp.ne.s32.totalorder %s51, %s52
      %p61 = scmp.eq.s32.totalorder %s20, 0
      %p62 = por %p60, %p61
      %p63 = scmp.ne.s32.totalorder %s51, %s52
      %p64 = scmp.eq.s32.totalorder %s21, 1
      %p65 = por %p63, %p64
      %p67 = scmp.ne.s32.totalorder %s52, %s66
      %p68 = scmp.eq.s32.totalorder %s21, 0
      %p69 = por %p67, %p68
      %s71 = sadd.s32 %s70, 1
      %p74 = scmp.eq.s32.totalorder %s15, 1
      %p75 = scmp.ne.s32.totalorder %s70, %s72
      %p76 = scmp.eq.s32.totalorder %s15, 0
      %p77 = por %p75, %p76
      %p78 = scmp.ne.s32.totalorder %s70, %s72
      %p79 = scmp.eq.s32.totalorder %s20, 1
      %p80 = por %p78, %p79
      %p81 = scmp.ne.s32.totalorder %s72, %s73
      %p82 = scmp.eq.s32.totalorder %s20, 0
      %p83 = por %p81, %p82
      %p84 = scmp.ne.s32.totalorder %s72, %s73
      %p85 = scmp.eq.s32.totalorder %s21, 1
      %p86 = por %p84, %p85
      %p88 = scmp.ne.s32.totalorder %s73, %s87
      %p89 = scmp.eq.s32.totalorder %s21, 0
      %p90 = por %p88, %p89
      %s92 = sadd.s32 %s91, 1
      %p95 = scmp.eq.s32.totalorder %s15, 1
      %p96 = scmp.ne.s32.totalorder %s91, %s93
      %p97 = scmp.eq.s32.totalorder %s15, 0
      %p98 = por %p96, %p97
      %p99 = scmp.ne.s32.totalorder %s91, %s93
      %p100 = scmp.eq.s32.totalorder %s20, 1
      %p101 = por %p99, %p100
      %p102 = scmp.ne.s32.totalorder %s93, %s94
      %p103 = scmp.eq.s32.totalorder %s20, 0
      %p104 = por %p102, %p103
      %p105 = scmp.ne.s32.totalorder %s93, %s94
      %p106 = scmp.eq.s32.totalorder %s21, 1
      %p107 = por %p105, %p106
      %p109 = scmp.ne.s32.totalorder %s94, %s108
      %p110 = scmp.eq.s32.totalorder %s21, 0
      %p111 = por %p109, %p110
      %s113 = sadd.s32 %s112, 1
      %p116 = scmp.eq.s32.totalorder %s15, 1
      %p117 = scmp.ne.s32.totalorder %s112, %s114
      %p118 = scmp.eq.s32.totalorder %s15, 0
      %p119 = por %p117, %p118
      %p120 = scmp.ne.s32.totalorder %s112, %s114
      %p121 = scmp.eq.s32.totalorder %s20, 1
      %p122 = por %p120, %p121
      %p123 = scmp.ne.s32.totalorder %s114, %s115
      %p124 = scmp.eq.s32.totalorder %s20, 0
      %p125 = por %p123, %p124
      %p126 = scmp.ne.s32.totalorder %s114, %s115
      %p127 = scmp.eq.s32.totalorder %s21, 1
      %p128 = por %p126, %p127
      %p130 = scmp.ne.s32.totalorder %s115, %s129
      %p131 = scmp.eq.s32.totalorder %s21, 0
      %p132 = por %p130, %p131
      %s134 = sadd.s32 %s133, 1
      %p137 = scmp.eq.s32.totalorder %s15, 1
      %p138 = scmp.ne.s32.totalorder %s133, %s135
      %p139 = scmp.eq.s32.totalorder %s15, 0
      %p140 = por %p138, %p139
      %p141 = scmp.ne.s32.totalorder %s133, %s135
      %p142 = scmp.eq.s32.totalorder %s20, 1
      %p143 = por %p141, %p142
      %p144 = scmp.ne.s32.totalorder %s135, %s136
      %p145 = scmp.eq.s32.totalorder %s20, 0
      %p146 = por %p144, %p145
      %p147 = scmp.ne.s32.totalorder %s135, %s136
      %p148 = scmp.eq.s32.totalorder %s21, 1
      %p149 = por %p147, %p148
      %p151 = scmp.ne.s32.totalorder %s136, %s150
      %p152 = scmp.eq.s32.totalorder %s21, 0
      %p153 = por %p151, %p152
      %s154 = ssub.s32 %s15, %s22
      %p155 = scmp.eq.s32.totalorder %s154, 0
      %s157 = sadd.s32 %s156, 1
      %s158 = scalar_select %p155, %s156, %s157
      %p161 = pneg %p155
      %p162 = scmp.eq.s32.totalorder %s15, 1
      %p163 = por %p161, %p162
      %p164 = scmp.ne.s32.totalorder %s156, %s159
      %p165 = scmp.eq.s32.totalorder %s15, 0
      %p166 = por %p164, %p165
      %p167 = scmp.ne.s32.totalorder %s156, %s159
      %p168 = scmp.eq.s32.totalorder %s20, 1
      %p169 = por %p167, %p168
      %p170 = scmp.ne.s32.totalorder %s159, %s160
      %p171 = scmp.eq.s32.totalorder %s20, 0
      %p172 = por %p170, %p171
      %p173 = scmp.ne.s32.totalorder %s159, %s160
      %p174 = scmp.eq.s32.totalorder %s21, 1
      %p175 = por %p173, %p174
      %p177 = scmp.ne.s32.totalorder %s160, %s176
      %p178 = scmp.eq.s32.totalorder %s21, 0
      %p179 = por %p177, %p178
      %p180 = scmp.le.s32.totalorder 1, %s15
      %p181 = scmp.lt.s32.totalorder %s15, 3
      %p182 = pnand %p180, %p181
      %p183 = pneg %p182
      // Predicated region
      $region9: #{inception_forward.1} parent=5 // pred_check
        _
      $region10: #{inception_forward.1} parent=5 // pred_check_branch
        %185 = sbr.rel (%p182) target = $region12
      $region11: #{inception_forward.1} parent=5 // pred_region
        %s186 = ssub.s32 %s15, 1
        // Predicated region
        $region13: #{inception_forward.1} parent=11 // pred_check
          %p187 = pneg %p62
        $region14: #{inception_forward.1} parent=11 // pred_check_branch
          %189 = sbr.rel (%p187) target = $region16
        $region15: #{inception_forward.1} parent=11 // pred_region
          _
        $region16: #{inception_forward.1} parent=11 // pred_fallthru
          _
        // Predicated region
        $region17: #{inception_forward.1} parent=11 // pred_check
          %p190 = pneg %p83
        $region18: #{inception_forward.1} parent=11 // pred_check_branch
          %192 = sbr.rel (%p190) target = $region20
        $region19: #{inception_forward.1} parent=11 // pred_region
          _
        $region20: #{inception_forward.1} parent=11 // pred_fallthru
          _
        // Predicated region
        $region21: #{inception_forward.1} parent=11 // pred_check
          %p193 = pneg %p104
        $region22: #{inception_forward.1} parent=11 // pred_check_branch
          %195 = sbr.rel (%p193) target = $region24
        $region23: #{inception_forward.1} parent=11 // pred_region
          _
        $region24: #{inception_forward.1} parent=11 // pred_fallthru
          _
        // Predicated region
        $region25: #{inception_forward.1} parent=11 // pred_check
          %p196 = pneg %p125
        $region26: #{inception_forward.1} parent=11 // pred_check_branch
          %198 = sbr.rel (%p196) target = $region28
        $region27: #{inception_forward.1} parent=11 // pred_region
          _
        $region28: #{inception_forward.1} parent=11 // pred_fallthru
          _
        // Predicated region
        $region29: #{inception_forward.1} parent=11 // pred_check
          %p199 = pneg %p146
        $region30: #{inception_forward.1} parent=11 // pred_check_branch
          %201 = sbr.rel (%p199) target = $region32
        $region31: #{inception_forward.1} parent=11 // pred_region
          _
        $region32: #{inception_forward.1} parent=11 // pred_fallthru
          _
      $region12: #{inception_forward.1} parent=5 // pred_fallthru
        _
      %p202 = scmp.lt.s32.totalorder %s15, 2
      // Predicated region
      $region33: #{inception_forward.1} parent=5 // pred_check
        %p203 = pneg %p202
      $region34: #{inception_forward.1} parent=5 // pred_check_branch
        %205 = sbr.rel (%p203) target = $region36
      $region35: #{inception_forward.1} parent=5 // pred_region
        // Predicated region
        $region37: #{inception_forward.1} parent=35 // pred_check
          %p206 = pneg %p35
        $region38: #{inception_forward.1} parent=35 // pred_check_branch
          %208 = sbr.rel (%p206) target = $region40
        $region39: #{inception_forward.1} parent=35 // pred_region
          %p209 = scmp.lt.s32.totalorder %s15, 1
          %s210 = scalar_select %p209, %s15, 1
          %s211 = smul.addr %s210, 32
          %s212 = smul.addr %s211, 8
          %s213 = scalar_lea.vmem %s0, %s212
        $region40: #{inception_forward.1} parent=35 // pred_fallthru
          _
      $region36: #{inception_forward.1} parent=5 // pred_fallthru
        _
      %p214 = scmp.le.s32.totalorder 1, %s15
      %p215 = scmp.lt.s32.totalorder %s15, 3
      %p216 = pnand %p214, %p215
      %p217 = pneg %p216
      // Predicated region
      $region41: #{inception_forward.1} parent=5 // pred_check
        _
      $region42: #{inception_forward.1} parent=5 // pred_check_branch
        %219 = sbr.rel (%p216) target = $region44
      $region43: #{inception_forward.1} parent=5 // pred_region
        %s220 = ssub.s32 %s15, 1
        %p221 = scmp.lt.s32.totalorder %s20, 1
        %s222 = scalar_select %p221, %s20, 1
        %s223 = smul.addr %s222, 32
        %s224 = smul.addr %s223, 8
        %s225 = scalar_lea.vmem %s0, %s224
        %p226 = pneg %p41
        %p227 = pneg %p38
        %p228 = pneg %p62
        %p229 = pneg %p59
        %p230 = pneg %p83
        %p231 = pneg %p80
        %p232 = pneg %p104
        %p233 = pneg %p101
        %p234 = pneg %p125
        %p235 = pneg %p122
        %p236 = pneg %p146
        %p237 = pneg %p143
        %p238 = pneg %p172
        %p239 = pneg %p169
        %s240 = sand.u32 %s159, 1
        %s241 = scalar_lea.sflag [#allocation3], %s240
        %s242 = sand.u32 %s159, 1
        %s243 = smul.addr %s242, 256
        %s244 = scalar_lea.vmem [#allocation2], %s243
        %p245 = scmp.lt.s32.totalorder %s20, 1
        %s246 = scalar_select %p245, %s20, 1
        %s247 = smul.addr %s246, 32
        %s248 = smul.addr %s247, 8
        %s249 = scalar_lea.vmem %s0, %s248
        %v251 = vld [vmem:[%s249] sm:$0xff]
        %v252 = vld [vmem:[%s249 + $0x8] sm:$0xff]
        %v253 = vld [vmem:[%s249 + $0x10] sm:$0xff]
        %v254 = vld [vmem:[%s249 + $0x18] sm:$0xff]
        %v255 = vld [vmem:[%s249 + $0x20] sm:$0xff]
        %v256 = vld [vmem:[%s249 + $0x28] sm:$0xff]
        %v257 = vld [vmem:[%s249 + $0x30] sm:$0xff]
        %v258 = vld [vmem:[%s249 + $0x38] sm:$0xff]
        %v259 = vld [vmem:[%s249 + $0x40] sm:$0xff]
        %v260 = vld [vmem:[%s249 + $0x48] sm:$0xff]
        %v261 = vld [vmem:[%s249 + $0x50] sm:$0xff]
        %v262 = vld [vmem:[%s249 + $0x58] sm:$0xff]
        %v263 = vld [vmem:[%s249 + $0x60] sm:$0xff]
        %v264 = vld [vmem:[%s249 + $0x68] sm:$0xff]
        %v265 = vld [vmem:[%s249 + $0x70] sm:$0xff]
        %v266 = vld [vmem:[%s249 + $0x78] sm:$0xff]
        %v267 = vld [vmem:[%s249 + $0x80] sm:$0xff]
        %v268 = vld [vmem:[%s249 + $0x88] sm:$0xff]
        %v269 = vld [vmem:[%s249 + $0x90] sm:$0xff]
        %v270 = vld [vmem:[%s249 + $0x98] sm:$0xff]
        %v271 = vld [vmem:[%s249 + $0xa0] sm:$0xff]
        %v272 = vld [vmem:[%s249 + $0xa8] sm:$0xff]
        %v273 = vld [vmem:[%s249 + $0xb0] sm:$0xff]
        %v274 = vld [vmem:[%s249 + $0xb8] sm:$0xff]
        %v275 = vld [vmem:[%s249 + $0xc0] sm:$0xff]
        %v276 = vld [vmem:[%s249 + $0xc8] sm:$0xff]
        %v277 = vld [vmem:[%s249 + $0xd0] sm:$0xff]
        %v278 = vld [vmem:[%s249 + $0xd8] sm:$0xff]
        %v279 = vld [vmem:[%s249 + $0xe0] sm:$0xff]
        %v280 = vld [vmem:[%s249 + $0xe8] sm:$0xff]
        %v281 = vld [vmem:[%s249 + $0xf0] sm:$0xff]
        %v282 = vld [vmem:[%s249 + $0xf8] sm:$0xff]
        %v283 = vld [vmem:[%s5] sm:$0x3]
        %v284 = vlaneseq
        %v285 = vshrl.u32 %v284, 7
        %v286 = vadd.s32 %v285, 8
        %v287 = vpack.c.bf16 %v252, %v251
        %v288 = vpack.c.bf16 %v254, %v253
        %v289 = vpack.c.bf16 %v256, %v255
        %v290 = vpack.c.bf16 %v258, %v257
        %v291 = vpack.c.bf16 %v260, %v259
        %v292 = vpack.c.bf16 %v262, %v261
        %v293 = vpack.c.bf16 %v264, %v263
        %v294 = vpack.c.bf16 %v266, %v265
        %v295 = vpack.c.bf16 %v268, %v267
        %v296 = vpack.c.bf16 %v270, %v269
        %v297 = vpack.c.bf16 %v272, %v271
        %v298 = vpack.c.bf16 %v274, %v273
        %v299 = vpack.c.bf16 %v276, %v275
        %v300 = vpack.c.bf16 %v278, %v277
        %v301 = vpack.c.bf16 %v280, %v279
        %v302 = vpack.c.bf16 %v282, %v281
        %v303 = vld [vmem:[%s1] sm:$0xf]
        %v304 = vld [vmem:[%s1 + $0x4] sm:$0xf]
        %v305 = vld [vmem:[%s1 + $0x8] sm:$0xf]
        %v306 = vld [vmem:[%s1 + $0xc] sm:$0xf]
        %v307 = vld [vmem:[%s1 + $0x10] sm:$0xf]
        %v308 = vld [vmem:[%s1 + $0x14] sm:$0xf]
        %v309 = vld [vmem:[%s1 + $0x18] sm:$0xf]
        %v310 = vld [vmem:[%s1 + $0x1c] sm:$0xf]
        %v311 = vld [vmem:[%s1 + $0x20] sm:$0xf]
        %v312 = vld [vmem:[%s1 + $0x24] sm:$0xf]
        %v313 = vld [vmem:[%s1 + $0x28] sm:$0xf]
        %v314 = vld [vmem:[%s1 + $0x2c] sm:$0xf]
        %v315 = vld [vmem:[%s1 + $0x30] sm:$0xf]
        %v316 = vld [vmem:[%s1 + $0x34] sm:$0xf]
        %v317 = vld [vmem:[%s1 + $0x38] sm:$0xf]
        %v318 = vld [vmem:[%s1 + $0x3c] sm:$0xf]
        %v319 = vlaneseq
        %v320 = vshrl.u32 %v319, 7
        %v321 = vsub.s32 0, %v320
        %v322 = vrot.slane %v283, %v321
        %v339 = vunpack.c.l.b16 %v303
        %v340 = vunpack.c.l.b16 %v304
        %v341 = vunpack.c.l.b16 %v305
        %v342 = vunpack.c.l.b16 %v306
        %v343 = vunpack.c.l.b16 %v307
        %v344 = vunpack.c.l.b16 %v308
        %v345 = vunpack.c.l.b16 %v309
        %v346 = vunpack.c.l.b16 %v310
        %v347 = vunpack.c.l.b16 %v311
        %v348 = vunpack.c.l.b16 %v312
        %v349 = vunpack.c.l.b16 %v313
        %v350 = vunpack.c.l.b16 %v314
        %v351 = vunpack.c.l.b16 %v315
        %v352 = vunpack.c.l.b16 %v316
        %v353 = vunpack.c.l.b16 %v317
        %v354 = vunpack.c.l.b16 %v318
        %v355 = vpack.c.b16 %v340, %v339
        %v356 = vpack.c.b16 %v342, %v341
        %v357 = vpack.c.b16 %v344, %v343
        %v358 = vpack.c.b16 %v346, %v345
        %v359 = vpack.c.b16 %v348, %v347
        %v360 = vpack.c.b16 %v350, %v349
        %v361 = vpack.c.b16 %v352, %v351
        %v362 = vpack.c.b16 %v354, %v353
        %371 = vmatprep.subr.bf16.mxu0 0
        %372 = vmatpush1.bf16.msra.mxu0 %v355
        %373 = vmatprep.subr.bf16.mxu0 0
        %374 = vmatpush1.bf16.msra.mxu0 %v356
        %375 = vmatprep.subr.bf16.mxu0 0
        %376 = vmatpush1.bf16.msra.mxu0 %v357
        %377 = vmatprep.subr.bf16.mxu0 0
        %378 = vmatpush1.bf16.msra.mxu0 %v358
        %379 = vmatprep.subr.bf16.mxu0 0
        %380 = vmatpush1.bf16.msra.mxu0 %v359
        %381 = vmatprep.subr.bf16.mxu0 0
        %382 = vmatpush1.bf16.msra.mxu0 %v360
        %383 = vmatprep.subr.bf16.mxu0 0
        %384 = vmatpush1.bf16.msra.mxu0 %v361
        %385 = vmatprep.subr.bf16.mxu0 0
        %386 = vmatpush1.bf16.msra.mxu0 %v362
        %387 = vmatprep.subr.bf16.mxu0 0
        %388 = vmatpush1.bf16.msra.mxu0 0
        %389 = vmatprep.subr.bf16.mxu0 0
        %390 = vmatpush1.bf16.msra.mxu0 0
        %391 = vmatprep.subr.bf16.mxu0 0
        %392 = vmatpush1.bf16.msra.mxu0 0
        %393 = vmatprep.subr.bf16.mxu0 0
        %394 = vmatpush1.bf16.msra.mxu0 0
        %395 = vmatprep.subr.bf16.mxu0 0
        %396 = vmatpush1.bf16.msra.mxu0 0
        %397 = vmatprep.subr.bf16.mxu0 0
        %398 = vmatpush1.bf16.msra.mxu0 0
        %399 = vmatprep.subr.bf16.mxu0 0
        %400 = vmatpush1.bf16.msra.mxu0 0
        %401 = vmatprep.subr.bf16.mxu0 0
        %402 = vmatpush1.bf16.msra.mxu0 0
        %403 = vmatprep.mubr.bf16.mxu0 0
        %404 = vmatmul.mubr.bf16.gmra.mrb[0].mxu0 %v287
        %v405 = vpop.f32.mrb[0].mxu0
        %v406 = vadd.f32 %v322, %v405
        %v407 = vpop.f32.mrb[0].mxu0
        %v408 = vpop.f32.mrb[0].mxu0
        %v409 = vadd.f32 %v322, %v408
        %v410 = vpop.f32.mrb[0].mxu0
        %411 = vmatprep.mubr.bf16.mxu0 0
        %412 = vmatmul.mubr.bf16.gmra.mrb[0].mxu0 %v288
        %v413 = vpop.f32.mrb[0].mxu0
        %v414 = vadd.f32 %v322, %v413
        %v415 = vpop.f32.mrb[0].mxu0
        %v416 = vpop.f32.mrb[0].mxu0
        %v417 = vadd.f32 %v322, %v416
        %v418 = vpop.f32.mrb[0].mxu0
        %419 = vmatprep.mubr.bf16.mxu0 0
        %420 = vmatmul.mubr.bf16.gmra.mrb[0].mxu0 %v289
        %v421 = vpop.f32.mrb[0].mxu0
        %v422 = vadd.f32 %v322, %v421
        %v423 = vpop.f32.mrb[0].mxu0
        %v424 = vpop.f32.mrb[0].mxu0
        %v425 = vadd.f32 %v322, %v424
        %v426 = vpop.f32.mrb[0].mxu0
        %427 = vmatprep.mubr.bf16.mxu0 0
        %428 = vmatmul.mubr.bf16.gmra.mrb[0].mxu0 %v290
        %v429 = vpop.f32.mrb[0].mxu0
        %v430 = vadd.f32 %v322, %v429
        %v431 = vpop.f32.mrb[0].mxu0
        %v432 = vpop.f32.mrb[0].mxu0
        %v433 = vadd.f32 %v322, %v432
        %v434 = vpop.f32.mrb[0].mxu0
        %435 = vmatprep.mubr.bf16.mxu0 0
        %436 = vmatmul.mubr.bf16.gmra.mrb[0].mxu0 %v291
        %v437 = vpop.f32.mrb[0].mxu0
        %v438 = vadd.f32 %v322, %v437
        %v439 = vpop.f32.mrb[0].mxu0
        %v440 = vpop.f32.mrb[0].mxu0
        %v441 = vadd.f32 %v322, %v440
        %v442 = vpop.f32.mrb[0].mxu0
        %443 = vmatprep.mubr.bf16.mxu0 0
        %444 = vmatmul.mubr.bf16.gmra.mrb[0].mxu0 %v292
        %v445 = vpop.f32.mrb[0].mxu0
        %v446 = vadd.f32 %v322, %v445
        %v447 = vpop.f32.mrb[0].mxu0
        %v448 = vpop.f32.mrb[0].mxu0
        %v449 = vadd.f32 %v322, %v448
        %v450 = vpop.f32.mrb[0].mxu0
        %451 = vmatprep.mubr.bf16.mxu0 0
        %452 = vmatmul.mubr.bf16.gmra.mrb[0].mxu0 %v293
        %v453 = vpop.f32.mrb[0].mxu0
        %v454 = vadd.f32 %v322, %v453
        %v455 = vpop.f32.mrb[0].mxu0
        %v456 = vpop.f32.mrb[0].mxu0
        %v457 = vadd.f32 %v322, %v456
        %v458 = vpop.f32.mrb[0].mxu0
        %459 = vmatprep.mubr.bf16.mxu0 0
        %460 = vmatmul.mubr.bf16.gmra.mrb[0].mxu0 %v294
        %v461 = vpop.f32.mrb[0].mxu0
        %v462 = vadd.f32 %v322, %v461
        %v463 = vpop.f32.mrb[0].mxu0
        %v464 = vpop.f32.mrb[0].mxu0
        %v465 = vadd.f32 %v322, %v464
        %v466 = vpop.f32.mrb[0].mxu0
        %467 = vmatprep.mubr.bf16.mxu0 0
        %468 = vmatmul.mubr.bf16.gmra.mrb[0].mxu0 %v295
        %v469 = vpop.f32.mrb[0].mxu0
        %v470 = vadd.f32 %v322, %v469
        %v471 = vpop.f32.mrb[0].mxu0
        %v472 = vpop.f32.mrb[0].mxu0
        %v473 = vadd.f32 %v322, %v472
        %v474 = vpop.f32.mrb[0].mxu0
        %475 = vmatprep.mubr.bf16.mxu0 0
        %476 = vmatmul.mubr.bf16.gmra.mrb[0].mxu0 %v296
        %v477 = vpop.f32.mrb[0].mxu0
        %v478 = vadd.f32 %v322, %v477
        %v479 = vpop.f32.mrb[0].mxu0
        %v480 = vpop.f32.mrb[0].mxu0
        %v481 = vadd.f32 %v322, %v480
        %v482 = vpop.f32.mrb[0].mxu0
        %483 = vmatprep.mubr.bf16.mxu0 0
        %484 = vmatmul.mubr.bf16.gmra.mrb[0].mxu0 %v297
        %v485 = vpop.f32.mrb[0].mxu0
        %v486 = vadd.f32 %v322, %v485
        %v487 = vpop.f32.mrb[0].mxu0
        %v488 = vpop.f32.mrb[0].mxu0
        %v489 = vadd.f32 %v322, %v488
        %v490 = vpop.f32.mrb[0].mxu0
        %491 = vmatprep.mubr.bf16.mxu0 0
        %492 = vmatmul.mubr.bf16.gmra.mrb[0].mxu0 %v298
        %v493 = vpop.f32.mrb[0].mxu0
        %v494 = vadd.f32 %v322, %v493
        %v495 = vpop.f32.mrb[0].mxu0
        %v496 = vpop.f32.mrb[0].mxu0
        %v497 = vadd.f32 %v322, %v496
        %v498 = vpop.f32.mrb[0].mxu0
        %499 = vmatprep.mubr.bf16.mxu0 0
        %500 = vmatmul.mubr.bf16.gmra.mrb[0].mxu0 %v299
        %v501 = vpop.f32.mrb[0].mxu0
        %v502 = vadd.f32 %v322, %v501
        %v503 = vpop.f32.mrb[0].mxu0
        %v504 = vpop.f32.mrb[0].mxu0
        %v505 = vadd.f32 %v322, %v504
        %v506 = vpop.f32.mrb[0].mxu0
        %507 = vmatprep.mubr.bf16.mxu0 0
        %508 = vmatmul.mubr.bf16.gmra.mrb[0].mxu0 %v300
        %v509 = vpop.f32.mrb[0].mxu0
        %v510 = vadd.f32 %v322, %v509
        %v511 = vpop.f32.mrb[0].mxu0
        %v512 = vpop.f32.mrb[0].mxu0
        %v513 = vadd.f32 %v322, %v512
        %v514 = vpop.f32.mrb[0].mxu0
        %515 = vmatprep.mubr.bf16.mxu0 0
        %516 = vmatmul.mubr.bf16.gmra.mrb[0].mxu0 %v301
        %v517 = vpop.f32.mrb[0].mxu0
        %v518 = vadd.f32 %v322, %v517
        %v519 = vpop.f32.mrb[0].mxu0
        %v520 = vpop.f32.mrb[0].mxu0
        %v521 = vadd.f32 %v322, %v520
        %v522 = vpop.f32.mrb[0].mxu0
        %523 = vmatprep.mubr.bf16.mxu0 0
        %524 = vmatmul.mubr.bf16.gmra.mrb[0].mxu0 %v302
        %v525 = vpop.f32.mrb[0].mxu0
        %v526 = vadd.f32 %v322, %v525
        %v527 = vpop.f32.mrb[0].mxu0
        %v528 = vpop.f32.mrb[0].mxu0
        %v529 = vadd.f32 %v322, %v528
        %v530 = vpop.f32.mrb[0].mxu0
        %531 = vdwg.mxu0
        %vm532 = vcmp.eq.s32.totalorder %v285, 0
        %vm533 = vcmp.eq.s32.totalorder %v286, 0
        %v534 = vrot.slane %v251, 7
        %v535 = vrot.slane %v253, 7
        %v536 = vrot.slane %v255, 7
        %v537 = vrot.slane %v257, 7
        %v538 = vrot.slane %v259, 7
        %v539 = vrot.slane %v261, 7
        %v540 = vrot.slane %v263, 7
        %v541 = vrot.slane %v265, 7
        %v542 = vrot.slane %v267, 7
        %v543 = vrot.slane %v269, 7
        %v544 = vrot.slane %v271, 7
        %v545 = vrot.slane %v273, 7
        %v546 = vrot.slane %v275, 7
        %v547 = vrot.slane %v277, 7
        %v548 = vrot.slane %v279, 7
        %v549 = vrot.slane %v281, 7
        %v550 = vrot.slane %v252, 7
        %v551 = vrot.slane %v254, 7
        %v552 = vrot.slane %v256, 7
        %v553 = vrot.slane %v258, 7
        %v554 = vrot.slane %v260, 7
        %v555 = vrot.slane %v262, 7
        %v556 = vrot.slane %v264, 7
        %v557 = vrot.slane %v266, 7
        %v558 = vrot.slane %v268, 7
        %v559 = vrot.slane %v270, 7
        %v560 = vrot.slane %v272, 7
        %v561 = vrot.slane %v274, 7
        %v562 = vrot.slane %v276, 7
        %v563 = vrot.slane %v278, 7
        %v564 = vrot.slane %v280, 7
        %v565 = vrot.slane %v282, 7
        %vm566 = vcmp.lt.s32.totalorder %v285, 1
        %v567 = vsel %vm566, %v534, %v550
        %v568 = vsel %vm566, %v535, %v551
        %v569 = vsel %vm566, %v536, %v552
        %v570 = vsel %vm566, %v537, %v553
        %v571 = vsel %vm566, %v538, %v554
        %v572 = vsel %vm566, %v539, %v555
        %v573 = vsel %vm566, %v540, %v556
        %v574 = vsel %vm566, %v541, %v557
        %v575 = vsel %vm566, %v542, %v558
        %v576 = vsel %vm566, %v543, %v559
        %v577 = vsel %vm566, %v544, %v560
        %v578 = vsel %vm566, %v545, %v561
        %v579 = vsel %vm566, %v546, %v562
        %v580 = vsel %vm566, %v547, %v563
        %v581 = vsel %vm566, %v548, %v564
        %v582 = vsel %vm566, %v549, %v565
        %v583 = vsel %vm566, %v550, %v534
        %v584 = vsel %vm566, %v551, %v535
        %v585 = vsel %vm566, %v552, %v536
        %v586 = vsel %vm566, %v553, %v537
        %v587 = vsel %vm566, %v554, %v538
        %v588 = vsel %vm566, %v555, %v539
        %v589 = vsel %vm566, %v556, %v540
        %v590 = vsel %vm566, %v557, %v541
        %v591 = vsel %vm566, %v558, %v542
        %v592 = vsel %vm566, %v559, %v543
        %v593 = vsel %vm566, %v560, %v544
        %v594 = vsel %vm566, %v561, %v545
        %v595 = vsel %vm566, %v562, %v546
        %v596 = vsel %vm566, %v563, %v547
        %v597 = vsel %vm566, %v564, %v548
        %v598 = vsel %vm566, %v565, %v549
        %v599 = vsel %vm532, 1, 0
        %v600 = vsel %vm533, 1, 0
        %vm601 = vcmp.eq.s32.totalorder %v599, 1
        %vm602 = vcmp.eq.s32.totalorder %v600, 1
        %v603 = vsel %vm601, -inf, %v583
        %v604 = vsel %vm602, -inf, %v567
        %v605 = vsel %vm601, -inf, %v584
        %v606 = vsel %vm602, -inf, %v568
        %v607 = vsel %vm601, -inf, %v585
        %v608 = vsel %vm602, -inf, %v569
        %v609 = vsel %vm601, -inf, %v586
        %v610 = vsel %vm602, -inf, %v570
        %v611 = vsel %vm601, -inf, %v587
        %v612 = vsel %vm602, -inf, %v571
        %v613 = vsel %vm601, -inf, %v588
        %v614 = vsel %vm602, -inf, %v572
        %v615 = vsel %vm601, -inf, %v589
        %v616 = vsel %vm602, -inf, %v573
        %v617 = vsel %vm601, -inf, %v590
        %v618 = vsel %vm602, -inf, %v574
        %v619 = vsel %vm601, -inf, %v591
        %v620 = vsel %vm602, -inf, %v575
        %v621 = vsel %vm601, -inf, %v592
        %v622 = vsel %vm602, -inf, %v576
        %v623 = vsel %vm601, -inf, %v593
        %v624 = vsel %vm602, -inf, %v577
        %v625 = vsel %vm601, -inf, %v594
        %v626 = vsel %vm602, -inf, %v578
        %v627 = vsel %vm601, -inf, %v595
        %v628 = vsel %vm602, -inf, %v579
        %v629 = vsel %vm601, -inf, %v596
        %v630 = vsel %vm602, -inf, %v580
        %v631 = vsel %vm601, -inf, %v597
        %v632 = vsel %vm602, -inf, %v581
        %v633 = vsel %vm601, -inf, %v598
        %v634 = vsel %vm602, -inf, %v582
        %vm635 = vcmp.eq.s32.totalorder %v285, 15
        %vm636 = vcmp.eq.s32.totalorder %v286, 15
        %v637 = vrot.slane %v251, 1
        %v638 = vrot.slane %v253, 1
        %v639 = vrot.slane %v255, 1
        %v640 = vrot.slane %v257, 1
        %v641 = vrot.slane %v259, 1
        %v642 = vrot.slane %v261, 1
        %v643 = vrot.slane %v263, 1
        %v644 = vrot.slane %v265, 1
        %v645 = vrot.slane %v267, 1
        %v646 = vrot.slane %v269, 1
        %v647 = vrot.slane %v271, 1
        %v648 = vrot.slane %v273, 1
        %v649 = vrot.slane %v275, 1
        %v650 = vrot.slane %v277, 1
        %v651 = vrot.slane %v279, 1
        %v652 = vrot.slane %v281, 1
        %v653 = vrot.slane %v252, 1
        %v654 = vrot.slane %v254, 1
        %v655 = vrot.slane %v256, 1
        %v656 = vrot.slane %v258, 1
        %v657 = vrot.slane %v260, 1
        %v658 = vrot.slane %v262, 1
        %v659 = vrot.slane %v264, 1
        %v660 = vrot.slane %v266, 1
        %v661 = vrot.slane %v268, 1
        %v662 = vrot.slane %v270, 1
        %v663 = vrot.slane %v272, 1
        %v664 = vrot.slane %v274, 1
        %v665 = vrot.slane %v276, 1
        %v666 = vrot.slane %v278, 1
        %v667 = vrot.slane %v280, 1
        %v668 = vrot.slane %v282, 1
        %vm669 = vcmp.lt.s32.totalorder %v285, 7
        %v670 = vsel %vm669, %v637, %v653
        %v671 = vsel %vm669, %v638, %v654
        %v672 = vsel %vm669, %v639, %v655
        %v673 = vsel %vm669, %v640, %v656
        %v674 = vsel %vm669, %v641, %v657
        %v675 = vsel %vm669, %v642, %v658
        %v676 = vsel %vm669, %v643, %v659
        %v677 = vsel %vm669, %v644, %v660
        %v678 = vsel %vm669, %v645, %v661
        %v679 = vsel %vm669, %v646, %v662
        %v680 = vsel %vm669, %v647, %v663
        %v681 = vsel %vm669, %v648, %v664
        %v682 = vsel %vm669, %v649, %v665
        %v683 = vsel %vm669, %v650, %v666
        %v684 = vsel %vm669, %v651, %v667
        %v685 = vsel %vm669, %v652, %v668
        %v686 = vsel %vm669, %v653, %v637
        %v687 = vsel %vm669, %v654, %v638
        %v688 = vsel %vm669, %v655, %v639
        %v689 = vsel %vm669, %v656, %v640
        %v690 = vsel %vm669, %v657, %v641
        %v691 = vsel %vm669, %v658, %v642
        %v692 = vsel %vm669, %v659, %v643
        %v693 = vsel %vm669, %v660, %v644
        %v694 = vsel %vm669, %v661, %v645
        %v695 = vsel %vm669, %v662, %v646
        %v696 = vsel %vm669, %v663, %v647
        %v697 = vsel %vm669, %v664, %v648
        %v698 = vsel %vm669, %v665, %v649
        %v699 = vsel %vm669, %v666, %v650
        %v700 = vsel %vm669, %v667, %v651
        %v701 = vsel %vm669, %v668, %v652
        %v702 = vsel %vm635, 1, 0
        %v703 = vsel %vm636, 1, 0
        %vm704 = vcmp.eq.s32.totalorder %v702, 1
        %vm705 = vcmp.eq.s32.totalorder %v703, 1
        %v706 = vsel %vm704, -inf, %v670
        %v707 = vsel %vm705, -inf, %v686
        %v708 = vsel %vm704, -inf, %v671
        %v709 = vsel %vm705, -inf, %v687
        %v710 = vsel %vm704, -inf, %v672
        %v711 = vsel %vm705, -inf, %v688
        %v712 = vsel %vm704, -inf, %v673
        %v713 = vsel %vm705, -inf, %v689
        %v714 = vsel %vm704, -inf, %v674
        %v715 = vsel %vm705, -inf, %v690
        %v716 = vsel %vm704, -inf, %v675
        %v717 = vsel %vm705, -inf, %v691
        %v718 = vsel %vm704, -inf, %v676
        %v719 = vsel %vm705, -inf, %v692
        %v720 = vsel %vm704, -inf, %v677
        %v721 = vsel %vm705, -inf, %v693
        %v722 = vsel %vm704, -inf, %v678
        %v723 = vsel %vm705, -inf, %v694
        %v724 = vsel %vm704, -inf, %v679
        %v725 = vsel %vm705, -inf, %v695
        %v726 = vsel %vm704, -inf, %v680
        %v727 = vsel %vm705, -inf, %v696
        %v728 = vsel %vm704, -inf, %v681
        %v729 = vsel %vm705, -inf, %v697
        %v730 = vsel %vm704, -inf, %v682
        %v731 = vsel %vm705, -inf, %v698
        %v732 = vsel %vm704, -inf, %v683
        %v733 = vsel %vm705, -inf, %v699
        %v734 = vsel %vm704, -inf, %v684
        %v735 = vsel %vm705, -inf, %v700
        %v736 = vsel %vm704, -inf, %v685
        %v737 = vsel %vm705, -inf, %v701
        %v738 = vmax.f32 %v603, %v251
        %v739 = vmax.f32 %v604, %v252
        %v740 = vmax.f32 %v605, %v253
        %v741 = vmax.f32 %v606, %v254
        %v742 = vmax.f32 %v607, %v255
        %v743 = vmax.f32 %v608, %v256
        %v744 = vmax.f32 %v609, %v257
        %v745 = vmax.f32 %v610, %v258
        %v746 = vmax.f32 %v611, %v259
        %v747 = vmax.f32 %v612, %v260
        %v748 = vmax.f32 %v613, %v261
        %v749 = vmax.f32 %v614, %v262
        %v750 = vmax.f32 %v615, %v263
        %v751 = vmax.f32 %v616, %v264
        %v752 = vmax.f32 %v617, %v265
        %v753 = vmax.f32 %v618, %v266
        %v754 = vmax.f32 %v619, %v267
        %v755 = vmax.f32 %v620, %v268
        %v756 = vmax.f32 %v621, %v269
        %v757 = vmax.f32 %v622, %v270
        %v758 = vmax.f32 %v623, %v271
        %v759 = vmax.f32 %v624, %v272
        %v760 = vmax.f32 %v625, %v273
        %v761 = vmax.f32 %v626, %v274
        %v762 = vmax.f32 %v627, %v275
        %v763 = vmax.f32 %v628, %v276
        %v764 = vmax.f32 %v629, %v277
        %v765 = vmax.f32 %v630, %v278
        %v766 = vmax.f32 %v631, %v279
        %v767 = vmax.f32 %v632, %v280
        %v768 = vmax.f32 %v633, %v281
        %v769 = vmax.f32 %v634, %v282
        %v770 = vmax.f32 %v738, %v706
        %v771 = vmax.f32 %v739, %v707
        %v772 = vmax.f32 %v740, %v708
        %v773 = vmax.f32 %v741, %v709
        %v774 = vmax.f32 %v742, %v710
        %v775 = vmax.f32 %v743, %v711
        %v776 = vmax.f32 %v744, %v712
        %v777 = vmax.f32 %v745, %v713
        %v778 = vmax.f32 %v746, %v714
        %v779 = vmax.f32 %v747, %v715
        %v780 = vmax.f32 %v748, %v716
        %v781 = vmax.f32 %v749, %v717
        %v782 = vmax.f32 %v750, %v718
        %v783 = vmax.f32 %v751, %v719
        %v784 = vmax.f32 %v752, %v720
        %v785 = vmax.f32 %v753, %v721
        %v786 = vmax.f32 %v754, %v722
        %v787 = vmax.f32 %v755, %v723
        %v788 = vmax.f32 %v756, %v724
        %v789 = vmax.f32 %v757, %v725
        %v790 = vmax.f32 %v758, %v726
        %v791 = vmax.f32 %v759, %v727
        %v792 = vmax.f32 %v760, %v728
        %v793 = vmax.f32 %v761, %v729
        %v794 = vmax.f32 %v762, %v730
        %v795 = vmax.f32 %v763, %v731
        %v796 = vmax.f32 %v764, %v732
        %v797 = vmax.f32 %v765, %v733
        %v798 = vmax.f32 %v766, %v734
        %v799 = vmax.f32 %v767, %v735
        %v800 = vmax.f32 %v768, %v736
        %v801 = vmax.f32 %v769, %v737
        %v802 = vmax.f32 %v770, %v772
        %v803 = vmax.f32 %v771, %v773
        %v804 = vmax.f32 %v772, %v774
        %v805 = vmax.f32 %v773, %v775
        %v806 = vmax.f32 %v774, %v776
        %v807 = vmax.f32 %v775, %v777
        %v808 = vmax.f32 %v776, %v778
        %v809 = vmax.f32 %v777, %v779
        %v810 = vmax.f32 %v778, %v780
        %v811 = vmax.f32 %v779, %v781
        %v812 = vmax.f32 %v780, %v782
        %v813 = vmax.f32 %v781, %v783
        %v814 = vmax.f32 %v782, %v784
        %v815 = vmax.f32 %v783, %v785
        %v816 = vmax.f32 %v784, %v786
        %v817 = vmax.f32 %v785, %v787
        %v818 = vmax.f32 %v786, %v788
        %v819 = vmax.f32 %v787, %v789
        %v820 = vmax.f32 %v788, %v790
        %v821 = vmax.f32 %v789, %v791
        %v822 = vmax.f32 %v790, %v792
        %v823 = vmax.f32 %v791, %v793
        %v824 = vmax.f32 %v792, %v794
        %v825 = vmax.f32 %v793, %v795
        %v826 = vmax.f32 %v794, %v796
        %v827 = vmax.f32 %v795, %v797
        %v828 = vmax.f32 %v796, %v798
        %v829 = vmax.f32 %v797, %v799
        %v830 = vmax.f32 %v798, %v800
        %v831 = vmax.f32 %v799, %v801
        %v832 = vmax.f32 %v802, %v774
        %v833 = vmax.f32 %v803, %v775
        %v834 = vmax.f32 %v804, %v776
        %v835 = vmax.f32 %v805, %v777
        %v836 = vmax.f32 %v806, %v778
        %v837 = vmax.f32 %v807, %v779
        %v838 = vmax.f32 %v808, %v780
        %v839 = vmax.f32 %v809, %v781
        %v840 = vmax.f32 %v810, %v782
        %v841 = vmax.f32 %v811, %v783
        %v842 = vmax.f32 %v812, %v784
        %v843 = vmax.f32 %v813, %v785
        %v844 = vmax.f32 %v814, %v786
        %v845 = vmax.f32 %v815, %v787
        %v846 = vmax.f32 %v816, %v788
        %v847 = vmax.f32 %v817, %v789
        %v848 = vmax.f32 %v818, %v790
        %v849 = vmax.f32 %v819, %v791
        %v850 = vmax.f32 %v820, %v792
        %v851 = vmax.f32 %v821, %v793
        %v852 = vmax.f32 %v822, %v794
        %v853 = vmax.f32 %v823, %v795
        %v854 = vmax.f32 %v824, %v796
        %v855 = vmax.f32 %v825, %v797
        %v856 = vmax.f32 %v826, %v798
        %v857 = vmax.f32 %v827, %v799
        %v858 = vmax.f32 %v828, %v800
        %v859 = vmax.f32 %v829, %v801
        %v860 = vpack.c.bf16 %v803, %v802
        %v861 = vpack.c.bf16 %v833, %v832
        %v862 = vpack.c.bf16 %v835, %v834
        %v863 = vpack.c.bf16 %v837, %v836
        %v864 = vpack.c.bf16 %v839, %v838
        %v865 = vpack.c.bf16 %v841, %v840
        %v866 = vpack.c.bf16 %v843, %v842
        %v867 = vpack.c.bf16 %v845, %v844
        %v868 = vpack.c.bf16 %v847, %v846
        %v869 = vpack.c.bf16 %v849, %v848
        %v870 = vpack.c.bf16 %v851, %v850
        %v871 = vpack.c.bf16 %v853, %v852
        %v872 = vpack.c.bf16 %v855, %v854
        %v873 = vpack.c.bf16 %v857, %v856
        %v874 = vpack.c.bf16 %v859, %v858
        %v875 = vpack.c.bf16 %v831, %v830
        %v876 = vld [vmem:[%s2] sm:$0xf]
        %v877 = vld [vmem:[%s2 + $0x4] sm:$0xf]
        %v878 = vld [vmem:[%s2 + $0x8] sm:$0xf]
        %v879 = vld [vmem:[%s2 + $0xc] sm:$0xf]
        %v880 = vld [vmem:[%s2 + $0x10] sm:$0xf]
        %v881 = vld [vmem:[%s2 + $0x14] sm:$0xf]
        %v882 = vld [vmem:[%s2 + $0x18] sm:$0xf]
        %v883 = vld [vmem:[%s2 + $0x1c] sm:$0xf]
        %v884 = vld [vmem:[%s2 + $0x20] sm:$0xf]
        %v885 = vld [vmem:[%s2 + $0x24] sm:$0xf]
        %v886 = vld [vmem:[%s2 + $0x28] sm:$0xf]
        %v887 = vld [vmem:[%s2 + $0x2c] sm:$0xf]
        %v888 = vld [vmem:[%s2 + $0x30] sm:$0xf]
        %v889 = vld [vmem:[%s2 + $0x34] sm:$0xf]
        %v890 = vld [vmem:[%s2 + $0x38] sm:$0xf]
        %v891 = vld [vmem:[%s2 + $0x3c] sm:$0xf]
        %v892 = vlaneseq
        %v893 = vshrl.u32 %v892, 7
        %v894 = vsub.s32 1, %v893
        %v895 = vrot.slane %v283, %v894
        %v912 = vunpack.c.l.b16 %v876
        %v913 = vunpack.c.l.b16 %v877
        %v914 = vunpack.c.l.b16 %v878
        %v915 = vunpack.c.l.b16 %v879
        %v916 = vunpack.c.l.b16 %v880
        %v917 = vunpack.c.l.b16 %v881
        %v918 = vunpack.c.l.b16 %v882
        %v919 = vunpack.c.l.b16 %v883
        %v920 = vunpack.c.l.b16 %v884
        %v921 = vunpack.c.l.b16 %v885
        %v922 = vunpack.c.l.b16 %v886
        %v923 = vunpack.c.l.b16 %v887
        %v924 = vunpack.c.l.b16 %v888
        %v925 = vunpack.c.l.b16 %v889
        %v926 = vunpack.c.l.b16 %v890
        %v927 = vunpack.c.l.b16 %v891
        %v928 = vpack.c.b16 %v913, %v912
        %v929 = vpack.c.b16 %v915, %v914
        %v930 = vpack.c.b16 %v917, %v916
        %v931 = vpack.c.b16 %v919, %v918
        %v932 = vpack.c.b16 %v921, %v920
        %v933 = vpack.c.b16 %v923, %v922
        %v934 = vpack.c.b16 %v925, %v924
        %v935 = vpack.c.b16 %v927, %v926
        %944 = vmatprep.subr.bf16.mxu0 0
        %945 = vmatpush1.bf16.msra.mxu0 %v928
        %946 = vmatprep.subr.bf16.mxu0 0
        %947 = vmatpush1.bf16.msra.mxu0 %v929
        %948 = vmatprep.subr.bf16.mxu0 0
        %949 = vmatpush1.bf16.msra.mxu0 %v930
        %950 = vmatprep.subr.bf16.mxu0 0
        %951 = vmatpush1.bf16.msra.mxu0 %v931
        %952 = vmatprep.subr.bf16.mxu0 0
        %953 = vmatpush1.bf16.msra.mxu0 %v932
        %954 = vmatprep.subr.bf16.mxu0 0
        %955 = vmatpush1.bf16.msra.mxu0 %v933
        %956 = vmatprep.subr.bf16.mxu0 0
        %957 = vmatpush1.bf16.msra.mxu0 %v934
        %958 = vmatprep.subr.bf16.mxu0 0
        %959 = vmatpush1.bf16.msra.mxu0 %v935
        %960 = vmatprep.subr.bf16.mxu0 0
        %961 = vmatpush1.bf16.msra.mxu0 0
        %962 = vmatprep.subr.bf16.mxu0 0
        %963 = vmatpush1.bf16.msra.mxu0 0
        %964 = vmatprep.subr.bf16.mxu0 0
        %965 = vmatpush1.bf16.msra.mxu0 0
        %966 = vmatprep.subr.bf16.mxu0 0
        %967 = vmatpush1.bf16.msra.mxu0 0
        %968 = vmatprep.subr.bf16.mxu0 0
        %969 = vmatpush1.bf16.msra.mxu0 0
        %970 = vmatprep.subr.bf16.mxu0 0
        %971 = vmatpush1.bf16.msra.mxu0 0
        %972 = vmatprep.subr.bf16.mxu0 0
        %973 = vmatpush1.bf16.msra.mxu0 0
        %974 = vmatprep.subr.bf16.mxu0 0
        %975 = vmatpush1.bf16.msra.mxu0 0
        %976 = vmatprep.mubr.bf16.mxu0 0
        %977 = vmatmul.mubr.bf16.gmra.mrb[0].mxu0 %v860
        %v978 = vpop.f32.mrb[0].mxu0
        %v979 = vadd.f32 %v895, %v978
        %v980 = vpop.f32.mrb[0].mxu0
        %v981 = vpop.f32.mrb[0].mxu0
        %v982 = vadd.f32 %v895, %v981
        %v983 = vpop.f32.mrb[0].mxu0
        %984 = vmatprep.mubr.bf16.mxu0 0
        %985 = vmatmul.mubr.bf16.gmra.mrb[0].mxu0 %v861
        %v986 = vpop.f32.mrb[0].mxu0
        %v987 = vadd.f32 %v895, %v986
        %v988 = vpop.f32.mrb[0].mxu0
        %v989 = vpop.f32.mrb[0].mxu0
        %v990 = vadd.f32 %v895, %v989
        %v991 = vpop.f32.mrb[0].mxu0
        %992 = vmatprep.mubr.bf16.mxu0 0
        %993 = vmatmul.mubr.bf16.gmra.mrb[0].mxu0 %v862
        %v994 = vpop.f32.mrb[0].mxu0
        %v995 = vadd.f32 %v895, %v994
        %v996 = vpop.f32.mrb[0].mxu0
        %v997 = vpop.f32.mrb[0].mxu0
        %v998 = vadd.f32 %v895, %v997
        %v999 = vpop.f32.mrb[0].mxu0
        %1000 = vmatprep.mubr.bf16.mxu0 0
        %1001 = vmatmul.mubr.bf16.gmra.mrb[0].mxu0 %v863
        %v1002 = vpop.f32.mrb[0].mxu0
        %v1003 = vadd.f32 %v895, %v1002
        %v1004 = vpop.f32.mrb[0].mxu0
        %v1005 = vpop.f32.mrb[0].mxu0
        %v1006 = vadd.f32 %v895, %v1005
        %v1007 = vpop.f32.mrb[0].mxu0
        %1008 = vmatprep.mubr.bf16.mxu0 0
        %1009 = vmatmul.mubr.bf16.gmra.mrb[0].mxu0 %v864
        %v1010 = vpop.f32.mrb[0].mxu0
        %v1011 = vadd.f32 %v895, %v1010
        %v1012 = vpop.f32.mrb[0].mxu0
        %v1013 = vpop.f32.mrb[0].mxu0
        %v1014 = vadd.f32 %v895, %v1013
        %v1015 = vpop.f32.mrb[0].mxu0
        %1016 = vmatprep.mubr.bf16.mxu0 0
        %1017 = vmatmul.mubr.bf16.gmra.mrb[0].mxu0 %v865
        %v1018 = vpop.f32.mrb[0].mxu0
        %v1019 = vadd.f32 %v895, %v1018
        %v1020 = vpop.f32.mrb[0].mxu0
        %v1021 = vpop.f32.mrb[0].mxu0
        %v1022 = vadd.f32 %v895, %v1021
        %v1023 = vpop.f32.mrb[0].mxu0
        %1024 = vmatprep.mubr.bf16.mxu0 0
        %1025 = vmatmul.mubr.bf16.gmra.mrb[0].mxu0 %v866
        %v1026 = vpop.f32.mrb[0].mxu0
        %v1027 = vadd.f32 %v895, %v1026
        %v1028 = vpop.f32.mrb[0].mxu0
        %v1029 = vpop.f32.mrb[0].mxu0
        %v1030 = vadd.f32 %v895, %v1029
        %v1031 = vpop.f32.mrb[0].mxu0
        %1032 = vmatprep.mubr.bf16.mxu0 0
        %1033 = vmatmul.mubr.bf16.gmra.mrb[0].mxu0 %v867
        %v1034 = vpop.f32.mrb[0].mxu0
        %v1035 = vadd.f32 %v895, %v1034
        %v1036 = vpop.f32.mrb[0].mxu0
        %v1037 = vpop.f32.mrb[0].mxu0
        %v1038 = vadd.f32 %v895, %v1037
        %v1039 = vpop.f32.mrb[0].mxu0
        %1040 = vmatprep.mubr.bf16.mxu0 0
        %1041 = vmatmul.mubr.bf16.gmra.mrb[0].mxu0 %v868
        %v1042 = vpop.f32.mrb[0].mxu0
        %v1043 = vadd.f32 %v895, %v1042
        %v1044 = vpop.f32.mrb[0].mxu0
        %v1045 = vpop.f32.mrb[0].mxu0
        %v1046 = vadd.f32 %v895, %v1045
        %v1047 = vpop.f32.mrb[0].mxu0
        %1048 = vmatprep.mubr.bf16.mxu0 0
        %1049 = vmatmul.mubr.bf16.gmra.mrb[0].mxu0 %v869
        %v1050 = vpop.f32.mrb[0].mxu0
        %v1051 = vadd.f32 %v895, %v1050
        %v1052 = vpop.f32.mrb[0].mxu0
        %v1053 = vpop.f32.mrb[0].mxu0
        %v1054 = vadd.f32 %v895, %v1053
        %v1055 = vpop.f32.mrb[0].mxu0
        %1056 = vmatprep.mubr.bf16.mxu0 0
        %1057 = vmatmul.mubr.bf16.gmra.mrb[0].mxu0 %v870
        %v1058 = vpop.f32.mrb[0].mxu0
        %v1059 = vadd.f32 %v895, %v1058
        %v1060 = vpop.f32.mrb[0].mxu0
        %v1061 = vpop.f32.mrb[0].mxu0
        %v1062 = vadd.f32 %v895, %v1061
        %v1063 = vpop.f32.mrb[0].mxu0
        %1064 = vmatprep.mubr.bf16.mxu0 0
        %1065 = vmatmul.mubr.bf16.gmra.mrb[0].mxu0 %v871
        %v1066 = vpop.f32.mrb[0].mxu0
        %v1067 = vadd.f32 %v895, %v1066
        %v1068 = vpop.f32.mrb[0].mxu0
        %v1069 = vpop.f32.mrb[0].mxu0
        %v1070 = vadd.f32 %v895, %v1069
        %v1071 = vpop.f32.mrb[0].mxu0
        %1072 = vmatprep.mubr.bf16.mxu0 0
        %1073 = vmatmul.mubr.bf16.gmra.mrb[0].mxu0 %v872
        %v1074 = vpop.f32.mrb[0].mxu0
        %v1075 = vadd.f32 %v895, %v1074
        %v1076 = vpop.f32.mrb[0].mxu0
        %v1077 = vpop.f32.mrb[0].mxu0
        %v1078 = vadd.f32 %v895, %v1077
        %v1079 = vpop.f32.mrb[0].mxu0
        %1080 = vmatprep.mubr.bf16.mxu0 0
        %1081 = vmatmul.mubr.bf16.gmra.mrb[0].mxu0 %v873
        %v1082 = vpop.f32.mrb[0].mxu0
        %v1083 = vadd.f32 %v895, %v1082
        %v1084 = vpop.f32.mrb[0].mxu0
        %v1085 = vpop.f32.mrb[0].mxu0
        %v1086 = vadd.f32 %v895, %v1085
        %v1087 = vpop.f32.mrb[0].mxu0
        %1088 = vmatprep.mubr.bf16.mxu0 0
        %1089 = vmatmul.mubr.bf16.gmra.mrb[0].mxu0 %v874
        %v1090 = vpop.f32.mrb[0].mxu0
        %v1091 = vadd.f32 %v895, %v1090
        %v1092 = vpop.f32.mrb[0].mxu0
        %v1093 = vpop.f32.mrb[0].mxu0
        %v1094 = vadd.f32 %v895, %v1093
        %v1095 = vpop.f32.mrb[0].mxu0
        %1096 = vmatprep.mubr.bf16.mxu0 0
        %1097 = vmatmul.mubr.bf16.gmra.mrb[0].mxu0 %v875
        %v1098 = vpop.f32.mrb[0].mxu0
        %v1099 = vadd.f32 %v895, %v1098
        %v1100 = vpop.f32.mrb[0].mxu0
        %v1101 = vpop.f32.mrb[0].mxu0
        %v1102 = vadd.f32 %v895, %v1101
        %v1103 = vpop.f32.mrb[0].mxu0
        %1104 = vdwg.mxu0
        %1137 = vrot.lane.b32.xlu0 %v406, 96
        %v1138 = vpop.permute.xlu0 %1137
        %1139 = vrot.lane.b32.xlu0 %v409, 96
        %v1140 = vpop.permute.xlu0 %1139
        %1141 = vrot.lane.b32.xlu0 %v414, 96
        %v1142 = vpop.permute.xlu0 %1141
        %1143 = vrot.lane.b32.xlu0 %v417, 96
        %v1144 = vpop.permute.xlu0 %1143
        %1145 = vrot.lane.b32.xlu0 %v422, 96
        %v1146 = vpop.permute.xlu0 %1145
        %1147 = vrot.lane.b32.xlu0 %v425, 96
        %v1148 = vpop.permute.xlu0 %1147
        %1149 = vrot.lane.b32.xlu0 %v430, 96
        %v1150 = vpop.permute.xlu0 %1149
        %1151 = vrot.lane.b32.xlu0 %v433, 96
        %v1152 = vpop.permute.xlu0 %1151
        %1153 = vrot.lane.b32.xlu0 %v438, 96
        %v1154 = vpop.permute.xlu0 %1153
        %1155 = vrot.lane.b32.xlu0 %v441, 96
        %v1156 = vpop.permute.xlu0 %1155
        %1157 = vrot.lane.b32.xlu0 %v446, 96
        %v1158 = vpop.permute.xlu0 %1157
        %1159 = vrot.lane.b32.xlu0 %v449, 96
        %v1160 = vpop.permute.xlu0 %1159
        %1161 = vrot.lane.b32.xlu0 %v454, 96
        %v1162 = vpop.permute.xlu0 %1161
        %1163 = vrot.lane.b32.xlu0 %v457, 96
        %v1164 = vpop.permute.xlu0 %1163
        %1165 = vrot.lane.b32.xlu0 %v462, 96
        %v1166 = vpop.permute.xlu0 %1165
        %1167 = vrot.lane.b32.xlu0 %v465, 96
        %v1168 = vpop.permute.xlu0 %1167
        %1169 = vrot.lane.b32.xlu0 %v470, 96
        %v1170 = vpop.permute.xlu0 %1169
        %1171 = vrot.lane.b32.xlu0 %v473, 96
        %v1172 = vpop.permute.xlu0 %1171
        %1173 = vrot.lane.b32.xlu0 %v478, 96
        %v1174 = vpop.permute.xlu0 %1173
        %1175 = vrot.lane.b32.xlu0 %v481, 96
        %v1176 = vpop.permute.xlu0 %1175
        %1177 = vrot.lane.b32.xlu0 %v486, 96
        %v1178 = vpop.permute.xlu0 %1177
        %1179 = vrot.lane.b32.xlu0 %v489, 96
        %v1180 = vpop.permute.xlu0 %1179
        %1181 = vrot.lane.b32.xlu0 %v494, 96
        %v1182 = vpop.permute.xlu0 %1181
        %1183 = vrot.lane.b32.xlu0 %v497, 96
        %v1184 = vpop.permute.xlu0 %1183
        %1185 = vrot.lane.b32.xlu0 %v502, 96
        %v1186 = vpop.permute.xlu0 %1185
        %1187 = vrot.lane.b32.xlu0 %v505, 96
        %v1188 = vpop.permute.xlu0 %1187
        %1189 = vrot.lane.b32.xlu0 %v510, 96
        %v1190 = vpop.permute.xlu0 %1189
        %1191 = vrot.lane.b32.xlu0 %v513, 96
        %v1192 = vpop.permute.xlu0 %1191
        %1193 = vrot.lane.b32.xlu0 %v518, 96
        %v1194 = vpop.permute.xlu0 %1193
        %1195 = vrot.lane.b32.xlu0 %v521, 96
        %v1196 = vpop.permute.xlu0 %1195
        %1197 = vrot.lane.b32.xlu0 %v526, 96
        %v1198 = vpop.permute.xlu0 %1197
        %1199 = vrot.lane.b32.xlu0 %v529, 96
        %v1200 = vpop.permute.xlu0 %1199
        %v1233 = vrot.slane %v1138, 7
        %v1234 = vrot.slane %v1142, 7
        %v1235 = vrot.slane %v1146, 7
        %v1236 = vrot.slane %v1150, 7
        %v1237 = vrot.slane %v1154, 7
        %v1238 = vrot.slane %v1158, 7
        %v1239 = vrot.slane %v1162, 7
        %v1240 = vrot.slane %v1166, 7
        %v1241 = vrot.slane %v1170, 7
        %v1242 = vrot.slane %v1174, 7
        %v1243 = vrot.slane %v1178, 7
        %v1244 = vrot.slane %v1182, 7
        %v1245 = vrot.slane %v1186, 7
        %v1246 = vrot.slane %v1190, 7
        %v1247 = vrot.slane %v1194, 7
        %v1248 = vrot.slane %v1198, 7
        %v1249 = vrot.slane %v1140, 7
        %v1250 = vrot.slane %v1144, 7
        %v1251 = vrot.slane %v1148, 7
        %v1252 = vrot.slane %v1152, 7
        %v1253 = vrot.slane %v1156, 7
        %v1254 = vrot.slane %v1160, 7
        %v1255 = vrot.slane %v1164, 7
        %v1256 = vrot.slane %v1168, 7
        %v1257 = vrot.slane %v1172, 7
        %v1258 = vrot.slane %v1176, 7
        %v1259 = vrot.slane %v1180, 7
        %v1260 = vrot.slane %v1184, 7
        %v1261 = vrot.slane %v1188, 7
        %v1262 = vrot.slane %v1192, 7
        %v1263 = vrot.slane %v1196, 7
        %v1264 = vrot.slane %v1200, 7
        %v1265 = vsel %vm566, %v1233, %v1249
        %v1266 = vsel %vm566, %v1234, %v1250
        %v1267 = vsel %vm566, %v1235, %v1251
        %v1268 = vsel %vm566, %v1236, %v1252
        %v1269 = vsel %vm566, %v1237, %v1253
        %v1270 = vsel %vm566, %v1238, %v1254
        %v1271 = vsel %vm566, %v1239, %v1255
        %v1272 = vsel %vm566, %v1240, %v1256
        %v1273 = vsel %vm566, %v1241, %v1257
        %v1274 = vsel %vm566, %v1242, %v1258
        %v1275 = vsel %vm566, %v1243, %v1259
        %v1276 = vsel %vm566, %v1244, %v1260
        %v1277 = vsel %vm566, %v1245, %v1261
        %v1278 = vsel %vm566, %v1246, %v1262
        %v1279 = vsel %vm566, %v1247, %v1263
        %v1280 = vsel %vm566, %v1248, %v1264
        %v1281 = vsel %vm566, %v1249, %v1233
        %v1282 = vsel %vm566, %v1250, %v1234
        %v1283 = vsel %vm566, %v1251, %v1235
        %v1284 = vsel %vm566, %v1252, %v1236
        %v1285 = vsel %vm566, %v1253, %v1237
        %v1286 = vsel %vm566, %v1254, %v1238
        %v1287 = vsel %vm566, %v1255, %v1239
        %v1288 = vsel %vm566, %v1256, %v1240
        %v1289 = vsel %vm566, %v1257, %v1241
        %v1290 = vsel %vm566, %v1258, %v1242
        %v1291 = vsel %vm566, %v1259, %v1243
        %v1292 = vsel %vm566, %v1260, %v1244
        %v1293 = vsel %vm566, %v1261, %v1245
        %v1294 = vsel %vm566, %v1262, %v1246
        %v1295 = vsel %vm566, %v1263, %v1247
        %v1296 = vsel %vm566, %v1264, %v1248
        %v1297 = vsel %vm601, 0.0, %v1281
        %v1298 = vsel %vm602, 0.0, %v1265
        %v1299 = vsel %vm601, 0.0, %v1282
        %v1300 = vsel %vm602, 0.0, %v1266
        %v1301 = vsel %vm601, 0.0, %v1283
        %v1302 = vsel %vm602, 0.0, %v1267
        %v1303 = vsel %vm601, 0.0, %v1284
        %v1304 = vsel %vm602, 0.0, %v1268
        %v1305 = vsel %vm601, 0.0, %v1285
        %v1306 = vsel %vm602, 0.0, %v1269
        %v1307 = vsel %vm601, 0.0, %v1286
        %v1308 = vsel %vm602, 0.0, %v1270
        %v1309 = vsel %vm601, 0.0, %v1287
        %v1310 = vsel %vm602, 0.0, %v1271
        %v1311 = vsel %vm601, 0.0, %v1288
        %v1312 = vsel %vm602, 0.0, %v1272
        %v1313 = vsel %vm601, 0.0, %v1289
        %v1314 = vsel %vm602, 0.0, %v1273
        %v1315 = vsel %vm601, 0.0, %v1290
        %v1316 = vsel %vm602, 0.0, %v1274
        %v1317 = vsel %vm601, 0.0, %v1291
        %v1318 = vsel %vm602, 0.0, %v1275
        %v1319 = vsel %vm601, 0.0, %v1292
        %v1320 = vsel %vm602, 0.0, %v1276
        %v1321 = vsel %vm601, 0.0, %v1293
        %v1322 = vsel %vm602, 0.0, %v1277
        %v1323 = vsel %vm601, 0.0, %v1294
        %v1324 = vsel %vm602, 0.0, %v1278
        %v1325 = vsel %vm601, 0.0, %v1295
        %v1326 = vsel %vm602, 0.0, %v1279
        %v1327 = vsel %vm601, 0.0, %v1296
        %v1328 = vsel %vm602, 0.0, %v1280
        %v1329 = vrot.slane %v1138, 1
        %v1330 = vrot.slane %v1142, 1
        %v1331 = vrot.slane %v1146, 1
        %v1332 = vrot.slane %v1150, 1
        %v1333 = vrot.slane %v1154, 1
        %v1334 = vrot.slane %v1158, 1
        %v1335 = vrot.slane %v1162, 1
        %v1336 = vrot.slane %v1166, 1
        %v1337 = vrot.slane %v1170, 1
        %v1338 = vrot.slane %v1174, 1
        %v1339 = vrot.slane %v1178, 1
        %v1340 = vrot.slane %v1182, 1
        %v1341 = vrot.slane %v1186, 1
        %v1342 = vrot.slane %v1190, 1
        %v1343 = vrot.slane %v1194, 1
        %v1344 = vrot.slane %v1198, 1
        %v1345 = vrot.slane %v1140, 1
        %v1346 = vrot.slane %v1144, 1
        %v1347 = vrot.slane %v1148, 1
        %v1348 = vrot.slane %v1152, 1
        %v1349 = vrot.slane %v1156, 1
        %v1350 = vrot.slane %v1160, 1
        %v1351 = vrot.slane %v1164, 1
        %v1352 = vrot.slane %v1168, 1
        %v1353 = vrot.slane %v1172, 1
        %v1354 = vrot.slane %v1176, 1
        %v1355 = vrot.slane %v1180, 1
        %v1356 = vrot.slane %v1184, 1
        %v1357 = vrot.slane %v1188, 1
        %v1358 = vrot.slane %v1192, 1
        %v1359 = vrot.slane %v1196, 1
        %v1360 = vrot.slane %v1200, 1
        %v1361 = vsel %vm669, %v1329, %v1345
        %v1362 = vsel %vm669, %v1330, %v1346
        %v1363 = vsel %vm669, %v1331, %v1347
        %v1364 = vsel %vm669, %v1332, %v1348
        %v1365 = vsel %vm669, %v1333, %v1349
        %v1366 = vsel %vm669, %v1334, %v1350
        %v1367 = vsel %vm669, %v1335, %v1351
        %v1368 = vsel %vm669, %v1336, %v1352
        %v1369 = vsel %vm669, %v1337, %v1353
        %v1370 = vsel %vm669, %v1338, %v1354
        %v1371 = vsel %vm669, %v1339, %v1355
        %v1372 = vsel %vm669, %v1340, %v1356
        %v1373 = vsel %vm669, %v1341, %v1357
        %v1374 = vsel %vm669, %v1342, %v1358
        %v1375 = vsel %vm669, %v1343, %v1359
        %v1376 = vsel %vm669, %v1344, %v1360
        %v1377 = vsel %vm669, %v1345, %v1329
        %v1378 = vsel %vm669, %v1346, %v1330
        %v1379 = vsel %vm669, %v1347, %v1331
        %v1380 = vsel %vm669, %v1348, %v1332
        %v1381 = vsel %vm669, %v1349, %v1333
        %v1382 = vsel %vm669, %v1350, %v1334
        %v1383 = vsel %vm669, %v1351, %v1335
        %v1384 = vsel %vm669, %v1352, %v1336
        %v1385 = vsel %vm669, %v1353, %v1337
        %v1386 = vsel %vm669, %v1354, %v1338
        %v1387 = vsel %vm669, %v1355, %v1339
        %v1388 = vsel %vm669, %v1356, %v1340
        %v1389 = vsel %vm669, %v1357, %v1341
        %v1390 = vsel %vm669, %v1358, %v1342
        %v1391 = vsel %vm669, %v1359, %v1343
        %v1392 = vsel %vm669, %v1360, %v1344
        %v1393 = vsel %vm704, 0.0, %v1361
        %v1394 = vsel %vm705, 0.0, %v1377
        %v1395 = vsel %vm704, 0.0, %v1362
        %v1396 = vsel %vm705, 0.0, %v1378
        %v1397 = vsel %vm704, 0.0, %v1363
        %v1398 = vsel %vm705, 0.0, %v1379
        %v1399 = vsel %vm704, 0.0, %v1364
        %v1400 = vsel %vm705, 0.0, %v1380
        %v1401 = vsel %vm704, 0.0, %v1365
        %v1402 = vsel %vm705, 0.0, %v1381
        %v1403 = vsel %vm704, 0.0, %v1366
        %v1404 = vsel %vm705, 0.0, %v1382
        %v1405 = vsel %vm704, 0.0, %v1367
        %v1406 = vsel %vm705, 0.0, %v1383
        %v1407 = vsel %vm704, 0.0, %v1368
        %v1408 = vsel %vm705, 0.0, %v1384
        %v1409 = vsel %vm704, 0.0, %v1369
        %v1410 = vsel %vm705, 0.0, %v1385
        %v1411 = vsel %vm704, 0.0, %v1370
        %v1412 = vsel %vm705, 0.0, %v1386
        %v1413 = vsel %vm704, 0.0, %v1371
        %v1414 = vsel %vm705, 0.0, %v1387
        %v1415 = vsel %vm704, 0.0, %v1372
        %v1416 = vsel %vm705, 0.0, %v1388
        %v1417 = vsel %vm704, 0.0, %v1373
        %v1418 = vsel %vm705, 0.0, %v1389
        %v1419 = vsel %vm704, 0.0, %v1374
        %v1420 = vsel %vm705, 0.0, %v1390
        %v1421 = vsel %vm704, 0.0, %v1375
        %v1422 = vsel %vm705, 0.0, %v1391
        %v1423 = vsel %vm704, 0.0, %v1376
        %v1424 = vsel %vm705, 0.0, %v1392
        %v1425 = vpack.c.bf16 %v1298, %v1297
        %v1426 = vpack.c.bf16 %v1300, %v1299
        %v1427 = vpack.c.bf16 %v1302, %v1301
        %v1428 = vpack.c.bf16 %v1304, %v1303
        %v1429 = vpack.c.bf16 %v1306, %v1305
        %v1430 = vpack.c.bf16 %v1308, %v1307
        %v1431 = vpack.c.bf16 %v1310, %v1309
        %v1432 = vpack.c.bf16 %v1312, %v1311
        %v1433 = vpack.c.bf16 %v1314, %v1313
        %v1434 = vpack.c.bf16 %v1316, %v1315
        %v1435 = vpack.c.bf16 %v1318, %v1317
        %v1436 = vpack.c.bf16 %v1320, %v1319
        %v1437 = vpack.c.bf16 %v1322, %v1321
        %v1438 = vpack.c.bf16 %v1324, %v1323
        %v1439 = vpack.c.bf16 %v1326, %v1325
        %v1440 = vpack.c.bf16 %v1328, %v1327
        %v1441 = vpack.c.bf16 %v409, %v406
        %v1442 = vpack.c.bf16 %v417, %v414
        %v1443 = vpack.c.bf16 %v425, %v422
        %v1444 = vpack.c.bf16 %v433, %v430
        %v1445 = vpack.c.bf16 %v441, %v438
        %v1446 = vpack.c.bf16 %v449, %v446
        %v1447 = vpack.c.bf16 %v457, %v454
        %v1448 = vpack.c.bf16 %v465, %v462
        %v1449 = vpack.c.bf16 %v473, %v470
        %v1450 = vpack.c.bf16 %v481, %v478
        %v1451 = vpack.c.bf16 %v489, %v486
        %v1452 = vpack.c.bf16 %v497, %v494
        %v1453 = vpack.c.bf16 %v505, %v502
        %v1454 = vpack.c.bf16 %v513, %v510
        %v1455 = vpack.c.bf16 %v521, %v518
        %v1456 = vpack.c.bf16 %v529, %v526
        %1473 = vrot.lane.b32.xlu0 %v1441, 96
        %v1474 = vpop.permute.xlu0 %1473
        %1475 = vrot.lane.b32.xlu0 %v1442, 96
        %v1476 = vpop.permute.xlu0 %1475
        %1477 = vrot.lane.b32.xlu0 %v1443, 96
        %v1478 = vpop.permute.xlu0 %1477
        %1479 = vrot.lane.b32.xlu0 %v1444, 96
        %v1480 = vpop.permute.xlu0 %1479
        %1481 = vrot.lane.b32.xlu0 %v1445, 96
        %v1482 = vpop.permute.xlu0 %1481
        %1483 = vrot.lane.b32.xlu0 %v1446, 96
        %v1484 = vpop.permute.xlu0 %1483
        %1485 = vrot.lane.b32.xlu0 %v1447, 96
        %v1486 = vpop.permute.xlu0 %1485
        %1487 = vrot.lane.b32.xlu0 %v1448, 96
        %v1488 = vpop.permute.xlu0 %1487
        %1489 = vrot.lane.b32.xlu0 %v1449, 96
        %v1490 = vpop.permute.xlu0 %1489
        %1491 = vrot.lane.b32.xlu0 %v1450, 96
        %v1492 = vpop.permute.xlu0 %1491
        %1493 = vrot.lane.b32.xlu0 %v1451, 96
        %v1494 = vpop.permute.xlu0 %1493
        %1495 = vrot.lane.b32.xlu0 %v1452, 96
        %v1496 = vpop.permute.xlu0 %1495
        %1497 = vrot.lane.b32.xlu0 %v1453, 96
        %v1498 = vpop.permute.xlu0 %1497
        %1499 = vrot.lane.b32.xlu0 %v1454, 96
        %v1500 = vpop.permute.xlu0 %1499
        %1501 = vrot.lane.b32.xlu0 %v1455, 96
        %v1502 = vpop.permute.xlu0 %1501
        %1503 = vrot.lane.b32.xlu0 %v1456, 96
        %v1504 = vpop.permute.xlu0 %1503
        %v1505 = vpack.c.bf16 %v1394, %v1393
        %v1506 = vpack.c.bf16 %v1396, %v1395
        %v1507 = vpack.c.bf16 %v1398, %v1397
        %v1508 = vpack.c.bf16 %v1400, %v1399
        %v1509 = vpack.c.bf16 %v1402, %v1401
        %v1510 = vpack.c.bf16 %v1404, %v1403
        %v1511 = vpack.c.bf16 %v1406, %v1405
        %v1512 = vpack.c.bf16 %v1408, %v1407
        %v1513 = vpack.c.bf16 %v1410, %v1409
        %v1514 = vpack.c.bf16 %v1412, %v1411
        %v1515 = vpack.c.bf16 %v1414, %v1413
        %v1516 = vpack.c.bf16 %v1416, %v1415
        %v1517 = vpack.c.bf16 %v1418, %v1417
        %v1518 = vpack.c.bf16 %v1420, %v1419
        %v1519 = vpack.c.bf16 %v1422, %v1421
        %v1520 = vpack.c.bf16 %v1424, %v1423
        %v1521 = vld [vmem:[%s3] sm:$0xf]
        %v1522 = vld [vmem:[%s3 + $0x4] sm:$0xf]
        %v1523 = vld [vmem:[%s3 + $0x8] sm:$0xf]
        %v1524 = vld [vmem:[%s3 + $0xc] sm:$0xf]
        %v1525 = vld [vmem:[%s3 + $0x10] sm:$0xf]
        %v1526 = vld [vmem:[%s3 + $0x14] sm:$0xf]
        %v1527 = vld [vmem:[%s3 + $0x18] sm:$0xf]
        %v1528 = vld [vmem:[%s3 + $0x1c] sm:$0xf]
        %s1529 = scalar_lea.vmem %s3, 32
        %v1530 = vld [vmem:[%s1529] sm:$0xf]
        %v1531 = vld [vmem:[%s1529 + $0x4] sm:$0xf]
        %v1532 = vld [vmem:[%s1529 + $0x8] sm:$0xf]
        %v1533 = vld [vmem:[%s1529 + $0xc] sm:$0xf]
        %v1534 = vld [vmem:[%s1529 + $0x10] sm:$0xf]
        %v1535 = vld [vmem:[%s1529 + $0x14] sm:$0xf]
        %v1536 = vld [vmem:[%s1529 + $0x18] sm:$0xf]
        %v1537 = vld [vmem:[%s1529 + $0x1c] sm:$0xf]
        %v1546 = vunpack.c.l.b16 %v1530
        %v1547 = vunpack.c.l.b16 %v1531
        %v1548 = vunpack.c.l.b16 %v1532
        %v1549 = vunpack.c.l.b16 %v1533
        %v1550 = vunpack.c.l.b16 %v1534
        %v1551 = vunpack.c.l.b16 %v1535
        %v1552 = vunpack.c.l.b16 %v1536
        %v1553 = vunpack.c.l.b16 %v1537
        %v1554 = vpack.c.b16 %v1547, %v1546
        %v1555 = vpack.c.b16 %v1549, %v1548
        %v1556 = vpack.c.b16 %v1551, %v1550
        %v1557 = vpack.c.b16 %v1553, %v1552
        %vm1562 = vcmask 523264
        %v1564 = vsel %vm1562, 0, 0
        %v1567 = vsel %vm1562, %v1474, 0
        %v1570 = vsel %vm1562, %v1476, 0
        %v1573 = vsel %vm1562, %v1478, 0
        %v1576 = vsel %vm1562, %v1480, 0
        %v1579 = vsel %vm1562, %v1482, 0
        %v1582 = vsel %vm1562, %v1484, 0
        %v1585 = vsel %vm1562, %v1486, 0
        %v1588 = vsel %vm1562, %v1488, 0
        %v1591 = vsel %vm1562, %v1490, 0
        %v1594 = vsel %vm1562, %v1492, 0
        %v1597 = vsel %vm1562, %v1494, 0
        %v1600 = vsel %vm1562, %v1496, 0
        %v1603 = vsel %vm1562, %v1498, 0
        %v1606 = vsel %vm1562, %v1500, 0
        %v1609 = vsel %vm1562, %v1502, 0
        %1611 = vmatprep.subr.bf16.mxu0 0
        %1612 = vmatpush1.bf16.msra.mxu0 %v1554
        %1613 = vmatprep.subr.bf16.mxu0 0
        %1614 = vmatpush1.bf16.msra.mxu0 %v1555
        %1615 = vmatprep.subr.bf16.mxu0 0
        %1616 = vmatpush1.bf16.msra.mxu0 %v1556
        %1617 = vmatprep.subr.bf16.mxu0 0
        %1618 = vmatpush1.bf16.msra.mxu0 %v1557
        %1619 = vmatprep.subr.bf16.mxu0 0
        %1620 = vmatpush1.bf16.msra.mxu0 0
        %1621 = vmatprep.subr.bf16.mxu0 0
        %1622 = vmatpush1.bf16.msra.mxu0 0
        %1623 = vmatprep.subr.bf16.mxu0 0
        %1624 = vmatpush1.bf16.msra.mxu0 0
        %1625 = vmatprep.subr.bf16.mxu0 0
        %1626 = vmatpush1.bf16.msra.mxu0 0
        %1627 = vmatprep.subr.bf16.mxu0 0
        %1628 = vmatpush1.bf16.msra.mxu0 0
        %1629 = vmatprep.subr.bf16.mxu0 0
        %1630 = vmatpush1.bf16.msra.mxu0 0
        %1631 = vmatprep.subr.bf16.mxu0 0
        %1632 = vmatpush1.bf16.msra.mxu0 0
        %1633 = vmatprep.subr.bf16.mxu0 0
        %1634 = vmatpush1.bf16.msra.mxu0 0
        %1635 = vmatprep.subr.bf16.mxu0 0
        %1636 = vmatpush1.bf16.msra.mxu0 0
        %1637 = vmatprep.subr.bf16.mxu0 0
        %1638 = vmatpush1.bf16.msra.mxu0 0
        %1639 = vmatprep.subr.bf16.mxu0 0
        %1640 = vmatpush1.bf16.msra.mxu0 0
        %1641 = vmatprep.subr.bf16.mxu0 0
        %1642 = vmatpush1.bf16.msra.mxu0 0
        %1643 = vmatprep.mubr.bf16.mxu0 0
        %1644 = vmatmul.mubr.bf16.gmra.mrb[0].mxu0 %v1564
        %v1645 = vpop.f32.mrb[0].mxu0
        %v1646 = vadd.f32 0.0, %v1645
        %v1647 = vpop.f32.mrb[0].mxu0
        %v1648 = vpop.f32.mrb[0].mxu0
        %v1649 = vadd.f32 0.0, %v1648
        %v1650 = vpop.f32.mrb[0].mxu0
        %1651 = vmatprep.mubr.bf16.mxu0 0
        %1652 = vmatmul.mubr.bf16.gmra.mrb[0].mxu0 %v1567
        %v1653 = vpop.f32.mrb[0].mxu0
        %v1654 = vadd.f32 0.0, %v1653
        %v1655 = vpop.f32.mrb[0].mxu0
        %v1656 = vpop.f32.mrb[0].mxu0
        %v1657 = vadd.f32 0.0, %v1656
        %v1658 = vpop.f32.mrb[0].mxu0
        %1659 = vmatprep.mubr.bf16.mxu0 0
        %1660 = vmatmul.mubr.bf16.gmra.mrb[0].mxu0 %v1570
        %v1661 = vpop.f32.mrb[0].mxu0
        %v1662 = vadd.f32 0.0, %v1661
        %v1663 = vpop.f32.mrb[0].mxu0
        %v1664 = vpop.f32.mrb[0].mxu0
        %v1665 = vadd.f32 0.0, %v1664
        %v1666 = vpop.f32.mrb[0].mxu0
        %1667 = vmatprep.mubr.bf16.mxu0 0
        %1668 = vmatmul.mubr.bf16.gmra.mrb[0].mxu0 %v1573
        %v1669 = vpop.f32.mrb[0].mxu0
        %v1670 = vadd.f32 0.0, %v1669
        %v1671 = vpop.f32.mrb[0].mxu0
        %v1672 = vpop.f32.mrb[0].mxu0
        %v1673 = vadd.f32 0.0, %v1672
        %v1674 = vpop.f32.mrb[0].mxu0
        %1675 = vmatprep.mubr.bf16.mxu0 0
        %1676 = vmatmul.mubr.bf16.gmra.mrb[0].mxu0 %v1576
        %v1677 = vpop.f32.mrb[0].mxu0
        %v1678 = vadd.f32 0.0, %v1677
        %v1679 = vpop.f32.mrb[0].mxu0
        %v1680 = vpop.f32.mrb[0].mxu0
        %v1681 = vadd.f32 0.0, %v1680
        %v1682 = vpop.f32.mrb[0].mxu0
        %1683 = vmatprep.mubr.bf16.mxu0 0
        %1684 = vmatmul.mubr.bf16.gmra.mrb[0].mxu0 %v1579
        %v1685 = vpop.f32.mrb[0].mxu0
        %v1686 = vadd.f32 0.0, %v1685
        %v1687 = vpop.f32.mrb[0].mxu0
        %v1688 = vpop.f32.mrb[0].mxu0
        %v1689 = vadd.f32 0.0, %v1688
        %v1690 = vpop.f32.mrb[0].mxu0
        %1691 = vmatprep.mubr.bf16.mxu0 0
        %1692 = vmatmul.mubr.bf16.gmra.mrb[0].mxu0 %v1582
        %v1693 = vpop.f32.mrb[0].mxu0
        %v1694 = vadd.f32 0.0, %v1693
        %v1695 = vpop.f32.mrb[0].mxu0
        %v1696 = vpop.f32.mrb[0].mxu0
        %v1697 = vadd.f32 0.0, %v1696
        %v1698 = vpop.f32.mrb[0].mxu0
        %1699 = vmatprep.mubr.bf16.mxu0 0
        %1700 = vmatmul.mubr.bf16.gmra.mrb[0].mxu0 %v1585
        %v1701 = vpop.f32.mrb[0].mxu0
        %v1702 = vadd.f32 0.0, %v1701
        %v1703 = vpop.f32.mrb[0].mxu0
        %v1704 = vpop.f32.mrb[0].mxu0
        %v1705 = vadd.f32 0.0, %v1704
        %v1706 = vpop.f32.mrb[0].mxu0
        %1707 = vmatprep.mubr.bf16.mxu0 0
        %1708 = vmatmul.mubr.bf16.gmra.mrb[0].mxu0 %v1588
        %v1709 = vpop.f32.mrb[0].mxu0
        %v1710 = vadd.f32 0.0, %v1709
        %v1711 = vpop.f32.mrb[0].mxu0
        %v1712 = vpop.f32.mrb[0].mxu0
        %v1713 = vadd.f32 0.0, %v1712
        %v1714 = vpop.f32.mrb[0].mxu0
        %1715 = vmatprep.mubr.bf16.mxu0 0
        %1716 = vmatmul.mubr.bf16.gmra.mrb[0].mxu0 %v1591
        %v1717 = vpop.f32.mrb[0].mxu0
        %v1718 = vadd.f32 0.0, %v1717
        %v1719 = vpop.f32.mrb[0].mxu0
        %v1720 = vpop.f32.mrb[0].mxu0
        %v1721 = vadd.f32 0.0, %v1720
        %v1722 = vpop.f32.mrb[0].mxu0
        %1723 = vmatprep.mubr.bf16.mxu0 0
        %1724 = vmatmul.mubr.bf16.gmra.mrb[0].mxu0 %v1594
        %v1725 = vpop.f32.mrb[0].mxu0
        %v1726 = vadd.f32 0.0, %v1725
        %v1727 = vpop.f32.mrb[0].mxu0
        %v1728 = vpop.f32.mrb[0].mxu0
        %v1729 = vadd.f32 0.0, %v1728
        %v1730 = vpop.f32.mrb[0].mxu0
        %1731 = vmatprep.mubr.bf16.mxu0 0
        %1732 = vmatmul.mubr.bf16.gmra.mrb[0].mxu0 %v1597
        %v1733 = vpop.f32.mrb[0].mxu0
        %v1734 = vadd.f32 0.0, %v1733
        %v1735 = vpop.f32.mrb[0].mxu0
        %v1736 = vpop.f32.mrb[0].mxu0
        %v1737 = vadd.f32 0.0, %v1736
        %v1738 = vpop.f32.mrb[0].mxu0
        %1739 = vmatprep.mubr.bf16.mxu0 0
        %1740 = vmatmul.mubr.bf16.gmra.mrb[0].mxu0 %v1600
        %v1741 = vpop.f32.mrb[0].mxu0
        %v1742 = vadd.f32 0.0, %v1741
        %v1743 = vpop.f32.mrb[0].mxu0
        %v1744 = vpop.f32.mrb[0].mxu0
        %v1745 = vadd.f32 0.0, %v1744
        %v1746 = vpop.f32.mrb[0].mxu0
        %1747 = vmatprep.mubr.bf16.mxu0 0
        %1748 = vmatmul.mubr.bf16.gmra.mrb[0].mxu0 %v1603
        %v1749 = vpop.f32.mrb[0].mxu0
        %v1750 = vadd.f32 0.0, %v1749
        %v1751 = vpop.f32.mrb[0].mxu0
        %v1752 = vpop.f32.mrb[0].mxu0
        %v1753 = vadd.f32 0.0, %v1752
        %v1754 = vpop.f32.mrb[0].mxu0
        %1755 = vmatprep.mubr.bf16.mxu0 0
        %1756 = vmatmul.mubr.bf16.gmra.mrb[0].mxu0 %v1606
        %v1757 = vpop.f32.mrb[0].mxu0
        %v1758 = vadd.f32 0.0, %v1757
        %v1759 = vpop.f32.mrb[0].mxu0
        %v1760 = vpop.f32.mrb[0].mxu0
        %v1761 = vadd.f32 0.0, %v1760
        %v1762 = vpop.f32.mrb[0].mxu0
        %1763 = vmatprep.mubr.bf16.mxu0 0
        %1764 = vmatmul.mubr.bf16.gmra.mrb[0].mxu0 %v1609
        %v1765 = vpop.f32.mrb[0].mxu0
        %v1766 = vadd.f32 0.0, %v1765
        %v1767 = vpop.f32.mrb[0].mxu0
        %v1768 = vpop.f32.mrb[0].mxu0
        %v1769 = vadd.f32 0.0, %v1768
        %v1770 = vpop.f32.mrb[0].mxu0
        %1771 = vdwg.mxu0
        %v1780 = vunpack.c.l.b16 %v1521
        %v1781 = vunpack.c.l.b16 %v1522
        %v1782 = vunpack.c.l.b16 %v1523
        %v1783 = vunpack.c.l.b16 %v1524
        %v1784 = vunpack.c.l.b16 %v1525
        %v1785 = vunpack.c.l.b16 %v1526
        %v1786 = vunpack.c.l.b16 %v1527
        %v1787 = vunpack.c.l.b16 %v1528
        %v1788 = vpack.c.b16 %v1781, %v1780
        %v1789 = vpack.c.b16 %v1783, %v1782
        %v1790 = vpack.c.b16 %v1785, %v1784
        %v1791 = vpack.c.b16 %v1787, %v1786
        %v1797 = vsel %vm1562, %v1425, 0
        %v1800 = vsel %vm1562, %v1426, 0
        %v1803 = vsel %vm1562, %v1427, 0
        %v1806 = vsel %vm1562, %v1428, 0
        %v1809 = vsel %vm1562, %v1429, 0
        %v1812 = vsel %vm1562, %v1430, 0
        %v1815 = vsel %vm1562, %v1431, 0
        %v1818 = vsel %vm1562, %v1432, 0
        %v1821 = vsel %vm1562, %v1433, 0
        %v1824 = vsel %vm1562, %v1434, 0
        %v1827 = vsel %vm1562, %v1435, 0
        %v1830 = vsel %vm1562, %v1436, 0
        %v1833 = vsel %vm1562, %v1437, 0
        %v1836 = vsel %vm1562, %v1438, 0
        %v1839 = vsel %vm1562, %v1439, 0
        %1841 = vmatprep.subr.bf16.mxu0 0
        %1842 = vmatpush1.bf16.msra.mxu0 %v1788
        %1843 = vmatprep.subr.bf16.mxu0 0
        %1844 = vmatpush1.bf16.msra.mxu0 %v1789
        %1845 = vmatprep.subr.bf16.mxu0 0
        %1846 = vmatpush1.bf16.msra.mxu0 %v1790
        %1847 = vmatprep.subr.bf16.mxu0 0
        %1848 = vmatpush1.bf16.msra.mxu0 %v1791
        %1849 = vmatprep.subr.bf16.mxu0 0
        %1850 = vmatpush1.bf16.msra.mxu0 0
        %1851 = vmatprep.subr.bf16.mxu0 0
        %1852 = vmatpush1.bf16.msra.mxu0 0
        %1853 = vmatprep.subr.bf16.mxu0 0
        %1854 = vmatpush1.bf16.msra.mxu0 0
        %1855 = vmatprep.subr.bf16.mxu0 0
        %1856 = vmatpush1.bf16.msra.mxu0 0
        %1857 = vmatprep.subr.bf16.mxu0 0
        %1858 = vmatpush1.bf16.msra.mxu0 0
        %1859 = vmatprep.subr.bf16.mxu0 0
        %1860 = vmatpush1.bf16.msra.mxu0 0
        %1861 = vmatprep.subr.bf16.mxu0 0
        %1862 = vmatpush1.bf16.msra.mxu0 0
        %1863 = vmatprep.subr.bf16.mxu0 0
        %1864 = vmatpush1.bf16.msra.mxu0 0
        %1865 = vmatprep.subr.bf16.mxu0 0
        %1866 = vmatpush1.bf16.msra.mxu0 0
        %1867 = vmatprep.subr.bf16.mxu0 0
        %1868 = vmatpush1.bf16.msra.mxu0 0
        %1869 = vmatprep.subr.bf16.mxu0 0
        %1870 = vmatpush1.bf16.msra.mxu0 0
        %1871 = vmatprep.subr.bf16.mxu0 0
        %1872 = vmatpush1.bf16.msra.mxu0 0
        %1873 = vmatprep.mubr.bf16.mxu0 0
        %1874 = vmatmul.mubr.bf16.gmra.mrb[0].mxu0 %v1564
        %v1875 = vpop.f32.mrb[0].mxu0
        %v1876 = vadd.f32 %v1646, %v1875
        %v1877 = vpop.f32.mrb[0].mxu0
        %v1878 = vpop.f32.mrb[0].mxu0
        %v1879 = vadd.f32 %v1649, %v1878
        %v1880 = vpop.f32.mrb[0].mxu0
        %1881 = vmatprep.mubr.bf16.mxu0 0
        %1882 = vmatmul.mubr.bf16.gmra.mrb[0].mxu0 %v1797
        %v1883 = vpop.f32.mrb[0].mxu0
        %v1884 = vadd.f32 %v1654, %v1883
        %v1885 = vpop.f32.mrb[0].mxu0
        %v1886 = vpop.f32.mrb[0].mxu0
        %v1887 = vadd.f32 %v1657, %v1886
        %v1888 = vpop.f32.mrb[0].mxu0
        %1889 = vmatprep.mubr.bf16.mxu0 0
        %1890 = vmatmul.mubr.bf16.gmra.mrb[0].mxu0 %v1800
        %v1891 = vpop.f32.mrb[0].mxu0
        %v1892 = vadd.f32 %v1662, %v1891
        %v1893 = vpop.f32.mrb[0].mxu0
        %v1894 = vpop.f32.mrb[0].mxu0
        %v1895 = vadd.f32 %v1665, %v1894
        %v1896 = vpop.f32.mrb[0].mxu0
        %1897 = vmatprep.mubr.bf16.mxu0 0
        %1898 = vmatmul.mubr.bf16.gmra.mrb[0].mxu0 %v1803
        %v1899 = vpop.f32.mrb[0].mxu0
        %v1900 = vadd.f32 %v1670, %v1899
        %v1901 = vpop.f32.mrb[0].mxu0
        %v1902 = vpop.f32.mrb[0].mxu0
        %v1903 = vadd.f32 %v1673, %v1902
        %v1904 = vpop.f32.mrb[0].mxu0
        %1905 = vmatprep.mubr.bf16.mxu0 0
        %1906 = vmatmul.mubr.bf16.gmra.mrb[0].mxu0 %v1806
        %v1907 = vpop.f32.mrb[0].mxu0
        %v1908 = vadd.f32 %v1678, %v1907
        %v1909 = vpop.f32.mrb[0].mxu0
        %v1910 = vpop.f32.mrb[0].mxu0
        %v1911 = vadd.f32 %v1681, %v1910
        %v1912 = vpop.f32.mrb[0].mxu0
        %1913 = vmatprep.mubr.bf16.mxu0 0
        %1914 = vmatmul.mubr.bf16.gmra.mrb[0].mxu0 %v1809
        %v1915 = vpop.f32.mrb[0].mxu0
        %v1916 = vadd.f32 %v1686, %v1915
        %v1917 = vpop.f32.mrb[0].mxu0
        %v1918 = vpop.f32.mrb[0].mxu0
        %v1919 = vadd.f32 %v1689, %v1918
        %v1920 = vpop.f32.mrb[0].mxu0
        %1921 = vmatprep.mubr.bf16.mxu0 0
        %1922 = vmatmul.mubr.bf16.gmra.mrb[0].mxu0 %v1812
        %v1923 = vpop.f32.mrb[0].mxu0
        %v1924 = vadd.f32 %v1694, %v1923
        %v1925 = vpop.f32.mrb[0].mxu0
        %v1926 = vpop.f32.mrb[0].mxu0
        %v1927 = vadd.f32 %v1697, %v1926
        %v1928 = vpop.f32.mrb[0].mxu0
        %1929 = vmatprep.mubr.bf16.mxu0 0
        %1930 = vmatmul.mubr.bf16.gmra.mrb[0].mxu0 %v1815
        %v1931 = vpop.f32.mrb[0].mxu0
        %v1932 = vadd.f32 %v1702, %v1931
        %v1933 = vpop.f32.mrb[0].mxu0
        %v1934 = vpop.f32.mrb[0].mxu0
        %v1935 = vadd.f32 %v1705, %v1934
        %v1936 = vpop.f32.mrb[0].mxu0
        %1937 = vmatprep.mubr.bf16.mxu0 0
        %1938 = vmatmul.mubr.bf16.gmra.mrb[0].mxu0 %v1818
        %v1939 = vpop.f32.mrb[0].mxu0
        %v1940 = vadd.f32 %v1710, %v1939
        %v1941 = vpop.f32.mrb[0].mxu0
        %v1942 = vpop.f32.mrb[0].mxu0
        %v1943 = vadd.f32 %v1713, %v1942
        %v1944 = vpop.f32.mrb[0].mxu0
        %1945 = vmatprep.mubr.bf16.mxu0 0
        %1946 = vmatmul.mubr.bf16.gmra.mrb[0].mxu0 %v1821
        %v1947 = vpop.f32.mrb[0].mxu0
        %v1948 = vadd.f32 %v1718, %v1947
        %v1949 = vpop.f32.mrb[0].mxu0
        %v1950 = vpop.f32.mrb[0].mxu0
        %v1951 = vadd.f32 %v1721, %v1950
        %v1952 = vpop.f32.mrb[0].mxu0
        %1953 = vmatprep.mubr.bf16.mxu0 0
        %1954 = vmatmul.mubr.bf16.gmra.mrb[0].mxu0 %v1824
        %v1955 = vpop.f32.mrb[0].mxu0
        %v1956 = vadd.f32 %v1726, %v1955
        %v1957 = vpop.f32.mrb[0].mxu0
        %v1958 = vpop.f32.mrb[0].mxu0
        %v1959 = vadd.f32 %v1729, %v1958
        %v1960 = vpop.f32.mrb[0].mxu0
        %1961 = vmatprep.mubr.bf16.mxu0 0
        %1962 = vmatmul.mubr.bf16.gmra.mrb[0].mxu0 %v1827
        %v1963 = vpop.f32.mrb[0].mxu0
        %v1964 = vadd.f32 %v1734, %v1963
        %v1965 = vpop.f32.mrb[0].mxu0
        %v1966 = vpop.f32.mrb[0].mxu0
        %v1967 = vadd.f32 %v1737, %v1966
        %v1968 = vpop.f32.mrb[0].mxu0
        %1969 = vmatprep.mubr.bf16.mxu0 0
        %1970 = vmatmul.mubr.bf16.gmra.mrb[0].mxu0 %v1830
        %v1971 = vpop.f32.mrb[0].mxu0
        %v1972 = vadd.f32 %v1742, %v1971
        %v1973 = vpop.f32.mrb[0].mxu0
        %v1974 = vpop.f32.mrb[0].mxu0
        %v1975 = vadd.f32 %v1745, %v1974
        %v1976 = vpop.f32.mrb[0].mxu0
        %1977 = vmatprep.mubr.bf16.mxu0 0
        %1978 = vmatmul.mubr.bf16.gmra.mrb[0].mxu0 %v1833
        %v1979 = vpop.f32.mrb[0].mxu0
        %v1980 = vadd.f32 %v1750, %v1979
        %v1981 = vpop.f32.mrb[0].mxu0
        %v1982 = vpop.f32.mrb[0].mxu0
        %v1983 = vadd.f32 %v1753, %v1982
        %v1984 = vpop.f32.mrb[0].mxu0
        %1985 = vmatprep.mubr.bf16.mxu0 0
        %1986 = vmatmul.mubr.bf16.gmra.mrb[0].mxu0 %v1836
        %v1987 = vpop.f32.mrb[0].mxu0
        %v1988 = vadd.f32 %v1758, %v1987
        %v1989 = vpop.f32.mrb[0].mxu0
        %v1990 = vpop.f32.mrb[0].mxu0
        %v1991 = vadd.f32 %v1761, %v1990
        %v1992 = vpop.f32.mrb[0].mxu0
        %1993 = vmatprep.mubr.bf16.mxu0 0
        %1994 = vmatmul.mubr.bf16.gmra.mrb[0].mxu0 %v1839
        %v1995 = vpop.f32.mrb[0].mxu0
        %v1996 = vadd.f32 %v1766, %v1995
        %v1997 = vpop.f32.mrb[0].mxu0
        %v1998 = vpop.f32.mrb[0].mxu0
        %v1999 = vadd.f32 %v1769, %v1998
        %v2000 = vpop.f32.mrb[0].mxu0
        %2001 = vdwg.mxu0
        %s2002 = scalar_lea.vmem %s3, 64
        %v2003 = vld [vmem:[%s2002] sm:$0xf]
        %v2004 = vld [vmem:[%s2002 + $0x4] sm:$0xf]
        %v2005 = vld [vmem:[%s2002 + $0x8] sm:$0xf]
        %v2006 = vld [vmem:[%s2002 + $0xc] sm:$0xf]
        %v2007 = vld [vmem:[%s2002 + $0x10] sm:$0xf]
        %v2008 = vld [vmem:[%s2002 + $0x14] sm:$0xf]
        %v2009 = vld [vmem:[%s2002 + $0x18] sm:$0xf]
        %v2010 = vld [vmem:[%s2002 + $0x1c] sm:$0xf]
        %v2019 = vunpack.c.l.b16 %v2003
        %v2020 = vunpack.c.l.b16 %v2004
        %v2021 = vunpack.c.l.b16 %v2005
        %v2022 = vunpack.c.l.b16 %v2006
        %v2023 = vunpack.c.l.b16 %v2007
        %v2024 = vunpack.c.l.b16 %v2008
        %v2025 = vunpack.c.l.b16 %v2009
        %v2026 = vunpack.c.l.b16 %v2010
        %v2027 = vpack.c.b16 %v2020, %v2019
        %v2028 = vpack.c.b16 %v2022, %v2021
        %v2029 = vpack.c.b16 %v2024, %v2023
        %v2030 = vpack.c.b16 %v2026, %v2025
        %v2036 = vsel %vm1562, %v1505, 0
        %v2039 = vsel %vm1562, %v1506, 0
        %v2042 = vsel %vm1562, %v1507, 0
        %v2045 = vsel %vm1562, %v1508, 0
        %v2048 = vsel %vm1562, %v1509, 0
        %v2051 = vsel %vm1562, %v1510, 0
        %v2054 = vsel %vm1562, %v1511, 0
        %v2057 = vsel %vm1562, %v1512, 0
        %v2060 = vsel %vm1562, %v1513, 0
        %v2063 = vsel %vm1562, %v1514, 0
        %v2066 = vsel %vm1562, %v1515, 0
        %v2069 = vsel %vm1562, %v1516, 0
        %v2072 = vsel %vm1562, %v1517, 0
        %v2075 = vsel %vm1562, %v1518, 0
        %v2078 = vsel %vm1562, %v1519, 0
        %2080 = vmatprep.subr.bf16.mxu0 0
        %2081 = vmatpush1.bf16.msra.mxu0 %v2027
        %2082 = vmatprep.subr.bf16.mxu0 0
        %2083 = vmatpush1.bf16.msra.mxu0 %v2028
        %2084 = vmatprep.subr.bf16.mxu0 0
        %2085 = vmatpush1.bf16.msra.mxu0 %v2029
        %2086 = vmatprep.subr.bf16.mxu0 0
        %2087 = vmatpush1.bf16.msra.mxu0 %v2030
        %2088 = vmatprep.subr.bf16.mxu0 0
        %2089 = vmatpush1.bf16.msra.mxu0 0
        %2090 = vmatprep.subr.bf16.mxu0 0
        %2091 = vmatpush1.bf16.msra.mxu0 0
        %2092 = vmatprep.subr.bf16.mxu0 0
        %2093 = vmatpush1.bf16.msra.mxu0 0
        %2094 = vmatprep.subr.bf16.mxu0 0
        %2095 = vmatpush1.bf16.msra.mxu0 0
        %2096 = vmatprep.subr.bf16.mxu0 0
        %2097 = vmatpush1.bf16.msra.mxu0 0
        %2098 = vmatprep.subr.bf16.mxu0 0
        %2099 = vmatpush1.bf16.msra.mxu0 0
        %2100 = vmatprep.subr.bf16.mxu0 0
        %2101 = vmatpush1.bf16.msra.mxu0 0
        %2102 = vmatprep.subr.bf16.mxu0 0
        %2103 = vmatpush1.bf16.msra.mxu0 0
        %2104 = vmatprep.subr.bf16.mxu0 0
        %2105 = vmatpush1.bf16.msra.mxu0 0
        %2106 = vmatprep.subr.bf16.mxu0 0
        %2107 = vmatpush1.bf16.msra.mxu0 0
        %2108 = vmatprep.subr.bf16.mxu0 0
        %2109 = vmatpush1.bf16.msra.mxu0 0
        %2110 = vmatprep.subr.bf16.mxu0 0
        %2111 = vmatpush1.bf16.msra.mxu0 0
        %2112 = vmatprep.mubr.bf16.mxu0 0
        %2113 = vmatmul.mubr.bf16.gmra.mrb[0].mxu0 %v1564
        %v2114 = vpop.f32.mrb[0].mxu0
        %v2115 = vadd.f32 0.0, %v2114
        %v2116 = vpop.f32.mrb[0].mxu0
        %v2117 = vpop.f32.mrb[0].mxu0
        %v2118 = vadd.f32 0.0, %v2117
        %v2119 = vpop.f32.mrb[0].mxu0
        %2120 = vmatprep.mubr.bf16.mxu0 0
        %2121 = vmatmul.mubr.bf16.gmra.mrb[0].mxu0 %v2036
        %v2122 = vpop.f32.mrb[0].mxu0
        %v2123 = vadd.f32 0.0, %v2122
        %v2124 = vpop.f32.mrb[0].mxu0
        %v2125 = vpop.f32.mrb[0].mxu0
        %v2126 = vadd.f32 0.0, %v2125
        %v2127 = vpop.f32.mrb[0].mxu0
        %2128 = vmatprep.mubr.bf16.mxu0 0
        %2129 = vmatmul.mubr.bf16.gmra.mrb[0].mxu0 %v2039
        %v2130 = vpop.f32.mrb[0].mxu0
        %v2131 = vadd.f32 0.0, %v2130
        %v2132 = vpop.f32.mrb[0].mxu0
        %v2133 = vpop.f32.mrb[0].mxu0
        %v2134 = vadd.f32 0.0, %v2133
        %v2135 = vpop.f32.mrb[0].mxu0
        %2136 = vmatprep.mubr.bf16.mxu0 0
        %2137 = vmatmul.mubr.bf16.gmra.mrb[0].mxu0 %v2042
        %v2138 = vpop.f32.mrb[0].mxu0
        %v2139 = vadd.f32 0.0, %v2138
        %v2140 = vpop.f32.mrb[0].mxu0
        %v2141 = vpop.f32.mrb[0].mxu0
        %v2142 = vadd.f32 0.0, %v2141
        %v2143 = vpop.f32.mrb[0].mxu0
        %2144 = vmatprep.mubr.bf16.mxu0 0
        %2145 = vmatmul.mubr.bf16.gmra.mrb[0].mxu0 %v2045
        %v2146 = vpop.f32.mrb[0].mxu0
        %v2147 = vadd.f32 0.0, %v2146
        %v2148 = vpop.f32.mrb[0].mxu0
        %v2149 = vpop.f32.mrb[0].mxu0
        %v2150 = vadd.f32 0.0, %v2149
        %v2151 = vpop.f32.mrb[0].mxu0
        %2152 = vmatprep.mubr.bf16.mxu0 0
        %2153 = vmatmul.mubr.bf16.gmra.mrb[0].mxu0 %v2048
        %v2154 = vpop.f32.mrb[0].mxu0
        %v2155 = vadd.f32 0.0, %v2154
        %v2156 = vpop.f32.mrb[0].mxu0
        %v2157 = vpop.f32.mrb[0].mxu0
        %v2158 = vadd.f32 0.0, %v2157
        %v2159 = vpop.f32.mrb[0].mxu0
        %2160 = vmatprep.mubr.bf16.mxu0 0
        %2161 = vmatmul.mubr.bf16.gmra.mrb[0].mxu0 %v2051
        %v2162 = vpop.f32.mrb[0].mxu0
        %v2163 = vadd.f32 0.0, %v2162
        %v2164 = vpop.f32.mrb[0].mxu0
        %v2165 = vpop.f32.mrb[0].mxu0
        %v2166 = vadd.f32 0.0, %v2165
        %v2167 = vpop.f32.mrb[0].mxu0
        %2168 = vmatprep.mubr.bf16.mxu0 0
        %2169 = vmatmul.mubr.bf16.gmra.mrb[0].mxu0 %v2054
        %v2170 = vpop.f32.mrb[0].mxu0
        %v2171 = vadd.f32 0.0, %v2170
        %v2172 = vpop.f32.mrb[0].mxu0
        %v2173 = vpop.f32.mrb[0].mxu0
        %v2174 = vadd.f32 0.0, %v2173
        %v2175 = vpop.f32.mrb[0].mxu0
        %2176 = vmatprep.mubr.bf16.mxu0 0
        %2177 = vmatmul.mubr.bf16.gmra.mrb[0].mxu0 %v2057
        %v2178 = vpop.f32.mrb[0].mxu0
        %v2179 = vadd.f32 0.0, %v2178
        %v2180 = vpop.f32.mrb[0].mxu0
        %v2181 = vpop.f32.mrb[0].mxu0
        %v2182 = vadd.f32 0.0, %v2181
        %v2183 = vpop.f32.mrb[0].mxu0
        %2184 = vmatprep.mubr.bf16.mxu0 0
        %2185 = vmatmul.mubr.bf16.gmra.mrb[0].mxu0 %v2060
        %v2186 = vpop.f32.mrb[0].mxu0
        %v2187 = vadd.f32 0.0, %v2186
        %v2188 = vpop.f32.mrb[0].mxu0
        %v2189 = vpop.f32.mrb[0].mxu0
        %v2190 = vadd.f32 0.0, %v2189
        %v2191 = vpop.f32.mrb[0].mxu0
        %2192 = vmatprep.mubr.bf16.mxu0 0
        %2193 = vmatmul.mubr.bf16.gmra.mrb[0].mxu0 %v2063
        %v2194 = vpop.f32.mrb[0].mxu0
        %v2195 = vadd.f32 0.0, %v2194
        %v2196 = vpop.f32.mrb[0].mxu0
        %v2197 = vpop.f32.mrb[0].mxu0
        %v2198 = vadd.f32 0.0, %v2197
        %v2199 = vpop.f32.mrb[0].mxu0
        %2200 = vmatprep.mubr.bf16.mxu0 0
        %2201 = vmatmul.mubr.bf16.gmra.mrb[0].mxu0 %v2066
        %v2202 = vpop.f32.mrb[0].mxu0
        %v2203 = vadd.f32 0.0, %v2202
        %v2204 = vpop.f32.mrb[0].mxu0
        %v2205 = vpop.f32.mrb[0].mxu0
        %v2206 = vadd.f32 0.0, %v2205
        %v2207 = vpop.f32.mrb[0].mxu0
        %2208 = vmatprep.mubr.bf16.mxu0 0
        %2209 = vmatmul.mubr.bf16.gmra.mrb[0].mxu0 %v2069
        %v2210 = vpop.f32.mrb[0].mxu0
        %v2211 = vadd.f32 0.0, %v2210
        %v2212 = vpop.f32.mrb[0].mxu0
        %v2213 = vpop.f32.mrb[0].mxu0
        %v2214 = vadd.f32 0.0, %v2213
        %v2215 = vpop.f32.mrb[0].mxu0
        %2216 = vmatprep.mubr.bf16.mxu0 0
        %2217 = vmatmul.mubr.bf16.gmra.mrb[0].mxu0 %v2072
        %v2218 = vpop.f32.mrb[0].mxu0
        %v2219 = vadd.f32 0.0, %v2218
        %v2220 = vpop.f32.mrb[0].mxu0
        %v2221 = vpop.f32.mrb[0].mxu0
        %v2222 = vadd.f32 0.0, %v2221
        %v2223 = vpop.f32.mrb[0].mxu0
        %2224 = vmatprep.mubr.bf16.mxu0 0
        %2225 = vmatmul.mubr.bf16.gmra.mrb[0].mxu0 %v2075
        %v2226 = vpop.f32.mrb[0].mxu0
        %v2227 = vadd.f32 0.0, %v2226
        %v2228 = vpop.f32.mrb[0].mxu0
        %v2229 = vpop.f32.mrb[0].mxu0
        %v2230 = vadd.f32 0.0, %v2229
        %v2231 = vpop.f32.mrb[0].mxu0
        %2232 = vmatprep.mubr.bf16.mxu0 0
        %2233 = vmatmul.mubr.bf16.gmra.mrb[0].mxu0 %v2078
        %v2234 = vpop.f32.mrb[0].mxu0
        %v2235 = vadd.f32 0.0, %v2234
        %v2236 = vpop.f32.mrb[0].mxu0
        %v2237 = vpop.f32.mrb[0].mxu0
        %v2238 = vadd.f32 0.0, %v2237
        %v2239 = vpop.f32.mrb[0].mxu0
        %2240 = vdwg.mxu0
        %v2241 = vadd.f32 %v1876, %v2115
        %v2242 = vadd.f32 %v1879, %v2118
        %v2243 = vadd.f32 %v1884, %v2123
        %v2244 = vadd.f32 %v1887, %v2126
        %v2245 = vadd.f32 %v1892, %v2131
        %v2246 = vadd.f32 %v1895, %v2134
        %v2247 = vadd.f32 %v1900, %v2139
        %v2248 = vadd.f32 %v1903, %v2142
        %v2249 = vadd.f32 %v1908, %v2147
        %v2250 = vadd.f32 %v1911, %v2150
        %v2251 = vadd.f32 %v1916, %v2155
        %v2252 = vadd.f32 %v1919, %v2158
        %v2253 = vadd.f32 %v1924, %v2163
        %v2254 = vadd.f32 %v1927, %v2166
        %v2255 = vadd.f32 %v1932, %v2171
        %v2256 = vadd.f32 %v1935, %v2174
        %v2257 = vadd.f32 %v1940, %v2179
        %v2258 = vadd.f32 %v1943, %v2182
        %v2259 = vadd.f32 %v1948, %v2187
        %v2260 = vadd.f32 %v1951, %v2190
        %v2261 = vadd.f32 %v1956, %v2195
        %v2262 = vadd.f32 %v1959, %v2198
        %v2263 = vadd.f32 %v1964, %v2203
        %v2264 = vadd.f32 %v1967, %v2206
        %v2265 = vadd.f32 %v1972, %v2211
        %v2266 = vadd.f32 %v1975, %v2214
        %v2267 = vadd.f32 %v1980, %v2219
        %v2268 = vadd.f32 %v1983, %v2222
        %v2269 = vadd.f32 %v1988, %v2227
        %v2270 = vadd.f32 %v1991, %v2230
        %v2271 = vadd.f32 %v1996, %v2235
        %v2272 = vadd.f32 %v1999, %v2238
        %s2273 = scalar_lea.vmem %s3, 96
        %v2274 = vld [vmem:[%s2273] sm:$0xf]
        %v2275 = vld [vmem:[%s2273 + $0x4] sm:$0xf]
        %v2276 = vld [vmem:[%s2273 + $0x8] sm:$0xf]
        %v2277 = vld [vmem:[%s2273 + $0xc] sm:$0xf]
        %v2278 = vld [vmem:[%s2273 + $0x10] sm:$0xf]
        %v2279 = vld [vmem:[%s2273 + $0x14] sm:$0xf]
        %v2280 = vld [vmem:[%s2273 + $0x18] sm:$0xf]
        %v2281 = vld [vmem:[%s2273 + $0x1c] sm:$0xf]
        %v2290 = vunpack.c.l.b16 %v2274
        %v2291 = vunpack.c.l.b16 %v2275
        %v2292 = vunpack.c.l.b16 %v2276
        %v2293 = vunpack.c.l.b16 %v2277
        %v2294 = vunpack.c.l.b16 %v2278
        %v2295 = vunpack.c.l.b16 %v2279
        %v2296 = vunpack.c.l.b16 %v2280
        %v2297 = vunpack.c.l.b16 %v2281
        %v2298 = vpack.c.b16 %v2291, %v2290
        %v2299 = vpack.c.b16 %v2293, %v2292
        %v2300 = vpack.c.b16 %v2295, %v2294
        %v2301 = vpack.c.b16 %v2297, %v2296
        %v2307 = vsel %vm1562, %v1440, 0
        %2309 = vmatprep.subr.bf16.mxu0 0
        %2310 = vmatpush1.bf16.msra.mxu0 %v2298
        %2311 = vmatprep.subr.bf16.mxu0 0
        %2312 = vmatpush1.bf16.msra.mxu0 %v2299
        %2313 = vmatprep.subr.bf16.mxu0 0
        %2314 = vmatpush1.bf16.msra.mxu0 %v2300
        %2315 = vmatprep.subr.bf16.mxu0 0
        %2316 = vmatpush1.bf16.msra.mxu0 %v2301
        %2317 = vmatprep.subr.bf16.mxu0 0
        %2318 = vmatpush1.bf16.msra.mxu0 0
        %2319 = vmatprep.subr.bf16.mxu0 0
        %2320 = vmatpush1.bf16.msra.mxu0 0
        %2321 = vmatprep.subr.bf16.mxu0 0
        %2322 = vmatpush1.bf16.msra.mxu0 0
        %2323 = vmatprep.subr.bf16.mxu0 0
        %2324 = vmatpush1.bf16.msra.mxu0 0
        %2325 = vmatprep.subr.bf16.mxu0 0
        %2326 = vmatpush1.bf16.msra.mxu0 0
        %2327 = vmatprep.subr.bf16.mxu0 0
        %2328 = vmatpush1.bf16.msra.mxu0 0
        %2329 = vmatprep.subr.bf16.mxu0 0
        %2330 = vmatpush1.bf16.msra.mxu0 0
        %2331 = vmatprep.subr.bf16.mxu0 0
        %2332 = vmatpush1.bf16.msra.mxu0 0
        %2333 = vmatprep.subr.bf16.mxu0 0
        %2334 = vmatpush1.bf16.msra.mxu0 0
        %2335 = vmatprep.subr.bf16.mxu0 0
        %2336 = vmatpush1.bf16.msra.mxu0 0
        %2337 = vmatprep.subr.bf16.mxu0 0
        %2338 = vmatpush1.bf16.msra.mxu0 0
        %2339 = vmatprep.subr.bf16.mxu0 0
        %2340 = vmatpush1.bf16.msra.mxu0 0
        %2341 = vmatprep.mubr.bf16.mxu0 0
        %2342 = vmatmul.mubr.bf16.gmra.mrb[0].mxu0 %v1797
        %v2343 = vpop.f32.mrb[0].mxu0
        %v2344 = vadd.f32 0.0, %v2343
        %v2345 = vpop.f32.mrb[0].mxu0
        %v2346 = vpop.f32.mrb[0].mxu0
        %v2347 = vadd.f32 0.0, %v2346
        %v2348 = vpop.f32.mrb[0].mxu0
        %2349 = vmatprep.mubr.bf16.mxu0 0
        %2350 = vmatmul.mubr.bf16.gmra.mrb[0].mxu0 %v1800
        %v2351 = vpop.f32.mrb[0].mxu0
        %v2352 = vadd.f32 0.0, %v2351
        %v2353 = vpop.f32.mrb[0].mxu0
        %v2354 = vpop.f32.mrb[0].mxu0
        %v2355 = vadd.f32 0.0, %v2354
        %v2356 = vpop.f32.mrb[0].mxu0
        %2357 = vmatprep.mubr.bf16.mxu0 0
        %2358 = vmatmul.mubr.bf16.gmra.mrb[0].mxu0 %v1803
        %v2359 = vpop.f32.mrb[0].mxu0
        %v2360 = vadd.f32 0.0, %v2359
        %v2361 = vpop.f32.mrb[0].mxu0
        %v2362 = vpop.f32.mrb[0].mxu0
        %v2363 = vadd.f32 0.0, %v2362
        %v2364 = vpop.f32.mrb[0].mxu0
        %2365 = vmatprep.mubr.bf16.mxu0 0
        %2366 = vmatmul.mubr.bf16.gmra.mrb[0].mxu0 %v1806
        %v2367 = vpop.f32.mrb[0].mxu0
        %v2368 = vadd.f32 0.0, %v2367
        %v2369 = vpop.f32.mrb[0].mxu0
        %v2370 = vpop.f32.mrb[0].mxu0
        %v2371 = vadd.f32 0.0, %v2370
        %v2372 = vpop.f32.mrb[0].mxu0
        %2373 = vmatprep.mubr.bf16.mxu0 0
        %2374 = vmatmul.mubr.bf16.gmra.mrb[0].mxu0 %v1809
        %v2375 = vpop.f32.mrb[0].mxu0
        %v2376 = vadd.f32 0.0, %v2375
        %v2377 = vpop.f32.mrb[0].mxu0
        %v2378 = vpop.f32.mrb[0].mxu0
        %v2379 = vadd.f32 0.0, %v2378
        %v2380 = vpop.f32.mrb[0].mxu0
        %2381 = vmatprep.mubr.bf16.mxu0 0
        %2382 = vmatmul.mubr.bf16.gmra.mrb[0].mxu0 %v1812
        %v2383 = vpop.f32.mrb[0].mxu0
        %v2384 = vadd.f32 0.0, %v2383
        %v2385 = vpop.f32.mrb[0].mxu0
        %v2386 = vpop.f32.mrb[0].mxu0
        %v2387 = vadd.f32 0.0, %v2386
        %v2388 = vpop.f32.mrb[0].mxu0
        %2389 = vmatprep.mubr.bf16.mxu0 0
        %2390 = vmatmul.mubr.bf16.gmra.mrb[0].mxu0 %v1815
        %v2391 = vpop.f32.mrb[0].mxu0
        %v2392 = vadd.f32 0.0, %v2391
        %v2393 = vpop.f32.mrb[0].mxu0
        %v2394 = vpop.f32.mrb[0].mxu0
        %v2395 = vadd.f32 0.0, %v2394
        %v2396 = vpop.f32.mrb[0].mxu0
        %2397 = vmatprep.mubr.bf16.mxu0 0
        %2398 = vmatmul.mubr.bf16.gmra.mrb[0].mxu0 %v1818
        %v2399 = vpop.f32.mrb[0].mxu0
        %v2400 = vadd.f32 0.0, %v2399
        %v2401 = vpop.f32.mrb[0].mxu0
        %v2402 = vpop.f32.mrb[0].mxu0
        %v2403 = vadd.f32 0.0, %v2402
        %v2404 = vpop.f32.mrb[0].mxu0
        %2405 = vmatprep.mubr.bf16.mxu0 0
        %2406 = vmatmul.mubr.bf16.gmra.mrb[0].mxu0 %v1821
        %v2407 = vpop.f32.mrb[0].mxu0
        %v2408 = vadd.f32 0.0, %v2407
        %v2409 = vpop.f32.mrb[0].mxu0
        %v2410 = vpop.f32.mrb[0].mxu0
        %v2411 = vadd.f32 0.0, %v2410
        %v2412 = vpop.f32.mrb[0].mxu0
        %2413 = vmatprep.mubr.bf16.mxu0 0
        %2414 = vmatmul.mubr.bf16.gmra.mrb[0].mxu0 %v1824
        %v2415 = vpop.f32.mrb[0].mxu0
        %v2416 = vadd.f32 0.0, %v2415
        %v2417 = vpop.f32.mrb[0].mxu0
        %v2418 = vpop.f32.mrb[0].mxu0
        %v2419 = vadd.f32 0.0, %v2418
        %v2420 = vpop.f32.mrb[0].mxu0
        %2421 = vmatprep.mubr.bf16.mxu0 0
        %2422 = vmatmul.mubr.bf16.gmra.mrb[0].mxu0 %v1827
        %v2423 = vpop.f32.mrb[0].mxu0
        %v2424 = vadd.f32 0.0, %v2423
        %v2425 = vpop.f32.mrb[0].mxu0
        %v2426 = vpop.f32.mrb[0].mxu0
        %v2427 = vadd.f32 0.0, %v2426
        %v2428 = vpop.f32.mrb[0].mxu0
        %2429 = vmatprep.mubr.bf16.mxu0 0
        %2430 = vmatmul.mubr.bf16.gmra.mrb[0].mxu0 %v1830
        %v2431 = vpop.f32.mrb[0].mxu0
        %v2432 = vadd.f32 0.0, %v2431
        %v2433 = vpop.f32.mrb[0].mxu0
        %v2434 = vpop.f32.mrb[0].mxu0
        %v2435 = vadd.f32 0.0, %v2434
        %v2436 = vpop.f32.mrb[0].mxu0
        %2437 = vmatprep.mubr.bf16.mxu0 0
        %2438 = vmatmul.mubr.bf16.gmra.mrb[0].mxu0 %v1833
        %v2439 = vpop.f32.mrb[0].mxu0
        %v2440 = vadd.f32 0.0, %v2439
        %v2441 = vpop.f32.mrb[0].mxu0
        %v2442 = vpop.f32.mrb[0].mxu0
        %v2443 = vadd.f32 0.0, %v2442
        %v2444 = vpop.f32.mrb[0].mxu0
        %2445 = vmatprep.mubr.bf16.mxu0 0
        %2446 = vmatmul.mubr.bf16.gmra.mrb[0].mxu0 %v1836
        %v2447 = vpop.f32.mrb[0].mxu0
        %v2448 = vadd.f32 0.0, %v2447
        %v2449 = vpop.f32.mrb[0].mxu0
        %v2450 = vpop.f32.mrb[0].mxu0
        %v2451 = vadd.f32 0.0, %v2450
        %v2452 = vpop.f32.mrb[0].mxu0
        %2453 = vmatprep.mubr.bf16.mxu0 0
        %2454 = vmatmul.mubr.bf16.gmra.mrb[0].mxu0 %v1839
        %v2455 = vpop.f32.mrb[0].mxu0
        %v2456 = vadd.f32 0.0, %v2455
        %v2457 = vpop.f32.mrb[0].mxu0
        %v2458 = vpop.f32.mrb[0].mxu0
        %v2459 = vadd.f32 0.0, %v2458
        %v2460 = vpop.f32.mrb[0].mxu0
        %2461 = vmatprep.mubr.bf16.mxu0 0
        %2462 = vmatmul.mubr.bf16.gmra.mrb[0].mxu0 %v2307
        %v2463 = vpop.f32.mrb[0].mxu0
        %v2464 = vadd.f32 0.0, %v2463
        %v2465 = vpop.f32.mrb[0].mxu0
        %v2466 = vpop.f32.mrb[0].mxu0
        %v2467 = vadd.f32 0.0, %v2466
        %v2468 = vpop.f32.mrb[0].mxu0
        %2469 = vdwg.mxu0
        %v2470 = vadd.f32 %v2241, %v2344
        %v2471 = vadd.f32 %v2242, %v2347
        %v2472 = vadd.f32 %v2243, %v2352
        %v2473 = vadd.f32 %v2244, %v2355
        %v2474 = vadd.f32 %v2245, %v2360
        %v2475 = vadd.f32 %v2246, %v2363
        %v2476 = vadd.f32 %v2247, %v2368
        %v2477 = vadd.f32 %v2248, %v2371
        %v2478 = vadd.f32 %v2249, %v2376
        %v2479 = vadd.f32 %v2250, %v2379
        %v2480 = vadd.f32 %v2251, %v2384
        %v2481 = vadd.f32 %v2252, %v2387
        %v2482 = vadd.f32 %v2253, %v2392
        %v2483 = vadd.f32 %v2254, %v2395
        %v2484 = vadd.f32 %v2255, %v2400
        %v2485 = vadd.f32 %v2256, %v2403
        %v2486 = vadd.f32 %v2257, %v2408
        %v2487 = vadd.f32 %v2258, %v2411
        %v2488 = vadd.f32 %v2259, %v2416
        %v2489 = vadd.f32 %v2260, %v2419
        %v2490 = vadd.f32 %v2261, %v2424
        %v2491 = vadd.f32 %v2262, %v2427
        %v2492 = vadd.f32 %v2263, %v2432
        %v2493 = vadd.f32 %v2264, %v2435
        %v2494 = vadd.f32 %v2265, %v2440
        %v2495 = vadd.f32 %v2266, %v2443
        %v2496 = vadd.f32 %v2267, %v2448
        %v2497 = vadd.f32 %v2268, %v2451
        %v2498 = vadd.f32 %v2269, %v2456
        %v2499 = vadd.f32 %v2270, %v2459
        %v2500 = vadd.f32 %v2271, %v2464
        %v2501 = vadd.f32 %v2272, %v2467
        %s2502 = scalar_lea.vmem %s3, 128
        %v2503 = vld [vmem:[%s2502] sm:$0xf]
        %v2504 = vld [vmem:[%s2502 + $0x4] sm:$0xf]
        %v2505 = vld [vmem:[%s2502 + $0x8] sm:$0xf]
        %v2506 = vld [vmem:[%s2502 + $0xc] sm:$0xf]
        %v2507 = vld [vmem:[%s2502 + $0x10] sm:$0xf]
        %v2508 = vld [vmem:[%s2502 + $0x14] sm:$0xf]
        %v2509 = vld [vmem:[%s2502 + $0x18] sm:$0xf]
        %v2510 = vld [vmem:[%s2502 + $0x1c] sm:$0xf]
        %v2519 = vunpack.c.l.b16 %v2503
        %v2520 = vunpack.c.l.b16 %v2504
        %v2521 = vunpack.c.l.b16 %v2505
        %v2522 = vunpack.c.l.b16 %v2506
        %v2523 = vunpack.c.l.b16 %v2507
        %v2524 = vunpack.c.l.b16 %v2508
        %v2525 = vunpack.c.l.b16 %v2509
        %v2526 = vunpack.c.l.b16 %v2510
        %v2527 = vpack.c.b16 %v2520, %v2519
        %v2528 = vpack.c.b16 %v2522, %v2521
        %v2529 = vpack.c.b16 %v2524, %v2523
        %v2530 = vpack.c.b16 %v2526, %v2525
        %v2536 = vsel %vm1562, %v1504, 0
        %2538 = vmatprep.subr.bf16.mxu0 0
        %2539 = vmatpush1.bf16.msra.mxu0 %v2527
        %2540 = vmatprep.subr.bf16.mxu0 0
        %2541 = vmatpush1.bf16.msra.mxu0 %v2528
        %2542 = vmatprep.subr.bf16.mxu0 0
        %2543 = vmatpush1.bf16.msra.mxu0 %v2529
        %2544 = vmatprep.subr.bf16.mxu0 0
        %2545 = vmatpush1.bf16.msra.mxu0 %v2530
        %2546 = vmatprep.subr.bf16.mxu0 0
        %2547 = vmatpush1.bf16.msra.mxu0 0
        %2548 = vmatprep.subr.bf16.mxu0 0
        %2549 = vmatpush1.bf16.msra.mxu0 0
        %2550 = vmatprep.subr.bf16.mxu0 0
        %2551 = vmatpush1.bf16.msra.mxu0 0
        %2552 = vmatprep.subr.bf16.mxu0 0
        %2553 = vmatpush1.bf16.msra.mxu0 0
        %2554 = vmatprep.subr.bf16.mxu0 0
        %2555 = vmatpush1.bf16.msra.mxu0 0
        %2556 = vmatprep.subr.bf16.mxu0 0
        %2557 = vmatpush1.bf16.msra.mxu0 0
        %2558 = vmatprep.subr.bf16.mxu0 0
        %2559 = vmatpush1.bf16.msra.mxu0 0
        %2560 = vmatprep.subr.bf16.mxu0 0
        %2561 = vmatpush1.bf16.msra.mxu0 0
        %2562 = vmatprep.subr.bf16.mxu0 0
        %2563 = vmatpush1.bf16.msra.mxu0 0
        %2564 = vmatprep.subr.bf16.mxu0 0
        %2565 = vmatpush1.bf16.msra.mxu0 0
        %2566 = vmatprep.subr.bf16.mxu0 0
        %2567 = vmatpush1.bf16.msra.mxu0 0
        %2568 = vmatprep.subr.bf16.mxu0 0
        %2569 = vmatpush1.bf16.msra.mxu0 0
        %2570 = vmatprep.mubr.bf16.mxu0 0
        %2571 = vmatmul.mubr.bf16.gmra.mrb[0].mxu0 %v1567
        %v2572 = vpop.f32.mrb[0].mxu0
        %v2573 = vadd.f32 0.0, %v2572
        %v2574 = vpop.f32.mrb[0].mxu0
        %v2575 = vpop.f32.mrb[0].mxu0
        %v2576 = vadd.f32 0.0, %v2575
        %v2577 = vpop.f32.mrb[0].mxu0
        %2578 = vmatprep.mubr.bf16.mxu0 0
        %2579 = vmatmul.mubr.bf16.gmra.mrb[0].mxu0 %v1570
        %v2580 = vpop.f32.mrb[0].mxu0
        %v2581 = vadd.f32 0.0, %v2580
        %v2582 = vpop.f32.mrb[0].mxu0
        %v2583 = vpop.f32.mrb[0].mxu0
        %v2584 = vadd.f32 0.0, %v2583
        %v2585 = vpop.f32.mrb[0].mxu0
        %2586 = vmatprep.mubr.bf16.mxu0 0
        %2587 = vmatmul.mubr.bf16.gmra.mrb[0].mxu0 %v1573
        %v2588 = vpop.f32.mrb[0].mxu0
        %v2589 = vadd.f32 0.0, %v2588
        %v2590 = vpop.f32.mrb[0].mxu0
        %v2591 = vpop.f32.mrb[0].mxu0
        %v2592 = vadd.f32 0.0, %v2591
        %v2593 = vpop.f32.mrb[0].mxu0
        %2594 = vmatprep.mubr.bf16.mxu0 0
        %2595 = vmatmul.mubr.bf16.gmra.mrb[0].mxu0 %v1576
        %v2596 = vpop.f32.mrb[0].mxu0
        %v2597 = vadd.f32 0.0, %v2596
        %v2598 = vpop.f32.mrb[0].mxu0
        %v2599 = vpop.f32.mrb[0].mxu0
        %v2600 = vadd.f32 0.0, %v2599
        %v2601 = vpop.f32.mrb[0].mxu0
        %2602 = vmatprep.mubr.bf16.mxu0 0
        %2603 = vmatmul.mubr.bf16.gmra.mrb[0].mxu0 %v1579
        %v2604 = vpop.f32.mrb[0].mxu0
        %v2605 = vadd.f32 0.0, %v2604
        %v2606 = vpop.f32.mrb[0].mxu0
        %v2607 = vpop.f32.mrb[0].mxu0
        %v2608 = vadd.f32 0.0, %v2607
        %v2609 = vpop.f32.mrb[0].mxu0
        %2610 = vmatprep.mubr.bf16.mxu0 0
        %2611 = vmatmul.mubr.bf16.gmra.mrb[0].mxu0 %v1582
        %v2612 = vpop.f32.mrb[0].mxu0
        %v2613 = vadd.f32 0.0, %v2612
        %v2614 = vpop.f32.mrb[0].mxu0
        %v2615 = vpop.f32.mrb[0].mxu0
        %v2616 = vadd.f32 0.0, %v2615
        %v2617 = vpop.f32.mrb[0].mxu0
        %2618 = vmatprep.mubr.bf16.mxu0 0
        %2619 = vmatmul.mubr.bf16.gmra.mrb[0].mxu0 %v1585
        %v2620 = vpop.f32.mrb[0].mxu0
        %v2621 = vadd.f32 0.0, %v2620
        %v2622 = vpop.f32.mrb[0].mxu0
        %v2623 = vpop.f32.mrb[0].mxu0
        %v2624 = vadd.f32 0.0, %v2623
        %v2625 = vpop.f32.mrb[0].mxu0
        %2626 = vmatprep.mubr.bf16.mxu0 0
        %2627 = vmatmul.mubr.bf16.gmra.mrb[0].mxu0 %v1588
        %v2628 = vpop.f32.mrb[0].mxu0
        %v2629 = vadd.f32 0.0, %v2628
        %v2630 = vpop.f32.mrb[0].mxu0
        %v2631 = vpop.f32.mrb[0].mxu0
        %v2632 = vadd.f32 0.0, %v2631
        %v2633 = vpop.f32.mrb[0].mxu0
        %2634 = vmatprep.mubr.bf16.mxu0 0
        %2635 = vmatmul.mubr.bf16.gmra.mrb[0].mxu0 %v1591
        %v2636 = vpop.f32.mrb[0].mxu0
        %v2637 = vadd.f32 0.0, %v2636
        %v2638 = vpop.f32.mrb[0].mxu0
        %v2639 = vpop.f32.mrb[0].mxu0
        %v2640 = vadd.f32 0.0, %v2639
        %v2641 = vpop.f32.mrb[0].mxu0
        %2642 = vmatprep.mubr.bf16.mxu0 0
        %2643 = vmatmul.mubr.bf16.gmra.mrb[0].mxu0 %v1594
        %v2644 = vpop.f32.mrb[0].mxu0
        %v2645 = vadd.f32 0.0, %v2644
        %v2646 = vpop.f32.mrb[0].mxu0
        %v2647 = vpop.f32.mrb[0].mxu0
        %v2648 = vadd.f32 0.0, %v2647
        %v2649 = vpop.f32.mrb[0].mxu0
        %2650 = vmatprep.mubr.bf16.mxu0 0
        %2651 = vmatmul.mubr.bf16.gmra.mrb[0].mxu0 %v1597
        %v2652 = vpop.f32.mrb[0].mxu0
        %v2653 = vadd.f32 0.0, %v2652
        %v2654 = vpop.f32.mrb[0].mxu0
        %v2655 = vpop.f32.mrb[0].mxu0
        %v2656 = vadd.f32 0.0, %v2655
        %v2657 = vpop.f32.mrb[0].mxu0
        %2658 = vmatprep.mubr.bf16.mxu0 0
        %2659 = vmatmul.mubr.bf16.gmra.mrb[0].mxu0 %v1600
        %v2660 = vpop.f32.mrb[0].mxu0
        %v2661 = vadd.f32 0.0, %v2660
        %v2662 = vpop.f32.mrb[0].mxu0
        %v2663 = vpop.f32.mrb[0].mxu0
        %v2664 = vadd.f32 0.0, %v2663
        %v2665 = vpop.f32.mrb[0].mxu0
        %2666 = vmatprep.mubr.bf16.mxu0 0
        %2667 = vmatmul.mubr.bf16.gmra.mrb[0].mxu0 %v1603
        %v2668 = vpop.f32.mrb[0].mxu0
        %v2669 = vadd.f32 0.0, %v2668
        %v2670 = vpop.f32.mrb[0].mxu0
        %v2671 = vpop.f32.mrb[0].mxu0
        %v2672 = vadd.f32 0.0, %v2671
        %v2673 = vpop.f32.mrb[0].mxu0
        %2674 = vmatprep.mubr.bf16.mxu0 0
        %2675 = vmatmul.mubr.bf16.gmra.mrb[0].mxu0 %v1606
        %v2676 = vpop.f32.mrb[0].mxu0
        %v2677 = vadd.f32 0.0, %v2676
        %v2678 = vpop.f32.mrb[0].mxu0
        %v2679 = vpop.f32.mrb[0].mxu0
        %v2680 = vadd.f32 0.0, %v2679
        %v2681 = vpop.f32.mrb[0].mxu0
        %2682 = vmatprep.mubr.bf16.mxu0 0
        %2683 = vmatmul.mubr.bf16.gmra.mrb[0].mxu0 %v1609
        %v2684 = vpop.f32.mrb[0].mxu0
        %v2685 = vadd.f32 0.0, %v2684
        %v2686 = vpop.f32.mrb[0].mxu0
        %v2687 = vpop.f32.mrb[0].mxu0
        %v2688 = vadd.f32 0.0, %v2687
        %v2689 = vpop.f32.mrb[0].mxu0
        %2690 = vmatprep.mubr.bf16.mxu0 0
        %2691 = vmatmul.mubr.bf16.gmra.mrb[0].mxu0 %v2536
        %v2692 = vpop.f32.mrb[0].mxu0
        %v2693 = vadd.f32 0.0, %v2692
        %v2694 = vpop.f32.mrb[0].mxu0
        %v2695 = vpop.f32.mrb[0].mxu0
        %v2696 = vadd.f32 0.0, %v2695
        %v2697 = vpop.f32.mrb[0].mxu0
        %2698 = vdwg.mxu0
        %v2699 = vadd.f32 %v2470, %v2573
        %v2700 = vadd.f32 %v2471, %v2576
        %v2701 = vadd.f32 %v2472, %v2581
        %v2702 = vadd.f32 %v2473, %v2584
        %v2703 = vadd.f32 %v2474, %v2589
        %v2704 = vadd.f32 %v2475, %v2592
        %v2705 = vadd.f32 %v2476, %v2597
        %v2706 = vadd.f32 %v2477, %v2600
        %v2707 = vadd.f32 %v2478, %v2605
        %v2708 = vadd.f32 %v2479, %v2608
        %v2709 = vadd.f32 %v2480, %v2613
        %v2710 = vadd.f32 %v2481, %v2616
        %v2711 = vadd.f32 %v2482, %v2621
        %v2712 = vadd.f32 %v2483, %v2624
        %v2713 = vadd.f32 %v2484, %v2629
        %v2714 = vadd.f32 %v2485, %v2632
        %v2715 = vadd.f32 %v2486, %v2637
        %v2716 = vadd.f32 %v2487, %v2640
        %v2717 = vadd.f32 %v2488, %v2645
        %v2718 = vadd.f32 %v2489, %v2648
        %v2719 = vadd.f32 %v2490, %v2653
        %v2720 = vadd.f32 %v2491, %v2656
        %v2721 = vadd.f32 %v2492, %v2661
        %v2722 = vadd.f32 %v2493, %v2664
        %v2723 = vadd.f32 %v2494, %v2669
        %v2724 = vadd.f32 %v2495, %v2672
        %v2725 = vadd.f32 %v2496, %v2677
        %v2726 = vadd.f32 %v2497, %v2680
        %v2727 = vadd.f32 %v2498, %v2685
        %v2728 = vadd.f32 %v2499, %v2688
        %v2729 = vadd.f32 %v2500, %v2693
        %v2730 = vadd.f32 %v2501, %v2696
        %s2731 = scalar_lea.vmem %s3, 160
        %v2732 = vld [vmem:[%s2731] sm:$0xf]
        %v2733 = vld [vmem:[%s2731 + $0x4] sm:$0xf]
        %v2734 = vld [vmem:[%s2731 + $0x8] sm:$0xf]
        %v2735 = vld [vmem:[%s2731 + $0xc] sm:$0xf]
        %v2736 = vld [vmem:[%s2731 + $0x10] sm:$0xf]
        %v2737 = vld [vmem:[%s2731 + $0x14] sm:$0xf]
        %v2738 = vld [vmem:[%s2731 + $0x18] sm:$0xf]
        %v2739 = vld [vmem:[%s2731 + $0x1c] sm:$0xf]
        %v2748 = vunpack.c.l.b16 %v2732
        %v2749 = vunpack.c.l.b16 %v2733
        %v2750 = vunpack.c.l.b16 %v2734
        %v2751 = vunpack.c.l.b16 %v2735
        %v2752 = vunpack.c.l.b16 %v2736
        %v2753 = vunpack.c.l.b16 %v2737
        %v2754 = vunpack.c.l.b16 %v2738
        %v2755 = vunpack.c.l.b16 %v2739
        %v2756 = vpack.c.b16 %v2749, %v2748
        %v2757 = vpack.c.b16 %v2751, %v2750
        %v2758 = vpack.c.b16 %v2753, %v2752
        %v2759 = vpack.c.b16 %v2755, %v2754
        %v2765 = vsel %vm1562, %v1520, 0
        %2767 = vmatprep.subr.bf16.mxu0 0
        %2768 = vmatpush1.bf16.msra.mxu0 %v2756
        %2769 = vmatprep.subr.bf16.mxu0 0
        %2770 = vmatpush1.bf16.msra.mxu0 %v2757
        %2771 = vmatprep.subr.bf16.mxu0 0
        %2772 = vmatpush1.bf16.msra.mxu0 %v2758
        %2773 = vmatprep.subr.bf16.mxu0 0
        %2774 = vmatpush1.bf16.msra.mxu0 %v2759
        %2775 = vmatprep.subr.bf16.mxu0 0
        %2776 = vmatpush1.bf16.msra.mxu0 0
        %2777 = vmatprep.subr.bf16.mxu0 0
        %2778 = vmatpush1.bf16.msra.mxu0 0
        %2779 = vmatprep.subr.bf16.mxu0 0
        %2780 = vmatpush1.bf16.msra.mxu0 0
        %2781 = vmatprep.subr.bf16.mxu0 0
        %2782 = vmatpush1.bf16.msra.mxu0 0
        %2783 = vmatprep.subr.bf16.mxu0 0
        %2784 = vmatpush1.bf16.msra.mxu0 0
        %2785 = vmatprep.subr.bf16.mxu0 0
        %2786 = vmatpush1.bf16.msra.mxu0 0
        %2787 = vmatprep.subr.bf16.mxu0 0
        %2788 = vmatpush1.bf16.msra.mxu0 0
        %2789 = vmatprep.subr.bf16.mxu0 0
        %2790 = vmatpush1.bf16.msra.mxu0 0
        %2791 = vmatprep.subr.bf16.mxu0 0
        %2792 = vmatpush1.bf16.msra.mxu0 0
        %2793 = vmatprep.subr.bf16.mxu0 0
        %2794 = vmatpush1.bf16.msra.mxu0 0
        %2795 = vmatprep.subr.bf16.mxu0 0
        %2796 = vmatpush1.bf16.msra.mxu0 0
        %2797 = vmatprep.subr.bf16.mxu0 0
        %2798 = vmatpush1.bf16.msra.mxu0 0
        %2799 = vmatprep.mubr.bf16.mxu0 0
        %2800 = vmatmul.mubr.bf16.gmra.mrb[0].mxu0 %v2036
        %v2801 = vpop.f32.mrb[0].mxu0
        %v2802 = vadd.f32 0.0, %v2801
        %v2803 = vpop.f32.mrb[0].mxu0
        %v2804 = vpop.f32.mrb[0].mxu0
        %v2805 = vadd.f32 0.0, %v2804
        %v2806 = vpop.f32.mrb[0].mxu0
        %2807 = vmatprep.mubr.bf16.mxu0 0
        %2808 = vmatmul.mubr.bf16.gmra.mrb[0].mxu0 %v2039
        %v2809 = vpop.f32.mrb[0].mxu0
        %v2810 = vadd.f32 0.0, %v2809
        %v2811 = vpop.f32.mrb[0].mxu0
        %v2812 = vpop.f32.mrb[0].mxu0
        %v2813 = vadd.f32 0.0, %v2812
        %v2814 = vpop.f32.mrb[0].mxu0
        %2815 = vmatprep.mubr.bf16.mxu0 0
        %2816 = vmatmul.mubr.bf16.gmra.mrb[0].mxu0 %v2042
        %v2817 = vpop.f32.mrb[0].mxu0
        %v2818 = vadd.f32 0.0, %v2817
        %v2819 = vpop.f32.mrb[0].mxu0
        %v2820 = vpop.f32.mrb[0].mxu0
        %v2821 = vadd.f32 0.0, %v2820
        %v2822 = vpop.f32.mrb[0].mxu0
        %2823 = vmatprep.mubr.bf16.mxu0 0
        %2824 = vmatmul.mubr.bf16.gmra.mrb[0].mxu0 %v2045
        %v2825 = vpop.f32.mrb[0].mxu0
        %v2826 = vadd.f32 0.0, %v2825
        %v2827 = vpop.f32.mrb[0].mxu0
        %v2828 = vpop.f32.mrb[0].mxu0
        %v2829 = vadd.f32 0.0, %v2828
        %v2830 = vpop.f32.mrb[0].mxu0
        %2831 = vmatprep.mubr.bf16.mxu0 0
        %2832 = vmatmul.mubr.bf16.gmra.mrb[0].mxu0 %v2048
        %v2833 = vpop.f32.mrb[0].mxu0
        %v2834 = vadd.f32 0.0, %v2833
        %v2835 = vpop.f32.mrb[0].mxu0
        %v2836 = vpop.f32.mrb[0].mxu0
        %v2837 = vadd.f32 0.0, %v2836
        %v2838 = vpop.f32.mrb[0].mxu0
        %2839 = vmatprep.mubr.bf16.mxu0 0
        %2840 = vmatmul.mubr.bf16.gmra.mrb[0].mxu0 %v2051
        %v2841 = vpop.f32.mrb[0].mxu0
        %v2842 = vadd.f32 0.0, %v2841
        %v2843 = vpop.f32.mrb[0].mxu0
        %v2844 = vpop.f32.mrb[0].mxu0
        %v2845 = vadd.f32 0.0, %v2844
        %v2846 = vpop.f32.mrb[0].mxu0
        %2847 = vmatprep.mubr.bf16.mxu0 0
        %2848 = vmatmul.mubr.bf16.gmra.mrb[0].mxu0 %v2054
        %v2849 = vpop.f32.mrb[0].mxu0
        %v2850 = vadd.f32 0.0, %v2849
        %v2851 = vpop.f32.mrb[0].mxu0
        %v2852 = vpop.f32.mrb[0].mxu0
        %v2853 = vadd.f32 0.0, %v2852
        %v2854 = vpop.f32.mrb[0].mxu0
        %2855 = vmatprep.mubr.bf16.mxu0 0
        %2856 = vmatmul.mubr.bf16.gmra.mrb[0].mxu0 %v2057
        %v2857 = vpop.f32.mrb[0].mxu0
        %v2858 = vadd.f32 0.0, %v2857
        %v2859 = vpop.f32.mrb[0].mxu0
        %v2860 = vpop.f32.mrb[0].mxu0
        %v2861 = vadd.f32 0.0, %v2860
        %v2862 = vpop.f32.mrb[0].mxu0
        %2863 = vmatprep.mubr.bf16.mxu0 0
        %2864 = vmatmul.mubr.bf16.gmra.mrb[0].mxu0 %v2060
        %v2865 = vpop.f32.mrb[0].mxu0
        %v2866 = vadd.f32 0.0, %v2865
        %v2867 = vpop.f32.mrb[0].mxu0
        %v2868 = vpop.f32.mrb[0].mxu0
        %v2869 = vadd.f32 0.0, %v2868
        %v2870 = vpop.f32.mrb[0].mxu0
        %2871 = vmatprep.mubr.bf16.mxu0 0
        %2872 = vmatmul.mubr.bf16.gmra.mrb[0].mxu0 %v2063
        %v2873 = vpop.f32.mrb[0].mxu0
        %v2874 = vadd.f32 0.0, %v2873
        %v2875 = vpop.f32.mrb[0].mxu0
        %v2876 = vpop.f32.mrb[0].mxu0
        %v2877 = vadd.f32 0.0, %v2876
        %v2878 = vpop.f32.mrb[0].mxu0
        %2879 = vmatprep.mubr.bf16.mxu0 0
        %2880 = vmatmul.mubr.bf16.gmra.mrb[0].mxu0 %v2066
        %v2881 = vpop.f32.mrb[0].mxu0
        %v2882 = vadd.f32 0.0, %v2881
        %v2883 = vpop.f32.mrb[0].mxu0
        %v2884 = vpop.f32.mrb[0].mxu0
        %v2885 = vadd.f32 0.0, %v2884
        %v2886 = vpop.f32.mrb[0].mxu0
        %2887 = vmatprep.mubr.bf16.mxu0 0
        %2888 = vmatmul.mubr.bf16.gmra.mrb[0].mxu0 %v2069
        %v2889 = vpop.f32.mrb[0].mxu0
        %v2890 = vadd.f32 0.0, %v2889
        %v2891 = vpop.f32.mrb[0].mxu0
        %v2892 = vpop.f32.mrb[0].mxu0
        %v2893 = vadd.f32 0.0, %v2892
        %v2894 = vpop.f32.mrb[0].mxu0
        %2895 = vmatprep.mubr.bf16.mxu0 0
        %2896 = vmatmul.mubr.bf16.gmra.mrb[0].mxu0 %v2072
        %v2897 = vpop.f32.mrb[0].mxu0
        %v2898 = vadd.f32 0.0, %v2897
        %v2899 = vpop.f32.mrb[0].mxu0
        %v2900 = vpop.f32.mrb[0].mxu0
        %v2901 = vadd.f32 0.0, %v2900
        %v2902 = vpop.f32.mrb[0].mxu0
        %2903 = vmatprep.mubr.bf16.mxu0 0
        %2904 = vmatmul.mubr.bf16.gmra.mrb[0].mxu0 %v2075
        %v2905 = vpop.f32.mrb[0].mxu0
        %v2906 = vadd.f32 0.0, %v2905
        %v2907 = vpop.f32.mrb[0].mxu0
        %v2908 = vpop.f32.mrb[0].mxu0
        %v2909 = vadd.f32 0.0, %v2908
        %v2910 = vpop.f32.mrb[0].mxu0
        %2911 = vmatprep.mubr.bf16.mxu0 0
        %2912 = vmatmul.mubr.bf16.gmra.mrb[0].mxu0 %v2078
        %v2913 = vpop.f32.mrb[0].mxu0
        %v2914 = vadd.f32 0.0, %v2913
        %v2915 = vpop.f32.mrb[0].mxu0
        %v2916 = vpop.f32.mrb[0].mxu0
        %v2917 = vadd.f32 0.0, %v2916
        %v2918 = vpop.f32.mrb[0].mxu0
        %2919 = vmatprep.mubr.bf16.mxu0 0
        %2920 = vmatmul.mubr.bf16.gmra.mrb[0].mxu0 %v2765
        %v2921 = vpop.f32.mrb[0].mxu0
        %v2922 = vadd.f32 0.0, %v2921
        %v2923 = vpop.f32.mrb[0].mxu0
        %v2924 = vpop.f32.mrb[0].mxu0
        %v2925 = vadd.f32 0.0, %v2924
        %v2926 = vpop.f32.mrb[0].mxu0
        %2927 = vdwg.mxu0
        %v2928 = vadd.f32 %v2699, %v2802
        %v2929 = vadd.f32 %v2700, %v2805
        %v2930 = vadd.f32 %v2701, %v2810
        %v2931 = vadd.f32 %v2702, %v2813
        %v2932 = vadd.f32 %v2703, %v2818
        %v2933 = vadd.f32 %v2704, %v2821
        %v2934 = vadd.f32 %v2705, %v2826
        %v2935 = vadd.f32 %v2706, %v2829
        %v2936 = vadd.f32 %v2707, %v2834
        %v2937 = vadd.f32 %v2708, %v2837
        %v2938 = vadd.f32 %v2709, %v2842
        %v2939 = vadd.f32 %v2710, %v2845
        %v2940 = vadd.f32 %v2711, %v2850
        %v2941 = vadd.f32 %v2712, %v2853
        %v2942 = vadd.f32 %v2713, %v2858
        %v2943 = vadd.f32 %v2714, %v2861
        %v2944 = vadd.f32 %v2715, %v2866
        %v2945 = vadd.f32 %v2716, %v2869
        %v2946 = vadd.f32 %v2717, %v2874
        %v2947 = vadd.f32 %v2718, %v2877
        %v2948 = vadd.f32 %v2719, %v2882
        %v2949 = vadd.f32 %v2720, %v2885
        %v2950 = vadd.f32 %v2721, %v2890
        %v2951 = vadd.f32 %v2722, %v2893
        %v2952 = vadd.f32 %v2723, %v2898
        %v2953 = vadd.f32 %v2724, %v2901
        %v2954 = vadd.f32 %v2725, %v2906
        %v2955 = vadd.f32 %v2726, %v2909
        %v2956 = vadd.f32 %v2727, %v2914
        %v2957 = vadd.f32 %v2728, %v2917
        %v2958 = vadd.f32 %v2729, %v2922
        %v2959 = vadd.f32 %v2730, %v2925
        %s2960 = scalar_lea.vmem %s3, 192
        %v2961 = vld [vmem:[%s2960] sm:$0xf]
        %v2962 = vld [vmem:[%s2960 + $0x4] sm:$0xf]
        %v2963 = vld [vmem:[%s2960 + $0x8] sm:$0xf]
        %v2964 = vld [vmem:[%s2960 + $0xc] sm:$0xf]
        %v2965 = vld [vmem:[%s2960 + $0x10] sm:$0xf]
        %v2966 = vld [vmem:[%s2960 + $0x14] sm:$0xf]
        %v2967 = vld [vmem:[%s2960 + $0x18] sm:$0xf]
        %v2968 = vld [vmem:[%s2960 + $0x1c] sm:$0xf]
        %v2977 = vunpack.c.l.b16 %v2961
        %v2978 = vunpack.c.l.b16 %v2962
        %v2979 = vunpack.c.l.b16 %v2963
        %v2980 = vunpack.c.l.b16 %v2964
        %v2981 = vunpack.c.l.b16 %v2965
        %v2982 = vunpack.c.l.b16 %v2966
        %v2983 = vunpack.c.l.b16 %v2967
        %v2984 = vunpack.c.l.b16 %v2968
        %v2985 = vpack.c.b16 %v2978, %v2977
        %v2986 = vpack.c.b16 %v2980, %v2979
        %v2987 = vpack.c.b16 %v2982, %v2981
        %v2988 = vpack.c.b16 %v2984, %v2983
        %2993 = vmatprep.subr.bf16.mxu0 0
        %2994 = vmatpush1.bf16.msra.mxu0 %v2985
        %2995 = vmatprep.subr.bf16.mxu0 0
        %2996 = vmatpush1.bf16.msra.mxu0 %v2986
        %2997 = vmatprep.subr.bf16.mxu0 0
        %2998 = vmatpush1.bf16.msra.mxu0 %v2987
        %2999 = vmatprep.subr.bf16.mxu0 0
        %3000 = vmatpush1.bf16.msra.mxu0 %v2988
        %3001 = vmatprep.subr.bf16.mxu0 0
        %3002 = vmatpush1.bf16.msra.mxu0 0
        %3003 = vmatprep.subr.bf16.mxu0 0
        %3004 = vmatpush1.bf16.msra.mxu0 0
        %3005 = vmatprep.subr.bf16.mxu0 0
        %3006 = vmatpush1.bf16.msra.mxu0 0
        %3007 = vmatprep.subr.bf16.mxu0 0
        %3008 = vmatpush1.bf16.msra.mxu0 0
        %3009 = vmatprep.subr.bf16.mxu0 0
        %3010 = vmatpush1.bf16.msra.mxu0 0
        %3011 = vmatprep.subr.bf16.mxu0 0
        %3012 = vmatpush1.bf16.msra.mxu0 0
        %3013 = vmatprep.subr.bf16.mxu0 0
        %3014 = vmatpush1.bf16.msra.mxu0 0
        %3015 = vmatprep.subr.bf16.mxu0 0
        %3016 = vmatpush1.bf16.msra.mxu0 0
        %3017 = vmatprep.subr.bf16.mxu0 0
        %3018 = vmatpush1.bf16.msra.mxu0 0
        %3019 = vmatprep.subr.bf16.mxu0 0
        %3020 = vmatpush1.bf16.msra.mxu0 0
        %3021 = vmatprep.subr.bf16.mxu0 0
        %3022 = vmatpush1.bf16.msra.mxu0 0
        %3023 = vmatprep.subr.bf16.mxu0 0
        %3024 = vmatpush1.bf16.msra.mxu0 0
        %3025 = vmatprep.mubr.bf16.mxu0 0
        %3026 = vmatmul.mubr.bf16.gmra.mrb[0].mxu0 %v1800
        %v3027 = vpop.f32.mrb[0].mxu0
        %v3028 = vadd.f32 0.0, %v3027
        %v3029 = vpop.f32.mrb[0].mxu0
        %v3030 = vpop.f32.mrb[0].mxu0
        %v3031 = vadd.f32 0.0, %v3030
        %v3032 = vpop.f32.mrb[0].mxu0
        %3033 = vmatprep.mubr.bf16.mxu0 0
        %3034 = vmatmul.mubr.bf16.gmra.mrb[0].mxu0 %v1803
        %v3035 = vpop.f32.mrb[0].mxu0
        %v3036 = vadd.f32 0.0, %v3035
        %v3037 = vpop.f32.mrb[0].mxu0
        %v3038 = vpop.f32.mrb[0].mxu0
        %v3039 = vadd.f32 0.0, %v3038
        %v3040 = vpop.f32.mrb[0].mxu0
        %3041 = vmatprep.mubr.bf16.mxu0 0
        %3042 = vmatmul.mubr.bf16.gmra.mrb[0].mxu0 %v1806
        %v3043 = vpop.f32.mrb[0].mxu0
        %v3044 = vadd.f32 0.0, %v3043
        %v3045 = vpop.f32.mrb[0].mxu0
        %v3046 = vpop.f32.mrb[0].mxu0
        %v3047 = vadd.f32 0.0, %v3046
        %v3048 = vpop.f32.mrb[0].mxu0
        %3049 = vmatprep.mubr.bf16.mxu0 0
        %3050 = vmatmul.mubr.bf16.gmra.mrb[0].mxu0 %v1809
        %v3051 = vpop.f32.mrb[0].mxu0
        %v3052 = vadd.f32 0.0, %v3051
        %v3053 = vpop.f32.mrb[0].mxu0
        %v3054 = vpop.f32.mrb[0].mxu0
        %v3055 = vadd.f32 0.0, %v3054
        %v3056 = vpop.f32.mrb[0].mxu0
        %3057 = vmatprep.mubr.bf16.mxu0 0
        %3058 = vmatmul.mubr.bf16.gmra.mrb[0].mxu0 %v1812
        %v3059 = vpop.f32.mrb[0].mxu0
        %v3060 = vadd.f32 0.0, %v3059
        %v3061 = vpop.f32.mrb[0].mxu0
        %v3062 = vpop.f32.mrb[0].mxu0
        %v3063 = vadd.f32 0.0, %v3062
        %v3064 = vpop.f32.mrb[0].mxu0
        %3065 = vmatprep.mubr.bf16.mxu0 0
        %3066 = vmatmul.mubr.bf16.gmra.mrb[0].mxu0 %v1815
        %v3067 = vpop.f32.mrb[0].mxu0
        %v3068 = vadd.f32 0.0, %v3067
        %v3069 = vpop.f32.mrb[0].mxu0
        %v3070 = vpop.f32.mrb[0].mxu0
        %v3071 = vadd.f32 0.0, %v3070
        %v3072 = vpop.f32.mrb[0].mxu0
        %3073 = vmatprep.mubr.bf16.mxu0 0
        %3074 = vmatmul.mubr.bf16.gmra.mrb[0].mxu0 %v1818
        %v3075 = vpop.f32.mrb[0].mxu0
        %v3076 = vadd.f32 0.0, %v3075
        %v3077 = vpop.f32.mrb[0].mxu0
        %v3078 = vpop.f32.mrb[0].mxu0
        %v3079 = vadd.f32 0.0, %v3078
        %v3080 = vpop.f32.mrb[0].mxu0
        %3081 = vmatprep.mubr.bf16.mxu0 0
        %3082 = vmatmul.mubr.bf16.gmra.mrb[0].mxu0 %v1821
        %v3083 = vpop.f32.mrb[0].mxu0
        %v3084 = vadd.f32 0.0, %v3083
        %v3085 = vpop.f32.mrb[0].mxu0
        %v3086 = vpop.f32.mrb[0].mxu0
        %v3087 = vadd.f32 0.0, %v3086
        %v3088 = vpop.f32.mrb[0].mxu0
        %3089 = vmatprep.mubr.bf16.mxu0 0
        %3090 = vmatmul.mubr.bf16.gmra.mrb[0].mxu0 %v1824
        %v3091 = vpop.f32.mrb[0].mxu0
        %v3092 = vadd.f32 0.0, %v3091
        %v3093 = vpop.f32.mrb[0].mxu0
        %v3094 = vpop.f32.mrb[0].mxu0
        %v3095 = vadd.f32 0.0, %v3094
        %v3096 = vpop.f32.mrb[0].mxu0
        %3097 = vmatprep.mubr.bf16.mxu0 0
        %3098 = vmatmul.mubr.bf16.gmra.mrb[0].mxu0 %v1827
        %v3099 = vpop.f32.mrb[0].mxu0
        %v3100 = vadd.f32 0.0, %v3099
        %v3101 = vpop.f32.mrb[0].mxu0
        %v3102 = vpop.f32.mrb[0].mxu0
        %v3103 = vadd.f32 0.0, %v3102
        %v3104 = vpop.f32.mrb[0].mxu0
        %3105 = vmatprep.mubr.bf16.mxu0 0
        %3106 = vmatmul.mubr.bf16.gmra.mrb[0].mxu0 %v1830
        %v3107 = vpop.f32.mrb[0].mxu0
        %v3108 = vadd.f32 0.0, %v3107
        %v3109 = vpop.f32.mrb[0].mxu0
        %v3110 = vpop.f32.mrb[0].mxu0
        %v3111 = vadd.f32 0.0, %v3110
        %v3112 = vpop.f32.mrb[0].mxu0
        %3113 = vmatprep.mubr.bf16.mxu0 0
        %3114 = vmatmul.mubr.bf16.gmra.mrb[0].mxu0 %v1833
        %v3115 = vpop.f32.mrb[0].mxu0
        %v3116 = vadd.f32 0.0, %v3115
        %v3117 = vpop.f32.mrb[0].mxu0
        %v3118 = vpop.f32.mrb[0].mxu0
        %v3119 = vadd.f32 0.0, %v3118
        %v3120 = vpop.f32.mrb[0].mxu0
        %3121 = vmatprep.mubr.bf16.mxu0 0
        %3122 = vmatmul.mubr.bf16.gmra.mrb[0].mxu0 %v1836
        %v3123 = vpop.f32.mrb[0].mxu0
        %v3124 = vadd.f32 0.0, %v3123
        %v3125 = vpop.f32.mrb[0].mxu0
        %v3126 = vpop.f32.mrb[0].mxu0
        %v3127 = vadd.f32 0.0, %v3126
        %v3128 = vpop.f32.mrb[0].mxu0
        %3129 = vmatprep.mubr.bf16.mxu0 0
        %3130 = vmatmul.mubr.bf16.gmra.mrb[0].mxu0 %v1839
        %v3131 = vpop.f32.mrb[0].mxu0
        %v3132 = vadd.f32 0.0, %v3131
        %v3133 = vpop.f32.mrb[0].mxu0
        %v3134 = vpop.f32.mrb[0].mxu0
        %v3135 = vadd.f32 0.0, %v3134
        %v3136 = vpop.f32.mrb[0].mxu0
        %3137 = vmatprep.mubr.bf16.mxu0 0
        %3138 = vmatmul.mubr.bf16.gmra.mrb[0].mxu0 %v2307
        %v3139 = vpop.f32.mrb[0].mxu0
        %v3140 = vadd.f32 0.0, %v3139
        %v3141 = vpop.f32.mrb[0].mxu0
        %v3142 = vpop.f32.mrb[0].mxu0
        %v3143 = vadd.f32 0.0, %v3142
        %v3144 = vpop.f32.mrb[0].mxu0
        %3145 = vmatprep.mubr.bf16.mxu0 0
        %3146 = vmatmul.mubr.bf16.gmra.mrb[0].mxu0 %v1564
        %v3147 = vpop.f32.mrb[0].mxu0
        %v3148 = vadd.f32 0.0, %v3147
        %v3149 = vpop.f32.mrb[0].mxu0
        %v3150 = vpop.f32.mrb[0].mxu0
        %v3151 = vadd.f32 0.0, %v3150
        %v3152 = vpop.f32.mrb[0].mxu0
        %3153 = vdwg.mxu0
        %v3154 = vadd.f32 %v2928, %v3028
        %v3155 = vadd.f32 %v2929, %v3031
        %v3156 = vadd.f32 %v2930, %v3036
        %v3157 = vadd.f32 %v2931, %v3039
        %v3158 = vadd.f32 %v2932, %v3044
        %v3159 = vadd.f32 %v2933, %v3047
        %v3160 = vadd.f32 %v2934, %v3052
        %v3161 = vadd.f32 %v2935, %v3055
        %v3162 = vadd.f32 %v2936, %v3060
        %v3163 = vadd.f32 %v2937, %v3063
        %v3164 = vadd.f32 %v2938, %v3068
        %v3165 = vadd.f32 %v2939, %v3071
        %v3166 = vadd.f32 %v2940, %v3076
        %v3167 = vadd.f32 %v2941, %v3079
        %v3168 = vadd.f32 %v2942, %v3084
        %v3169 = vadd.f32 %v2943, %v3087
        %v3170 = vadd.f32 %v2944, %v3092
        %v3171 = vadd.f32 %v2945, %v3095
        %v3172 = vadd.f32 %v2946, %v3100
        %v3173 = vadd.f32 %v2947, %v3103
        %v3174 = vadd.f32 %v2948, %v3108
        %v3175 = vadd.f32 %v2949, %v3111
        %v3176 = vadd.f32 %v2950, %v3116
        %v3177 = vadd.f32 %v2951, %v3119
        %v3178 = vadd.f32 %v2952, %v3124
        %v3179 = vadd.f32 %v2953, %v3127
        %v3180 = vadd.f32 %v2954, %v3132
        %v3181 = vadd.f32 %v2955, %v3135
        %v3182 = vadd.f32 %v2956, %v3140
        %v3183 = vadd.f32 %v2957, %v3143
        %v3184 = vadd.f32 %v2958, %v3148
        %v3185 = vadd.f32 %v2959, %v3151
        %s3186 = scalar_lea.vmem %s3, 224
        %v3187 = vld [vmem:[%s3186] sm:$0xf]
        %v3188 = vld [vmem:[%s3186 + $0x4] sm:$0xf]
        %v3189 = vld [vmem:[%s3186 + $0x8] sm:$0xf]
        %v3190 = vld [vmem:[%s3186 + $0xc] sm:$0xf]
        %v3191 = vld [vmem:[%s3186 + $0x10] sm:$0xf]
        %v3192 = vld [vmem:[%s3186 + $0x14] sm:$0xf]
        %v3193 = vld [vmem:[%s3186 + $0x18] sm:$0xf]
        %v3194 = vld [vmem:[%s3186 + $0x1c] sm:$0xf]
        %v3203 = vunpack.c.l.b16 %v3187
        %v3204 = vunpack.c.l.b16 %v3188
        %v3205 = vunpack.c.l.b16 %v3189
        %v3206 = vunpack.c.l.b16 %v3190
        %v3207 = vunpack.c.l.b16 %v3191
        %v3208 = vunpack.c.l.b16 %v3192
        %v3209 = vunpack.c.l.b16 %v3193
        %v3210 = vunpack.c.l.b16 %v3194
        %v3211 = vpack.c.b16 %v3204, %v3203
        %v3212 = vpack.c.b16 %v3206, %v3205
        %v3213 = vpack.c.b16 %v3208, %v3207
        %v3214 = vpack.c.b16 %v3210, %v3209
        %3219 = vmatprep.subr.bf16.mxu0 0
        %3220 = vmatpush1.bf16.msra.mxu0 %v3211
        %3221 = vmatprep.subr.bf16.mxu0 0
        %3222 = vmatpush1.bf16.msra.mxu0 %v3212
        %3223 = vmatprep.subr.bf16.mxu0 0
        %3224 = vmatpush1.bf16.msra.mxu0 %v3213
        %3225 = vmatprep.subr.bf16.mxu0 0
        %3226 = vmatpush1.bf16.msra.mxu0 %v3214
        %3227 = vmatprep.subr.bf16.mxu0 0
        %3228 = vmatpush1.bf16.msra.mxu0 0
        %3229 = vmatprep.subr.bf16.mxu0 0
        %3230 = vmatpush1.bf16.msra.mxu0 0
        %3231 = vmatprep.subr.bf16.mxu0 0
        %3232 = vmatpush1.bf16.msra.mxu0 0
        %3233 = vmatprep.subr.bf16.mxu0 0
        %3234 = vmatpush1.bf16.msra.mxu0 0
        %3235 = vmatprep.subr.bf16.mxu0 0
        %3236 = vmatpush1.bf16.msra.mxu0 0
        %3237 = vmatprep.subr.bf16.mxu0 0
        %3238 = vmatpush1.bf16.msra.mxu0 0
        %3239 = vmatprep.subr.bf16.mxu0 0
        %3240 = vmatpush1.bf16.msra.mxu0 0
        %3241 = vmatprep.subr.bf16.mxu0 0
        %3242 = vmatpush1.bf16.msra.mxu0 0
        %3243 = vmatprep.subr.bf16.mxu0 0
        %3244 = vmatpush1.bf16.msra.mxu0 0
        %3245 = vmatprep.subr.bf16.mxu0 0
        %3246 = vmatpush1.bf16.msra.mxu0 0
        %3247 = vmatprep.subr.bf16.mxu0 0
        %3248 = vmatpush1.bf16.msra.mxu0 0
        %3249 = vmatprep.subr.bf16.mxu0 0
        %3250 = vmatpush1.bf16.msra.mxu0 0
        %3251 = vmatprep.mubr.bf16.mxu0 0
        %3252 = vmatmul.mubr.bf16.gmra.mrb[0].mxu0 %v1570
        %v3253 = vpop.f32.mrb[0].mxu0
        %v3254 = vadd.f32 0.0, %v3253
        %v3255 = vpop.f32.mrb[0].mxu0
        %v3256 = vpop.f32.mrb[0].mxu0
        %v3257 = vadd.f32 0.0, %v3256
        %v3258 = vpop.f32.mrb[0].mxu0
        %3259 = vmatprep.mubr.bf16.mxu0 0
        %3260 = vmatmul.mubr.bf16.gmra.mrb[0].mxu0 %v1573
        %v3261 = vpop.f32.mrb[0].mxu0
        %v3262 = vadd.f32 0.0, %v3261
        %v3263 = vpop.f32.mrb[0].mxu0
        %v3264 = vpop.f32.mrb[0].mxu0
        %v3265 = vadd.f32 0.0, %v3264
        %v3266 = vpop.f32.mrb[0].mxu0
        %3267 = vmatprep.mubr.bf16.mxu0 0
        %3268 = vmatmul.mubr.bf16.gmra.mrb[0].mxu0 %v1576
        %v3269 = vpop.f32.mrb[0].mxu0
        %v3270 = vadd.f32 0.0, %v3269
        %v3271 = vpop.f32.mrb[0].mxu0
        %v3272 = vpop.f32.mrb[0].mxu0
        %v3273 = vadd.f32 0.0, %v3272
        %v3274 = vpop.f32.mrb[0].mxu0
        %3275 = vmatprep.mubr.bf16.mxu0 0
        %3276 = vmatmul.mubr.bf16.gmra.mrb[0].mxu0 %v1579
        %v3277 = vpop.f32.mrb[0].mxu0
        %v3278 = vadd.f32 0.0, %v3277
        %v3279 = vpop.f32.mrb[0].mxu0
        %v3280 = vpop.f32.mrb[0].mxu0
        %v3281 = vadd.f32 0.0, %v3280
        %v3282 = vpop.f32.mrb[0].mxu0
        %3283 = vmatprep.mubr.bf16.mxu0 0
        %3284 = vmatmul.mubr.bf16.gmra.mrb[0].mxu0 %v1582
        %v3285 = vpop.f32.mrb[0].mxu0
        %v3286 = vadd.f32 0.0, %v3285
        %v3287 = vpop.f32.mrb[0].mxu0
        %v3288 = vpop.f32.mrb[0].mxu0
        %v3289 = vadd.f32 0.0, %v3288
        %v3290 = vpop.f32.mrb[0].mxu0
        %3291 = vmatprep.mubr.bf16.mxu0 0
        %3292 = vmatmul.mubr.bf16.gmra.mrb[0].mxu0 %v1585
        %v3293 = vpop.f32.mrb[0].mxu0
        %v3294 = vadd.f32 0.0, %v3293
        %v3295 = vpop.f32.mrb[0].mxu0
        %v3296 = vpop.f32.mrb[0].mxu0
        %v3297 = vadd.f32 0.0, %v3296
        %v3298 = vpop.f32.mrb[0].mxu0
        %3299 = vmatprep.mubr.bf16.mxu0 0
        %3300 = vmatmul.mubr.bf16.gmra.mrb[0].mxu0 %v1588
        %v3301 = vpop.f32.mrb[0].mxu0
        %v3302 = vadd.f32 0.0, %v3301
        %v3303 = vpop.f32.mrb[0].mxu0
        %v3304 = vpop.f32.mrb[0].mxu0
        %v3305 = vadd.f32 0.0, %v3304
        %v3306 = vpop.f32.mrb[0].mxu0
        %3307 = vmatprep.mubr.bf16.mxu0 0
        %3308 = vmatmul.mubr.bf16.gmra.mrb[0].mxu0 %v1591
        %v3309 = vpop.f32.mrb[0].mxu0
        %v3310 = vadd.f32 0.0, %v3309
        %v3311 = vpop.f32.mrb[0].mxu0
        %v3312 = vpop.f32.mrb[0].mxu0
        %v3313 = vadd.f32 0.0, %v3312
        %v3314 = vpop.f32.mrb[0].mxu0
        %3315 = vmatprep.mubr.bf16.mxu0 0
        %3316 = vmatmul.mubr.bf16.gmra.mrb[0].mxu0 %v1594
        %v3317 = vpop.f32.mrb[0].mxu0
        %v3318 = vadd.f32 0.0, %v3317
        %v3319 = vpop.f32.mrb[0].mxu0
        %v3320 = vpop.f32.mrb[0].mxu0
        %v3321 = vadd.f32 0.0, %v3320
        %v3322 = vpop.f32.mrb[0].mxu0
        %3323 = vmatprep.mubr.bf16.mxu0 0
        %3324 = vmatmul.mubr.bf16.gmra.mrb[0].mxu0 %v1597
        %v3325 = vpop.f32.mrb[0].mxu0
        %v3326 = vadd.f32 0.0, %v3325
        %v3327 = vpop.f32.mrb[0].mxu0
        %v3328 = vpop.f32.mrb[0].mxu0
        %v3329 = vadd.f32 0.0, %v3328
        %v3330 = vpop.f32.mrb[0].mxu0
        %3331 = vmatprep.mubr.bf16.mxu0 0
        %3332 = vmatmul.mubr.bf16.gmra.mrb[0].mxu0 %v1600
        %v3333 = vpop.f32.mrb[0].mxu0
        %v3334 = vadd.f32 0.0, %v3333
        %v3335 = vpop.f32.mrb[0].mxu0
        %v3336 = vpop.f32.mrb[0].mxu0
        %v3337 = vadd.f32 0.0, %v3336
        %v3338 = vpop.f32.mrb[0].mxu0
        %3339 = vmatprep.mubr.bf16.mxu0 0
        %3340 = vmatmul.mubr.bf16.gmra.mrb[0].mxu0 %v1603
        %v3341 = vpop.f32.mrb[0].mxu0
        %v3342 = vadd.f32 0.0, %v3341
        %v3343 = vpop.f32.mrb[0].mxu0
        %v3344 = vpop.f32.mrb[0].mxu0
        %v3345 = vadd.f32 0.0, %v3344
        %v3346 = vpop.f32.mrb[0].mxu0
        %3347 = vmatprep.mubr.bf16.mxu0 0
        %3348 = vmatmul.mubr.bf16.gmra.mrb[0].mxu0 %v1606
        %v3349 = vpop.f32.mrb[0].mxu0
        %v3350 = vadd.f32 0.0, %v3349
        %v3351 = vpop.f32.mrb[0].mxu0
        %v3352 = vpop.f32.mrb[0].mxu0
        %v3353 = vadd.f32 0.0, %v3352
        %v3354 = vpop.f32.mrb[0].mxu0
        %3355 = vmatprep.mubr.bf16.mxu0 0
        %3356 = vmatmul.mubr.bf16.gmra.mrb[0].mxu0 %v1609
        %v3357 = vpop.f32.mrb[0].mxu0
        %v3358 = vadd.f32 0.0, %v3357
        %v3359 = vpop.f32.mrb[0].mxu0
        %v3360 = vpop.f32.mrb[0].mxu0
        %v3361 = vadd.f32 0.0, %v3360
        %v3362 = vpop.f32.mrb[0].mxu0
        %3363 = vmatprep.mubr.bf16.mxu0 0
        %3364 = vmatmul.mubr.bf16.gmra.mrb[0].mxu0 %v2536
        %v3365 = vpop.f32.mrb[0].mxu0
        %v3366 = vadd.f32 0.0, %v3365
        %v3367 = vpop.f32.mrb[0].mxu0
        %v3368 = vpop.f32.mrb[0].mxu0
        %v3369 = vadd.f32 0.0, %v3368
        %v3370 = vpop.f32.mrb[0].mxu0
        %3371 = vmatprep.mubr.bf16.mxu0 0
        %3372 = vmatmul.mubr.bf16.gmra.mrb[0].mxu0 %v1564
        %v3373 = vpop.f32.mrb[0].mxu0
        %v3374 = vadd.f32 0.0, %v3373
        %v3375 = vpop.f32.mrb[0].mxu0
        %v3376 = vpop.f32.mrb[0].mxu0
        %v3377 = vadd.f32 0.0, %v3376
        %v3378 = vpop.f32.mrb[0].mxu0
        %3379 = vdwg.mxu0
        %v3380 = vadd.f32 %v3154, %v3254
        %v3381 = vadd.f32 %v3155, %v3257
        %v3382 = vadd.f32 %v3156, %v3262
        %v3383 = vadd.f32 %v3157, %v3265
        %v3384 = vadd.f32 %v3158, %v3270
        %v3385 = vadd.f32 %v3159, %v3273
        %v3386 = vadd.f32 %v3160, %v3278
        %v3387 = vadd.f32 %v3161, %v3281
        %v3388 = vadd.f32 %v3162, %v3286
        %v3389 = vadd.f32 %v3163, %v3289
        %v3390 = vadd.f32 %v3164, %v3294
        %v3391 = vadd.f32 %v3165, %v3297
        %v3392 = vadd.f32 %v3166, %v3302
        %v3393 = vadd.f32 %v3167, %v3305
        %v3394 = vadd.f32 %v3168, %v3310
        %v3395 = vadd.f32 %v3169, %v3313
        %v3396 = vadd.f32 %v3170, %v3318
        %v3397 = vadd.f32 %v3171, %v3321
        %v3398 = vadd.f32 %v3172, %v3326
        %v3399 = vadd.f32 %v3173, %v3329
        %v3400 = vadd.f32 %v3174, %v3334
        %v3401 = vadd.f32 %v3175, %v3337
        %v3402 = vadd.f32 %v3176, %v3342
        %v3403 = vadd.f32 %v3177, %v3345
        %v3404 = vadd.f32 %v3178, %v3350
        %v3405 = vadd.f32 %v3179, %v3353
        %v3406 = vadd.f32 %v3180, %v3358
        %v3407 = vadd.f32 %v3181, %v3361
        %v3408 = vadd.f32 %v3182, %v3366
        %v3409 = vadd.f32 %v3183, %v3369
        %v3410 = vadd.f32 %v3184, %v3374
        %v3411 = vadd.f32 %v3185, %v3377
        %s3412 = scalar_lea.vmem %s3, 256
        %v3413 = vld [vmem:[%s3412] sm:$0xf]
        %v3414 = vld [vmem:[%s3412 + $0x4] sm:$0xf]
        %v3415 = vld [vmem:[%s3412 + $0x8] sm:$0xf]
        %v3416 = vld [vmem:[%s3412 + $0xc] sm:$0xf]
        %v3417 = vld [vmem:[%s3412 + $0x10] sm:$0xf]
        %v3418 = vld [vmem:[%s3412 + $0x14] sm:$0xf]
        %v3419 = vld [vmem:[%s3412 + $0x18] sm:$0xf]
        %v3420 = vld [vmem:[%s3412 + $0x1c] sm:$0xf]
        %v3429 = vunpack.c.l.b16 %v3413
        %v3430 = vunpack.c.l.b16 %v3414
        %v3431 = vunpack.c.l.b16 %v3415
        %v3432 = vunpack.c.l.b16 %v3416
        %v3433 = vunpack.c.l.b16 %v3417
        %v3434 = vunpack.c.l.b16 %v3418
        %v3435 = vunpack.c.l.b16 %v3419
        %v3436 = vunpack.c.l.b16 %v3420
        %v3437 = vpack.c.b16 %v3430, %v3429
        %v3438 = vpack.c.b16 %v3432, %v3431
        %v3439 = vpack.c.b16 %v3434, %v3433
        %v3440 = vpack.c.b16 %v3436, %v3435
        %3445 = vmatprep.subr.bf16.mxu0 0
        %3446 = vmatpush1.bf16.msra.mxu0 %v3437
        %3447 = vmatprep.subr.bf16.mxu0 0
        %3448 = vmatpush1.bf16.msra.mxu0 %v3438
        %3449 = vmatprep.subr.bf16.mxu0 0
        %3450 = vmatpush1.bf16.msra.mxu0 %v3439
        %3451 = vmatprep.subr.bf16.mxu0 0
        %3452 = vmatpush1.bf16.msra.mxu0 %v3440
        %3453 = vmatprep.subr.bf16.mxu0 0
        %3454 = vmatpush1.bf16.msra.mxu0 0
        %3455 = vmatprep.subr.bf16.mxu0 0
        %3456 = vmatpush1.bf16.msra.mxu0 0
        %3457 = vmatprep.subr.bf16.mxu0 0
        %3458 = vmatpush1.bf16.msra.mxu0 0
        %3459 = vmatprep.subr.bf16.mxu0 0
        %3460 = vmatpush1.bf16.msra.mxu0 0
        %3461 = vmatprep.subr.bf16.mxu0 0
        %3462 = vmatpush1.bf16.msra.mxu0 0
        %3463 = vmatprep.subr.bf16.mxu0 0
        %3464 = vmatpush1.bf16.msra.mxu0 0
        %3465 = vmatprep.subr.bf16.mxu0 0
        %3466 = vmatpush1.bf16.msra.mxu0 0
        %3467 = vmatprep.subr.bf16.mxu0 0
        %3468 = vmatpush1.bf16.msra.mxu0 0
        %3469 = vmatprep.subr.bf16.mxu0 0
        %3470 = vmatpush1.bf16.msra.mxu0 0
        %3471 = vmatprep.subr.bf16.mxu0 0
        %3472 = vmatpush1.bf16.msra.mxu0 0
        %3473 = vmatprep.subr.bf16.mxu0 0
        %3474 = vmatpush1.bf16.msra.mxu0 0
        %3475 = vmatprep.subr.bf16.mxu0 0
        %3476 = vmatpush1.bf16.msra.mxu0 0
        %3477 = vmatprep.mubr.bf16.mxu0 0
        %3478 = vmatmul.mubr.bf16.gmra.mrb[0].mxu0 %v2039
        %v3479 = vpop.f32.mrb[0].mxu0
        %v3480 = vadd.f32 0.0, %v3479
        %v3481 = vpop.f32.mrb[0].mxu0
        %v3482 = vpop.f32.mrb[0].mxu0
        %v3483 = vadd.f32 0.0, %v3482
        %v3484 = vpop.f32.mrb[0].mxu0
        %3485 = vmatprep.mubr.bf16.mxu0 0
        %3486 = vmatmul.mubr.bf16.gmra.mrb[0].mxu0 %v2042
        %v3487 = vpop.f32.mrb[0].mxu0
        %v3488 = vadd.f32 0.0, %v3487
        %v3489 = vpop.f32.mrb[0].mxu0
        %v3490 = vpop.f32.mrb[0].mxu0
        %v3491 = vadd.f32 0.0, %v3490
        %v3492 = vpop.f32.mrb[0].mxu0
        %3493 = vmatprep.mubr.bf16.mxu0 0
        %3494 = vmatmul.mubr.bf16.gmra.mrb[0].mxu0 %v2045
        %v3495 = vpop.f32.mrb[0].mxu0
        %v3496 = vadd.f32 0.0, %v3495
        %v3497 = vpop.f32.mrb[0].mxu0
        %v3498 = vpop.f32.mrb[0].mxu0
        %v3499 = vadd.f32 0.0, %v3498
        %v3500 = vpop.f32.mrb[0].mxu0
        %3501 = vmatprep.mubr.bf16.mxu0 0
        %3502 = vmatmul.mubr.bf16.gmra.mrb[0].mxu0 %v2048
        %v3503 = vpop.f32.mrb[0].mxu0
        %v3504 = vadd.f32 0.0, %v3503
        %v3505 = vpop.f32.mrb[0].mxu0
        %v3506 = vpop.f32.mrb[0].mxu0
        %v3507 = vadd.f32 0.0, %v3506
        %v3508 = vpop.f32.mrb[0].mxu0
        %3509 = vmatprep.mubr.bf16.mxu0 0
        %3510 = vmatmul.mubr.bf16.gmra.mrb[0].mxu0 %v2051
        %v3511 = vpop.f32.mrb[0].mxu0
        %v3512 = vadd.f32 0.0, %v3511
        %v3513 = vpop.f32.mrb[0].mxu0
        %v3514 = vpop.f32.mrb[0].mxu0
        %v3515 = vadd.f32 0.0, %v3514
        %v3516 = vpop.f32.mrb[0].mxu0
        %3517 = vmatprep.mubr.bf16.mxu0 0
        %3518 = vmatmul.mubr.bf16.gmra.mrb[0].mxu0 %v2054
        %v3519 = vpop.f32.mrb[0].mxu0
        %v3520 = vadd.f32 0.0, %v3519
        %v3521 = vpop.f32.mrb[0].mxu0
        %v3522 = vpop.f32.mrb[0].mxu0
        %v3523 = vadd.f32 0.0, %v3522
        %v3524 = vpop.f32.mrb[0].mxu0
        %3525 = vmatprep.mubr.bf16.mxu0 0
        %3526 = vmatmul.mubr.bf16.gmra.mrb[0].mxu0 %v2057
        %v3527 = vpop.f32.mrb[0].mxu0
        %v3528 = vadd.f32 0.0, %v3527
        %v3529 = vpop.f32.mrb[0].mxu0
        %v3530 = vpop.f32.mrb[0].mxu0
        %v3531 = vadd.f32 0.0, %v3530
        %v3532 = vpop.f32.mrb[0].mxu0
        %3533 = vmatprep.mubr.bf16.mxu0 0
        %3534 = vmatmul.mubr.bf16.gmra.mrb[0].mxu0 %v2060
        %v3535 = vpop.f32.mrb[0].mxu0
        %v3536 = vadd.f32 0.0, %v3535
        %v3537 = vpop.f32.mrb[0].mxu0
        %v3538 = vpop.f32.mrb[0].mxu0
        %v3539 = vadd.f32 0.0, %v3538
        %v3540 = vpop.f32.mrb[0].mxu0
        %3541 = vmatprep.mubr.bf16.mxu0 0
        %3542 = vmatmul.mubr.bf16.gmra.mrb[0].mxu0 %v2063
        %v3543 = vpop.f32.mrb[0].mxu0
        %v3544 = vadd.f32 0.0, %v3543
        %v3545 = vpop.f32.mrb[0].mxu0
        %v3546 = vpop.f32.mrb[0].mxu0
        %v3547 = vadd.f32 0.0, %v3546
        %v3548 = vpop.f32.mrb[0].mxu0
        %3549 = vmatprep.mubr.bf16.mxu0 0
        %3550 = vmatmul.mubr.bf16.gmra.mrb[0].mxu0 %v2066
        %v3551 = vpop.f32.mrb[0].mxu0
        %v3552 = vadd.f32 0.0, %v3551
        %v3553 = vpop.f32.mrb[0].mxu0
        %v3554 = vpop.f32.mrb[0].mxu0
        %v3555 = vadd.f32 0.0, %v3554
        %v3556 = vpop.f32.mrb[0].mxu0
        %3557 = vmatprep.mubr.bf16.mxu0 0
        %3558 = vmatmul.mubr.bf16.gmra.mrb[0].mxu0 %v2069
        %v3559 = vpop.f32.mrb[0].mxu0
        %v3560 = vadd.f32 0.0, %v3559
        %v3561 = vpop.f32.mrb[0].mxu0
        %v3562 = vpop.f32.mrb[0].mxu0
        %v3563 = vadd.f32 0.0, %v3562
        %v3564 = vpop.f32.mrb[0].mxu0
        %3565 = vmatprep.mubr.bf16.mxu0 0
        %3566 = vmatmul.mubr.bf16.gmra.mrb[0].mxu0 %v2072
        %v3567 = vpop.f32.mrb[0].mxu0
        %v3568 = vadd.f32 0.0, %v3567
        %v3569 = vpop.f32.mrb[0].mxu0
        %v3570 = vpop.f32.mrb[0].mxu0
        %v3571 = vadd.f32 0.0, %v3570
        %v3572 = vpop.f32.mrb[0].mxu0
        %3573 = vmatprep.mubr.bf16.mxu0 0
        %3574 = vmatmul.mubr.bf16.gmra.mrb[0].mxu0 %v2075
        %v3575 = vpop.f32.mrb[0].mxu0
        %v3576 = vadd.f32 0.0, %v3575
        %v3577 = vpop.f32.mrb[0].mxu0
        %v3578 = vpop.f32.mrb[0].mxu0
        %v3579 = vadd.f32 0.0, %v3578
        %v3580 = vpop.f32.mrb[0].mxu0
        %3581 = vmatprep.mubr.bf16.mxu0 0
        %3582 = vmatmul.mubr.bf16.gmra.mrb[0].mxu0 %v2078
        %v3583 = vpop.f32.mrb[0].mxu0
        %v3584 = vadd.f32 0.0, %v3583
        %v3585 = vpop.f32.mrb[0].mxu0
        %v3586 = vpop.f32.mrb[0].mxu0
        %v3587 = vadd.f32 0.0, %v3586
        %v3588 = vpop.f32.mrb[0].mxu0
        %3589 = vmatprep.mubr.bf16.mxu0 0
        %3590 = vmatmul.mubr.bf16.gmra.mrb[0].mxu0 %v2765
        %v3591 = vpop.f32.mrb[0].mxu0
        %v3592 = vadd.f32 0.0, %v3591
        %v3593 = vpop.f32.mrb[0].mxu0
        %v3594 = vpop.f32.mrb[0].mxu0
        %v3595 = vadd.f32 0.0, %v3594
        %v3596 = vpop.f32.mrb[0].mxu0
        %3597 = vmatprep.mubr.bf16.mxu0 0
        %3598 = vmatmul.mubr.bf16.gmra.mrb[0].mxu0 %v1564
        %v3599 = vpop.f32.mrb[0].mxu0
        %v3600 = vadd.f32 0.0, %v3599
        %v3601 = vpop.f32.mrb[0].mxu0
        %v3602 = vpop.f32.mrb[0].mxu0
        %v3603 = vadd.f32 0.0, %v3602
        %v3604 = vpop.f32.mrb[0].mxu0
        %3605 = vdwg.mxu0
        %v3606 = vadd.f32 %v3380, %v3480
        %v3607 = vadd.f32 %v3381, %v3483
        %v3608 = vadd.f32 %v3382, %v3488
        %v3609 = vadd.f32 %v3383, %v3491
        %v3610 = vadd.f32 %v3384, %v3496
        %v3611 = vadd.f32 %v3385, %v3499
        %v3612 = vadd.f32 %v3386, %v3504
        %v3613 = vadd.f32 %v3387, %v3507
        %v3614 = vadd.f32 %v3388, %v3512
        %v3615 = vadd.f32 %v3389, %v3515
        %v3616 = vadd.f32 %v3390, %v3520
        %v3617 = vadd.f32 %v3391, %v3523
        %v3618 = vadd.f32 %v3392, %v3528
        %v3619 = vadd.f32 %v3393, %v3531
        %v3620 = vadd.f32 %v3394, %v3536
        %v3621 = vadd.f32 %v3395, %v3539
        %v3622 = vadd.f32 %v3396, %v3544
        %v3623 = vadd.f32 %v3397, %v3547
        %v3624 = vadd.f32 %v3398, %v3552
        %v3625 = vadd.f32 %v3399, %v3555
        %v3626 = vadd.f32 %v3400, %v3560
        %v3627 = vadd.f32 %v3401, %v3563
        %v3628 = vadd.f32 %v3402, %v3568
        %v3629 = vadd.f32 %v3403, %v3571
        %v3630 = vadd.f32 %v3404, %v3576
        %v3631 = vadd.f32 %v3405, %v3579
        %v3632 = vadd.f32 %v3406, %v3584
        %v3633 = vadd.f32 %v3407, %v3587
        %v3634 = vadd.f32 %v3408, %v3592
        %v3635 = vadd.f32 %v3409, %v3595
        %v3636 = vadd.f32 %v3410, %v3600
        %v3637 = vadd.f32 %v3411, %v3603
        %3639 = vrot.lane.b32.xlu0 %v895, 96
        %v3640 = vpop.permute.xlu0 %3639
        %v3642 = vadd.f32 %v3606, %v3640
        %v3643 = vadd.f32 %v3607, %v3640
        %v3644 = vadd.f32 %v3608, %v3640
        %v3645 = vadd.f32 %v3609, %v3640
        %v3646 = vadd.f32 %v3610, %v3640
        %v3647 = vadd.f32 %v3611, %v3640
        %v3648 = vadd.f32 %v3612, %v3640
        %v3649 = vadd.f32 %v3613, %v3640
        %v3650 = vadd.f32 %v3614, %v3640
        %v3651 = vadd.f32 %v3615, %v3640
        %v3652 = vadd.f32 %v3616, %v3640
        %v3653 = vadd.f32 %v3617, %v3640
        %v3654 = vadd.f32 %v3618, %v3640
        %v3655 = vadd.f32 %v3619, %v3640
        %v3656 = vadd.f32 %v3620, %v3640
        %v3657 = vadd.f32 %v3621, %v3640
        %v3658 = vadd.f32 %v3622, %v3640
        %v3659 = vadd.f32 %v3623, %v3640
        %v3660 = vadd.f32 %v3624, %v3640
        %v3661 = vadd.f32 %v3625, %v3640
        %v3662 = vadd.f32 %v3626, %v3640
        %v3663 = vadd.f32 %v3627, %v3640
        %v3664 = vadd.f32 %v3628, %v3640
        %v3665 = vadd.f32 %v3629, %v3640
        %v3666 = vadd.f32 %v3630, %v3640
        %v3667 = vadd.f32 %v3631, %v3640
        %v3668 = vadd.f32 %v3632, %v3640
        %v3669 = vadd.f32 %v3633, %v3640
        %v3670 = vadd.f32 %v3634, %v3640
        %v3671 = vadd.f32 %v3635, %v3640
        %v3672 = vadd.f32 %v3636, %v3640
        %v3673 = vadd.f32 %v3637, %v3640
        %3706 = vrot.lane.b32.xlu0 %v3642, 96
        %v3707 = vpop.permute.xlu0 %3706
        %3708 = vrot.lane.b32.xlu0 %v3643, 96
        %v3709 = vpop.permute.xlu0 %3708
        %3710 = vrot.lane.b32.xlu0 %v3644, 96
        %v3711 = vpop.permute.xlu0 %3710
        %3712 = vrot.lane.b32.xlu0 %v3645, 96
        %v3713 = vpop.permute.xlu0 %3712
        %3714 = vrot.lane.b32.xlu0 %v3646, 96
        %v3715 = vpop.permute.xlu0 %3714
        %3716 = vrot.lane.b32.xlu0 %v3647, 96
        %v3717 = vpop.permute.xlu0 %3716
        %3718 = vrot.lane.b32.xlu0 %v3648, 96
        %v3719 = vpop.permute.xlu0 %3718
        %3720 = vrot.lane.b32.xlu0 %v3649, 96
        %v3721 = vpop.permute.xlu0 %3720
        %3722 = vrot.lane.b32.xlu0 %v3650, 96
        %v3723 = vpop.permute.xlu0 %3722
        %3724 = vrot.lane.b32.xlu0 %v3651, 96
        %v3725 = vpop.permute.xlu0 %3724
        %3726 = vrot.lane.b32.xlu0 %v3652, 96
        %v3727 = vpop.permute.xlu0 %3726
        %3728 = vrot.lane.b32.xlu0 %v3653, 96
        %v3729 = vpop.permute.xlu0 %3728
        %3730 = vrot.lane.b32.xlu0 %v3654, 96
        %v3731 = vpop.permute.xlu0 %3730
        %3732 = vrot.lane.b32.xlu0 %v3655, 96
        %v3733 = vpop.permute.xlu0 %3732
        %3734 = vrot.lane.b32.xlu0 %v3656, 96
        %v3735 = vpop.permute.xlu0 %3734
        %3736 = vrot.lane.b32.xlu0 %v3657, 96
        %v3737 = vpop.permute.xlu0 %3736
        %3738 = vrot.lane.b32.xlu0 %v3658, 96
        %v3739 = vpop.permute.xlu0 %3738
        %3740 = vrot.lane.b32.xlu0 %v3659, 96
        %v3741 = vpop.permute.xlu0 %3740
        %3742 = vrot.lane.b32.xlu0 %v3660, 96
        %v3743 = vpop.permute.xlu0 %3742
        %3744 = vrot.lane.b32.xlu0 %v3661, 96
        %v3745 = vpop.permute.xlu0 %3744
        %3746 = vrot.lane.b32.xlu0 %v3662, 96
        %v3747 = vpop.permute.xlu0 %3746
        %3748 = vrot.lane.b32.xlu0 %v3663, 96
        %v3749 = vpop.permute.xlu0 %3748
        %3750 = vrot.lane.b32.xlu0 %v3664, 96
        %v3751 = vpop.permute.xlu0 %3750
        %3752 = vrot.lane.b32.xlu0 %v3665, 96
        %v3753 = vpop.permute.xlu0 %3752
        %3754 = vrot.lane.b32.xlu0 %v3666, 96
        %v3755 = vpop.permute.xlu0 %3754
        %3756 = vrot.lane.b32.xlu0 %v3667, 96
        %v3757 = vpop.permute.xlu0 %3756
        %3758 = vrot.lane.b32.xlu0 %v3668, 96
        %v3759 = vpop.permute.xlu0 %3758
        %3760 = vrot.lane.b32.xlu0 %v3669, 96
        %v3761 = vpop.permute.xlu0 %3760
        %3762 = vrot.lane.b32.xlu0 %v3670, 96
        %v3763 = vpop.permute.xlu0 %3762
        %3764 = vrot.lane.b32.xlu0 %v3671, 96
        %v3765 = vpop.permute.xlu0 %3764
        %3766 = vrot.lane.b32.xlu0 %v3672, 96
        %v3767 = vpop.permute.xlu0 %3766
        %3768 = vrot.lane.b32.xlu0 %v3673, 96
        %v3769 = vpop.permute.xlu0 %3768
        %v3802 = vrot.slane %v3707, 7
        %v3803 = vrot.slane %v3711, 7
        %v3804 = vrot.slane %v3715, 7
        %v3805 = vrot.slane %v3719, 7
        %v3806 = vrot.slane %v3723, 7
        %v3807 = vrot.slane %v3727, 7
        %v3808 = vrot.slane %v3731, 7
        %v3809 = vrot.slane %v3735, 7
        %v3810 = vrot.slane %v3739, 7
        %v3811 = vrot.slane %v3743, 7
        %v3812 = vrot.slane %v3747, 7
        %v3813 = vrot.slane %v3751, 7
        %v3814 = vrot.slane %v3755, 7
        %v3815 = vrot.slane %v3759, 7
        %v3816 = vrot.slane %v3763, 7
        %v3817 = vrot.slane %v3767, 7
        %v3818 = vrot.slane %v3709, 7
        %v3819 = vrot.slane %v3713, 7
        %v3820 = vrot.slane %v3717, 7
        %v3821 = vrot.slane %v3721, 7
        %v3822 = vrot.slane %v3725, 7
        %v3823 = vrot.slane %v3729, 7
        %v3824 = vrot.slane %v3733, 7
        %v3825 = vrot.slane %v3737, 7
        %v3826 = vrot.slane %v3741, 7
        %v3827 = vrot.slane %v3745, 7
        %v3828 = vrot.slane %v3749, 7
        %v3829 = vrot.slane %v3753, 7
        %v3830 = vrot.slane %v3757, 7
        %v3831 = vrot.slane %v3761, 7
        %v3832 = vrot.slane %v3765, 7
        %v3833 = vrot.slane %v3769, 7
        %v3834 = vsel %vm566, %v3802, %v3818
        %v3835 = vsel %vm566, %v3803, %v3819
        %v3836 = vsel %vm566, %v3804, %v3820
        %v3837 = vsel %vm566, %v3805, %v3821
        %v3838 = vsel %vm566, %v3806, %v3822
        %v3839 = vsel %vm566, %v3807, %v3823
        %v3840 = vsel %vm566, %v3808, %v3824
        %v3841 = vsel %vm566, %v3809, %v3825
        %v3842 = vsel %vm566, %v3810, %v3826
        %v3843 = vsel %vm566, %v3811, %v3827
        %v3844 = vsel %vm566, %v3812, %v3828
        %v3845 = vsel %vm566, %v3813, %v3829
        %v3846 = vsel %vm566, %v3814, %v3830
        %v3847 = vsel %vm566, %v3815, %v3831
        %v3848 = vsel %vm566, %v3816, %v3832
        %v3849 = vsel %vm566, %v3817, %v3833
        %v3850 = vsel %vm566, %v3818, %v3802
        %v3851 = vsel %vm566, %v3819, %v3803
        %v3852 = vsel %vm566, %v3820, %v3804
        %v3853 = vsel %vm566, %v3821, %v3805
        %v3854 = vsel %vm566, %v3822, %v3806
        %v3855 = vsel %vm566, %v3823, %v3807
        %v3856 = vsel %vm566, %v3824, %v3808
        %v3857 = vsel %vm566, %v3825, %v3809
        %v3858 = vsel %vm566, %v3826, %v3810
        %v3859 = vsel %vm566, %v3827, %v3811
        %v3860 = vsel %vm566, %v3828, %v3812
        %v3861 = vsel %vm566, %v3829, %v3813
        %v3862 = vsel %vm566, %v3830, %v3814
        %v3863 = vsel %vm566, %v3831, %v3815
        %v3864 = vsel %vm566, %v3832, %v3816
        %v3865 = vsel %vm566, %v3833, %v3817
        %v3866 = vsel %vm601, 0.0, %v3850
        %v3867 = vsel %vm602, 0.0, %v3834
        %v3868 = vsel %vm601, 0.0, %v3851
        %v3869 = vsel %vm602, 0.0, %v3835
        %v3870 = vsel %vm601, 0.0, %v3852
        %v3871 = vsel %vm602, 0.0, %v3836
        %v3872 = vsel %vm601, 0.0, %v3853
        %v3873 = vsel %vm602, 0.0, %v3837
        %v3874 = vsel %vm601, 0.0, %v3854
        %v3875 = vsel %vm602, 0.0, %v3838
        %v3876 = vsel %vm601, 0.0, %v3855
        %v3877 = vsel %vm602, 0.0, %v3839
        %v3878 = vsel %vm601, 0.0, %v3856
        %v3879 = vsel %vm602, 0.0, %v3840
        %v3880 = vsel %vm601, 0.0, %v3857
        %v3881 = vsel %vm602, 0.0, %v3841
        %v3882 = vsel %vm601, 0.0, %v3858
        %v3883 = vsel %vm602, 0.0, %v3842
        %v3884 = vsel %vm601, 0.0, %v3859
        %v3885 = vsel %vm602, 0.0, %v3843
        %v3886 = vsel %vm601, 0.0, %v3860
        %v3887 = vsel %vm602, 0.0, %v3844
        %v3888 = vsel %vm601, 0.0, %v3861
        %v3889 = vsel %vm602, 0.0, %v3845
        %v3890 = vsel %vm601, 0.0, %v3862
        %v3891 = vsel %vm602, 0.0, %v3846
        %v3892 = vsel %vm601, 0.0, %v3863
        %v3893 = vsel %vm602, 0.0, %v3847
        %v3894 = vsel %vm601, 0.0, %v3864
        %v3895 = vsel %vm602, 0.0, %v3848
        %v3896 = vsel %vm601, 0.0, %v3865
        %v3897 = vsel %vm602, 0.0, %v3849
        %v3898 = vrot.slane %v3707, 1
        %v3899 = vrot.slane %v3711, 1
        %v3900 = vrot.slane %v3715, 1
        %v3901 = vrot.slane %v3719, 1
        %v3902 = vrot.slane %v3723, 1
        %v3903 = vrot.slane %v3727, 1
        %v3904 = vrot.slane %v3731, 1
        %v3905 = vrot.slane %v3735, 1
        %v3906 = vrot.slane %v3739, 1
        %v3907 = vrot.slane %v3743, 1
        %v3908 = vrot.slane %v3747, 1
        %v3909 = vrot.slane %v3751, 1
        %v3910 = vrot.slane %v3755, 1
        %v3911 = vrot.slane %v3759, 1
        %v3912 = vrot.slane %v3763, 1
        %v3913 = vrot.slane %v3767, 1
        %v3914 = vrot.slane %v3709, 1
        %v3915 = vrot.slane %v3713, 1
        %v3916 = vrot.slane %v3717, 1
        %v3917 = vrot.slane %v3721, 1
        %v3918 = vrot.slane %v3725, 1
        %v3919 = vrot.slane %v3729, 1
        %v3920 = vrot.slane %v3733, 1
        %v3921 = vrot.slane %v3737, 1
        %v3922 = vrot.slane %v3741, 1
        %v3923 = vrot.slane %v3745, 1
        %v3924 = vrot.slane %v3749, 1
        %v3925 = vrot.slane %v3753, 1
        %v3926 = vrot.slane %v3757, 1
        %v3927 = vrot.slane %v3761, 1
        %v3928 = vrot.slane %v3765, 1
        %v3929 = vrot.slane %v3769, 1
        %v3930 = vsel %vm669, %v3898, %v3914
        %v3931 = vsel %vm669, %v3899, %v3915
        %v3932 = vsel %vm669, %v3900, %v3916
        %v3933 = vsel %vm669, %v3901, %v3917
        %v3934 = vsel %vm669, %v3902, %v3918
        %v3935 = vsel %vm669, %v3903, %v3919
        %v3936 = vsel %vm669, %v3904, %v3920
        %v3937 = vsel %vm669, %v3905, %v3921
        %v3938 = vsel %vm669, %v3906, %v3922
        %v3939 = vsel %vm669, %v3907, %v3923
        %v3940 = vsel %vm669, %v3908, %v3924
        %v3941 = vsel %vm669, %v3909, %v3925
        %v3942 = vsel %vm669, %v3910, %v3926
        %v3943 = vsel %vm669, %v3911, %v3927
        %v3944 = vsel %vm669, %v3912, %v3928
        %v3945 = vsel %vm669, %v3913, %v3929
        %v3946 = vsel %vm669, %v3914, %v3898
        %v3947 = vsel %vm669, %v3915, %v3899
        %v3948 = vsel %vm669, %v3916, %v3900
        %v3949 = vsel %vm669, %v3917, %v3901
        %v3950 = vsel %vm669, %v3918, %v3902
        %v3951 = vsel %vm669, %v3919, %v3903
        %v3952 = vsel %vm669, %v3920, %v3904
        %v3953 = vsel %vm669, %v3921, %v3905
        %v3954 = vsel %vm669, %v3922, %v3906
        %v3955 = vsel %vm669, %v3923, %v3907
        %v3956 = vsel %vm669, %v3924, %v3908
        %v3957 = vsel %vm669, %v3925, %v3909
        %v3958 = vsel %vm669, %v3926, %v3910
        %v3959 = vsel %vm669, %v3927, %v3911
        %v3960 = vsel %vm669, %v3928, %v3912
        %v3961 = vsel %vm669, %v3929, %v3913
        %v3962 = vsel %vm704, 0.0, %v3930
        %v3963 = vsel %vm705, 0.0, %v3946
        %v3964 = vsel %vm704, 0.0, %v3931
        %v3965 = vsel %vm705, 0.0, %v3947
        %v3966 = vsel %vm704, 0.0, %v3932
        %v3967 = vsel %vm705, 0.0, %v3948
        %v3968 = vsel %vm704, 0.0, %v3933
        %v3969 = vsel %vm705, 0.0, %v3949
        %v3970 = vsel %vm704, 0.0, %v3934
        %v3971 = vsel %vm705, 0.0, %v3950
        %v3972 = vsel %vm704, 0.0, %v3935
        %v3973 = vsel %vm705, 0.0, %v3951
        %v3974 = vsel %vm704, 0.0, %v3936
        %v3975 = vsel %vm705, 0.0, %v3952
        %v3976 = vsel %vm704, 0.0, %v3937
        %v3977 = vsel %vm705, 0.0, %v3953
        %v3978 = vsel %vm704, 0.0, %v3938
        %v3979 = vsel %vm705, 0.0, %v3954
        %v3980 = vsel %vm704, 0.0, %v3939
        %v3981 = vsel %vm705, 0.0, %v3955
        %v3982 = vsel %vm704, 0.0, %v3940
        %v3983 = vsel %vm705, 0.0, %v3956
        %v3984 = vsel %vm704, 0.0, %v3941
        %v3985 = vsel %vm705, 0.0, %v3957
        %v3986 = vsel %vm704, 0.0, %v3942
        %v3987 = vsel %vm705, 0.0, %v3958
        %v3988 = vsel %vm704, 0.0, %v3943
        %v3989 = vsel %vm705, 0.0, %v3959
        %v3990 = vsel %vm704, 0.0, %v3944
        %v3991 = vsel %vm705, 0.0, %v3960
        %v3992 = vsel %vm704, 0.0, %v3945
        %v3993 = vsel %vm705, 0.0, %v3961
        %v3994 = vpack.c.bf16 %v3867, %v3866
        %v3995 = vpack.c.bf16 %v3869, %v3868
        %v3996 = vpack.c.bf16 %v3871, %v3870
        %v3997 = vpack.c.bf16 %v3873, %v3872
        %v3998 = vpack.c.bf16 %v3875, %v3874
        %v3999 = vpack.c.bf16 %v3877, %v3876
        %v4000 = vpack.c.bf16 %v3879, %v3878
        %v4001 = vpack.c.bf16 %v3881, %v3880
        %v4002 = vpack.c.bf16 %v3883, %v3882
        %v4003 = vpack.c.bf16 %v3885, %v3884
        %v4004 = vpack.c.bf16 %v3887, %v3886
        %v4005 = vpack.c.bf16 %v3889, %v3888
        %v4006 = vpack.c.bf16 %v3891, %v3890
        %v4007 = vpack.c.bf16 %v3893, %v3892
        %v4008 = vpack.c.bf16 %v3895, %v3894
        %v4009 = vpack.c.bf16 %v3897, %v3896
        %v4010 = vpack.c.bf16 %v3643, %v3642
        %v4011 = vpack.c.bf16 %v3645, %v3644
        %v4012 = vpack.c.bf16 %v3647, %v3646
        %v4013 = vpack.c.bf16 %v3649, %v3648
        %v4014 = vpack.c.bf16 %v3651, %v3650
        %v4015 = vpack.c.bf16 %v3653, %v3652
        %v4016 = vpack.c.bf16 %v3655, %v3654
        %v4017 = vpack.c.bf16 %v3657, %v3656
        %v4018 = vpack.c.bf16 %v3659, %v3658
        %v4019 = vpack.c.bf16 %v3661, %v3660
        %v4020 = vpack.c.bf16 %v3663, %v3662
        %v4021 = vpack.c.bf16 %v3665, %v3664
        %v4022 = vpack.c.bf16 %v3667, %v3666
        %v4023 = vpack.c.bf16 %v3669, %v3668
        %v4024 = vpack.c.bf16 %v3671, %v3670
        %v4025 = vpack.c.bf16 %v3673, %v3672
        %4042 = vrot.lane.b32.xlu0 %v4010, 96
        %v4043 = vpop.permute.xlu0 %4042
        %4044 = vrot.lane.b32.xlu0 %v4011, 96
        %v4045 = vpop.permute.xlu0 %4044
        %4046 = vrot.lane.b32.xlu0 %v4012, 96
        %v4047 = vpop.permute.xlu0 %4046
        %4048 = vrot.lane.b32.xlu0 %v4013, 96
        %v4049 = vpop.permute.xlu0 %4048
        %4050 = vrot.lane.b32.xlu0 %v4014, 96
        %v4051 = vpop.permute.xlu0 %4050
        %4052 = vrot.lane.b32.xlu0 %v4015, 96
        %v4053 = vpop.permute.xlu0 %4052
        %4054 = vrot.lane.b32.xlu0 %v4016, 96
        %v4055 = vpop.permute.xlu0 %4054
        %4056 = vrot.lane.b32.xlu0 %v4017, 96
        %v4057 = vpop.permute.xlu0 %4056
        %4058 = vrot.lane.b32.xlu0 %v4018, 96
        %v4059 = vpop.permute.xlu0 %4058
        %4060 = vrot.lane.b32.xlu0 %v4019, 96
        %v4061 = vpop.permute.xlu0 %4060
        %4062 = vrot.lane.b32.xlu0 %v4020, 96
        %v4063 = vpop.permute.xlu0 %4062
        %4064 = vrot.lane.b32.xlu0 %v4021, 96
        %v4065 = vpop.permute.xlu0 %4064
        %4066 = vrot.lane.b32.xlu0 %v4022, 96
        %v4067 = vpop.permute.xlu0 %4066
        %4068 = vrot.lane.b32.xlu0 %v4023, 96
        %v4069 = vpop.permute.xlu0 %4068
        %4070 = vrot.lane.b32.xlu0 %v4024, 96
        %v4071 = vpop.permute.xlu0 %4070
        %4072 = vrot.lane.b32.xlu0 %v4025, 96
        %v4073 = vpop.permute.xlu0 %4072
        %v4074 = vpack.c.bf16 %v3963, %v3962
        %v4075 = vpack.c.bf16 %v3965, %v3964
        %v4076 = vpack.c.bf16 %v3967, %v3966
        %v4077 = vpack.c.bf16 %v3969, %v3968
        %v4078 = vpack.c.bf16 %v3971, %v3970
        %v4079 = vpack.c.bf16 %v3973, %v3972
        %v4080 = vpack.c.bf16 %v3975, %v3974
        %v4081 = vpack.c.bf16 %v3977, %v3976
        %v4082 = vpack.c.bf16 %v3979, %v3978
        %v4083 = vpack.c.bf16 %v3981, %v3980
        %v4084 = vpack.c.bf16 %v3983, %v3982
        %v4085 = vpack.c.bf16 %v3985, %v3984
        %v4086 = vpack.c.bf16 %v3987, %v3986
        %v4087 = vpack.c.bf16 %v3989, %v3988
        %v4088 = vpack.c.bf16 %v3991, %v3990
        %v4089 = vpack.c.bf16 %v3993, %v3992
        %v4090 = vld [vmem:[%s4] sm:$0xf]
        %v4091 = vld [vmem:[%s4 + $0x4] sm:$0xf]
        %v4092 = vld [vmem:[%s4 + $0x8] sm:$0xf]
        %v4093 = vld [vmem:[%s4 + $0xc] sm:$0xf]
        %s4094 = scalar_lea.vmem %s4, 16
        %v4095 = vld [vmem:[%s4094] sm:$0xf]
        %v4096 = vld [vmem:[%s4094 + $0x4] sm:$0xf]
        %v4097 = vld [vmem:[%s4094 + $0x8] sm:$0xf]
        %v4098 = vld [vmem:[%s4094 + $0xc] sm:$0xf]
        %v4103 = vunpack.c.l.b16 %v4095
        %v4104 = vunpack.c.l.b16 %v4096
        %v4105 = vunpack.c.l.b16 %v4097
        %v4106 = vunpack.c.l.b16 %v4098
        %v4107 = vpack.c.b16 %v4104, %v4103
        %v4108 = vpack.c.b16 %v4106, %v4105
        %vm4111 = vcmask 261120
        %v4112 = vsel %vm4111, 0, 0
        %v4115 = vsel %vm4111, %v4043, 0
        %v4118 = vsel %vm4111, %v4045, 0
        %v4121 = vsel %vm4111, %v4047, 0
        %v4124 = vsel %vm4111, %v4049, 0
        %v4127 = vsel %vm4111, %v4051, 0
        %v4130 = vsel %vm4111, %v4053, 0
        %v4133 = vsel %vm4111, %v4055, 0
        %v4136 = vsel %vm4111, %v4057, 0
        %v4139 = vsel %vm4111, %v4059, 0
        %v4142 = vsel %vm4111, %v4061, 0
        %v4145 = vsel %vm4111, %v4063, 0
        %v4148 = vsel %vm4111, %v4065, 0
        %v4151 = vsel %vm4111, %v4067, 0
        %v4154 = vsel %vm4111, %v4069, 0
        %v4157 = vsel %vm4111, %v4071, 0
        %4159 = vmatprep.subr.bf16.mxu0 0
        %4160 = vmatpush1.bf16.msra.mxu0 %v4107
        %4161 = vmatprep.subr.bf16.mxu0 0
        %4162 = vmatpush1.bf16.msra.mxu0 %v4108
        %4163 = vmatprep.subr.bf16.mxu0 0
        %4164 = vmatpush1.bf16.msra.mxu0 0
        %4165 = vmatprep.subr.bf16.mxu0 0
        %4166 = vmatpush1.bf16.msra.mxu0 0
        %4167 = vmatprep.subr.bf16.mxu0 0
        %4168 = vmatpush1.bf16.msra.mxu0 0
        %4169 = vmatprep.subr.bf16.mxu0 0
        %4170 = vmatpush1.bf16.msra.mxu0 0
        %4171 = vmatprep.subr.bf16.mxu0 0
        %4172 = vmatpush1.bf16.msra.mxu0 0
        %4173 = vmatprep.subr.bf16.mxu0 0
        %4174 = vmatpush1.bf16.msra.mxu0 0
        %4175 = vmatprep.subr.bf16.mxu0 0
        %4176 = vmatpush1.bf16.msra.mxu0 0
        %4177 = vmatprep.subr.bf16.mxu0 0
        %4178 = vmatpush1.bf16.msra.mxu0 0
        %4179 = vmatprep.subr.bf16.mxu0 0
        %4180 = vmatpush1.bf16.msra.mxu0 0
        %4181 = vmatprep.subr.bf16.mxu0 0
        %4182 = vmatpush1.bf16.msra.mxu0 0
        %4183 = vmatprep.subr.bf16.mxu0 0
        %4184 = vmatpush1.bf16.msra.mxu0 0
        %4185 = vmatprep.subr.bf16.mxu0 0
        %4186 = vmatpush1.bf16.msra.mxu0 0
        %4187 = vmatprep.subr.bf16.mxu0 0
        %4188 = vmatpush1.bf16.msra.mxu0 0
        %4189 = vmatprep.subr.bf16.mxu0 0
        %4190 = vmatpush1.bf16.msra.mxu0 0
        %4191 = vmatprep.mubr.bf16.mxu0 0
        %4192 = vmatmul.mubr.bf16.gmra.mrb[0].mxu0 %v4112
        %v4193 = vpop.f32.mrb[0].mxu0
        %v4194 = vadd.f32 0.0, %v4193
        %v4195 = vpop.f32.mrb[0].mxu0
        %v4196 = vpop.f32.mrb[0].mxu0
        %v4197 = vadd.f32 0.0, %v4196
        %v4198 = vpop.f32.mrb[0].mxu0
        %4199 = vmatprep.mubr.bf16.mxu0 0
        %4200 = vmatmul.mubr.bf16.gmra.mrb[0].mxu0 %v4115
        %v4201 = vpop.f32.mrb[0].mxu0
        %v4202 = vadd.f32 0.0, %v4201
        %v4203 = vpop.f32.mrb[0].mxu0
        %v4204 = vpop.f32.mrb[0].mxu0
        %v4205 = vadd.f32 0.0, %v4204
        %v4206 = vpop.f32.mrb[0].mxu0
        %4207 = vmatprep.mubr.bf16.mxu0 0
        %4208 = vmatmul.mubr.bf16.gmra.mrb[0].mxu0 %v4118
        %v4209 = vpop.f32.mrb[0].mxu0
        %v4210 = vadd.f32 0.0, %v4209
        %v4211 = vpop.f32.mrb[0].mxu0
        %v4212 = vpop.f32.mrb[0].mxu0
        %v4213 = vadd.f32 0.0, %v4212
        %v4214 = vpop.f32.mrb[0].mxu0
        %4215 = vmatprep.mubr.bf16.mxu0 0
        %4216 = vmatmul.mubr.bf16.gmra.mrb[0].mxu0 %v4121
        %v4217 = vpop.f32.mrb[0].mxu0
        %v4218 = vadd.f32 0.0, %v4217
        %v4219 = vpop.f32.mrb[0].mxu0
        %v4220 = vpop.f32.mrb[0].mxu0
        %v4221 = vadd.f32 0.0, %v4220
        %v4222 = vpop.f32.mrb[0].mxu0
        %4223 = vmatprep.mubr.bf16.mxu0 0
        %4224 = vmatmul.mubr.bf16.gmra.mrb[0].mxu0 %v4124
        %v4225 = vpop.f32.mrb[0].mxu0
        %v4226 = vadd.f32 0.0, %v4225
        %v4227 = vpop.f32.mrb[0].mxu0
        %v4228 = vpop.f32.mrb[0].mxu0
        %v4229 = vadd.f32 0.0, %v4228
        %v4230 = vpop.f32.mrb[0].mxu0
        %4231 = vmatprep.mubr.bf16.mxu0 0
        %4232 = vmatmul.mubr.bf16.gmra.mrb[0].mxu0 %v4127
        %v4233 = vpop.f32.mrb[0].mxu0
        %v4234 = vadd.f32 0.0, %v4233
        %v4235 = vpop.f32.mrb[0].mxu0
        %v4236 = vpop.f32.mrb[0].mxu0
        %v4237 = vadd.f32 0.0, %v4236
        %v4238 = vpop.f32.mrb[0].mxu0
        %4239 = vmatprep.mubr.bf16.mxu0 0
        %4240 = vmatmul.mubr.bf16.gmra.mrb[0].mxu0 %v4130
        %v4241 = vpop.f32.mrb[0].mxu0
        %v4242 = vadd.f32 0.0, %v4241
        %v4243 = vpop.f32.mrb[0].mxu0
        %v4244 = vpop.f32.mrb[0].mxu0
        %v4245 = vadd.f32 0.0, %v4244
        %v4246 = vpop.f32.mrb[0].mxu0
        %4247 = vmatprep.mubr.bf16.mxu0 0
        %4248 = vmatmul.mubr.bf16.gmra.mrb[0].mxu0 %v4133
        %v4249 = vpop.f32.mrb[0].mxu0
        %v4250 = vadd.f32 0.0, %v4249
        %v4251 = vpop.f32.mrb[0].mxu0
        %v4252 = vpop.f32.mrb[0].mxu0
        %v4253 = vadd.f32 0.0, %v4252
        %v4254 = vpop.f32.mrb[0].mxu0
        %4255 = vmatprep.mubr.bf16.mxu0 0
        %4256 = vmatmul.mubr.bf16.gmra.mrb[0].mxu0 %v4136
        %v4257 = vpop.f32.mrb[0].mxu0
        %v4258 = vadd.f32 0.0, %v4257
        %v4259 = vpop.f32.mrb[0].mxu0
        %v4260 = vpop.f32.mrb[0].mxu0
        %v4261 = vadd.f32 0.0, %v4260
        %v4262 = vpop.f32.mrb[0].mxu0
        %4263 = vmatprep.mubr.bf16.mxu0 0
        %4264 = vmatmul.mubr.bf16.gmra.mrb[0].mxu0 %v4139
        %v4265 = vpop.f32.mrb[0].mxu0
        %v4266 = vadd.f32 0.0, %v4265
        %v4267 = vpop.f32.mrb[0].mxu0
        %v4268 = vpop.f32.mrb[0].mxu0
        %v4269 = vadd.f32 0.0, %v4268
        %v4270 = vpop.f32.mrb[0].mxu0
        %4271 = vmatprep.mubr.bf16.mxu0 0
        %4272 = vmatmul.mubr.bf16.gmra.mrb[0].mxu0 %v4142
        %v4273 = vpop.f32.mrb[0].mxu0
        %v4274 = vadd.f32 0.0, %v4273
        %v4275 = vpop.f32.mrb[0].mxu0
        %v4276 = vpop.f32.mrb[0].mxu0
        %v4277 = vadd.f32 0.0, %v4276
        %v4278 = vpop.f32.mrb[0].mxu0
        %4279 = vmatprep.mubr.bf16.mxu0 0
        %4280 = vmatmul.mubr.bf16.gmra.mrb[0].mxu0 %v4145
        %v4281 = vpop.f32.mrb[0].mxu0
        %v4282 = vadd.f32 0.0, %v4281
        %v4283 = vpop.f32.mrb[0].mxu0
        %v4284 = vpop.f32.mrb[0].mxu0
        %v4285 = vadd.f32 0.0, %v4284
        %v4286 = vpop.f32.mrb[0].mxu0
        %4287 = vmatprep.mubr.bf16.mxu0 0
        %4288 = vmatmul.mubr.bf16.gmra.mrb[0].mxu0 %v4148
        %v4289 = vpop.f32.mrb[0].mxu0
        %v4290 = vadd.f32 0.0, %v4289
        %v4291 = vpop.f32.mrb[0].mxu0
        %v4292 = vpop.f32.mrb[0].mxu0
        %v4293 = vadd.f32 0.0, %v4292
        %v4294 = vpop.f32.mrb[0].mxu0
        %4295 = vmatprep.mubr.bf16.mxu0 0
        %4296 = vmatmul.mubr.bf16.gmra.mrb[0].mxu0 %v4151
        %v4297 = vpop.f32.mrb[0].mxu0
        %v4298 = vadd.f32 0.0, %v4297
        %v4299 = vpop.f32.mrb[0].mxu0
        %v4300 = vpop.f32.mrb[0].mxu0
        %v4301 = vadd.f32 0.0, %v4300
        %v4302 = vpop.f32.mrb[0].mxu0
        %4303 = vmatprep.mubr.bf16.mxu0 0
        %4304 = vmatmul.mubr.bf16.gmra.mrb[0].mxu0 %v4154
        %v4305 = vpop.f32.mrb[0].mxu0
        %v4306 = vadd.f32 0.0, %v4305
        %v4307 = vpop.f32.mrb[0].mxu0
        %v4308 = vpop.f32.mrb[0].mxu0
        %v4309 = vadd.f32 0.0, %v4308
        %v4310 = vpop.f32.mrb[0].mxu0
        %4311 = vmatprep.mubr.bf16.mxu0 0
        %4312 = vmatmul.mubr.bf16.gmra.mrb[0].mxu0 %v4157
        %v4313 = vpop.f32.mrb[0].mxu0
        %v4314 = vadd.f32 0.0, %v4313
        %v4315 = vpop.f32.mrb[0].mxu0
        %v4316 = vpop.f32.mrb[0].mxu0
        %v4317 = vadd.f32 0.0, %v4316
        %v4318 = vpop.f32.mrb[0].mxu0
        %4319 = vdwg.mxu0
        %v4324 = vunpack.c.l.b16 %v4090
        %v4325 = vunpack.c.l.b16 %v4091
        %v4326 = vunpack.c.l.b16 %v4092
        %v4327 = vunpack.c.l.b16 %v4093
        %v4328 = vpack.c.b16 %v4325, %v4324
        %v4329 = vpack.c.b16 %v4327, %v4326
        %v4333 = vsel %vm4111, %v3994, 0
        %v4336 = vsel %vm4111, %v3995, 0
        %v4339 = vsel %vm4111, %v3996, 0
        %v4342 = vsel %vm4111, %v3997, 0
        %v4345 = vsel %vm4111, %v3998, 0
        %v4348 = vsel %vm4111, %v3999, 0
        %v4351 = vsel %vm4111, %v4000, 0
        %v4354 = vsel %vm4111, %v4001, 0
        %v4357 = vsel %vm4111, %v4002, 0
        %v4360 = vsel %vm4111, %v4003, 0
        %v4363 = vsel %vm4111, %v4004, 0
        %v4366 = vsel %vm4111, %v4005, 0
        %v4369 = vsel %vm4111, %v4006, 0
        %v4372 = vsel %vm4111, %v4007, 0
        %v4375 = vsel %vm4111, %v4008, 0
        %4377 = vmatprep.subr.bf16.mxu0 0
        %4378 = vmatpush1.bf16.msra.mxu0 %v4328
        %4379 = vmatprep.subr.bf16.mxu0 0
        %4380 = vmatpush1.bf16.msra.mxu0 %v4329
        %4381 = vmatprep.subr.bf16.mxu0 0
        %4382 = vmatpush1.bf16.msra.mxu0 0
        %4383 = vmatprep.subr.bf16.mxu0 0
        %4384 = vmatpush1.bf16.msra.mxu0 0
        %4385 = vmatprep.subr.bf16.mxu0 0
        %4386 = vmatpush1.bf16.msra.mxu0 0
        %4387 = vmatprep.subr.bf16.mxu0 0
        %4388 = vmatpush1.bf16.msra.mxu0 0
        %4389 = vmatprep.subr.bf16.mxu0 0
        %4390 = vmatpush1.bf16.msra.mxu0 0
        %4391 = vmatprep.subr.bf16.mxu0 0
        %4392 = vmatpush1.bf16.msra.mxu0 0
        %4393 = vmatprep.subr.bf16.mxu0 0
        %4394 = vmatpush1.bf16.msra.mxu0 0
        %4395 = vmatprep.subr.bf16.mxu0 0
        %4396 = vmatpush1.bf16.msra.mxu0 0
        %4397 = vmatprep.subr.bf16.mxu0 0
        %4398 = vmatpush1.bf16.msra.mxu0 0
        %4399 = vmatprep.subr.bf16.mxu0 0
        %4400 = vmatpush1.bf16.msra.mxu0 0
        %4401 = vmatprep.subr.bf16.mxu0 0
        %4402 = vmatpush1.bf16.msra.mxu0 0
        %4403 = vmatprep.subr.bf16.mxu0 0
        %4404 = vmatpush1.bf16.msra.mxu0 0
        %4405 = vmatprep.subr.bf16.mxu0 0
        %4406 = vmatpush1.bf16.msra.mxu0 0
        %4407 = vmatprep.subr.bf16.mxu0 0
        %4408 = vmatpush1.bf16.msra.mxu0 0
        %4409 = vmatprep.mubr.bf16.mxu0 0
        %4410 = vmatmul.mubr.bf16.gmra.mrb[0].mxu0 %v4112
        %v4411 = vpop.f32.mrb[0].mxu0
        %v4412 = vadd.f32 %v4194, %v4411
        %v4413 = vpop.f32.mrb[0].mxu0
        %v4414 = vpop.f32.mrb[0].mxu0
        %v4415 = vadd.f32 %v4197, %v4414
        %v4416 = vpop.f32.mrb[0].mxu0
        %4417 = vmatprep.mubr.bf16.mxu0 0
        %4418 = vmatmul.mubr.bf16.gmra.mrb[0].mxu0 %v4333
        %v4419 = vpop.f32.mrb[0].mxu0
        %v4420 = vadd.f32 %v4202, %v4419
        %v4421 = vpop.f32.mrb[0].mxu0
        %v4422 = vpop.f32.mrb[0].mxu0
        %v4423 = vadd.f32 %v4205, %v4422
        %v4424 = vpop.f32.mrb[0].mxu0
        %4425 = vmatprep.mubr.bf16.mxu0 0
        %4426 = vmatmul.mubr.bf16.gmra.mrb[0].mxu0 %v4336
        %v4427 = vpop.f32.mrb[0].mxu0
        %v4428 = vadd.f32 %v4210, %v4427
        %v4429 = vpop.f32.mrb[0].mxu0
        %v4430 = vpop.f32.mrb[0].mxu0
        %v4431 = vadd.f32 %v4213, %v4430
        %v4432 = vpop.f32.mrb[0].mxu0
        %4433 = vmatprep.mubr.bf16.mxu0 0
        %4434 = vmatmul.mubr.bf16.gmra.mrb[0].mxu0 %v4339
        %v4435 = vpop.f32.mrb[0].mxu0
        %v4436 = vadd.f32 %v4218, %v4435
        %v4437 = vpop.f32.mrb[0].mxu0
        %v4438 = vpop.f32.mrb[0].mxu0
        %v4439 = vadd.f32 %v4221, %v4438
        %v4440 = vpop.f32.mrb[0].mxu0
        %4441 = vmatprep.mubr.bf16.mxu0 0
        %4442 = vmatmul.mubr.bf16.gmra.mrb[0].mxu0 %v4342
        %v4443 = vpop.f32.mrb[0].mxu0
        %v4444 = vadd.f32 %v4226, %v4443
        %v4445 = vpop.f32.mrb[0].mxu0
        %v4446 = vpop.f32.mrb[0].mxu0
        %v4447 = vadd.f32 %v4229, %v4446
        %v4448 = vpop.f32.mrb[0].mxu0
        %4449 = vmatprep.mubr.bf16.mxu0 0
        %4450 = vmatmul.mubr.bf16.gmra.mrb[0].mxu0 %v4345
        %v4451 = vpop.f32.mrb[0].mxu0
        %v4452 = vadd.f32 %v4234, %v4451
        %v4453 = vpop.f32.mrb[0].mxu0
        %v4454 = vpop.f32.mrb[0].mxu0
        %v4455 = vadd.f32 %v4237, %v4454
        %v4456 = vpop.f32.mrb[0].mxu0
        %4457 = vmatprep.mubr.bf16.mxu0 0
        %4458 = vmatmul.mubr.bf16.gmra.mrb[0].mxu0 %v4348
        %v4459 = vpop.f32.mrb[0].mxu0
        %v4460 = vadd.f32 %v4242, %v4459
        %v4461 = vpop.f32.mrb[0].mxu0
        %v4462 = vpop.f32.mrb[0].mxu0
        %v4463 = vadd.f32 %v4245, %v4462
        %v4464 = vpop.f32.mrb[0].mxu0
        %4465 = vmatprep.mubr.bf16.mxu0 0
        %4466 = vmatmul.mubr.bf16.gmra.mrb[0].mxu0 %v4351
        %v4467 = vpop.f32.mrb[0].mxu0
        %v4468 = vadd.f32 %v4250, %v4467
        %v4469 = vpop.f32.mrb[0].mxu0
        %v4470 = vpop.f32.mrb[0].mxu0
        %v4471 = vadd.f32 %v4253, %v4470
        %v4472 = vpop.f32.mrb[0].mxu0
        %4473 = vmatprep.mubr.bf16.mxu0 0
        %4474 = vmatmul.mubr.bf16.gmra.mrb[0].mxu0 %v4354
        %v4475 = vpop.f32.mrb[0].mxu0
        %v4476 = vadd.f32 %v4258, %v4475
        %v4477 = vpop.f32.mrb[0].mxu0
        %v4478 = vpop.f32.mrb[0].mxu0
        %v4479 = vadd.f32 %v4261, %v4478
        %v4480 = vpop.f32.mrb[0].mxu0
        %4481 = vmatprep.mubr.bf16.mxu0 0
        %4482 = vmatmul.mubr.bf16.gmra.mrb[0].mxu0 %v4357
        %v4483 = vpop.f32.mrb[0].mxu0
        %v4484 = vadd.f32 %v4266, %v4483
        %v4485 = vpop.f32.mrb[0].mxu0
        %v4486 = vpop.f32.mrb[0].mxu0
        %v4487 = vadd.f32 %v4269, %v4486
        %v4488 = vpop.f32.mrb[0].mxu0
        %4489 = vmatprep.mubr.bf16.mxu0 0
        %4490 = vmatmul.mubr.bf16.gmra.mrb[0].mxu0 %v4360
        %v4491 = vpop.f32.mrb[0].mxu0
        %v4492 = vadd.f32 %v4274, %v4491
        %v4493 = vpop.f32.mrb[0].mxu0
        %v4494 = vpop.f32.mrb[0].mxu0
        %v4495 = vadd.f32 %v4277, %v4494
        %v4496 = vpop.f32.mrb[0].mxu0
        %4497 = vmatprep.mubr.bf16.mxu0 0
        %4498 = vmatmul.mubr.bf16.gmra.mrb[0].mxu0 %v4363
        %v4499 = vpop.f32.mrb[0].mxu0
        %v4500 = vadd.f32 %v4282, %v4499
        %v4501 = vpop.f32.mrb[0].mxu0
        %v4502 = vpop.f32.mrb[0].mxu0
        %v4503 = vadd.f32 %v4285, %v4502
        %v4504 = vpop.f32.mrb[0].mxu0
        %4505 = vmatprep.mubr.bf16.mxu0 0
        %4506 = vmatmul.mubr.bf16.gmra.mrb[0].mxu0 %v4366
        %v4507 = vpop.f32.mrb[0].mxu0
        %v4508 = vadd.f32 %v4290, %v4507
        %v4509 = vpop.f32.mrb[0].mxu0
        %v4510 = vpop.f32.mrb[0].mxu0
        %v4511 = vadd.f32 %v4293, %v4510
        %v4512 = vpop.f32.mrb[0].mxu0
        %4513 = vmatprep.mubr.bf16.mxu0 0
        %4514 = vmatmul.mubr.bf16.gmra.mrb[0].mxu0 %v4369
        %v4515 = vpop.f32.mrb[0].mxu0
        %v4516 = vadd.f32 %v4298, %v4515
        %v4517 = vpop.f32.mrb[0].mxu0
        %v4518 = vpop.f32.mrb[0].mxu0
        %v4519 = vadd.f32 %v4301, %v4518
        %v4520 = vpop.f32.mrb[0].mxu0
        %4521 = vmatprep.mubr.bf16.mxu0 0
        %4522 = vmatmul.mubr.bf16.gmra.mrb[0].mxu0 %v4372
        %v4523 = vpop.f32.mrb[0].mxu0
        %v4524 = vadd.f32 %v4306, %v4523
        %v4525 = vpop.f32.mrb[0].mxu0
        %v4526 = vpop.f32.mrb[0].mxu0
        %v4527 = vadd.f32 %v4309, %v4526
        %v4528 = vpop.f32.mrb[0].mxu0
        %4529 = vmatprep.mubr.bf16.mxu0 0
        %4530 = vmatmul.mubr.bf16.gmra.mrb[0].mxu0 %v4375
        %v4531 = vpop.f32.mrb[0].mxu0
        %v4532 = vadd.f32 %v4314, %v4531
        %v4533 = vpop.f32.mrb[0].mxu0
        %v4534 = vpop.f32.mrb[0].mxu0
        %v4535 = vadd.f32 %v4317, %v4534
        %v4536 = vpop.f32.mrb[0].mxu0
        %4537 = vdwg.mxu0
        %s4538 = scalar_lea.vmem %s4, 32
        %v4539 = vld [vmem:[%s4538] sm:$0xf]
        %v4540 = vld [vmem:[%s4538 + $0x4] sm:$0xf]
        %v4541 = vld [vmem:[%s4538 + $0x8] sm:$0xf]
        %v4542 = vld [vmem:[%s4538 + $0xc] sm:$0xf]
        %v4547 = vunpack.c.l.b16 %v4539
        %v4548 = vunpack.c.l.b16 %v4540
        %v4549 = vunpack.c.l.b16 %v4541
        %v4550 = vunpack.c.l.b16 %v4542
        %v4551 = vpack.c.b16 %v4548, %v4547
        %v4552 = vpack.c.b16 %v4550, %v4549
        %v4556 = vsel %vm4111, %v4074, 0
        %v4559 = vsel %vm4111, %v4075, 0
        %v4562 = vsel %vm4111, %v4076, 0
        %v4565 = vsel %vm4111, %v4077, 0
        %v4568 = vsel %vm4111, %v4078, 0
        %v4571 = vsel %vm4111, %v4079, 0
        %v4574 = vsel %vm4111, %v4080, 0
        %v4577 = vsel %vm4111, %v4081, 0
        %v4580 = vsel %vm4111, %v4082, 0
        %v4583 = vsel %vm4111, %v4083, 0
        %v4586 = vsel %vm4111, %v4084, 0
        %v4589 = vsel %vm4111, %v4085, 0
        %v4592 = vsel %vm4111, %v4086, 0
        %v4595 = vsel %vm4111, %v4087, 0
        %v4598 = vsel %vm4111, %v4088, 0
        %4600 = vmatprep.subr.bf16.mxu0 0
        %4601 = vmatpush1.bf16.msra.mxu0 %v4551
        %4602 = vmatprep.subr.bf16.mxu0 0
        %4603 = vmatpush1.bf16.msra.mxu0 %v4552
        %4604 = vmatprep.subr.bf16.mxu0 0
        %4605 = vmatpush1.bf16.msra.mxu0 0
        %4606 = vmatprep.subr.bf16.mxu0 0
        %4607 = vmatpush1.bf16.msra.mxu0 0
        %4608 = vmatprep.subr.bf16.mxu0 0
        %4609 = vmatpush1.bf16.msra.mxu0 0
        %4610 = vmatprep.subr.bf16.mxu0 0
        %4611 = vmatpush1.bf16.msra.mxu0 0
        %4612 = vmatprep.subr.bf16.mxu0 0
        %4613 = vmatpush1.bf16.msra.mxu0 0
        %4614 = vmatprep.subr.bf16.mxu0 0
        %4615 = vmatpush1.bf16.msra.mxu0 0
        %4616 = vmatprep.subr.bf16.mxu0 0
        %4617 = vmatpush1.bf16.msra.mxu0 0
        %4618 = vmatprep.subr.bf16.mxu0 0
        %4619 = vmatpush1.bf16.msra.mxu0 0
        %4620 = vmatprep.subr.bf16.mxu0 0
        %4621 = vmatpush1.bf16.msra.mxu0 0
        %4622 = vmatprep.subr.bf16.mxu0 0
        %4623 = vmatpush1.bf16.msra.mxu0 0
        %4624 = vmatprep.subr.bf16.mxu0 0
        %4625 = vmatpush1.bf16.msra.mxu0 0
        %4626 = vmatprep.subr.bf16.mxu0 0
        %4627 = vmatpush1.bf16.msra.mxu0 0
        %4628 = vmatprep.subr.bf16.mxu0 0
        %4629 = vmatpush1.bf16.msra.mxu0 0
        %4630 = vmatprep.subr.bf16.mxu0 0
        %4631 = vmatpush1.bf16.msra.mxu0 0
        %4632 = vmatprep.mubr.bf16.mxu0 0
        %4633 = vmatmul.mubr.bf16.gmra.mrb[0].mxu0 %v4112
        %v4634 = vpop.f32.mrb[0].mxu0
        %v4635 = vadd.f32 0.0, %v4634
        %v4636 = vpop.f32.mrb[0].mxu0
        %v4637 = vpop.f32.mrb[0].mxu0
        %v4638 = vadd.f32 0.0, %v4637
        %v4639 = vpop.f32.mrb[0].mxu0
        %4640 = vmatprep.mubr.bf16.mxu0 0
        %4641 = vmatmul.mubr.bf16.gmra.mrb[0].mxu0 %v4556
        %v4642 = vpop.f32.mrb[0].mxu0
        %v4643 = vadd.f32 0.0, %v4642
        %v4644 = vpop.f32.mrb[0].mxu0
        %v4645 = vpop.f32.mrb[0].mxu0
        %v4646 = vadd.f32 0.0, %v4645
        %v4647 = vpop.f32.mrb[0].mxu0
        %4648 = vmatprep.mubr.bf16.mxu0 0
        %4649 = vmatmul.mubr.bf16.gmra.mrb[0].mxu0 %v4559
        %v4650 = vpop.f32.mrb[0].mxu0
        %v4651 = vadd.f32 0.0, %v4650
        %v4652 = vpop.f32.mrb[0].mxu0
        %v4653 = vpop.f32.mrb[0].mxu0
        %v4654 = vadd.f32 0.0, %v4653
        %v4655 = vpop.f32.mrb[0].mxu0
        %4656 = vmatprep.mubr.bf16.mxu0 0
        %4657 = vmatmul.mubr.bf16.gmra.mrb[0].mxu0 %v4562
        %v4658 = vpop.f32.mrb[0].mxu0
        %v4659 = vadd.f32 0.0, %v4658
        %v4660 = vpop.f32.mrb[0].mxu0
        %v4661 = vpop.f32.mrb[0].mxu0
        %v4662 = vadd.f32 0.0, %v4661
        %v4663 = vpop.f32.mrb[0].mxu0
        %4664 = vmatprep.mubr.bf16.mxu0 0
        %4665 = vmatmul.mubr.bf16.gmra.mrb[0].mxu0 %v4565
        %v4666 = vpop.f32.mrb[0].mxu0
        %v4667 = vadd.f32 0.0, %v4666
        %v4668 = vpop.f32.mrb[0].mxu0
        %v4669 = vpop.f32.mrb[0].mxu0
        %v4670 = vadd.f32 0.0, %v4669
        %v4671 = vpop.f32.mrb[0].mxu0
        %4672 = vmatprep.mubr.bf16.mxu0 0
        %4673 = vmatmul.mubr.bf16.gmra.mrb[0].mxu0 %v4568
        %v4674 = vpop.f32.mrb[0].mxu0
        %v4675 = vadd.f32 0.0, %v4674
        %v4676 = vpop.f32.mrb[0].mxu0
        %v4677 = vpop.f32.mrb[0].mxu0
        %v4678 = vadd.f32 0.0, %v4677
        %v4679 = vpop.f32.mrb[0].mxu0
        %4680 = vmatprep.mubr.bf16.mxu0 0
        %4681 = vmatmul.mubr.bf16.gmra.mrb[0].mxu0 %v4571
        %v4682 = vpop.f32.mrb[0].mxu0
        %v4683 = vadd.f32 0.0, %v4682
        %v4684 = vpop.f32.mrb[0].mxu0
        %v4685 = vpop.f32.mrb[0].mxu0
        %v4686 = vadd.f32 0.0, %v4685
        %v4687 = vpop.f32.mrb[0].mxu0
        %4688 = vmatprep.mubr.bf16.mxu0 0
        %4689 = vmatmul.mubr.bf16.gmra.mrb[0].mxu0 %v4574
        %v4690 = vpop.f32.mrb[0].mxu0
        %v4691 = vadd.f32 0.0, %v4690
        %v4692 = vpop.f32.mrb[0].mxu0
        %v4693 = vpop.f32.mrb[0].mxu0
        %v4694 = vadd.f32 0.0, %v4693
        %v4695 = vpop.f32.mrb[0].mxu0
        %4696 = vmatprep.mubr.bf16.mxu0 0
        %4697 = vmatmul.mubr.bf16.gmra.mrb[0].mxu0 %v4577
        %v4698 = vpop.f32.mrb[0].mxu0
        %v4699 = vadd.f32 0.0, %v4698
        %v4700 = vpop.f32.mrb[0].mxu0
        %v4701 = vpop.f32.mrb[0].mxu0
        %v4702 = vadd.f32 0.0, %v4701
        %v4703 = vpop.f32.mrb[0].mxu0
        %4704 = vmatprep.mubr.bf16.mxu0 0
        %4705 = vmatmul.mubr.bf16.gmra.mrb[0].mxu0 %v4580
        %v4706 = vpop.f32.mrb[0].mxu0
        %v4707 = vadd.f32 0.0, %v4706
        %v4708 = vpop.f32.mrb[0].mxu0
        %v4709 = vpop.f32.mrb[0].mxu0
        %v4710 = vadd.f32 0.0, %v4709
        %v4711 = vpop.f32.mrb[0].mxu0
        %4712 = vmatprep.mubr.bf16.mxu0 0
        %4713 = vmatmul.mubr.bf16.gmra.mrb[0].mxu0 %v4583
        %v4714 = vpop.f32.mrb[0].mxu0
        %v4715 = vadd.f32 0.0, %v4714
        %v4716 = vpop.f32.mrb[0].mxu0
        %v4717 = vpop.f32.mrb[0].mxu0
        %v4718 = vadd.f32 0.0, %v4717
        %v4719 = vpop.f32.mrb[0].mxu0
        %4720 = vmatprep.mubr.bf16.mxu0 0
        %4721 = vmatmul.mubr.bf16.gmra.mrb[0].mxu0 %v4586
        %v4722 = vpop.f32.mrb[0].mxu0
        %v4723 = vadd.f32 0.0, %v4722
        %v4724 = vpop.f32.mrb[0].mxu0
        %v4725 = vpop.f32.mrb[0].mxu0
        %v4726 = vadd.f32 0.0, %v4725
        %v4727 = vpop.f32.mrb[0].mxu0
        %4728 = vmatprep.mubr.bf16.mxu0 0
        %4729 = vmatmul.mubr.bf16.gmra.mrb[0].mxu0 %v4589
        %v4730 = vpop.f32.mrb[0].mxu0
        %v4731 = vadd.f32 0.0, %v4730
        %v4732 = vpop.f32.mrb[0].mxu0
        %v4733 = vpop.f32.mrb[0].mxu0
        %v4734 = vadd.f32 0.0, %v4733
        %v4735 = vpop.f32.mrb[0].mxu0
        %4736 = vmatprep.mubr.bf16.mxu0 0
        %4737 = vmatmul.mubr.bf16.gmra.mrb[0].mxu0 %v4592
        %v4738 = vpop.f32.mrb[0].mxu0
        %v4739 = vadd.f32 0.0, %v4738
        %v4740 = vpop.f32.mrb[0].mxu0
        %v4741 = vpop.f32.mrb[0].mxu0
        %v4742 = vadd.f32 0.0, %v4741
        %v4743 = vpop.f32.mrb[0].mxu0
        %4744 = vmatprep.mubr.bf16.mxu0 0
        %4745 = vmatmul.mubr.bf16.gmra.mrb[0].mxu0 %v4595
        %v4746 = vpop.f32.mrb[0].mxu0
        %v4747 = vadd.f32 0.0, %v4746
        %v4748 = vpop.f32.mrb[0].mxu0
        %v4749 = vpop.f32.mrb[0].mxu0
        %v4750 = vadd.f32 0.0, %v4749
        %v4751 = vpop.f32.mrb[0].mxu0
        %4752 = vmatprep.mubr.bf16.mxu0 0
        %4753 = vmatmul.mubr.bf16.gmra.mrb[0].mxu0 %v4598
        %v4754 = vpop.f32.mrb[0].mxu0
        %v4755 = vadd.f32 0.0, %v4754
        %v4756 = vpop.f32.mrb[0].mxu0
        %v4757 = vpop.f32.mrb[0].mxu0
        %v4758 = vadd.f32 0.0, %v4757
        %v4759 = vpop.f32.mrb[0].mxu0
        %4760 = vdwg.mxu0
        %v4761 = vadd.f32 %v4412, %v4635
        %v4762 = vadd.f32 %v4415, %v4638
        %v4763 = vadd.f32 %v4420, %v4643
        %v4764 = vadd.f32 %v4423, %v4646
        %v4765 = vadd.f32 %v4428, %v4651
        %v4766 = vadd.f32 %v4431, %v4654
        %v4767 = vadd.f32 %v4436, %v4659
        %v4768 = vadd.f32 %v4439, %v4662
        %v4769 = vadd.f32 %v4444, %v4667
        %v4770 = vadd.f32 %v4447, %v4670
        %v4771 = vadd.f32 %v4452, %v4675
        %v4772 = vadd.f32 %v4455, %v4678
        %v4773 = vadd.f32 %v4460, %v4683
        %v4774 = vadd.f32 %v4463, %v4686
        %v4775 = vadd.f32 %v4468, %v4691
        %v4776 = vadd.f32 %v4471, %v4694
        %v4777 = vadd.f32 %v4476, %v4699
        %v4778 = vadd.f32 %v4479, %v4702
        %v4779 = vadd.f32 %v4484, %v4707
        %v4780 = vadd.f32 %v4487, %v4710
        %v4781 = vadd.f32 %v4492, %v4715
        %v4782 = vadd.f32 %v4495, %v4718
        %v4783 = vadd.f32 %v4500, %v4723
        %v4784 = vadd.f32 %v4503, %v4726
        %v4785 = vadd.f32 %v4508, %v4731
        %v4786 = vadd.f32 %v4511, %v4734
        %v4787 = vadd.f32 %v4516, %v4739
        %v4788 = vadd.f32 %v4519, %v4742
        %v4789 = vadd.f32 %v4524, %v4747
        %v4790 = vadd.f32 %v4527, %v4750
        %v4791 = vadd.f32 %v4532, %v4755
        %v4792 = vadd.f32 %v4535, %v4758
        %s4793 = scalar_lea.vmem %s4, 48
        %v4794 = vld [vmem:[%s4793] sm:$0xf]
        %v4795 = vld [vmem:[%s4793 + $0x4] sm:$0xf]
        %v4796 = vld [vmem:[%s4793 + $0x8] sm:$0xf]
        %v4797 = vld [vmem:[%s4793 + $0xc] sm:$0xf]
        %v4802 = vunpack.c.l.b16 %v4794
        %v4803 = vunpack.c.l.b16 %v4795
        %v4804 = vunpack.c.l.b16 %v4796
        %v4805 = vunpack.c.l.b16 %v4797
        %v4806 = vpack.c.b16 %v4803, %v4802
        %v4807 = vpack.c.b16 %v4805, %v4804
        %v4811 = vsel %vm4111, %v4009, 0
        %4813 = vmatprep.subr.bf16.mxu0 0
        %4814 = vmatpush1.bf16.msra.mxu0 %v4806
        %4815 = vmatprep.subr.bf16.mxu0 0
        %4816 = vmatpush1.bf16.msra.mxu0 %v4807
        %4817 = vmatprep.subr.bf16.mxu0 0
        %4818 = vmatpush1.bf16.msra.mxu0 0
        %4819 = vmatprep.subr.bf16.mxu0 0
        %4820 = vmatpush1.bf16.msra.mxu0 0
        %4821 = vmatprep.subr.bf16.mxu0 0
        %4822 = vmatpush1.bf16.msra.mxu0 0
        %4823 = vmatprep.subr.bf16.mxu0 0
        %4824 = vmatpush1.bf16.msra.mxu0 0
        %4825 = vmatprep.subr.bf16.mxu0 0
        %4826 = vmatpush1.bf16.msra.mxu0 0
        %4827 = vmatprep.subr.bf16.mxu0 0
        %4828 = vmatpush1.bf16.msra.mxu0 0
        %4829 = vmatprep.subr.bf16.mxu0 0
        %4830 = vmatpush1.bf16.msra.mxu0 0
        %4831 = vmatprep.subr.bf16.mxu0 0
        %4832 = vmatpush1.bf16.msra.mxu0 0
        %4833 = vmatprep.subr.bf16.mxu0 0
        %4834 = vmatpush1.bf16.msra.mxu0 0
        %4835 = vmatprep.subr.bf16.mxu0 0
        %4836 = vmatpush1.bf16.msra.mxu0 0
        %4837 = vmatprep.subr.bf16.mxu0 0
        %4838 = vmatpush1.bf16.msra.mxu0 0
        %4839 = vmatprep.subr.bf16.mxu0 0
        %4840 = vmatpush1.bf16.msra.mxu0 0
        %4841 = vmatprep.subr.bf16.mxu0 0
        %4842 = vmatpush1.bf16.msra.mxu0 0
        %4843 = vmatprep.subr.bf16.mxu0 0
        %4844 = vmatpush1.bf16.msra.mxu0 0
        %4845 = vmatprep.mubr.bf16.mxu0 0
        %4846 = vmatmul.mubr.bf16.gmra.mrb[0].mxu0 %v4333
        %v4847 = vpop.f32.mrb[0].mxu0
        %v4848 = vadd.f32 0.0, %v4847
        %v4849 = vpop.f32.mrb[0].mxu0
        %v4850 = vpop.f32.mrb[0].mxu0
        %v4851 = vadd.f32 0.0, %v4850
        %v4852 = vpop.f32.mrb[0].mxu0
        %4853 = vmatprep.mubr.bf16.mxu0 0
        %4854 = vmatmul.mubr.bf16.gmra.mrb[0].mxu0 %v4336
        %v4855 = vpop.f32.mrb[0].mxu0
        %v4856 = vadd.f32 0.0, %v4855
        %v4857 = vpop.f32.mrb[0].mxu0
        %v4858 = vpop.f32.mrb[0].mxu0
        %v4859 = vadd.f32 0.0, %v4858
        %v4860 = vpop.f32.mrb[0].mxu0
        %4861 = vmatprep.mubr.bf16.mxu0 0
        %4862 = vmatmul.mubr.bf16.gmra.mrb[0].mxu0 %v4339
        %v4863 = vpop.f32.mrb[0].mxu0
        %v4864 = vadd.f32 0.0, %v4863
        %v4865 = vpop.f32.mrb[0].mxu0
        %v4866 = vpop.f32.mrb[0].mxu0
        %v4867 = vadd.f32 0.0, %v4866
        %v4868 = vpop.f32.mrb[0].mxu0
        %4869 = vmatprep.mubr.bf16.mxu0 0
        %4870 = vmatmul.mubr.bf16.gmra.mrb[0].mxu0 %v4342
        %v4871 = vpop.f32.mrb[0].mxu0
        %v4872 = vadd.f32 0.0, %v4871
        %v4873 = vpop.f32.mrb[0].mxu0
        %v4874 = vpop.f32.mrb[0].mxu0
        %v4875 = vadd.f32 0.0, %v4874
        %v4876 = vpop.f32.mrb[0].mxu0
        %4877 = vmatprep.mubr.bf16.mxu0 0
        %4878 = vmatmul.mubr.bf16.gmra.mrb[0].mxu0 %v4345
        %v4879 = vpop.f32.mrb[0].mxu0
        %v4880 = vadd.f32 0.0, %v4879
        %v4881 = vpop.f32.mrb[0].mxu0
        %v4882 = vpop.f32.mrb[0].mxu0
        %v4883 = vadd.f32 0.0, %v4882
        %v4884 = vpop.f32.mrb[0].mxu0
        %4885 = vmatprep.mubr.bf16.mxu0 0
        %4886 = vmatmul.mubr.bf16.gmra.mrb[0].mxu0 %v4348
        %v4887 = vpop.f32.mrb[0].mxu0
        %v4888 = vadd.f32 0.0, %v4887
        %v4889 = vpop.f32.mrb[0].mxu0
        %v4890 = vpop.f32.mrb[0].mxu0
        %v4891 = vadd.f32 0.0, %v4890
        %v4892 = vpop.f32.mrb[0].mxu0
        %4893 = vmatprep.mubr.bf16.mxu0 0
        %4894 = vmatmul.mubr.bf16.gmra.mrb[0].mxu0 %v4351
        %v4895 = vpop.f32.mrb[0].mxu0
        %v4896 = vadd.f32 0.0, %v4895
        %v4897 = vpop.f32.mrb[0].mxu0
        %v4898 = vpop.f32.mrb[0].mxu0
        %v4899 = vadd.f32 0.0, %v4898
        %v4900 = vpop.f32.mrb[0].mxu0
        %4901 = vmatprep.mubr.bf16.mxu0 0
        %4902 = vmatmul.mubr.bf16.gmra.mrb[0].mxu0 %v4354
        %v4903 = vpop.f32.mrb[0].mxu0
        %v4904 = vadd.f32 0.0, %v4903
        %v4905 = vpop.f32.mrb[0].mxu0
        %v4906 = vpop.f32.mrb[0].mxu0
        %v4907 = vadd.f32 0.0, %v4906
        %v4908 = vpop.f32.mrb[0].mxu0
        %4909 = vmatprep.mubr.bf16.mxu0 0
        %4910 = vmatmul.mubr.bf16.gmra.mrb[0].mxu0 %v4357
        %v4911 = vpop.f32.mrb[0].mxu0
        %v4912 = vadd.f32 0.0, %v4911
        %v4913 = vpop.f32.mrb[0].mxu0
        %v4914 = vpop.f32.mrb[0].mxu0
        %v4915 = vadd.f32 0.0, %v4914
        %v4916 = vpop.f32.mrb[0].mxu0
        %4917 = vmatprep.mubr.bf16.mxu0 0
        %4918 = vmatmul.mubr.bf16.gmra.mrb[0].mxu0 %v4360
        %v4919 = vpop.f32.mrb[0].mxu0
        %v4920 = vadd.f32 0.0, %v4919
        %v4921 = vpop.f32.mrb[0].mxu0
        %v4922 = vpop.f32.mrb[0].mxu0
        %v4923 = vadd.f32 0.0, %v4922
        %v4924 = vpop.f32.mrb[0].mxu0
        %4925 = vmatprep.mubr.bf16.mxu0 0
        %4926 = vmatmul.mubr.bf16.gmra.mrb[0].mxu0 %v4363
        %v4927 = vpop.f32.mrb[0].mxu0
        %v4928 = vadd.f32 0.0, %v4927
        %v4929 = vpop.f32.mrb[0].mxu0
        %v4930 = vpop.f32.mrb[0].mxu0
        %v4931 = vadd.f32 0.0, %v4930
        %v4932 = vpop.f32.mrb[0].mxu0
        %4933 = vmatprep.mubr.bf16.mxu0 0
        %4934 = vmatmul.mubr.bf16.gmra.mrb[0].mxu0 %v4366
        %v4935 = vpop.f32.mrb[0].mxu0
        %v4936 = vadd.f32 0.0, %v4935
        %v4937 = vpop.f32.mrb[0].mxu0
        %v4938 = vpop.f32.mrb[0].mxu0
        %v4939 = vadd.f32 0.0, %v4938
        %v4940 = vpop.f32.mrb[0].mxu0
        %4941 = vmatprep.mubr.bf16.mxu0 0
        %4942 = vmatmul.mubr.bf16.gmra.mrb[0].mxu0 %v4369
        %v4943 = vpop.f32.mrb[0].mxu0
        %v4944 = vadd.f32 0.0, %v4943
        %v4945 = vpop.f32.mrb[0].mxu0
        %v4946 = vpop.f32.mrb[0].mxu0
        %v4947 = vadd.f32 0.0, %v4946
        %v4948 = vpop.f32.mrb[0].mxu0
        %4949 = vmatprep.mubr.bf16.mxu0 0
        %4950 = vmatmul.mubr.bf16.gmra.mrb[0].mxu0 %v4372
        %v4951 = vpop.f32.mrb[0].mxu0
        %v4952 = vadd.f32 0.0, %v4951
        %v4953 = vpop.f32.mrb[0].mxu0
        %v4954 = vpop.f32.mrb[0].mxu0
        %v4955 = vadd.f32 0.0, %v4954
        %v4956 = vpop.f32.mrb[0].mxu0
        %4957 = vmatprep.mubr.bf16.mxu0 0
        %4958 = vmatmul.mubr.bf16.gmra.mrb[0].mxu0 %v4375
        %v4959 = vpop.f32.mrb[0].mxu0
        %v4960 = vadd.f32 0.0, %v4959
        %v4961 = vpop.f32.mrb[0].mxu0
        %v4962 = vpop.f32.mrb[0].mxu0
        %v4963 = vadd.f32 0.0, %v4962
        %v4964 = vpop.f32.mrb[0].mxu0
        %4965 = vmatprep.mubr.bf16.mxu0 0
        %4966 = vmatmul.mubr.bf16.gmra.mrb[0].mxu0 %v4811
        %v4967 = vpop.f32.mrb[0].mxu0
        %v4968 = vadd.f32 0.0, %v4967
        %v4969 = vpop.f32.mrb[0].mxu0
        %v4970 = vpop.f32.mrb[0].mxu0
        %v4971 = vadd.f32 0.0, %v4970
        %v4972 = vpop.f32.mrb[0].mxu0
        %4973 = vdwg.mxu0
        %v4974 = vadd.f32 %v4761, %v4848
        %v4975 = vadd.f32 %v4762, %v4851
        %v4976 = vadd.f32 %v4763, %v4856
        %v4977 = vadd.f32 %v4764, %v4859
        %v4978 = vadd.f32 %v4765, %v4864
        %v4979 = vadd.f32 %v4766, %v4867
        %v4980 = vadd.f32 %v4767, %v4872
        %v4981 = vadd.f32 %v4768, %v4875
        %v4982 = vadd.f32 %v4769, %v4880
        %v4983 = vadd.f32 %v4770, %v4883
        %v4984 = vadd.f32 %v4771, %v4888
        %v4985 = vadd.f32 %v4772, %v4891
        %v4986 = vadd.f32 %v4773, %v4896
        %v4987 = vadd.f32 %v4774, %v4899
        %v4988 = vadd.f32 %v4775, %v4904
        %v4989 = vadd.f32 %v4776, %v4907
        %v4990 = vadd.f32 %v4777, %v4912
        %v4991 = vadd.f32 %v4778, %v4915
        %v4992 = vadd.f32 %v4779, %v4920
        %v4993 = vadd.f32 %v4780, %v4923
        %v4994 = vadd.f32 %v4781, %v4928
        %v4995 = vadd.f32 %v4782, %v4931
        %v4996 = vadd.f32 %v4783, %v4936
        %v4997 = vadd.f32 %v4784, %v4939
        %v4998 = vadd.f32 %v4785, %v4944
        %v4999 = vadd.f32 %v4786, %v4947
        %v5000 = vadd.f32 %v4787, %v4952
        %v5001 = vadd.f32 %v4788, %v4955
        %v5002 = vadd.f32 %v4789, %v4960
        %v5003 = vadd.f32 %v4790, %v4963
        %v5004 = vadd.f32 %v4791, %v4968
        %v5005 = vadd.f32 %v4792, %v4971
        %s5006 = scalar_lea.vmem %s4, 64
        %v5007 = vld [vmem:[%s5006] sm:$0xf]
        %v5008 = vld [vmem:[%s5006 + $0x4] sm:$0xf]
        %v5009 = vld [vmem:[%s5006 + $0x8] sm:$0xf]
        %v5010 = vld [vmem:[%s5006 + $0xc] sm:$0xf]
        %v5015 = vunpack.c.l.b16 %v5007
        %v5016 = vunpack.c.l.b16 %v5008
        %v5017 = vunpack.c.l.b16 %v5009
        %v5018 = vunpack.c.l.b16 %v5010
        %v5019 = vpack.c.b16 %v5016, %v5015
        %v5020 = vpack.c.b16 %v5018, %v5017
        %v5024 = vsel %vm4111, %v4073, 0
        %5026 = vmatprep.subr.bf16.mxu0 0
        %5027 = vmatpush1.bf16.msra.mxu0 %v5019
        %5028 = vmatprep.subr.bf16.mxu0 0
        %5029 = vmatpush1.bf16.msra.mxu0 %v5020
        %5030 = vmatprep.subr.bf16.mxu0 0
        %5031 = vmatpush1.bf16.msra.mxu0 0
        %5032 = vmatprep.subr.bf16.mxu0 0
        %5033 = vmatpush1.bf16.msra.mxu0 0
        %5034 = vmatprep.subr.bf16.mxu0 0
        %5035 = vmatpush1.bf16.msra.mxu0 0
        %5036 = vmatprep.subr.bf16.mxu0 0
        %5037 = vmatpush1.bf16.msra.mxu0 0
        %5038 = vmatprep.subr.bf16.mxu0 0
        %5039 = vmatpush1.bf16.msra.mxu0 0
        %5040 = vmatprep.subr.bf16.mxu0 0
        %5041 = vmatpush1.bf16.msra.mxu0 0
        %5042 = vmatprep.subr.bf16.mxu0 0
        %5043 = vmatpush1.bf16.msra.mxu0 0
        %5044 = vmatprep.subr.bf16.mxu0 0
        %5045 = vmatpush1.bf16.msra.mxu0 0
        %5046 = vmatprep.subr.bf16.mxu0 0
        %5047 = vmatpush1.bf16.msra.mxu0 0
        %5048 = vmatprep.subr.bf16.mxu0 0
        %5049 = vmatpush1.bf16.msra.mxu0 0
        %5050 = vmatprep.subr.bf16.mxu0 0
        %5051 = vmatpush1.bf16.msra.mxu0 0
        %5052 = vmatprep.subr.bf16.mxu0 0
        %5053 = vmatpush1.bf16.msra.mxu0 0
        %5054 = vmatprep.subr.bf16.mxu0 0
        %5055 = vmatpush1.bf16.msra.mxu0 0
        %5056 = vmatprep.subr.bf16.mxu0 0
        %5057 = vmatpush1.bf16.msra.mxu0 0
        %5058 = vmatprep.mubr.bf16.mxu0 0
        %5059 = vmatmul.mubr.bf16.gmra.mrb[0].mxu0 %v4115
        %v5060 = vpop.f32.mrb[0].mxu0
        %v5061 = vadd.f32 0.0, %v5060
        %v5062 = vpop.f32.mrb[0].mxu0
        %v5063 = vpop.f32.mrb[0].mxu0
        %v5064 = vadd.f32 0.0, %v5063
        %v5065 = vpop.f32.mrb[0].mxu0
        %5066 = vmatprep.mubr.bf16.mxu0 0
        %5067 = vmatmul.mubr.bf16.gmra.mrb[0].mxu0 %v4118
        %v5068 = vpop.f32.mrb[0].mxu0
        %v5069 = vadd.f32 0.0, %v5068
        %v5070 = vpop.f32.mrb[0].mxu0
        %v5071 = vpop.f32.mrb[0].mxu0
        %v5072 = vadd.f32 0.0, %v5071
        %v5073 = vpop.f32.mrb[0].mxu0
        %5074 = vmatprep.mubr.bf16.mxu0 0
        %5075 = vmatmul.mubr.bf16.gmra.mrb[0].mxu0 %v4121
        %v5076 = vpop.f32.mrb[0].mxu0
        %v5077 = vadd.f32 0.0, %v5076
        %v5078 = vpop.f32.mrb[0].mxu0
        %v5079 = vpop.f32.mrb[0].mxu0
        %v5080 = vadd.f32 0.0, %v5079
        %v5081 = vpop.f32.mrb[0].mxu0
        %5082 = vmatprep.mubr.bf16.mxu0 0
        %5083 = vmatmul.mubr.bf16.gmra.mrb[0].mxu0 %v4124
        %v5084 = vpop.f32.mrb[0].mxu0
        %v5085 = vadd.f32 0.0, %v5084
        %v5086 = vpop.f32.mrb[0].mxu0
        %v5087 = vpop.f32.mrb[0].mxu0
        %v5088 = vadd.f32 0.0, %v5087
        %v5089 = vpop.f32.mrb[0].mxu0
        %5090 = vmatprep.mubr.bf16.mxu0 0
        %5091 = vmatmul.mubr.bf16.gmra.mrb[0].mxu0 %v4127
        %v5092 = vpop.f32.mrb[0].mxu0
        %v5093 = vadd.f32 0.0, %v5092
        %v5094 = vpop.f32.mrb[0].mxu0
        %v5095 = vpop.f32.mrb[0].mxu0
        %v5096 = vadd.f32 0.0, %v5095
        %v5097 = vpop.f32.mrb[0].mxu0
        %5098 = vmatprep.mubr.bf16.mxu0 0
        %5099 = vmatmul.mubr.bf16.gmra.mrb[0].mxu0 %v4130
        %v5100 = vpop.f32.mrb[0].mxu0
        %v5101 = vadd.f32 0.0, %v5100
        %v5102 = vpop.f32.mrb[0].mxu0
        %v5103 = vpop.f32.mrb[0].mxu0
        %v5104 = vadd.f32 0.0, %v5103
        %v5105 = vpop.f32.mrb[0].mxu0
        %5106 = vmatprep.mubr.bf16.mxu0 0
        %5107 = vmatmul.mubr.bf16.gmra.mrb[0].mxu0 %v4133
        %v5108 = vpop.f32.mrb[0].mxu0
        %v5109 = vadd.f32 0.0, %v5108
        %v5110 = vpop.f32.mrb[0].mxu0
        %v5111 = vpop.f32.mrb[0].mxu0
        %v5112 = vadd.f32 0.0, %v5111
        %v5113 = vpop.f32.mrb[0].mxu0
        %5114 = vmatprep.mubr.bf16.mxu0 0
        %5115 = vmatmul.mubr.bf16.gmra.mrb[0].mxu0 %v4136
        %v5116 = vpop.f32.mrb[0].mxu0
        %v5117 = vadd.f32 0.0, %v5116
        %v5118 = vpop.f32.mrb[0].mxu0
        %v5119 = vpop.f32.mrb[0].mxu0
        %v5120 = vadd.f32 0.0, %v5119
        %v5121 = vpop.f32.mrb[0].mxu0
        %5122 = vmatprep.mubr.bf16.mxu0 0
        %5123 = vmatmul.mubr.bf16.gmra.mrb[0].mxu0 %v4139
        %v5124 = vpop.f32.mrb[0].mxu0
        %v5125 = vadd.f32 0.0, %v5124
        %v5126 = vpop.f32.mrb[0].mxu0
        %v5127 = vpop.f32.mrb[0].mxu0
        %v5128 = vadd.f32 0.0, %v5127
        %v5129 = vpop.f32.mrb[0].mxu0
        %5130 = vmatprep.mubr.bf16.mxu0 0
        %5131 = vmatmul.mubr.bf16.gmra.mrb[0].mxu0 %v4142
        %v5132 = vpop.f32.mrb[0].mxu0
        %v5133 = vadd.f32 0.0, %v5132
        %v5134 = vpop.f32.mrb[0].mxu0
        %v5135 = vpop.f32.mrb[0].mxu0
        %v5136 = vadd.f32 0.0, %v5135
        %v5137 = vpop.f32.mrb[0].mxu0
        %5138 = vmatprep.mubr.bf16.mxu0 0
        %5139 = vmatmul.mubr.bf16.gmra.mrb[0].mxu0 %v4145
        %v5140 = vpop.f32.mrb[0].mxu0
        %v5141 = vadd.f32 0.0, %v5140
        %v5142 = vpop.f32.mrb[0].mxu0
        %v5143 = vpop.f32.mrb[0].mxu0
        %v5144 = vadd.f32 0.0, %v5143
        %v5145 = vpop.f32.mrb[0].mxu0
        %5146 = vmatprep.mubr.bf16.mxu0 0
        %5147 = vmatmul.mubr.bf16.gmra.mrb[0].mxu0 %v4148
        %v5148 = vpop.f32.mrb[0].mxu0
        %v5149 = vadd.f32 0.0, %v5148
        %v5150 = vpop.f32.mrb[0].mxu0
        %v5151 = vpop.f32.mrb[0].mxu0
        %v5152 = vadd.f32 0.0, %v5151
        %v5153 = vpop.f32.mrb[0].mxu0
        %5154 = vmatprep.mubr.bf16.mxu0 0
        %5155 = vmatmul.mubr.bf16.gmra.mrb[0].mxu0 %v4151
        %v5156 = vpop.f32.mrb[0].mxu0
        %v5157 = vadd.f32 0.0, %v5156
        %v5158 = vpop.f32.mrb[0].mxu0
        %v5159 = vpop.f32.mrb[0].mxu0
        %v5160 = vadd.f32 0.0, %v5159
        %v5161 = vpop.f32.mrb[0].mxu0
        %5162 = vmatprep.mubr.bf16.mxu0 0
        %5163 = vmatmul.mubr.bf16.gmra.mrb[0].mxu0 %v4154
        %v5164 = vpop.f32.mrb[0].mxu0
        %v5165 = vadd.f32 0.0, %v5164
        %v5166 = vpop.f32.mrb[0].mxu0
        %v5167 = vpop.f32.mrb[0].mxu0
        %v5168 = vadd.f32 0.0, %v5167
        %v5169 = vpop.f32.mrb[0].mxu0
        %5170 = vmatprep.mubr.bf16.mxu0 0
        %5171 = vmatmul.mubr.bf16.gmra.mrb[0].mxu0 %v4157
        %v5172 = vpop.f32.mrb[0].mxu0
        %v5173 = vadd.f32 0.0, %v5172
        %v5174 = vpop.f32.mrb[0].mxu0
        %v5175 = vpop.f32.mrb[0].mxu0
        %v5176 = vadd.f32 0.0, %v5175
        %v5177 = vpop.f32.mrb[0].mxu0
        %5178 = vmatprep.mubr.bf16.mxu0 0
        %5179 = vmatmul.mubr.bf16.gmra.mrb[0].mxu0 %v5024
        %v5180 = vpop.f32.mrb[0].mxu0
        %v5181 = vadd.f32 0.0, %v5180
        %v5182 = vpop.f32.mrb[0].mxu0
        %v5183 = vpop.f32.mrb[0].mxu0
        %v5184 = vadd.f32 0.0, %v5183
        %v5185 = vpop.f32.mrb[0].mxu0
        %5186 = vdwg.mxu0
        %v5187 = vadd.f32 %v4974, %v5061
        %v5188 = vadd.f32 %v4975, %v5064
        %v5189 = vadd.f32 %v4976, %v5069
        %v5190 = vadd.f32 %v4977, %v5072
        %v5191 = vadd.f32 %v4978, %v5077
        %v5192 = vadd.f32 %v4979, %v5080
        %v5193 = vadd.f32 %v4980, %v5085
        %v5194 = vadd.f32 %v4981, %v5088
        %v5195 = vadd.f32 %v4982, %v5093
        %v5196 = vadd.f32 %v4983, %v5096
        %v5197 = vadd.f32 %v4984, %v5101
        %v5198 = vadd.f32 %v4985, %v5104
        %v5199 = vadd.f32 %v4986, %v5109
        %v5200 = vadd.f32 %v4987, %v5112
        %v5201 = vadd.f32 %v4988, %v5117
        %v5202 = vadd.f32 %v4989, %v5120
        %v5203 = vadd.f32 %v4990, %v5125
        %v5204 = vadd.f32 %v4991, %v5128
        %v5205 = vadd.f32 %v4992, %v5133
        %v5206 = vadd.f32 %v4993, %v5136
        %v5207 = vadd.f32 %v4994, %v5141
        %v5208 = vadd.f32 %v4995, %v5144
        %v5209 = vadd.f32 %v4996, %v5149
        %v5210 = vadd.f32 %v4997, %v5152
        %v5211 = vadd.f32 %v4998, %v5157
        %v5212 = vadd.f32 %v4999, %v5160
        %v5213 = vadd.f32 %v5000, %v5165
        %v5214 = vadd.f32 %v5001, %v5168
        %v5215 = vadd.f32 %v5002, %v5173
        %v5216 = vadd.f32 %v5003, %v5176
        %v5217 = vadd.f32 %v5004, %v5181
        %v5218 = vadd.f32 %v5005, %v5184
        %s5219 = scalar_lea.vmem %s4, 80
        %v5220 = vld [vmem:[%s5219] sm:$0xf]
        %v5221 = vld [vmem:[%s5219 + $0x4] sm:$0xf]
        %v5222 = vld [vmem:[%s5219 + $0x8] sm:$0xf]
        %v5223 = vld [vmem:[%s5219 + $0xc] sm:$0xf]
        %v5228 = vunpack.c.l.b16 %v5220
        %v5229 = vunpack.c.l.b16 %v5221
        %v5230 = vunpack.c.l.b16 %v5222
        %v5231 = vunpack.c.l.b16 %v5223
        %v5232 = vpack.c.b16 %v5229, %v5228
        %v5233 = vpack.c.b16 %v5231, %v5230
        %v5237 = vsel %vm4111, %v4089, 0
        %5239 = vmatprep.subr.bf16.mxu0 0
        %5240 = vmatpush1.bf16.msra.mxu0 %v5232
        %5241 = vmatprep.subr.bf16.mxu0 0
        %5242 = vmatpush1.bf16.msra.mxu0 %v5233
        %5243 = vmatprep.subr.bf16.mxu0 0
        %5244 = vmatpush1.bf16.msra.mxu0 0
        %5245 = vmatprep.subr.bf16.mxu0 0
        %5246 = vmatpush1.bf16.msra.mxu0 0
        %5247 = vmatprep.subr.bf16.mxu0 0
        %5248 = vmatpush1.bf16.msra.mxu0 0
        %5249 = vmatprep.subr.bf16.mxu0 0
        %5250 = vmatpush1.bf16.msra.mxu0 0
        %5251 = vmatprep.subr.bf16.mxu0 0
        %5252 = vmatpush1.bf16.msra.mxu0 0
        %5253 = vmatprep.subr.bf16.mxu0 0
        %5254 = vmatpush1.bf16.msra.mxu0 0
        %5255 = vmatprep.subr.bf16.mxu0 0
        %5256 = vmatpush1.bf16.msra.mxu0 0
        %5257 = vmatprep.subr.bf16.mxu0 0
        %5258 = vmatpush1.bf16.msra.mxu0 0
        %5259 = vmatprep.subr.bf16.mxu0 0
        %5260 = vmatpush1.bf16.msra.mxu0 0
        %5261 = vmatprep.subr.bf16.mxu0 0
        %5262 = vmatpush1.bf16.msra.mxu0 0
        %5263 = vmatprep.subr.bf16.mxu0 0
        %5264 = vmatpush1.bf16.msra.mxu0 0
        %5265 = vmatprep.subr.bf16.mxu0 0
        %5266 = vmatpush1.bf16.msra.mxu0 0
        %5267 = vmatprep.subr.bf16.mxu0 0
        %5268 = vmatpush1.bf16.msra.mxu0 0
        %5269 = vmatprep.subr.bf16.mxu0 0
        %5270 = vmatpush1.bf16.msra.mxu0 0
        %5271 = vmatprep.mubr.bf16.mxu0 0
        %5272 = vmatmul.mubr.bf16.gmra.mrb[0].mxu0 %v4556
        %v5273 = vpop.f32.mrb[0].mxu0
        %v5274 = vadd.f32 0.0, %v5273
        %v5275 = vpop.f32.mrb[0].mxu0
        %v5276 = vpop.f32.mrb[0].mxu0
        %v5277 = vadd.f32 0.0, %v5276
        %v5278 = vpop.f32.mrb[0].mxu0
        %5279 = vmatprep.mubr.bf16.mxu0 0
        %5280 = vmatmul.mubr.bf16.gmra.mrb[0].mxu0 %v4559
        %v5281 = vpop.f32.mrb[0].mxu0
        %v5282 = vadd.f32 0.0, %v5281
        %v5283 = vpop.f32.mrb[0].mxu0
        %v5284 = vpop.f32.mrb[0].mxu0
        %v5285 = vadd.f32 0.0, %v5284
        %v5286 = vpop.f32.mrb[0].mxu0
        %5287 = vmatprep.mubr.bf16.mxu0 0
        %5288 = vmatmul.mubr.bf16.gmra.mrb[0].mxu0 %v4562
        %v5289 = vpop.f32.mrb[0].mxu0
        %v5290 = vadd.f32 0.0, %v5289
        %v5291 = vpop.f32.mrb[0].mxu0
        %v5292 = vpop.f32.mrb[0].mxu0
        %v5293 = vadd.f32 0.0, %v5292
        %v5294 = vpop.f32.mrb[0].mxu0
        %5295 = vmatprep.mubr.bf16.mxu0 0
        %5296 = vmatmul.mubr.bf16.gmra.mrb[0].mxu0 %v4565
        %v5297 = vpop.f32.mrb[0].mxu0
        %v5298 = vadd.f32 0.0, %v5297
        %v5299 = vpop.f32.mrb[0].mxu0
        %v5300 = vpop.f32.mrb[0].mxu0
        %v5301 = vadd.f32 0.0, %v5300
        %v5302 = vpop.f32.mrb[0].mxu0
        %5303 = vmatprep.mubr.bf16.mxu0 0
        %5304 = vmatmul.mubr.bf16.gmra.mrb[0].mxu0 %v4568
        %v5305 = vpop.f32.mrb[0].mxu0
        %v5306 = vadd.f32 0.0, %v5305
        %v5307 = vpop.f32.mrb[0].mxu0
        %v5308 = vpop.f32.mrb[0].mxu0
        %v5309 = vadd.f32 0.0, %v5308
        %v5310 = vpop.f32.mrb[0].mxu0
        %5311 = vmatprep.mubr.bf16.mxu0 0
        %5312 = vmatmul.mubr.bf16.gmra.mrb[0].mxu0 %v4571
        %v5313 = vpop.f32.mrb[0].mxu0
        %v5314 = vadd.f32 0.0, %v5313
        %v5315 = vpop.f32.mrb[0].mxu0
        %v5316 = vpop.f32.mrb[0].mxu0
        %v5317 = vadd.f32 0.0, %v5316
        %v5318 = vpop.f32.mrb[0].mxu0
        %5319 = vmatprep.mubr.bf16.mxu0 0
        %5320 = vmatmul.mubr.bf16.gmra.mrb[0].mxu0 %v4574
        %v5321 = vpop.f32.mrb[0].mxu0
        %v5322 = vadd.f32 0.0, %v5321
        %v5323 = vpop.f32.mrb[0].mxu0
        %v5324 = vpop.f32.mrb[0].mxu0
        %v5325 = vadd.f32 0.0, %v5324
        %v5326 = vpop.f32.mrb[0].mxu0
        %5327 = vmatprep.mubr.bf16.mxu0 0
        %5328 = vmatmul.mubr.bf16.gmra.mrb[0].mxu0 %v4577
        %v5329 = vpop.f32.mrb[0].mxu0
        %v5330 = vadd.f32 0.0, %v5329
        %v5331 = vpop.f32.mrb[0].mxu0
        %v5332 = vpop.f32.mrb[0].mxu0
        %v5333 = vadd.f32 0.0, %v5332
        %v5334 = vpop.f32.mrb[0].mxu0
        %5335 = vmatprep.mubr.bf16.mxu0 0
        %5336 = vmatmul.mubr.bf16.gmra.mrb[0].mxu0 %v4580
        %v5337 = vpop.f32.mrb[0].mxu0
        %v5338 = vadd.f32 0.0, %v5337
        %v5339 = vpop.f32.mrb[0].mxu0
        %v5340 = vpop.f32.mrb[0].mxu0
        %v5341 = vadd.f32 0.0, %v5340
        %v5342 = vpop.f32.mrb[0].mxu0
        %5343 = vmatprep.mubr.bf16.mxu0 0
        %5344 = vmatmul.mubr.bf16.gmra.mrb[0].mxu0 %v4583
        %v5345 = vpop.f32.mrb[0].mxu0
        %v5346 = vadd.f32 0.0, %v5345
        %v5347 = vpop.f32.mrb[0].mxu0
        %v5348 = vpop.f32.mrb[0].mxu0
        %v5349 = vadd.f32 0.0, %v5348
        %v5350 = vpop.f32.mrb[0].mxu0
        %5351 = vmatprep.mubr.bf16.mxu0 0
        %5352 = vmatmul.mubr.bf16.gmra.mrb[0].mxu0 %v4586
        %v5353 = vpop.f32.mrb[0].mxu0
        %v5354 = vadd.f32 0.0, %v5353
        %v5355 = vpop.f32.mrb[0].mxu0
        %v5356 = vpop.f32.mrb[0].mxu0
        %v5357 = vadd.f32 0.0, %v5356
        %v5358 = vpop.f32.mrb[0].mxu0
        %5359 = vmatprep.mubr.bf16.mxu0 0
        %5360 = vmatmul.mubr.bf16.gmra.mrb[0].mxu0 %v4589
        %v5361 = vpop.f32.mrb[0].mxu0
        %v5362 = vadd.f32 0.0, %v5361
        %v5363 = vpop.f32.mrb[0].mxu0
        %v5364 = vpop.f32.mrb[0].mxu0
        %v5365 = vadd.f32 0.0, %v5364
        %v5366 = vpop.f32.mrb[0].mxu0
        %5367 = vmatprep.mubr.bf16.mxu0 0
        %5368 = vmatmul.mubr.bf16.gmra.mrb[0].mxu0 %v4592
        %v5369 = vpop.f32.mrb[0].mxu0
        %v5370 = vadd.f32 0.0, %v5369
        %v5371 = vpop.f32.mrb[0].mxu0
        %v5372 = vpop.f32.mrb[0].mxu0
        %v5373 = vadd.f32 0.0, %v5372
        %v5374 = vpop.f32.mrb[0].mxu0
        %5375 = vmatprep.mubr.bf16.mxu0 0
        %5376 = vmatmul.mubr.bf16.gmra.mrb[0].mxu0 %v4595
        %v5377 = vpop.f32.mrb[0].mxu0
        %v5378 = vadd.f32 0.0, %v5377
        %v5379 = vpop.f32.mrb[0].mxu0
        %v5380 = vpop.f32.mrb[0].mxu0
        %v5381 = vadd.f32 0.0, %v5380
        %v5382 = vpop.f32.mrb[0].mxu0
        %5383 = vmatprep.mubr.bf16.mxu0 0
        %5384 = vmatmul.mubr.bf16.gmra.mrb[0].mxu0 %v4598
        %v5385 = vpop.f32.mrb[0].mxu0
        %v5386 = vadd.f32 0.0, %v5385
        %v5387 = vpop.f32.mrb[0].mxu0
        %v5388 = vpop.f32.mrb[0].mxu0
        %v5389 = vadd.f32 0.0, %v5388
        %v5390 = vpop.f32.mrb[0].mxu0
        %5391 = vmatprep.mubr.bf16.mxu0 0
        %5392 = vmatmul.mubr.bf16.gmra.mrb[0].mxu0 %v5237
        %v5393 = vpop.f32.mrb[0].mxu0
        %v5394 = vadd.f32 0.0, %v5393
        %v5395 = vpop.f32.mrb[0].mxu0
        %v5396 = vpop.f32.mrb[0].mxu0
        %v5397 = vadd.f32 0.0, %v5396
        %v5398 = vpop.f32.mrb[0].mxu0
        %5399 = vdwg.mxu0
        %v5400 = vadd.f32 %v5187, %v5274
        %v5401 = vadd.f32 %v5188, %v5277
        %v5402 = vadd.f32 %v5189, %v5282
        %v5403 = vadd.f32 %v5190, %v5285
        %v5404 = vadd.f32 %v5191, %v5290
        %v5405 = vadd.f32 %v5192, %v5293
        %v5406 = vadd.f32 %v5193, %v5298
        %v5407 = vadd.f32 %v5194, %v5301
        %v5408 = vadd.f32 %v5195, %v5306
        %v5409 = vadd.f32 %v5196, %v5309
        %v5410 = vadd.f32 %v5197, %v5314
        %v5411 = vadd.f32 %v5198, %v5317
        %v5412 = vadd.f32 %v5199, %v5322
        %v5413 = vadd.f32 %v5200, %v5325
        %v5414 = vadd.f32 %v5201, %v5330
        %v5415 = vadd.f32 %v5202, %v5333
        %v5416 = vadd.f32 %v5203, %v5338
        %v5417 = vadd.f32 %v5204, %v5341
        %v5418 = vadd.f32 %v5205, %v5346
        %v5419 = vadd.f32 %v5206, %v5349
        %v5420 = vadd.f32 %v5207, %v5354
        %v5421 = vadd.f32 %v5208, %v5357
        %v5422 = vadd.f32 %v5209, %v5362
        %v5423 = vadd.f32 %v5210, %v5365
        %v5424 = vadd.f32 %v5211, %v5370
        %v5425 = vadd.f32 %v5212, %v5373
        %v5426 = vadd.f32 %v5213, %v5378
        %v5427 = vadd.f32 %v5214, %v5381
        %v5428 = vadd.f32 %v5215, %v5386
        %v5429 = vadd.f32 %v5216, %v5389
        %v5430 = vadd.f32 %v5217, %v5394
        %v5431 = vadd.f32 %v5218, %v5397
        %s5432 = scalar_lea.vmem %s4, 96
        %v5433 = vld [vmem:[%s5432] sm:$0xf]
        %v5434 = vld [vmem:[%s5432 + $0x4] sm:$0xf]
        %v5435 = vld [vmem:[%s5432 + $0x8] sm:$0xf]
        %v5436 = vld [vmem:[%s5432 + $0xc] sm:$0xf]
        %v5441 = vunpack.c.l.b16 %v5433
        %v5442 = vunpack.c.l.b16 %v5434
        %v5443 = vunpack.c.l.b16 %v5435
        %v5444 = vunpack.c.l.b16 %v5436
        %v5445 = vpack.c.b16 %v5442, %v5441
        %v5446 = vpack.c.b16 %v5444, %v5443
        %5449 = vmatprep.subr.bf16.mxu0 0
        %5450 = vmatpush1.bf16.msra.mxu0 %v5445
        %5451 = vmatprep.subr.bf16.mxu0 0
        %5452 = vmatpush1.bf16.msra.mxu0 %v5446
        %5453 = vmatprep.subr.bf16.mxu0 0
        %5454 = vmatpush1.bf16.msra.mxu0 0
        %5455 = vmatprep.subr.bf16.mxu0 0
        %5456 = vmatpush1.bf16.msra.mxu0 0
        %5457 = vmatprep.subr.bf16.mxu0 0
        %5458 = vmatpush1.bf16.msra.mxu0 0
        %5459 = vmatprep.subr.bf16.mxu0 0
        %5460 = vmatpush1.bf16.msra.mxu0 0
        %5461 = vmatprep.subr.bf16.mxu0 0
        %5462 = vmatpush1.bf16.msra.mxu0 0
        %5463 = vmatprep.subr.bf16.mxu0 0
        %5464 = vmatpush1.bf16.msra.mxu0 0
        %5465 = vmatprep.subr.bf16.mxu0 0
        %5466 = vmatpush1.bf16.msra.mxu0 0
        %5467 = vmatprep.subr.bf16.mxu0 0
        %5468 = vmatpush1.bf16.msra.mxu0 0
        %5469 = vmatprep.subr.bf16.mxu0 0
        %5470 = vmatpush1.bf16.msra.mxu0 0
        %5471 = vmatprep.subr.bf16.mxu0 0
        %5472 = vmatpush1.bf16.msra.mxu0 0
        %5473 = vmatprep.subr.bf16.mxu0 0
        %5474 = vmatpush1.bf16.msra.mxu0 0
        %5475 = vmatprep.subr.bf16.mxu0 0
        %5476 = vmatpush1.bf16.msra.mxu0 0
        %5477 = vmatprep.subr.bf16.mxu0 0
        %5478 = vmatpush1.bf16.msra.mxu0 0
        %5479 = vmatprep.subr.bf16.mxu0 0
        %5480 = vmatpush1.bf16.msra.mxu0 0
        %5481 = vmatprep.mubr.bf16.mxu0 0
        %5482 = vmatmul.mubr.bf16.gmra.mrb[0].mxu0 %v4336
        %v5483 = vpop.f32.mrb[0].mxu0
        %v5484 = vadd.f32 0.0, %v5483
        %v5485 = vpop.f32.mrb[0].mxu0
        %v5486 = vpop.f32.mrb[0].mxu0
        %v5487 = vadd.f32 0.0, %v5486
        %v5488 = vpop.f32.mrb[0].mxu0
        %5489 = vmatprep.mubr.bf16.mxu0 0
        %5490 = vmatmul.mubr.bf16.gmra.mrb[0].mxu0 %v4339
        %v5491 = vpop.f32.mrb[0].mxu0
        %v5492 = vadd.f32 0.0, %v5491
        %v5493 = vpop.f32.mrb[0].mxu0
        %v5494 = vpop.f32.mrb[0].mxu0
        %v5495 = vadd.f32 0.0, %v5494
        %v5496 = vpop.f32.mrb[0].mxu0
        %5497 = vmatprep.mubr.bf16.mxu0 0
        %5498 = vmatmul.mubr.bf16.gmra.mrb[0].mxu0 %v4342
        %v5499 = vpop.f32.mrb[0].mxu0
        %v5500 = vadd.f32 0.0, %v5499
        %v5501 = vpop.f32.mrb[0].mxu0
        %v5502 = vpop.f32.mrb[0].mxu0
        %v5503 = vadd.f32 0.0, %v5502
        %v5504 = vpop.f32.mrb[0].mxu0
        %5505 = vmatprep.mubr.bf16.mxu0 0
        %5506 = vmatmul.mubr.bf16.gmra.mrb[0].mxu0 %v4345
        %v5507 = vpop.f32.mrb[0].mxu0
        %v5508 = vadd.f32 0.0, %v5507
        %v5509 = vpop.f32.mrb[0].mxu0
        %v5510 = vpop.f32.mrb[0].mxu0
        %v5511 = vadd.f32 0.0, %v5510
        %v5512 = vpop.f32.mrb[0].mxu0
        %5513 = vmatprep.mubr.bf16.mxu0 0
        %5514 = vmatmul.mubr.bf16.gmra.mrb[0].mxu0 %v4348
        %v5515 = vpop.f32.mrb[0].mxu0
        %v5516 = vadd.f32 0.0, %v5515
        %v5517 = vpop.f32.mrb[0].mxu0
        %v5518 = vpop.f32.mrb[0].mxu0
        %v5519 = vadd.f32 0.0, %v5518
        %v5520 = vpop.f32.mrb[0].mxu0
        %5521 = vmatprep.mubr.bf16.mxu0 0
        %5522 = vmatmul.mubr.bf16.gmra.mrb[0].mxu0 %v4351
        %v5523 = vpop.f32.mrb[0].mxu0
        %v5524 = vadd.f32 0.0, %v5523
        %v5525 = vpop.f32.mrb[0].mxu0
        %v5526 = vpop.f32.mrb[0].mxu0
        %v5527 = vadd.f32 0.0, %v5526
        %v5528 = vpop.f32.mrb[0].mxu0
        %5529 = vmatprep.mubr.bf16.mxu0 0
        %5530 = vmatmul.mubr.bf16.gmra.mrb[0].mxu0 %v4354
        %v5531 = vpop.f32.mrb[0].mxu0
        %v5532 = vadd.f32 0.0, %v5531
        %v5533 = vpop.f32.mrb[0].mxu0
        %v5534 = vpop.f32.mrb[0].mxu0
        %v5535 = vadd.f32 0.0, %v5534
        %v5536 = vpop.f32.mrb[0].mxu0
        %5537 = vmatprep.mubr.bf16.mxu0 0
        %5538 = vmatmul.mubr.bf16.gmra.mrb[0].mxu0 %v4357
        %v5539 = vpop.f32.mrb[0].mxu0
        %v5540 = vadd.f32 0.0, %v5539
        %v5541 = vpop.f32.mrb[0].mxu0
        %v5542 = vpop.f32.mrb[0].mxu0
        %v5543 = vadd.f32 0.0, %v5542
        %v5544 = vpop.f32.mrb[0].mxu0
        %5545 = vmatprep.mubr.bf16.mxu0 0
        %5546 = vmatmul.mubr.bf16.gmra.mrb[0].mxu0 %v4360
        %v5547 = vpop.f32.mrb[0].mxu0
        %v5548 = vadd.f32 0.0, %v5547
        %v5549 = vpop.f32.mrb[0].mxu0
        %v5550 = vpop.f32.mrb[0].mxu0
        %v5551 = vadd.f32 0.0, %v5550
        %v5552 = vpop.f32.mrb[0].mxu0
        %5553 = vmatprep.mubr.bf16.mxu0 0
        %5554 = vmatmul.mubr.bf16.gmra.mrb[0].mxu0 %v4363
        %v5555 = vpop.f32.mrb[0].mxu0
        %v5556 = vadd.f32 0.0, %v5555
        %v5557 = vpop.f32.mrb[0].mxu0
        %v5558 = vpop.f32.mrb[0].mxu0
        %v5559 = vadd.f32 0.0, %v5558
        %v5560 = vpop.f32.mrb[0].mxu0
        %5561 = vmatprep.mubr.bf16.mxu0 0
        %5562 = vmatmul.mubr.bf16.gmra.mrb[0].mxu0 %v4366
        %v5563 = vpop.f32.mrb[0].mxu0
        %v5564 = vadd.f32 0.0, %v5563
        %v5565 = vpop.f32.mrb[0].mxu0
        %v5566 = vpop.f32.mrb[0].mxu0
        %v5567 = vadd.f32 0.0, %v5566
        %v5568 = vpop.f32.mrb[0].mxu0
        %5569 = vmatprep.mubr.bf16.mxu0 0
        %5570 = vmatmul.mubr.bf16.gmra.mrb[0].mxu0 %v4369
        %v5571 = vpop.f32.mrb[0].mxu0
        %v5572 = vadd.f32 0.0, %v5571
        %v5573 = vpop.f32.mrb[0].mxu0
        %v5574 = vpop.f32.mrb[0].mxu0
        %v5575 = vadd.f32 0.0, %v5574
        %v5576 = vpop.f32.mrb[0].mxu0
        %5577 = vmatprep.mubr.bf16.mxu0 0
        %5578 = vmatmul.mubr.bf16.gmra.mrb[0].mxu0 %v4372
        %v5579 = vpop.f32.mrb[0].mxu0
        %v5580 = vadd.f32 0.0, %v5579
        %v5581 = vpop.f32.mrb[0].mxu0
        %v5582 = vpop.f32.mrb[0].mxu0
        %v5583 = vadd.f32 0.0, %v5582
        %v5584 = vpop.f32.mrb[0].mxu0
        %5585 = vmatprep.mubr.bf16.mxu0 0
        %5586 = vmatmul.mubr.bf16.gmra.mrb[0].mxu0 %v4375
        %v5587 = vpop.f32.mrb[0].mxu0
        %v5588 = vadd.f32 0.0, %v5587
        %v5589 = vpop.f32.mrb[0].mxu0
        %v5590 = vpop.f32.mrb[0].mxu0
        %v5591 = vadd.f32 0.0, %v5590
        %v5592 = vpop.f32.mrb[0].mxu0
        %5593 = vmatprep.mubr.bf16.mxu0 0
        %5594 = vmatmul.mubr.bf16.gmra.mrb[0].mxu0 %v4811
        %v5595 = vpop.f32.mrb[0].mxu0
        %v5596 = vadd.f32 0.0, %v5595
        %v5597 = vpop.f32.mrb[0].mxu0
        %v5598 = vpop.f32.mrb[0].mxu0
        %v5599 = vadd.f32 0.0, %v5598
        %v5600 = vpop.f32.mrb[0].mxu0
        %5601 = vmatprep.mubr.bf16.mxu0 0
        %5602 = vmatmul.mubr.bf16.gmra.mrb[0].mxu0 %v4112
        %v5603 = vpop.f32.mrb[0].mxu0
        %v5604 = vadd.f32 0.0, %v5603
        %v5605 = vpop.f32.mrb[0].mxu0
        %v5606 = vpop.f32.mrb[0].mxu0
        %v5607 = vadd.f32 0.0, %v5606
        %v5608 = vpop.f32.mrb[0].mxu0
        %5609 = vdwg.mxu0
        %v5610 = vadd.f32 %v5400, %v5484
        %v5611 = vadd.f32 %v5401, %v5487
        %v5612 = vadd.f32 %v5402, %v5492
        %v5613 = vadd.f32 %v5403, %v5495
        %v5614 = vadd.f32 %v5404, %v5500
        %v5615 = vadd.f32 %v5405, %v5503
        %v5616 = vadd.f32 %v5406, %v5508
        %v5617 = vadd.f32 %v5407, %v5511
        %v5618 = vadd.f32 %v5408, %v5516
        %v5619 = vadd.f32 %v5409, %v5519
        %v5620 = vadd.f32 %v5410, %v5524
        %v5621 = vadd.f32 %v5411, %v5527
        %v5622 = vadd.f32 %v5412, %v5532
        %v5623 = vadd.f32 %v5413, %v5535
        %v5624 = vadd.f32 %v5414, %v5540
        %v5625 = vadd.f32 %v5415, %v5543
        %v5626 = vadd.f32 %v5416, %v5548
        %v5627 = vadd.f32 %v5417, %v5551
        %v5628 = vadd.f32 %v5418, %v5556
        %v5629 = vadd.f32 %v5419, %v5559
        %v5630 = vadd.f32 %v5420, %v5564
        %v5631 = vadd.f32 %v5421, %v5567
        %v5632 = vadd.f32 %v5422, %v5572
        %v5633 = vadd.f32 %v5423, %v5575
        %v5634 = vadd.f32 %v5424, %v5580
        %v5635 = vadd.f32 %v5425, %v5583
        %v5636 = vadd.f32 %v5426, %v5588
        %v5637 = vadd.f32 %v5427, %v5591
        %v5638 = vadd.f32 %v5428, %v5596
        %v5639 = vadd.f32 %v5429, %v5599
        %v5640 = vadd.f32 %v5430, %v5604
        %v5641 = vadd.f32 %v5431, %v5607
        %s5642 = scalar_lea.vmem %s4, 112
        %v5643 = vld [vmem:[%s5642] sm:$0xf]
        %v5644 = vld [vmem:[%s5642 + $0x4] sm:$0xf]
        %v5645 = vld [vmem:[%s5642 + $0x8] sm:$0xf]
        %v5646 = vld [vmem:[%s5642 + $0xc] sm:$0xf]
        %v5651 = vunpack.c.l.b16 %v5643
        %v5652 = vunpack.c.l.b16 %v5644
        %v5653 = vunpack.c.l.b16 %v5645
        %v5654 = vunpack.c.l.b16 %v5646
        %v5655 = vpack.c.b16 %v5652, %v5651
        %v5656 = vpack.c.b16 %v5654, %v5653
        %5659 = vmatprep.subr.bf16.mxu0 0
        %5660 = vmatpush1.bf16.msra.mxu0 %v5655
        %5661 = vmatprep.subr.bf16.mxu0 0
        %5662 = vmatpush1.bf16.msra.mxu0 %v5656
        %5663 = vmatprep.subr.bf16.mxu0 0
        %5664 = vmatpush1.bf16.msra.mxu0 0
        %5665 = vmatprep.subr.bf16.mxu0 0
        %5666 = vmatpush1.bf16.msra.mxu0 0
        %5667 = vmatprep.subr.bf16.mxu0 0
        %5668 = vmatpush1.bf16.msra.mxu0 0
        %5669 = vmatprep.subr.bf16.mxu0 0
        %5670 = vmatpush1.bf16.msra.mxu0 0
        %5671 = vmatprep.subr.bf16.mxu0 0
        %5672 = vmatpush1.bf16.msra.mxu0 0
        %5673 = vmatprep.subr.bf16.mxu0 0
        %5674 = vmatpush1.bf16.msra.mxu0 0
        %5675 = vmatprep.subr.bf16.mxu0 0
        %5676 = vmatpush1.bf16.msra.mxu0 0
        %5677 = vmatprep.subr.bf16.mxu0 0
        %5678 = vmatpush1.bf16.msra.mxu0 0
        %5679 = vmatprep.subr.bf16.mxu0 0
        %5680 = vmatpush1.bf16.msra.mxu0 0
        %5681 = vmatprep.subr.bf16.mxu0 0
        %5682 = vmatpush1.bf16.msra.mxu0 0
        %5683 = vmatprep.subr.bf16.mxu0 0
        %5684 = vmatpush1.bf16.msra.mxu0 0
        %5685 = vmatprep.subr.bf16.mxu0 0
        %5686 = vmatpush1.bf16.msra.mxu0 0
        %5687 = vmatprep.subr.bf16.mxu0 0
        %5688 = vmatpush1.bf16.msra.mxu0 0
        %5689 = vmatprep.subr.bf16.mxu0 0
        %5690 = vmatpush1.bf16.msra.mxu0 0
        %5691 = vmatprep.mubr.bf16.mxu0 0
        %5692 = vmatmul.mubr.bf16.gmra.mrb[0].mxu0 %v4118
        %v5693 = vpop.f32.mrb[0].mxu0
        %v5694 = vadd.f32 0.0, %v5693
        %v5695 = vpop.f32.mrb[0].mxu0
        %v5696 = vpop.f32.mrb[0].mxu0
        %v5697 = vadd.f32 0.0, %v5696
        %v5698 = vpop.f32.mrb[0].mxu0
        %5699 = vmatprep.mubr.bf16.mxu0 0
        %5700 = vmatmul.mubr.bf16.gmra.mrb[0].mxu0 %v4121
        %v5701 = vpop.f32.mrb[0].mxu0
        %v5702 = vadd.f32 0.0, %v5701
        %v5703 = vpop.f32.mrb[0].mxu0
        %v5704 = vpop.f32.mrb[0].mxu0
        %v5705 = vadd.f32 0.0, %v5704
        %v5706 = vpop.f32.mrb[0].mxu0
        %5707 = vmatprep.mubr.bf16.mxu0 0
        %5708 = vmatmul.mubr.bf16.gmra.mrb[0].mxu0 %v4124
        %v5709 = vpop.f32.mrb[0].mxu0
        %v5710 = vadd.f32 0.0, %v5709
        %v5711 = vpop.f32.mrb[0].mxu0
        %v5712 = vpop.f32.mrb[0].mxu0
        %v5713 = vadd.f32 0.0, %v5712
        %v5714 = vpop.f32.mrb[0].mxu0
        %5715 = vmatprep.mubr.bf16.mxu0 0
        %5716 = vmatmul.mubr.bf16.gmra.mrb[0].mxu0 %v4127
        %v5717 = vpop.f32.mrb[0].mxu0
        %v5718 = vadd.f32 0.0, %v5717
        %v5719 = vpop.f32.mrb[0].mxu0
        %v5720 = vpop.f32.mrb[0].mxu0
        %v5721 = vadd.f32 0.0, %v5720
        %v5722 = vpop.f32.mrb[0].mxu0
        %5723 = vmatprep.mubr.bf16.mxu0 0
        %5724 = vmatmul.mubr.bf16.gmra.mrb[0].mxu0 %v4130
        %v5725 = vpop.f32.mrb[0].mxu0
        %v5726 = vadd.f32 0.0, %v5725
        %v5727 = vpop.f32.mrb[0].mxu0
        %v5728 = vpop.f32.mrb[0].mxu0
        %v5729 = vadd.f32 0.0, %v5728
        %v5730 = vpop.f32.mrb[0].mxu0
        %5731 = vmatprep.mubr.bf16.mxu0 0
        %5732 = vmatmul.mubr.bf16.gmra.mrb[0].mxu0 %v4133
        %v5733 = vpop.f32.mrb[0].mxu0
        %v5734 = vadd.f32 0.0, %v5733
        %v5735 = vpop.f32.mrb[0].mxu0
        %v5736 = vpop.f32.mrb[0].mxu0
        %v5737 = vadd.f32 0.0, %v5736
        %v5738 = vpop.f32.mrb[0].mxu0
        %5739 = vmatprep.mubr.bf16.mxu0 0
        %5740 = vmatmul.mubr.bf16.gmra.mrb[0].mxu0 %v4136
        %v5741 = vpop.f32.mrb[0].mxu0
        %v5742 = vadd.f32 0.0, %v5741
        %v5743 = vpop.f32.mrb[0].mxu0
        %v5744 = vpop.f32.mrb[0].mxu0
        %v5745 = vadd.f32 0.0, %v5744
        %v5746 = vpop.f32.mrb[0].mxu0
        %5747 = vmatprep.mubr.bf16.mxu0 0
        %5748 = vmatmul.mubr.bf16.gmra.mrb[0].mxu0 %v4139
        %v5749 = vpop.f32.mrb[0].mxu0
        %v5750 = vadd.f32 0.0, %v5749
        %v5751 = vpop.f32.mrb[0].mxu0
        %v5752 = vpop.f32.mrb[0].mxu0
        %v5753 = vadd.f32 0.0, %v5752
        %v5754 = vpop.f32.mrb[0].mxu0
        %5755 = vmatprep.mubr.bf16.mxu0 0
        %5756 = vmatmul.mubr.bf16.gmra.mrb[0].mxu0 %v4142
        %v5757 = vpop.f32.mrb[0].mxu0
        %v5758 = vadd.f32 0.0, %v5757
        %v5759 = vpop.f32.mrb[0].mxu0
        %v5760 = vpop.f32.mrb[0].mxu0
        %v5761 = vadd.f32 0.0, %v5760
        %v5762 = vpop.f32.mrb[0].mxu0
        %5763 = vmatprep.mubr.bf16.mxu0 0
        %5764 = vmatmul.mubr.bf16.gmra.mrb[0].mxu0 %v4145
        %v5765 = vpop.f32.mrb[0].mxu0
        %v5766 = vadd.f32 0.0, %v5765
        %v5767 = vpop.f32.mrb[0].mxu0
        %v5768 = vpop.f32.mrb[0].mxu0
        %v5769 = vadd.f32 0.0, %v5768
        %v5770 = vpop.f32.mrb[0].mxu0
        %5771 = vmatprep.mubr.bf16.mxu0 0
        %5772 = vmatmul.mubr.bf16.gmra.mrb[0].mxu0 %v4148
        %v5773 = vpop.f32.mrb[0].mxu0
        %v5774 = vadd.f32 0.0, %v5773
        %v5775 = vpop.f32.mrb[0].mxu0
        %v5776 = vpop.f32.mrb[0].mxu0
        %v5777 = vadd.f32 0.0, %v5776
        %v5778 = vpop.f32.mrb[0].mxu0
        %5779 = vmatprep.mubr.bf16.mxu0 0
        %5780 = vmatmul.mubr.bf16.gmra.mrb[0].mxu0 %v4151
        %v5781 = vpop.f32.mrb[0].mxu0
        %v5782 = vadd.f32 0.0, %v5781
        %v5783 = vpop.f32.mrb[0].mxu0
        %v5784 = vpop.f32.mrb[0].mxu0
        %v5785 = vadd.f32 0.0, %v5784
        %v5786 = vpop.f32.mrb[0].mxu0
        %5787 = vmatprep.mubr.bf16.mxu0 0
        %5788 = vmatmul.mubr.bf16.gmra.mrb[0].mxu0 %v4154
        %v5789 = vpop.f32.mrb[0].mxu0
        %v5790 = vadd.f32 0.0, %v5789
        %v5791 = vpop.f32.mrb[0].mxu0
        %v5792 = vpop.f32.mrb[0].mxu0
        %v5793 = vadd.f32 0.0, %v5792
        %v5794 = vpop.f32.mrb[0].mxu0
        %5795 = vmatprep.mubr.bf16.mxu0 0
        %5796 = vmatmul.mubr.bf16.gmra.mrb[0].mxu0 %v4157
        %v5797 = vpop.f32.mrb[0].mxu0
        %v5798 = vadd.f32 0.0, %v5797
        %v5799 = vpop.f32.mrb[0].mxu0
        %v5800 = vpop.f32.mrb[0].mxu0
        %v5801 = vadd.f32 0.0, %v5800
        %v5802 = vpop.f32.mrb[0].mxu0
        %5803 = vmatprep.mubr.bf16.mxu0 0
        %5804 = vmatmul.mubr.bf16.gmra.mrb[0].mxu0 %v5024
        %v5805 = vpop.f32.mrb[0].mxu0
        %v5806 = vadd.f32 0.0, %v5805
        %v5807 = vpop.f32.mrb[0].mxu0
        %v5808 = vpop.f32.mrb[0].mxu0
        %v5809 = vadd.f32 0.0, %v5808
        %v5810 = vpop.f32.mrb[0].mxu0
        %5811 = vmatprep.mubr.bf16.mxu0 0
        %5812 = vmatmul.mubr.bf16.gmra.mrb[0].mxu0 %v4112
        %v5813 = vpop.f32.mrb[0].mxu0
        %v5814 = vadd.f32 0.0, %v5813
        %v5815 = vpop.f32.mrb[0].mxu0
        %v5816 = vpop.f32.mrb[0].mxu0
        %v5817 = vadd.f32 0.0, %v5816
        %v5818 = vpop.f32.mrb[0].mxu0
        %5819 = vdwg.mxu0
        %v5820 = vadd.f32 %v5610, %v5694
        %v5821 = vadd.f32 %v5611, %v5697
        %v5822 = vadd.f32 %v5612, %v5702
        %v5823 = vadd.f32 %v5613, %v5705
        %v5824 = vadd.f32 %v5614, %v5710
        %v5825 = vadd.f32 %v5615, %v5713
        %v5826 = vadd.f32 %v5616, %v5718
        %v5827 = vadd.f32 %v5617, %v5721
        %v5828 = vadd.f32 %v5618, %v5726
        %v5829 = vadd.f32 %v5619, %v5729
        %v5830 = vadd.f32 %v5620, %v5734
        %v5831 = vadd.f32 %v5621, %v5737
        %v5832 = vadd.f32 %v5622, %v5742
        %v5833 = vadd.f32 %v5623, %v5745
        %v5834 = vadd.f32 %v5624, %v5750
        %v5835 = vadd.f32 %v5625, %v5753
        %v5836 = vadd.f32 %v5626, %v5758
        %v5837 = vadd.f32 %v5627, %v5761
        %v5838 = vadd.f32 %v5628, %v5766
        %v5839 = vadd.f32 %v5629, %v5769
        %v5840 = vadd.f32 %v5630, %v5774
        %v5841 = vadd.f32 %v5631, %v5777
        %v5842 = vadd.f32 %v5632, %v5782
        %v5843 = vadd.f32 %v5633, %v5785
        %v5844 = vadd.f32 %v5634, %v5790
        %v5845 = vadd.f32 %v5635, %v5793
        %v5846 = vadd.f32 %v5636, %v5798
        %v5847 = vadd.f32 %v5637, %v5801
        %v5848 = vadd.f32 %v5638, %v5806
        %v5849 = vadd.f32 %v5639, %v5809
        %v5850 = vadd.f32 %v5640, %v5814
        %v5851 = vadd.f32 %v5641, %v5817
        %s5852 = scalar_lea.vmem %s4, 128
        %v5853 = vld [vmem:[%s5852] sm:$0xf]
        %v5854 = vld [vmem:[%s5852 + $0x4] sm:$0xf]
        %v5855 = vld [vmem:[%s5852 + $0x8] sm:$0xf]
        %v5856 = vld [vmem:[%s5852 + $0xc] sm:$0xf]
        %v5861 = vunpack.c.l.b16 %v5853
        %v5862 = vunpack.c.l.b16 %v5854
        %v5863 = vunpack.c.l.b16 %v5855
        %v5864 = vunpack.c.l.b16 %v5856
        %v5865 = vpack.c.b16 %v5862, %v5861
        %v5866 = vpack.c.b16 %v5864, %v5863
        %5869 = vmatprep.subr.bf16.mxu0 0
        %5870 = vmatpush1.bf16.msra.mxu0 %v5865
        %5871 = vmatprep.subr.bf16.mxu0 0
        %5872 = vmatpush1.bf16.msra.mxu0 %v5866
        %5873 = vmatprep.subr.bf16.mxu0 0
        %5874 = vmatpush1.bf16.msra.mxu0 0
        %5875 = vmatprep.subr.bf16.mxu0 0
        %5876 = vmatpush1.bf16.msra.mxu0 0
        %5877 = vmatprep.subr.bf16.mxu0 0
        %5878 = vmatpush1.bf16.msra.mxu0 0
        %5879 = vmatprep.subr.bf16.mxu0 0
        %5880 = vmatpush1.bf16.msra.mxu0 0
        %5881 = vmatprep.subr.bf16.mxu0 0
        %5882 = vmatpush1.bf16.msra.mxu0 0
        %5883 = vmatprep.subr.bf16.mxu0 0
        %5884 = vmatpush1.bf16.msra.mxu0 0
        %5885 = vmatprep.subr.bf16.mxu0 0
        %5886 = vmatpush1.bf16.msra.mxu0 0
        %5887 = vmatprep.subr.bf16.mxu0 0
        %5888 = vmatpush1.bf16.msra.mxu0 0
        %5889 = vmatprep.subr.bf16.mxu0 0
        %5890 = vmatpush1.bf16.msra.mxu0 0
        %5891 = vmatprep.subr.bf16.mxu0 0
        %5892 = vmatpush1.bf16.msra.mxu0 0
        %5893 = vmatprep.subr.bf16.mxu0 0
        %5894 = vmatpush1.bf16.msra.mxu0 0
        %5895 = vmatprep.subr.bf16.mxu0 0
        %5896 = vmatpush1.bf16.msra.mxu0 0
        %5897 = vmatprep.subr.bf16.mxu0 0
        %5898 = vmatpush1.bf16.msra.mxu0 0
        %5899 = vmatprep.subr.bf16.mxu0 0
        %5900 = vmatpush1.bf16.msra.mxu0 0
        %5901 = vmatprep.mubr.bf16.mxu0 0
        %5902 = vmatmul.mubr.bf16.gmra.mrb[0].mxu0 %v4559
        %v5903 = vpop.f32.mrb[0].mxu0
        %v5904 = vadd.f32 0.0, %v5903
        %v5905 = vpop.f32.mrb[0].mxu0
        %v5906 = vpop.f32.mrb[0].mxu0
        %v5907 = vadd.f32 0.0, %v5906
        %v5908 = vpop.f32.mrb[0].mxu0
        %5909 = vmatprep.mubr.bf16.mxu0 0
        %5910 = vmatmul.mubr.bf16.gmra.mrb[0].mxu0 %v4562
        %v5911 = vpop.f32.mrb[0].mxu0
        %v5912 = vadd.f32 0.0, %v5911
        %v5913 = vpop.f32.mrb[0].mxu0
        %v5914 = vpop.f32.mrb[0].mxu0
        %v5915 = vadd.f32 0.0, %v5914
        %v5916 = vpop.f32.mrb[0].mxu0
        %5917 = vmatprep.mubr.bf16.mxu0 0
        %5918 = vmatmul.mubr.bf16.gmra.mrb[0].mxu0 %v4565
        %v5919 = vpop.f32.mrb[0].mxu0
        %v5920 = vadd.f32 0.0, %v5919
        %v5921 = vpop.f32.mrb[0].mxu0
        %v5922 = vpop.f32.mrb[0].mxu0
        %v5923 = vadd.f32 0.0, %v5922
        %v5924 = vpop.f32.mrb[0].mxu0
        %5925 = vmatprep.mubr.bf16.mxu0 0
        %5926 = vmatmul.mubr.bf16.gmra.mrb[0].mxu0 %v4568
        %v5927 = vpop.f32.mrb[0].mxu0
        %v5928 = vadd.f32 0.0, %v5927
        %v5929 = vpop.f32.mrb[0].mxu0
        %v5930 = vpop.f32.mrb[0].mxu0
        %v5931 = vadd.f32 0.0, %v5930
        %v5932 = vpop.f32.mrb[0].mxu0
        %5933 = vmatprep.mubr.bf16.mxu0 0
        %5934 = vmatmul.mubr.bf16.gmra.mrb[0].mxu0 %v4571
        %v5935 = vpop.f32.mrb[0].mxu0
        %v5936 = vadd.f32 0.0, %v5935
        %v5937 = vpop.f32.mrb[0].mxu0
        %v5938 = vpop.f32.mrb[0].mxu0
        %v5939 = vadd.f32 0.0, %v5938
        %v5940 = vpop.f32.mrb[0].mxu0
        %5941 = vmatprep.mubr.bf16.mxu0 0
        %5942 = vmatmul.mubr.bf16.gmra.mrb[0].mxu0 %v4574
        %v5943 = vpop.f32.mrb[0].mxu0
        %v5944 = vadd.f32 0.0, %v5943
        %v5945 = vpop.f32.mrb[0].mxu0
        %v5946 = vpop.f32.mrb[0].mxu0
        %v5947 = vadd.f32 0.0, %v5946
        %v5948 = vpop.f32.mrb[0].mxu0
        %5949 = vmatprep.mubr.bf16.mxu0 0
        %5950 = vmatmul.mubr.bf16.gmra.mrb[0].mxu0 %v4577
        %v5951 = vpop.f32.mrb[0].mxu0
        %v5952 = vadd.f32 0.0, %v5951
        %v5953 = vpop.f32.mrb[0].mxu0
        %v5954 = vpop.f32.mrb[0].mxu0
        %v5955 = vadd.f32 0.0, %v5954
        %v5956 = vpop.f32.mrb[0].mxu0
        %5957 = vmatprep.mubr.bf16.mxu0 0
        %5958 = vmatmul.mubr.bf16.gmra.mrb[0].mxu0 %v4580
        %v5959 = vpop.f32.mrb[0].mxu0
        %v5960 = vadd.f32 0.0, %v5959
        %v5961 = vpop.f32.mrb[0].mxu0
        %v5962 = vpop.f32.mrb[0].mxu0
        %v5963 = vadd.f32 0.0, %v5962
        %v5964 = vpop.f32.mrb[0].mxu0
        %5965 = vmatprep.mubr.bf16.mxu0 0
        %5966 = vmatmul.mubr.bf16.gmra.mrb[0].mxu0 %v4583
        %v5967 = vpop.f32.mrb[0].mxu0
        %v5968 = vadd.f32 0.0, %v5967
        %v5969 = vpop.f32.mrb[0].mxu0
        %v5970 = vpop.f32.mrb[0].mxu0
        %v5971 = vadd.f32 0.0, %v5970
        %v5972 = vpop.f32.mrb[0].mxu0
        %5973 = vmatprep.mubr.bf16.mxu0 0
        %5974 = vmatmul.mubr.bf16.gmra.mrb[0].mxu0 %v4586
        %v5975 = vpop.f32.mrb[0].mxu0
        %v5976 = vadd.f32 0.0, %v5975
        %v5977 = vpop.f32.mrb[0].mxu0
        %v5978 = vpop.f32.mrb[0].mxu0
        %v5979 = vadd.f32 0.0, %v5978
        %v5980 = vpop.f32.mrb[0].mxu0
        %5981 = vmatprep.mubr.bf16.mxu0 0
        %5982 = vmatmul.mubr.bf16.gmra.mrb[0].mxu0 %v4589
        %v5983 = vpop.f32.mrb[0].mxu0
        %v5984 = vadd.f32 0.0, %v5983
        %v5985 = vpop.f32.mrb[0].mxu0
        %v5986 = vpop.f32.mrb[0].mxu0
        %v5987 = vadd.f32 0.0, %v5986
        %v5988 = vpop.f32.mrb[0].mxu0
        %5989 = vmatprep.mubr.bf16.mxu0 0
        %5990 = vmatmul.mubr.bf16.gmra.mrb[0].mxu0 %v4592
        %v5991 = vpop.f32.mrb[0].mxu0
        %v5992 = vadd.f32 0.0, %v5991
        %v5993 = vpop.f32.mrb[0].mxu0
        %v5994 = vpop.f32.mrb[0].mxu0
        %v5995 = vadd.f32 0.0, %v5994
        %v5996 = vpop.f32.mrb[0].mxu0
        %5997 = vmatprep.mubr.bf16.mxu0 0
        %5998 = vmatmul.mubr.bf16.gmra.mrb[0].mxu0 %v4595
        %v5999 = vpop.f32.mrb[0].mxu0
        %v6000 = vadd.f32 0.0, %v5999
        %v6001 = vpop.f32.mrb[0].mxu0
        %v6002 = vpop.f32.mrb[0].mxu0
        %v6003 = vadd.f32 0.0, %v6002
        %v6004 = vpop.f32.mrb[0].mxu0
        %6005 = vmatprep.mubr.bf16.mxu0 0
        %6006 = vmatmul.mubr.bf16.gmra.mrb[0].mxu0 %v4598
        %v6007 = vpop.f32.mrb[0].mxu0
        %v6008 = vadd.f32 0.0, %v6007
        %v6009 = vpop.f32.mrb[0].mxu0
        %v6010 = vpop.f32.mrb[0].mxu0
        %v6011 = vadd.f32 0.0, %v6010
        %v6012 = vpop.f32.mrb[0].mxu0
        %6013 = vmatprep.mubr.bf16.mxu0 0
        %6014 = vmatmul.mubr.bf16.gmra.mrb[0].mxu0 %v5237
        %v6015 = vpop.f32.mrb[0].mxu0
        %v6016 = vadd.f32 0.0, %v6015
        %v6017 = vpop.f32.mrb[0].mxu0
        %v6018 = vpop.f32.mrb[0].mxu0
        %v6019 = vadd.f32 0.0, %v6018
        %v6020 = vpop.f32.mrb[0].mxu0
        %6021 = vmatprep.mubr.bf16.mxu0 0
        %6022 = vmatmul.mubr.bf16.gmra.mrb[0].mxu0 %v4112
        %v6023 = vpop.f32.mrb[0].mxu0
        %v6024 = vadd.f32 0.0, %v6023
        %v6025 = vpop.f32.mrb[0].mxu0
        %v6026 = vpop.f32.mrb[0].mxu0
        %v6027 = vadd.f32 0.0, %v6026
        %v6028 = vpop.f32.mrb[0].mxu0
        %6029 = vdwg.mxu0
        %v6030 = vadd.f32 %v5820, %v5904
        %v6031 = vadd.f32 %v5821, %v5907
        %v6032 = vadd.f32 %v5822, %v5912
        %v6033 = vadd.f32 %v5823, %v5915
        %v6034 = vadd.f32 %v5824, %v5920
        %v6035 = vadd.f32 %v5825, %v5923
        %v6036 = vadd.f32 %v5826, %v5928
        %v6037 = vadd.f32 %v5827, %v5931
        %v6038 = vadd.f32 %v5828, %v5936
        %v6039 = vadd.f32 %v5829, %v5939
        %v6040 = vadd.f32 %v5830, %v5944
        %v6041 = vadd.f32 %v5831, %v5947
        %v6042 = vadd.f32 %v5832, %v5952
        %v6043 = vadd.f32 %v5833, %v5955
        %v6044 = vadd.f32 %v5834, %v5960
        %v6045 = vadd.f32 %v5835, %v5963
        %v6046 = vadd.f32 %v5836, %v5968
        %v6047 = vadd.f32 %v5837, %v5971
        %v6048 = vadd.f32 %v5838, %v5976
        %v6049 = vadd.f32 %v5839, %v5979
        %v6050 = vadd.f32 %v5840, %v5984
        %v6051 = vadd.f32 %v5841, %v5987
        %v6052 = vadd.f32 %v5842, %v5992
        %v6053 = vadd.f32 %v5843, %v5995
        %v6054 = vadd.f32 %v5844, %v6000
        %v6055 = vadd.f32 %v5845, %v6003
        %v6056 = vadd.f32 %v5846, %v6008
        %v6057 = vadd.f32 %v5847, %v6011
        %v6058 = vadd.f32 %v5848, %v6016
        %v6059 = vadd.f32 %v5849, %v6019
        %v6060 = vadd.f32 %v5850, %v6024
        %v6061 = vadd.f32 %v5851, %v6027
        %6062 = vrot.lane.b32.xlu0 %v895, 32
        %v6063 = vpop.permute.xlu0 %6062
        %v6065 = vadd.f32 %v6030, %v6063
        %v6066 = vadd.f32 %v6031, %v6063
        %v6067 = vadd.f32 %v6032, %v6063
        %v6068 = vadd.f32 %v6033, %v6063
        %v6069 = vadd.f32 %v6034, %v6063
        %v6070 = vadd.f32 %v6035, %v6063
        %v6071 = vadd.f32 %v6036, %v6063
        %v6072 = vadd.f32 %v6037, %v6063
        %v6073 = vadd.f32 %v6038, %v6063
        %v6074 = vadd.f32 %v6039, %v6063
        %v6075 = vadd.f32 %v6040, %v6063
        %v6076 = vadd.f32 %v6041, %v6063
        %v6077 = vadd.f32 %v6042, %v6063
        %v6078 = vadd.f32 %v6043, %v6063
        %v6079 = vadd.f32 %v6044, %v6063
        %v6080 = vadd.f32 %v6045, %v6063
        %v6081 = vadd.f32 %v6046, %v6063
        %v6082 = vadd.f32 %v6047, %v6063
        %v6083 = vadd.f32 %v6048, %v6063
        %v6084 = vadd.f32 %v6049, %v6063
        %v6085 = vadd.f32 %v6050, %v6063
        %v6086 = vadd.f32 %v6051, %v6063
        %v6087 = vadd.f32 %v6052, %v6063
        %v6088 = vadd.f32 %v6053, %v6063
        %v6089 = vadd.f32 %v6054, %v6063
        %v6090 = vadd.f32 %v6055, %v6063
        %v6091 = vadd.f32 %v6056, %v6063
        %v6092 = vadd.f32 %v6057, %v6063
        %v6093 = vadd.f32 %v6058, %v6063
        %v6094 = vadd.f32 %v6059, %v6063
        %v6095 = vadd.f32 %v6060, %v6063
        %v6096 = vadd.f32 %v6061, %v6063
        %6129 = vrot.lane.b32.xlu0 %v979, 32
        %v6130 = vpop.permute.xlu0 %6129
        %6131 = vrot.lane.b32.xlu0 %v982, 32
        %v6132 = vpop.permute.xlu0 %6131
        %6133 = vrot.lane.b32.xlu0 %v987, 32
        %v6134 = vpop.permute.xlu0 %6133
        %6135 = vrot.lane.b32.xlu0 %v990, 32
        %v6136 = vpop.permute.xlu0 %6135
        %6137 = vrot.lane.b32.xlu0 %v995, 32
        %v6138 = vpop.permute.xlu0 %6137
        %6139 = vrot.lane.b32.xlu0 %v998, 32
        %v6140 = vpop.permute.xlu0 %6139
        %6141 = vrot.lane.b32.xlu0 %v1003, 32
        %v6142 = vpop.permute.xlu0 %6141
        %6143 = vrot.lane.b32.xlu0 %v1006, 32
        %v6144 = vpop.permute.xlu0 %6143
        %6145 = vrot.lane.b32.xlu0 %v1011, 32
        %v6146 = vpop.permute.xlu0 %6145
        %6147 = vrot.lane.b32.xlu0 %v1014, 32
        %v6148 = vpop.permute.xlu0 %6147
        %6149 = vrot.lane.b32.xlu0 %v1019, 32
        %v6150 = vpop.permute.xlu0 %6149
        %6151 = vrot.lane.b32.xlu0 %v1022, 32
        %v6152 = vpop.permute.xlu0 %6151
        %6153 = vrot.lane.b32.xlu0 %v1027, 32
        %v6154 = vpop.permute.xlu0 %6153
        %6155 = vrot.lane.b32.xlu0 %v1030, 32
        %v6156 = vpop.permute.xlu0 %6155
        %6157 = vrot.lane.b32.xlu0 %v1035, 32
        %v6158 = vpop.permute.xlu0 %6157
        %6159 = vrot.lane.b32.xlu0 %v1038, 32
        %v6160 = vpop.permute.xlu0 %6159
        %6161 = vrot.lane.b32.xlu0 %v1043, 32
        %v6162 = vpop.permute.xlu0 %6161
        %6163 = vrot.lane.b32.xlu0 %v1046, 32
        %v6164 = vpop.permute.xlu0 %6163
        %6165 = vrot.lane.b32.xlu0 %v1051, 32
        %v6166 = vpop.permute.xlu0 %6165
        %6167 = vrot.lane.b32.xlu0 %v1054, 32
        %v6168 = vpop.permute.xlu0 %6167
        %6169 = vrot.lane.b32.xlu0 %v1059, 32
        %v6170 = vpop.permute.xlu0 %6169
        %6171 = vrot.lane.b32.xlu0 %v1062, 32
        %v6172 = vpop.permute.xlu0 %6171
        %6173 = vrot.lane.b32.xlu0 %v1067, 32
        %v6174 = vpop.permute.xlu0 %6173
        %6175 = vrot.lane.b32.xlu0 %v1070, 32
        %v6176 = vpop.permute.xlu0 %6175
        %6177 = vrot.lane.b32.xlu0 %v1075, 32
        %v6178 = vpop.permute.xlu0 %6177
        %6179 = vrot.lane.b32.xlu0 %v1078, 32
        %v6180 = vpop.permute.xlu0 %6179
        %6181 = vrot.lane.b32.xlu0 %v1083, 32
        %v6182 = vpop.permute.xlu0 %6181
        %6183 = vrot.lane.b32.xlu0 %v1086, 32
        %v6184 = vpop.permute.xlu0 %6183
        %6185 = vrot.lane.b32.xlu0 %v1091, 32
        %v6186 = vpop.permute.xlu0 %6185
        %6187 = vrot.lane.b32.xlu0 %v1094, 32
        %v6188 = vpop.permute.xlu0 %6187
        %6189 = vrot.lane.b32.xlu0 %v1099, 32
        %v6190 = vpop.permute.xlu0 %6189
        %6191 = vrot.lane.b32.xlu0 %v1102, 32
        %v6192 = vpop.permute.xlu0 %6191
        %6225 = vrot.lane.b32.xlu0 %v3642, 64
        %v6226 = vpop.permute.xlu0 %6225
        %6227 = vrot.lane.b32.xlu0 %v3643, 64
        %v6228 = vpop.permute.xlu0 %6227
        %6229 = vrot.lane.b32.xlu0 %v3644, 64
        %v6230 = vpop.permute.xlu0 %6229
        %6231 = vrot.lane.b32.xlu0 %v3645, 64
        %v6232 = vpop.permute.xlu0 %6231
        %6233 = vrot.lane.b32.xlu0 %v3646, 64
        %v6234 = vpop.permute.xlu0 %6233
        %6235 = vrot.lane.b32.xlu0 %v3647, 64
        %v6236 = vpop.permute.xlu0 %6235
        %6237 = vrot.lane.b32.xlu0 %v3648, 64
        %v6238 = vpop.permute.xlu0 %6237
        %6239 = vrot.lane.b32.xlu0 %v3649, 64
        %v6240 = vpop.permute.xlu0 %6239
        %6241 = vrot.lane.b32.xlu0 %v3650, 64
        %v6242 = vpop.permute.xlu0 %6241
        %6243 = vrot.lane.b32.xlu0 %v3651, 64
        %v6244 = vpop.permute.xlu0 %6243
        %6245 = vrot.lane.b32.xlu0 %v3652, 64
        %v6246 = vpop.permute.xlu0 %6245
        %6247 = vrot.lane.b32.xlu0 %v3653, 64
        %v6248 = vpop.permute.xlu0 %6247
        %6249 = vrot.lane.b32.xlu0 %v3654, 64
        %v6250 = vpop.permute.xlu0 %6249
        %6251 = vrot.lane.b32.xlu0 %v3655, 64
        %v6252 = vpop.permute.xlu0 %6251
        %6253 = vrot.lane.b32.xlu0 %v3656, 64
        %v6254 = vpop.permute.xlu0 %6253
        %6255 = vrot.lane.b32.xlu0 %v3657, 64
        %v6256 = vpop.permute.xlu0 %6255
        %6257 = vrot.lane.b32.xlu0 %v3658, 64
        %v6258 = vpop.permute.xlu0 %6257
        %6259 = vrot.lane.b32.xlu0 %v3659, 64
        %v6260 = vpop.permute.xlu0 %6259
        %6261 = vrot.lane.b32.xlu0 %v3660, 64
        %v6262 = vpop.permute.xlu0 %6261
        %6263 = vrot.lane.b32.xlu0 %v3661, 64
        %v6264 = vpop.permute.xlu0 %6263
        %6265 = vrot.lane.b32.xlu0 %v3662, 64
        %v6266 = vpop.permute.xlu0 %6265
        %6267 = vrot.lane.b32.xlu0 %v3663, 64
        %v6268 = vpop.permute.xlu0 %6267
        %6269 = vrot.lane.b32.xlu0 %v3664, 64
        %v6270 = vpop.permute.xlu0 %6269
        %6271 = vrot.lane.b32.xlu0 %v3665, 64
        %v6272 = vpop.permute.xlu0 %6271
        %6273 = vrot.lane.b32.xlu0 %v3666, 64
        %v6274 = vpop.permute.xlu0 %6273
        %6275 = vrot.lane.b32.xlu0 %v3667, 64
        %v6276 = vpop.permute.xlu0 %6275
        %6277 = vrot.lane.b32.xlu0 %v3668, 64
        %v6278 = vpop.permute.xlu0 %6277
        %6279 = vrot.lane.b32.xlu0 %v3669, 64
        %v6280 = vpop.permute.xlu0 %6279
        %6281 = vrot.lane.b32.xlu0 %v3670, 64
        %v6282 = vpop.permute.xlu0 %6281
        %6283 = vrot.lane.b32.xlu0 %v3671, 64
        %v6284 = vpop.permute.xlu0 %6283
        %6285 = vrot.lane.b32.xlu0 %v3672, 64
        %v6286 = vpop.permute.xlu0 %6285
        %6287 = vrot.lane.b32.xlu0 %v3673, 64
        %v6288 = vpop.permute.xlu0 %6287
        %6353 = vrot.lane.b32.xlu0 %v6065, 96
        %v6354 = vpop.permute.xlu0 %6353
        %6355 = vrot.lane.b32.xlu0 %v6066, 96
        %v6356 = vpop.permute.xlu0 %6355
        %6357 = vrot.lane.b32.xlu0 %v6067, 96
        %v6358 = vpop.permute.xlu0 %6357
        %6359 = vrot.lane.b32.xlu0 %v6068, 96
        %v6360 = vpop.permute.xlu0 %6359
        %6361 = vrot.lane.b32.xlu0 %v6069, 96
        %v6362 = vpop.permute.xlu0 %6361
        %6363 = vrot.lane.b32.xlu0 %v6070, 96
        %v6364 = vpop.permute.xlu0 %6363
        %6365 = vrot.lane.b32.xlu0 %v6071, 96
        %v6366 = vpop.permute.xlu0 %6365
        %6367 = vrot.lane.b32.xlu0 %v6072, 96
        %v6368 = vpop.permute.xlu0 %6367
        %6369 = vrot.lane.b32.xlu0 %v6073, 96
        %v6370 = vpop.permute.xlu0 %6369
        %6371 = vrot.lane.b32.xlu0 %v6074, 96
        %v6372 = vpop.permute.xlu0 %6371
        %6373 = vrot.lane.b32.xlu0 %v6075, 96
        %v6374 = vpop.permute.xlu0 %6373
        %6375 = vrot.lane.b32.xlu0 %v6076, 96
        %v6376 = vpop.permute.xlu0 %6375
        %6377 = vrot.lane.b32.xlu0 %v6077, 96
        %v6378 = vpop.permute.xlu0 %6377
        %6379 = vrot.lane.b32.xlu0 %v6078, 96
        %v6380 = vpop.permute.xlu0 %6379
        %6381 = vrot.lane.b32.xlu0 %v6079, 96
        %v6382 = vpop.permute.xlu0 %6381
        %6383 = vrot.lane.b32.xlu0 %v6080, 96
        %v6384 = vpop.permute.xlu0 %6383
        %6385 = vrot.lane.b32.xlu0 %v6081, 96
        %v6386 = vpop.permute.xlu0 %6385
        %6387 = vrot.lane.b32.xlu0 %v6082, 96
        %v6388 = vpop.permute.xlu0 %6387
        %6389 = vrot.lane.b32.xlu0 %v6083, 96
        %v6390 = vpop.permute.xlu0 %6389
        %6391 = vrot.lane.b32.xlu0 %v6084, 96
        %v6392 = vpop.permute.xlu0 %6391
        %6393 = vrot.lane.b32.xlu0 %v6085, 96
        %v6394 = vpop.permute.xlu0 %6393
        %6395 = vrot.lane.b32.xlu0 %v6086, 96
        %v6396 = vpop.permute.xlu0 %6395
        %6397 = vrot.lane.b32.xlu0 %v6087, 96
        %v6398 = vpop.permute.xlu0 %6397
        %6399 = vrot.lane.b32.xlu0 %v6088, 96
        %v6400 = vpop.permute.xlu0 %6399
        %6401 = vrot.lane.b32.xlu0 %v6089, 96
        %v6402 = vpop.permute.xlu0 %6401
        %6403 = vrot.lane.b32.xlu0 %v6090, 96
        %v6404 = vpop.permute.xlu0 %6403
        %6405 = vrot.lane.b32.xlu0 %v6091, 96
        %v6406 = vpop.permute.xlu0 %6405
        %6407 = vrot.lane.b32.xlu0 %v6092, 96
        %v6408 = vpop.permute.xlu0 %6407
        %6409 = vrot.lane.b32.xlu0 %v6093, 96
        %v6410 = vpop.permute.xlu0 %6409
        %6411 = vrot.lane.b32.xlu0 %v6094, 96
        %v6412 = vpop.permute.xlu0 %6411
        %6413 = vrot.lane.b32.xlu0 %v6095, 96
        %v6414 = vpop.permute.xlu0 %6413
        %6415 = vrot.lane.b32.xlu0 %v6096, 96
        %v6416 = vpop.permute.xlu0 %6415
        %v6449 = vsel %vm4111, %v406, %v6130
        %v6450 = vsel %vm4111, %v409, %v6132
        %v6451 = vsel %vm4111, %v414, %v6134
        %v6452 = vsel %vm4111, %v417, %v6136
        %v6453 = vsel %vm4111, %v422, %v6138
        %v6454 = vsel %vm4111, %v425, %v6140
        %v6455 = vsel %vm4111, %v430, %v6142
        %v6456 = vsel %vm4111, %v433, %v6144
        %v6457 = vsel %vm4111, %v438, %v6146
        %v6458 = vsel %vm4111, %v441, %v6148
        %v6459 = vsel %vm4111, %v446, %v6150
        %v6460 = vsel %vm4111, %v449, %v6152
        %v6461 = vsel %vm4111, %v454, %v6154
        %v6462 = vsel %vm4111, %v457, %v6156
        %v6463 = vsel %vm4111, %v462, %v6158
        %v6464 = vsel %vm4111, %v465, %v6160
        %v6465 = vsel %vm4111, %v470, %v6162
        %v6466 = vsel %vm4111, %v473, %v6164
        %v6467 = vsel %vm4111, %v478, %v6166
        %v6468 = vsel %vm4111, %v481, %v6168
        %v6469 = vsel %vm4111, %v486, %v6170
        %v6470 = vsel %vm4111, %v489, %v6172
        %v6471 = vsel %vm4111, %v494, %v6174
        %v6472 = vsel %vm4111, %v497, %v6176
        %v6473 = vsel %vm4111, %v502, %v6178
        %v6474 = vsel %vm4111, %v505, %v6180
        %v6475 = vsel %vm4111, %v510, %v6182
        %v6476 = vsel %vm4111, %v513, %v6184
        %v6477 = vsel %vm4111, %v518, %v6186
        %v6478 = vsel %vm4111, %v521, %v6188
        %v6479 = vsel %vm4111, %v526, %v6190
        %v6480 = vsel %vm4111, %v529, %v6192
        %v6481 = vsel %vm1562, %v6449, %v6226
        %v6482 = vsel %vm1562, %v6450, %v6228
        %v6483 = vsel %vm1562, %v6451, %v6230
        %v6484 = vsel %vm1562, %v6452, %v6232
        %v6485 = vsel %vm1562, %v6453, %v6234
        %v6486 = vsel %vm1562, %v6454, %v6236
        %v6487 = vsel %vm1562, %v6455, %v6238
        %v6488 = vsel %vm1562, %v6456, %v6240
        %v6489 = vsel %vm1562, %v6457, %v6242
        %v6490 = vsel %vm1562, %v6458, %v6244
        %v6491 = vsel %vm1562, %v6459, %v6246
        %v6492 = vsel %vm1562, %v6460, %v6248
        %v6493 = vsel %vm1562, %v6461, %v6250
        %v6494 = vsel %vm1562, %v6462, %v6252
        %v6495 = vsel %vm1562, %v6463, %v6254
        %v6496 = vsel %vm1562, %v6464, %v6256
        %v6497 = vsel %vm1562, %v6465, %v6258
        %v6498 = vsel %vm1562, %v6466, %v6260
        %v6499 = vsel %vm1562, %v6467, %v6262
        %v6500 = vsel %vm1562, %v6468, %v6264
        %v6501 = vsel %vm1562, %v6469, %v6266
        %v6502 = vsel %vm1562, %v6470, %v6268
        %v6503 = vsel %vm1562, %v6471, %v6270
        %v6504 = vsel %vm1562, %v6472, %v6272
        %v6505 = vsel %vm1562, %v6473, %v6274
        %v6506 = vsel %vm1562, %v6474, %v6276
        %v6507 = vsel %vm1562, %v6475, %v6278
        %v6508 = vsel %vm1562, %v6476, %v6280
        %v6509 = vsel %vm1562, %v6477, %v6282
        %v6510 = vsel %vm1562, %v6478, %v6284
        %v6511 = vsel %vm1562, %v6479, %v6286
        %v6512 = vsel %vm1562, %v6480, %v6288
        %vm6513 = vcmask 785408
        %v6514 = vsel %vm6513, %v6481, %v6354
        %v6515 = vsel %vm6513, %v6482, %v6356
        %v6516 = vsel %vm6513, %v6483, %v6358
        %v6517 = vsel %vm6513, %v6484, %v6360
        %v6518 = vsel %vm6513, %v6485, %v6362
        %v6519 = vsel %vm6513, %v6486, %v6364
        %v6520 = vsel %vm6513, %v6487, %v6366
        %v6521 = vsel %vm6513, %v6488, %v6368
        %v6522 = vsel %vm6513, %v6489, %v6370
        %v6523 = vsel %vm6513, %v6490, %v6372
        %v6524 = vsel %vm6513, %v6491, %v6374
        %v6525 = vsel %vm6513, %v6492, %v6376
        %v6526 = vsel %vm6513, %v6493, %v6378
        %v6527 = vsel %vm6513, %v6494, %v6380
        %v6528 = vsel %vm6513, %v6495, %v6382
        %v6529 = vsel %vm6513, %v6496, %v6384
        %v6530 = vsel %vm6513, %v6497, %v6386
        %v6531 = vsel %vm6513, %v6498, %v6388
        %v6532 = vsel %vm6513, %v6499, %v6390
        %v6533 = vsel %vm6513, %v6500, %v6392
        %v6534 = vsel %vm6513, %v6501, %v6394
        %v6535 = vsel %vm6513, %v6502, %v6396
        %v6536 = vsel %vm6513, %v6503, %v6398
        %v6537 = vsel %vm6513, %v6504, %v6400
        %v6538 = vsel %vm6513, %v6505, %v6402
        %v6539 = vsel %vm6513, %v6506, %v6404
        %v6540 = vsel %vm6513, %v6507, %v6406
        %v6541 = vsel %vm6513, %v6508, %v6408
        %v6542 = vsel %vm6513, %v6509, %v6410
        %v6543 = vsel %vm6513, %v6510, %v6412
        %v6544 = vsel %vm6513, %v6511, %v6414
        %v6545 = vsel %vm6513, %v6512, %v6416
        %6546 = vst [vmem:[%s244] sm:$0xff] %v6514
        %6547 = vst [vmem:[%s244 + $0x8] sm:$0xff] %v6515
        %6548 = vst [vmem:[%s244 + $0x10] sm:$0xff] %v6516
        %6549 = vst [vmem:[%s244 + $0x18] sm:$0xff] %v6517
        %6550 = vst [vmem:[%s244 + $0x20] sm:$0xff] %v6518
        %6551 = vst [vmem:[%s244 + $0x28] sm:$0xff] %v6519
        %6552 = vst [vmem:[%s244 + $0x30] sm:$0xff] %v6520
        %6553 = vst [vmem:[%s244 + $0x38] sm:$0xff] %v6521
        %6554 = vst [vmem:[%s244 + $0x40] sm:$0xff] %v6522
        %6555 = vst [vmem:[%s244 + $0x48] sm:$0xff] %v6523
        %6556 = vst [vmem:[%s244 + $0x50] sm:$0xff] %v6524
        %6557 = vst [vmem:[%s244 + $0x58] sm:$0xff] %v6525
        %6558 = vst [vmem:[%s244 + $0x60] sm:$0xff] %v6526
        %6559 = vst [vmem:[%s244 + $0x68] sm:$0xff] %v6527
        %6560 = vst [vmem:[%s244 + $0x70] sm:$0xff] %v6528
        %6561 = vst [vmem:[%s244 + $0x78] sm:$0xff] %v6529
        %6562 = vst [vmem:[%s244 + $0x80] sm:$0xff] %v6530
        %6563 = vst [vmem:[%s244 + $0x88] sm:$0xff] %v6531
        %6564 = vst [vmem:[%s244 + $0x90] sm:$0xff] %v6532
        %6565 = vst [vmem:[%s244 + $0x98] sm:$0xff] %v6533
        %6566 = vst [vmem:[%s244 + $0xa0] sm:$0xff] %v6534
        %6567 = vst [vmem:[%s244 + $0xa8] sm:$0xff] %v6535
        %6568 = vst [vmem:[%s244 + $0xb0] sm:$0xff] %v6536
        %6569 = vst [vmem:[%s244 + $0xb8] sm:$0xff] %v6537
        %6570 = vst [vmem:[%s244 + $0xc0] sm:$0xff] %v6538
        %6571 = vst [vmem:[%s244 + $0xc8] sm:$0xff] %v6539
        %6572 = vst [vmem:[%s244 + $0xd0] sm:$0xff] %v6540
        %6573 = vst [vmem:[%s244 + $0xd8] sm:$0xff] %v6541
        %6574 = vst [vmem:[%s244 + $0xe0] sm:$0xff] %v6542
        %6575 = vst [vmem:[%s244 + $0xe8] sm:$0xff] %v6543
        %6576 = vst [vmem:[%s244 + $0xf0] sm:$0xff] %v6544
        %6577 = vst [vmem:[%s244 + $0xf8] sm:$0xff] %v6545
        %s6578 = sand.u32 %s159, 1
        %s6579 = scalar_lea.sflag [#allocation3], %s6578
        %s6580 = sand.u32 %s159, 1
        %s6581 = smul.addr %s6580, 256
        %s6582 = scalar_lea.vmem [#allocation2], %s6581
        // Predicated region
        $region45: #{inception_forward.1} parent=43 // pred_check
          %p6583 = pneg %p169
        $region46: #{inception_forward.1} parent=43 // pred_check_branch
          %6585 = sbr.rel (%p6583) target = $region48
        $region47: #{inception_forward.1} parent=43 // pred_region
          %s6587 = ssub.s32 4096, 4096
          %6588 = vsyncadd %s6579, %s6587
          %s6589 = smul.addr %s20, 32
          %s6590 = smul.addr %s6589, 128
          %s6591 = scalar_lea.hbm %s6, %s6590
          %s6592 = sshll.u32 %s6582, 4
          %s6593 = int_to_ptr.vmem [resolvable:$true] %s6592
          %6598 = dma.vmem_to_hbm [thread:$0]  %s6593, 4096, %s6591, %s6579, 128, 128, 8
        $region48: #{inception_forward.1} parent=43 // pred_fallthru
          _
      $region44: #{inception_forward.1} parent=5 // pred_fallthru
        _
      %p6599 = scmp.le.s32.totalorder 2, %s15
      // Predicated region
      $region49: #{inception_forward.1} parent=5 // pred_check
        %p6600 = pneg %p6599
      $region50: #{inception_forward.1} parent=5 // pred_check_branch
        %6602 = sbr.rel (%p6600) target = $region52
      $region51: #{inception_forward.1} parent=5 // pred_region
        %s6603 = ssub.s32 %s15, 2
        // Predicated region
        $region53: #{inception_forward.1} parent=51 // pred_check
          %p6604 = pneg %p175
        $region54: #{inception_forward.1} parent=51 // pred_check_branch
          %6606 = sbr.rel (%p6604) target = $region56
        $region55: #{inception_forward.1} parent=51 // pred_region
          %s6607 = sand.u32 %s160, 1
          %s6608 = scalar_lea.sflag [#allocation3], %s6607
          %s6609 = sand.u32 %s160, 1
          %s6610 = smul.addr %s6609, 256
          %s6611 = scalar_lea.vmem [#allocation2], %s6610
          %6612 = dma.done %s6608, 4096
        $region56: #{inception_forward.1} parent=51 // pred_fallthru
          _
      $region52: #{inception_forward.1} parent=5 // pred_fallthru
        _
    $region6: #{inception_forward.1} parent=1 // loop_footer
      %s19 = sadd.s32 1, %s15
    $region7: #{inception_forward.1} parent=1 // loop_footer_branch
      %14 = sbr.rel target = $region3
    $region8: #{inception_forward.1} parent=1 // loop_exit
      _
    %6613 = vsyncpa [#allocation3], 1
    %s6614 = scalar_lea.sflag [#allocation3], 1
    %6615 = vsyncpa %s6614, 1

</llo_original>
